<compile_context>
chip_gen: v5e
topology: v5e:2x2
jax: 0.10.0
libtpu: 0.0.40
codegen_flags: <defaults>
</compile_context>

<pallas_src>
import functools

import jax
import jax.numpy as jnp
from jax.experimental import pallas as pl
from jax.experimental.pallas import tpu as pltpu


BLOCK_COUNT = 5
CHANNEL_STEP = 48


# ----------------------------------------------------------------------------
# Fused kernel: entire encoder / bottleneck / decoder stack on one halo'd
# (TL + 2*halo, C) window kept in VMEM.
# ----------------------------------------------------------------------------
def _fused_kernel(*refs, tl, halo, seq_len, block_count):
    win = tl + 2 * halo
    it = iter(refs)
    xc_ref = next(it)            # (1, tl, Cin)       center tile
    lh_ref = next(it)            # (1, 1, halo, Cin)  left halo rows (zeroed OOB)
    rh_ref = next(it)            # (1, 1, halo, Cin)  right halo rows (zeroed OOB)
    enc = [(next(it), next(it)) for _ in range(block_count)]
    bott = [(next(it), next(it)) for _ in range(2)]
    dec = [(next(it), next(it), next(it)) for _ in range(block_count)]
    wf_ref = next(it)
    bf_ref = next(it)
    o_ref = next(it)             # (1, tl, Cin)

    # Window-row validity: positions outside [0, seq_len) must stay exactly zero
    # after every layer so the next conv sees true zero padding at sequence ends.
    t = pl.program_id(1)
    pos = t * tl - halo + jax.lax.broadcasted_iota(jnp.int32, (win, 1), 0)
    valid = jnp.logical_and(pos >= 0, pos < seq_len)

    cdt = xc_ref.dtype
    x0 = jnp.concatenate([lh_ref[0, 0], xc_ref[0], rh_ref[0, 0]], axis=0)  # (win, Cin)

    def conv(streams, b_ref, relu):
        # streams: list of (x_window (win, Ci), w_ref (3, Ci, Cout)); shared bias.
        cout = streams[0][1].shape[-1]
        acc = jnp.zeros((win, cout), jnp.float32)
        for xw, w_ref in streams:
            z = jnp.zeros((1, xw.shape[1]), xw.dtype)
            xp = jnp.concatenate([z, xw[: win - 1]], axis=0)   # row l -> x[l-1]
            xn = jnp.concatenate([xw[1:], z], axis=0)          # row l -> x[l+1]
            acc = acc + jnp.dot(xp, w_ref[0], preferred_element_type=jnp.float32)
            acc = acc + jnp.dot(xw, w_ref[1], preferred_element_type=jnp.float32)
            acc = acc + jnp.dot(xn, w_ref[2], preferred_element_type=jnp.float32)
        acc = acc + b_ref[...]                                  # (1, cout) f32 bias
        if relu:
            acc = jnp.maximum(acc, 0.0)
            acc = jnp.where(valid, acc, 0.0)
        return acc

    # Encoder (skip features stay resident in VMEM).
    feats = [x0]
    h = x0
    for w_ref, b_ref in enc:
        h = conv([(h, w_ref)], b_ref, True).astype(cdt)
        feats.append(h)

    # Bottleneck (encoder-decoder variant).
    for w_ref, b_ref in bott:
        h = conv([(h, w_ref)], b_ref, True).astype(cdt)

    # Decoder: split-weight two-stream convs instead of channel concat.
    for i, (wh_ref, ws_ref, b_ref) in enumerate(dec):
        skip = feats[block_count - 1 - i]
        h = conv([(h, wh_ref), (skip, ws_ref)], b_ref, True).astype(cdt)

    y = conv([(h, wf_ref)], bf_ref, False)                      # final linear conv
    o_ref[0] = y[halo:halo + tl, :].astype(o_ref.dtype)         # central (valid) rows


# ----------------------------------------------------------------------------
# Wrapper
# ----------------------------------------------------------------------------
def _pick_tile(length, tile_l=None):
    if tile_l is not None:
        assert length % tile_l == 0, (length, tile_l)
        return tile_l
    for cand in (512, 256, 1024, 128, 64, 32, 16, 8):
        if length % cand == 0:
            return cand
    return length


def ricbe_encoder_decoder_pair_forward(
    x_ncl, params, *, compute_dtype=jnp.bfloat16, tile_l=None
):
    """x_ncl: (B, channels_input, L) — PyTorch Conv1d layout."""
    B, c_in, L = x_ncl.shape
    block_count = len(params["encoder"])
    depth = block_count + len(params["bottleneck"]) + block_count + 1   # = 13
    halo = ((depth + 7) // 8) * 8                                       # 16 (sublane aligned)
    tl = _pick_tile(L, tile_l)
    nt = L // tl

    x = jnp.transpose(x_ncl, (0, 2, 1)).astype(compute_dtype)          # (B, L, Cin)

    # Tiny halo-row gathers (replace the per-layer full-activation jnp.pad).
    base = jnp.arange(nt, dtype=jnp.int32)[:, None] * tl
    off = jnp.arange(halo, dtype=jnp.int32)[None, :]

    def gather_halo(pos):
        g = jnp.take(x, jnp.clip(pos, 0, L - 1), axis=1)               # (B, nt, halo, Cin)
        m = ((pos >= 0) & (pos < L))[None, :, :, None]
        return jnp.where(m, g, jnp.zeros_like(g))

    lh = gather_halo(base - halo + off)
    rh = gather_halo(base + tl + off)

    inputs = [x, lh, rh]
    in_specs = [
        pl.BlockSpec((1, tl, c_in), lambda b, t: (b, t, 0)),
        pl.BlockSpec((1, 1, halo, c_in), lambda b, t: (b, t, 0, 0)),
        pl.BlockSpec((1, 1, halo, c_in), lambda b, t: (b, t, 0, 0)),
    ]

    def add(arr):
        inputs.append(arr)
        zeros = (0,) * arr.ndim
        in_specs.append(pl.BlockSpec(arr.shape, lambda b, t, z=zeros: z))

    def add_wb(wt, bs):
        add(wt.astype(compute_dtype))
        add(bs.reshape(1, -1).astype(jnp.float32))

    for wt, bs in params["encoder"]:
        add_wb(wt, bs)
    for wt, bs in params["bottleneck"]:
        add_wb(wt, bs)
    for wt, bs in params["decoder_blocks"]:
        cout = wt.shape[2]
        ch = wt.shape[1] - cout                  # h-stream channels; skip-stream = cout
        add(wt[:, :ch, :].astype(compute_dtype))     # W_h
        add(wt[:, ch:, :].astype(compute_dtype))     # W_skip
        add(bs.reshape(1, -1).astype(jnp.float32))
    wf, bf = params["decoder_final"]
    add_wb(wf, bf)

    kernel = functools.partial(
        _fused_kernel, tl=tl, halo=halo, seq_len=L, block_count=block_count
    )
    y = pl.pallas_call(
        kernel,
        out_shape=jax.ShapeDtypeStruct((B, L, c_in), x_ncl.dtype),
        grid=(B, nt),
        in_specs=in_specs,
        out_specs=pl.BlockSpec((1, tl, c_in), lambda b, t: (b, t, 0)),
        compiler_params=pltpu.CompilerParams(
            dimension_semantics=("parallel", "parallel"),
            vmem_limit_bytes=64 * 1024 * 1024,
        ),
    )(*inputs)
    return jnp.transpose(y, (0, 2, 1))           # back to NCL


# ----------------------------------------------------------------------------
# Deterministic parameter construction (matches the __init__ channel plan).
# ----------------------------------------------------------------------------
def _init_conv(key, cin, cout, k=3):
    wkey, bkey = jax.random.split(key)
    scale = 1.0 / jnp.sqrt(jnp.float32(cin * k))
    w = jax.random.normal(wkey, (k, cin, cout), jnp.float32) * scale
    b = jax.random.normal(bkey, (cout,), jnp.float32) * 0.01
    return w, b


def make_params(channels_input: int, key):
    keys = iter(jax.random.split(key, 2 * BLOCK_COUNT + 3))
    enc, enc_ch = [], [channels_input]
    c = channels_input
    for _ in range(BLOCK_COUNT):
        c_out = c + CHANNEL_STEP
        enc.append(_init_conv(next(keys), c, c_out))
        c = c_out
        enc_ch.append(c)
    bottleneck_channels = BLOCK_COUNT * CHANNEL_STEP + channels_input
    assert c == bottleneck_channels

    bott = [
        _init_conv(next(keys), bottleneck_channels, bottleneck_channels),
        _init_conv(next(keys), bottleneck_channels, bottleneck_channels),
    ]

    dec = []
    c = bottleneck_channels
    for i in range(BLOCK_COUNT):
        skip_c = enc_ch[BLOCK_COUNT - 1 - i]
        dec.append(_init_conv(next(keys), c + skip_c, skip_c))
        c = skip_c
    dec_final = _init_conv(next(keys), channels_input, channels_input)

    return {
        "encoder": enc,
        "bottleneck": bott,
        "decoder_blocks": dec,
        "decoder_final": dec_final,
    }


# ----------------------------------------------------------------------------
# Pure-JAX reference (f32) for validating the fused/tiled kernel.
# ----------------------------------------------------------------------------
def _reference_forward(x_ncl, params):
    x = jnp.transpose(x_ncl, (0, 2, 1)).astype(jnp.float32)

    def conv(h, w, b, relu):
        lh = h.shape[1]
        hp = jnp.pad(h, ((0, 0), (1, 1), (0, 0)))
        acc = jnp.zeros(h.shape[:2] + (w.shape[2],), jnp.float32)
        for k in range(3):
            acc = acc + jnp.einsum(
                "blc,cd->bld", hp[:, k:k + lh, :], w[k].astype(jnp.float32),
                precision=jax.lax.Precision.HIGHEST,
            )
        acc = acc + b.astype(jnp.float32)
        return jnp.maximum(acc, 0.0) if relu else acc

    feats = [x]
    h = x
    for w, b in params["encoder"]:
        h = conv(h, w, b, True)
        feats.append(h)
    for w, b in params["bottleneck"]:
        h = conv(h, w, b, True)
    n = len(params["decoder_blocks"])
    for i, (w, b) in enumerate(params["decoder_blocks"]):
        skip = feats[n - 1 - i]
        h = conv(jnp.concatenate([h, skip], axis=-1), w, b, True)
    wf, bf = params["decoder_final"]
    h = conv(h, wf, bf, False)
    return jnp.transpose(h, (0, 2, 1))


if __name__ == "__main__":
    channels_input = 4
    batch, length = 2, 16

    key = jax.random.PRNGKey(0)
    xkey, pkey = jax.random.split(key)
    x = jax.random.normal(xkey, (batch, channels_input, length), jnp.float32)
    params = make_params(channels_input, pkey)

    # Main (performance) path: bf16 storage, f32 accumulation, fused kernel.
    fwd = jax.jit(lambda xx, pp: ricbe_encoder_decoder_pair_forward(xx, pp))
    out = jax.block_until_ready(fwd(x, params))
    assert out.shape == (batch, channels_input, length), out.shape

    # Correctness validation: f32 compute, forced multi-tile (tile_l=8) to
    # exercise the halo/tiling logic, compared against a pure-JAX reference.
    out_f32 = jax.block_until_ready(
        ricbe_encoder_decoder_pair_forward(
            x, params, compute_dtype=jnp.float32, tile_l=8
        )
    )
    ref = _reference_forward(x, params)
    err = float(jnp.max(jnp.abs(out_f32 - ref)))
    scale = float(jnp.max(jnp.abs(ref)))
    assert err <= 5e-2 * (1.0 + scale), f"max abs err {err} (ref scale {scale})"

    print("KERNEL_OK")
</pallas_src>

<mosaic_0001>
module attributes {stable_mosaic.version = 11 : i64} {
  func.func @_fused_kernel(%arg0: i32, %arg1: i32, %arg2: memref<1x16x4xbf16, #tpu.memory_space<vmem>>, %arg3: memref<1x1x16x4xbf16, #tpu.memory_space<vmem>>, %arg4: memref<1x1x16x4xbf16, #tpu.memory_space<vmem>>, %arg5: memref<3x4x52xbf16, #tpu.memory_space<vmem>>, %arg6: memref<1x52xf32, #tpu.memory_space<vmem>>, %arg7: memref<3x52x100xbf16, #tpu.memory_space<vmem>>, %arg8: memref<1x100xf32, #tpu.memory_space<vmem>>, %arg9: memref<3x100x148xbf16, #tpu.memory_space<vmem>>, %arg10: memref<1x148xf32, #tpu.memory_space<vmem>>, %arg11: memref<3x148x196xbf16, #tpu.memory_space<vmem>>, %arg12: memref<1x196xf32, #tpu.memory_space<vmem>>, %arg13: memref<3x196x244xbf16, #tpu.memory_space<vmem>>, %arg14: memref<1x244xf32, #tpu.memory_space<vmem>>, %arg15: memref<3x244x244xbf16, #tpu.memory_space<vmem>>, %arg16: memref<1x244xf32, #tpu.memory_space<vmem>>, %arg17: memref<3x244x244xbf16, #tpu.memory_space<vmem>>, %arg18: memref<1x244xf32, #tpu.memory_space<vmem>>, %arg19: memref<3x244x196xbf16, #tpu.memory_space<vmem>>, %arg20: memref<3x196x196xbf16, #tpu.memory_space<vmem>>, %arg21: memref<1x196xf32, #tpu.memory_space<vmem>>, %arg22: memref<3x196x148xbf16, #tpu.memory_space<vmem>>, %arg23: memref<3x148x148xbf16, #tpu.memory_space<vmem>>, %arg24: memref<1x148xf32, #tpu.memory_space<vmem>>, %arg25: memref<3x148x100xbf16, #tpu.memory_space<vmem>>, %arg26: memref<3x100x100xbf16, #tpu.memory_space<vmem>>, %arg27: memref<1x100xf32, #tpu.memory_space<vmem>>, %arg28: memref<3x100x52xbf16, #tpu.memory_space<vmem>>, %arg29: memref<3x52x52xbf16, #tpu.memory_space<vmem>>, %arg30: memref<1x52xf32, #tpu.memory_space<vmem>>, %arg31: memref<3x52x4xbf16, #tpu.memory_space<vmem>>, %arg32: memref<3x4x4xbf16, #tpu.memory_space<vmem>>, %arg33: memref<1x4xf32, #tpu.memory_space<vmem>>, %arg34: memref<3x4x4xbf16, #tpu.memory_space<vmem>>, %arg35: memref<1x4xf32, #tpu.memory_space<vmem>>, %arg36: memref<1x16x4xf32, #tpu.memory_space<vmem>>) attributes {dimension_semantics = [#tpu.dimension_semantics<parallel>, #tpu.dimension_semantics<parallel>], iteration_bounds = array<i64: 2, 1>, scalar_prefetch = 0 : i64, scratch_operands = 0 : i64, tpu.core_type = #tpu.core_type<tc>, window_params = [{transform_indices = @transform_0, window_bounds = array<i64: 1, 16, 4>}, {transform_indices = @transform_1, window_bounds = array<i64: 1, 1, 16, 4>}, {transform_indices = @transform_2, window_bounds = array<i64: 1, 1, 16, 4>}, {pipeline_mode = #tpu.pipeline_mode<synchronous>, transform_indices = @transform_3, window_bounds = array<i64: 3, 4, 52>}, {pipeline_mode = #tpu.pipeline_mode<synchronous>, transform_indices = @transform_4, window_bounds = array<i64: 1, 52>}, {pipeline_mode = #tpu.pipeline_mode<synchronous>, transform_indices = @transform_5, window_bounds = array<i64: 3, 52, 100>}, {pipeline_mode = #tpu.pipeline_mode<synchronous>, transform_indices = @transform_6, window_bounds = array<i64: 1, 100>}, {pipeline_mode = #tpu.pipeline_mode<synchronous>, transform_indices = @transform_7, window_bounds = array<i64: 3, 100, 148>}, {pipeline_mode = #tpu.pipeline_mode<synchronous>, transform_indices = @transform_8, window_bounds = array<i64: 1, 148>}, {pipeline_mode = #tpu.pipeline_mode<synchronous>, transform_indices = @transform_9, window_bounds = array<i64: 3, 148, 196>}, {pipeline_mode = #tpu.pipeline_mode<synchronous>, transform_indices = @transform_10, window_bounds = array<i64: 1, 196>}, {pipeline_mode = #tpu.pipeline_mode<synchronous>, transform_indices = @transform_11, window_bounds = array<i64: 3, 196, 244>}, {pipeline_mode = #tpu.pipeline_mode<synchronous>, transform_indices = @transform_12, window_bounds = array<i64: 1, 244>}, {pipeline_mode = #tpu.pipeline_mode<synchronous>, transform_indices = @transform_13, window_bounds = array<i64: 3, 244, 244>}, {pipeline_mode = #tpu.pipeline_mode<synchronous>, transform_indices = @transform_14, window_bounds = array<i64: 1, 244>}, {pipeline_mode = #tpu.pipeline_mode<synchronous>, transform_indices = @transform_15, window_bounds = array<i64: 3, 244, 244>}, {pipeline_mode = #tpu.pipeline_mode<synchronous>, transform_indices = @transform_16, window_bounds = array<i64: 1, 244>}, {pipeline_mode = #tpu.pipeline_mode<synchronous>, transform_indices = @transform_17, window_bounds = array<i64: 3, 244, 196>}, {pipeline_mode = #tpu.pipeline_mode<synchronous>, transform_indices = @transform_18, window_bounds = array<i64: 3, 196, 196>}, {pipeline_mode = #tpu.pipeline_mode<synchronous>, transform_indices = @transform_19, window_bounds = array<i64: 1, 196>}, {pipeline_mode = #tpu.pipeline_mode<synchronous>, transform_indices = @transform_20, window_bounds = array<i64: 3, 196, 148>}, {pipeline_mode = #tpu.pipeline_mode<synchronous>, transform_indices = @transform_21, window_bounds = array<i64: 3, 148, 148>}, {pipeline_mode = #tpu.pipeline_mode<synchronous>, transform_indices = @transform_22, window_bounds = array<i64: 1, 148>}, {pipeline_mode = #tpu.pipeline_mode<synchronous>, transform_indices = @transform_23, window_bounds = array<i64: 3, 148, 100>}, {pipeline_mode = #tpu.pipeline_mode<synchronous>, transform_indices = @transform_24, window_bounds = array<i64: 3, 100, 100>}, {pipeline_mode = #tpu.pipeline_mode<synchronous>, transform_indices = @transform_25, window_bounds = array<i64: 1, 100>}, {pipeline_mode = #tpu.pipeline_mode<synchronous>, transform_indices = @transform_26, window_bounds = array<i64: 3, 100, 52>}, {pipeline_mode = #tpu.pipeline_mode<synchronous>, transform_indices = @transform_27, window_bounds = array<i64: 3, 52, 52>}, {pipeline_mode = #tpu.pipeline_mode<synchronous>, transform_indices = @transform_28, window_bounds = array<i64: 1, 52>}, {pipeline_mode = #tpu.pipeline_mode<synchronous>, transform_indices = @transform_29, window_bounds = array<i64: 3, 52, 4>}, {pipeline_mode = #tpu.pipeline_mode<synchronous>, transform_indices = @transform_30, window_bounds = array<i64: 3, 4, 4>}, {pipeline_mode = #tpu.pipeline_mode<synchronous>, transform_indices = @transform_31, window_bounds = array<i64: 1, 4>}, {pipeline_mode = #tpu.pipeline_mode<synchronous>, transform_indices = @transform_32, window_bounds = array<i64: 3, 4, 4>}, {pipeline_mode = #tpu.pipeline_mode<synchronous>, transform_indices = @transform_33, window_bounds = array<i64: 1, 4>}, {transform_indices = @transform_34, window_bounds = array<i64: 1, 16, 4>}]} {
    %c16_i32 = arith.constant 16 : i32
    %0 = arith.muli %arg1, %c16_i32 : i32
    %c16_i32_0 = arith.constant 16 : i32
    %1 = arith.subi %0, %c16_i32_0 : i32
    %2 = tpu.iota {dimensions = array<i32: 0>} : vector<48x1xi32>
    %3 = vector.broadcast %1 : i32 to vector<48x1xi32>
    %4 = arith.addi %3, %2 : vector<48x1xi32>
    %c0_i32 = arith.constant 0 : i32
    %5 = vector.broadcast %c0_i32 : i32 to vector<48x1xi32>
    %6 = arith.cmpi sge, %4, %5 : vector<48x1xi32>
    %c16_i32_1 = arith.constant 16 : i32
    %7 = vector.broadcast %c16_i32_1 : i32 to vector<48x1xi32>
    %8 = arith.cmpi slt, %4, %7 : vector<48x1xi32>
    %9 = arith.andi %6, %8 : vector<48x1xi1>
    %c0 = arith.constant 0 : index
    %c0_2 = arith.constant 0 : index
    %c0_3 = arith.constant 0 : index
    %c0_4 = arith.constant 0 : index
    %10 = vector.load %arg3[%c0, %c0_2, %c0_3, %c0_4] : memref<1x1x16x4xbf16, #tpu.memory_space<vmem>>, vector<1x1x16x4xbf16>
    %11 = vector.shape_cast %10 : vector<1x1x16x4xbf16> to vector<16x4xbf16>
    %c0_5 = arith.constant 0 : index
    %c0_6 = arith.constant 0 : index
    %c0_7 = arith.constant 0 : index
    %12 = vector.load %arg2[%c0_5, %c0_6, %c0_7] : memref<1x16x4xbf16, #tpu.memory_space<vmem>>, vector<1x16x4xbf16>
    %13 = vector.shape_cast %12 : vector<1x16x4xbf16> to vector<16x4xbf16>
    %c0_8 = arith.constant 0 : index
    %c0_9 = arith.constant 0 : index
    %c0_10 = arith.constant 0 : index
    %c0_11 = arith.constant 0 : index
    %14 = vector.load %arg4[%c0_8, %c0_9, %c0_10, %c0_11] : memref<1x1x16x4xbf16, #tpu.memory_space<vmem>>, vector<1x1x16x4xbf16>
    %15 = vector.shape_cast %14 : vector<1x1x16x4xbf16> to vector<16x4xbf16>
    %16 = tpu.concatenate %11, %13, %15 in 0 : vector<16x4xbf16>, vector<16x4xbf16>, vector<16x4xbf16> -> vector<48x4xbf16>
    %cst = arith.constant 0.000000e+00 : f32
    %17 = vector.broadcast %cst : f32 to vector<48x52xf32>
    %cst_12 = arith.constant 0.000000e+00 : bf16
    %18 = vector.broadcast %cst_12 : bf16 to vector<1x4xbf16>
    %19 = vector.extract_strided_slice %16 {offsets = [0, 0], sizes = [47, 4], strides = [1, 1]} : vector<48x4xbf16> to vector<47x4xbf16>
    %20 = tpu.concatenate %18, %19 in 0 : vector<1x4xbf16>, vector<47x4xbf16> -> vector<48x4xbf16>
    %21 = vector.extract_strided_slice %16 {offsets = [1, 0], sizes = [47, 4], strides = [1, 1]} : vector<48x4xbf16> to vector<47x4xbf16>
    %22 = tpu.concatenate %21, %18 in 0 : vector<47x4xbf16>, vector<1x4xbf16> -> vector<48x4xbf16>
    %c0_13 = arith.constant 0 : index
    %c0_14 = arith.constant 0 : index
    %c0_15 = arith.constant 0 : index
    %23 = vector.load %arg5[%c0_13, %c0_14, %c0_15] : memref<3x4x52xbf16, #tpu.memory_space<vmem>>, vector<1x4x52xbf16>
    %24 = vector.shape_cast %23 : vector<1x4x52xbf16> to vector<4x52xbf16>
    %cst_16 = arith.constant dense<0.000000e+00> : vector<48x52xf32>
    %25 = tpu.matmul %20, %24, %cst_16 {dimension_numbers = #tpu.dot_dimension_numbers<[1], [0], [0], [1], [0, 0, 1, 1], [], []>} : vector<48x4xbf16>, vector<4x52xbf16>, vector<48x52xf32> -> vector<48x52xf32>
    %26 = arith.addf %17, %25 : vector<48x52xf32>
    %c1 = arith.constant 1 : index
    %c0_17 = arith.constant 0 : index
    %c0_18 = arith.constant 0 : index
    %27 = vector.load %arg5[%c1, %c0_17, %c0_18] : memref<3x4x52xbf16, #tpu.memory_space<vmem>>, vector<1x4x52xbf16>
    %28 = vector.shape_cast %27 : vector<1x4x52xbf16> to vector<4x52xbf16>
    %cst_19 = arith.constant dense<0.000000e+00> : vector<48x52xf32>
    %29 = tpu.matmul %16, %28, %cst_19 {dimension_numbers = #tpu.dot_dimension_numbers<[1], [0], [0], [1], [0, 0, 1, 1], [], []>} : vector<48x4xbf16>, vector<4x52xbf16>, vector<48x52xf32> -> vector<48x52xf32>
    %30 = arith.addf %26, %29 : vector<48x52xf32>
    %c2 = arith.constant 2 : index
    %c0_20 = arith.constant 0 : index
    %c0_21 = arith.constant 0 : index
    %31 = vector.load %arg5[%c2, %c0_20, %c0_21] : memref<3x4x52xbf16, #tpu.memory_space<vmem>>, vector<1x4x52xbf16>
    %32 = vector.shape_cast %31 : vector<1x4x52xbf16> to vector<4x52xbf16>
    %cst_22 = arith.constant dense<0.000000e+00> : vector<48x52xf32>
    %33 = tpu.matmul %22, %32, %cst_22 {dimension_numbers = #tpu.dot_dimension_numbers<[1], [0], [0], [1], [0, 0, 1, 1], [], []>} : vector<48x4xbf16>, vector<4x52xbf16>, vector<48x52xf32> -> vector<48x52xf32>
    %34 = arith.addf %30, %33 : vector<48x52xf32>
    %c0_23 = arith.constant 0 : index
    %c0_24 = arith.constant 0 : index
    %35 = vector.load %arg6[%c0_23, %c0_24] : memref<1x52xf32, #tpu.memory_space<vmem>>, vector<1x52xf32>
    %36 = vector.broadcast %35 : vector<1x52xf32> to vector<48x52xf32>
    %37 = arith.addf %34, %36 : vector<48x52xf32>
    %cst_25 = arith.constant 0.000000e+00 : f32
    %38 = vector.broadcast %cst_25 : f32 to vector<48x52xf32>
    %39 = arith.maximumf %37, %38 : vector<48x52xf32>
    %cst_26 = arith.constant 0.000000e+00 : f32
    %40 = vector.shape_cast %9 : vector<48x1xi1> to vector<48x1xi1>
    %41 = vector.broadcast %40 : vector<48x1xi1> to vector<48x52xi1>
    %42 = vector.broadcast %cst_26 : f32 to vector<48x52xf32>
    %43 = arith.select %41, %39, %42 : vector<48x52xi1>, vector<48x52xf32>
    %44 = arith.truncf %43 : vector<48x52xf32> to vector<48x52xbf16>
    %cst_27 = arith.constant 0.000000e+00 : f32
    %45 = vector.broadcast %cst_27 : f32 to vector<48x100xf32>
    %cst_28 = arith.constant 0.000000e+00 : bf16
    %46 = vector.broadcast %cst_28 : bf16 to vector<1x52xbf16>
    %47 = vector.extract_strided_slice %44 {offsets = [0, 0], sizes = [47, 52], strides = [1, 1]} : vector<48x52xbf16> to vector<47x52xbf16>
    %48 = tpu.concatenate %46, %47 in 0 : vector<1x52xbf16>, vector<47x52xbf16> -> vector<48x52xbf16>
    %49 = vector.extract_strided_slice %44 {offsets = [1, 0], sizes = [47, 52], strides = [1, 1]} : vector<48x52xbf16> to vector<47x52xbf16>
    %50 = tpu.concatenate %49, %46 in 0 : vector<47x52xbf16>, vector<1x52xbf16> -> vector<48x52xbf16>
    %c0_29 = arith.constant 0 : index
    %c0_30 = arith.constant 0 : index
    %c0_31 = arith.constant 0 : index
    %51 = vector.load %arg7[%c0_29, %c0_30, %c0_31] : memref<3x52x100xbf16, #tpu.memory_space<vmem>>, vector<1x52x100xbf16>
    %52 = vector.shape_cast %51 : vector<1x52x100xbf16> to vector<52x100xbf16>
    %cst_32 = arith.constant dense<0.000000e+00> : vector<48x100xf32>
    %53 = tpu.matmul %48, %52, %cst_32 {dimension_numbers = #tpu.dot_dimension_numbers<[1], [0], [0], [1], [0, 0, 1, 1], [], []>} : vector<48x52xbf16>, vector<52x100xbf16>, vector<48x100xf32> -> vector<48x100xf32>
    %54 = arith.addf %45, %53 : vector<48x100xf32>
    %c1_33 = arith.constant 1 : index
    %c0_34 = arith.constant 0 : index
    %c0_35 = arith.constant 0 : index
    %55 = vector.load %arg7[%c1_33, %c0_34, %c0_35] : memref<3x52x100xbf16, #tpu.memory_space<vmem>>, vector<1x52x100xbf16>
    %56 = vector.shape_cast %55 : vector<1x52x100xbf16> to vector<52x100xbf16>
    %cst_36 = arith.constant dense<0.000000e+00> : vector<48x100xf32>
    %57 = tpu.matmul %44, %56, %cst_36 {dimension_numbers = #tpu.dot_dimension_numbers<[1], [0], [0], [1], [0, 0, 1, 1], [], []>} : vector<48x52xbf16>, vector<52x100xbf16>, vector<48x100xf32> -> vector<48x100xf32>
    %58 = arith.addf %54, %57 : vector<48x100xf32>
    %c2_37 = arith.constant 2 : index
    %c0_38 = arith.constant 0 : index
    %c0_39 = arith.constant 0 : index
    %59 = vector.load %arg7[%c2_37, %c0_38, %c0_39] : memref<3x52x100xbf16, #tpu.memory_space<vmem>>, vector<1x52x100xbf16>
    %60 = vector.shape_cast %59 : vector<1x52x100xbf16> to vector<52x100xbf16>
    %cst_40 = arith.constant dense<0.000000e+00> : vector<48x100xf32>
    %61 = tpu.matmul %50, %60, %cst_40 {dimension_numbers = #tpu.dot_dimension_numbers<[1], [0], [0], [1], [0, 0, 1, 1], [], []>} : vector<48x52xbf16>, vector<52x100xbf16>, vector<48x100xf32> -> vector<48x100xf32>
    %62 = arith.addf %58, %61 : vector<48x100xf32>
    %c0_41 = arith.constant 0 : index
    %c0_42 = arith.constant 0 : index
    %63 = vector.load %arg8[%c0_41, %c0_42] : memref<1x100xf32, #tpu.memory_space<vmem>>, vector<1x100xf32>
    %64 = vector.broadcast %63 : vector<1x100xf32> to vector<48x100xf32>
    %65 = arith.addf %62, %64 : vector<48x100xf32>
    %cst_43 = arith.constant 0.000000e+00 : f32
    %66 = vector.broadcast %cst_43 : f32 to vector<48x100xf32>
    %67 = arith.maximumf %65, %66 : vector<48x100xf32>
    %cst_44 = arith.constant 0.000000e+00 : f32
    %68 = vector.shape_cast %9 : vector<48x1xi1> to vector<48x1xi1>
    %69 = vector.broadcast %68 : vector<48x1xi1> to vector<48x100xi1>
    %70 = vector.broadcast %cst_44 : f32 to vector<48x100xf32>
    %71 = arith.select %69, %67, %70 : vector<48x100xi1>, vector<48x100xf32>
    %72 = arith.truncf %71 : vector<48x100xf32> to vector<48x100xbf16>
    %cst_45 = arith.constant 0.000000e+00 : f32
    %73 = vector.broadcast %cst_45 : f32 to vector<48x148xf32>
    %cst_46 = arith.constant 0.000000e+00 : bf16
    %74 = vector.broadcast %cst_46 : bf16 to vector<1x100xbf16>
    %75 = vector.extract_strided_slice %72 {offsets = [0, 0], sizes = [47, 100], strides = [1, 1]} : vector<48x100xbf16> to vector<47x100xbf16>
    %76 = tpu.concatenate %74, %75 in 0 : vector<1x100xbf16>, vector<47x100xbf16> -> vector<48x100xbf16>
    %77 = vector.extract_strided_slice %72 {offsets = [1, 0], sizes = [47, 100], strides = [1, 1]} : vector<48x100xbf16> to vector<47x100xbf16>
    %78 = tpu.concatenate %77, %74 in 0 : vector<47x100xbf16>, vector<1x100xbf16> -> vector<48x100xbf16>
    %c0_47 = arith.constant 0 : index
    %c0_48 = arith.constant 0 : index
    %c0_49 = arith.constant 0 : index
    %79 = vector.load %arg9[%c0_47, %c0_48, %c0_49] : memref<3x100x148xbf16, #tpu.memory_space<vmem>>, vector<1x100x148xbf16>
    %80 = vector.shape_cast %79 : vector<1x100x148xbf16> to vector<100x148xbf16>
    %cst_50 = arith.constant dense<0.000000e+00> : vector<48x148xf32>
    %81 = tpu.matmul %76, %80, %cst_50 {dimension_numbers = #tpu.dot_dimension_numbers<[1], [0], [0], [1], [0, 0, 1, 1], [], []>} : vector<48x100xbf16>, vector<100x148xbf16>, vector<48x148xf32> -> vector<48x148xf32>
    %82 = arith.addf %73, %81 : vector<48x148xf32>
    %c1_51 = arith.constant 1 : index
    %c0_52 = arith.constant 0 : index
    %c0_53 = arith.constant 0 : index
    %83 = vector.load %arg9[%c1_51, %c0_52, %c0_53] : memref<3x100x148xbf16, #tpu.memory_space<vmem>>, vector<1x100x148xbf16>
    %84 = vector.shape_cast %83 : vector<1x100x148xbf16> to vector<100x148xbf16>
    %cst_54 = arith.constant dense<0.000000e+00> : vector<48x148xf32>
    %85 = tpu.matmul %72, %84, %cst_54 {dimension_numbers = #tpu.dot_dimension_numbers<[1], [0], [0], [1], [0, 0, 1, 1], [], []>} : vector<48x100xbf16>, vector<100x148xbf16>, vector<48x148xf32> -> vector<48x148xf32>
    %86 = arith.addf %82, %85 : vector<48x148xf32>
    %c2_55 = arith.constant 2 : index
    %c0_56 = arith.constant 0 : index
    %c0_57 = arith.constant 0 : index
    %87 = vector.load %arg9[%c2_55, %c0_56, %c0_57] : memref<3x100x148xbf16, #tpu.memory_space<vmem>>, vector<1x100x148xbf16>
    %88 = vector.shape_cast %87 : vector<1x100x148xbf16> to vector<100x148xbf16>
    %cst_58 = arith.constant dense<0.000000e+00> : vector<48x148xf32>
    %89 = tpu.matmul %78, %88, %cst_58 {dimension_numbers = #tpu.dot_dimension_numbers<[1], [0], [0], [1], [0, 0, 1, 1], [], []>} : vector<48x100xbf16>, vector<100x148xbf16>, vector<48x148xf32> -> vector<48x148xf32>
    %90 = arith.addf %86, %89 : vector<48x148xf32>
    %c0_59 = arith.constant 0 : index
    %c0_60 = arith.constant 0 : index
    %91 = vector.load %arg10[%c0_59, %c0_60] : memref<1x148xf32, #tpu.memory_space<vmem>>, vector<1x148xf32>
    %92 = vector.broadcast %91 : vector<1x148xf32> to vector<48x148xf32>
    %93 = arith.addf %90, %92 : vector<48x148xf32>
    %cst_61 = arith.constant 0.000000e+00 : f32
    %94 = vector.broadcast %cst_61 : f32 to vector<48x148xf32>
    %95 = arith.maximumf %93, %94 : vector<48x148xf32>
    %cst_62 = arith.constant 0.000000e+00 : f32
    %96 = vector.shape_cast %9 : vector<48x1xi1> to vector<48x1xi1>
    %97 = vector.broadcast %96 : vector<48x1xi1> to vector<48x148xi1>
    %98 = vector.broadcast %cst_62 : f32 to vector<48x148xf32>
    %99 = arith.select %97, %95, %98 : vector<48x148xi1>, vector<48x148xf32>
    %100 = arith.truncf %99 : vector<48x148xf32> to vector<48x148xbf16>
    %cst_63 = arith.constant 0.000000e+00 : f32
    %101 = vector.broadcast %cst_63 : f32 to vector<48x196xf32>
    %cst_64 = arith.constant 0.000000e+00 : bf16
    %102 = vector.broadcast %cst_64 : bf16 to vector<1x148xbf16>
    %103 = vector.extract_strided_slice %100 {offsets = [0, 0], sizes = [47, 148], strides = [1, 1]} : vector<48x148xbf16> to vector<47x148xbf16>
    %104 = tpu.concatenate %102, %103 in 0 : vector<1x148xbf16>, vector<47x148xbf16> -> vector<48x148xbf16>
    %105 = vector.extract_strided_slice %100 {offsets = [1, 0], sizes = [47, 148], strides = [1, 1]} : vector<48x148xbf16> to vector<47x148xbf16>
    %106 = tpu.concatenate %105, %102 in 0 : vector<47x148xbf16>, vector<1x148xbf16> -> vector<48x148xbf16>
    %c0_65 = arith.constant 0 : index
    %c0_66 = arith.constant 0 : index
    %c0_67 = arith.constant 0 : index
    %107 = vector.load %arg11[%c0_65, %c0_66, %c0_67] : memref<3x148x196xbf16, #tpu.memory_space<vmem>>, vector<1x148x196xbf16>
    %108 = vector.shape_cast %107 : vector<1x148x196xbf16> to vector<148x196xbf16>
    %cst_68 = arith.constant dense<0.000000e+00> : vector<48x196xf32>
    %109 = tpu.matmul %104, %108, %cst_68 {dimension_numbers = #tpu.dot_dimension_numbers<[1], [0], [0], [1], [0, 0, 1, 1], [], []>} : vector<48x148xbf16>, vector<148x196xbf16>, vector<48x196xf32> -> vector<48x196xf32>
    %110 = arith.addf %101, %109 : vector<48x196xf32>
    %c1_69 = arith.constant 1 : index
    %c0_70 = arith.constant 0 : index
    %c0_71 = arith.constant 0 : index
    %111 = vector.load %arg11[%c1_69, %c0_70, %c0_71] : memref<3x148x196xbf16, #tpu.memory_space<vmem>>, vector<1x148x196xbf16>
    %112 = vector.shape_cast %111 : vector<1x148x196xbf16> to vector<148x196xbf16>
    %cst_72 = arith.constant dense<0.000000e+00> : vector<48x196xf32>
    %113 = tpu.matmul %100, %112, %cst_72 {dimension_numbers = #tpu.dot_dimension_numbers<[1], [0], [0], [1], [0, 0, 1, 1], [], []>} : vector<48x148xbf16>, vector<148x196xbf16>, vector<48x196xf32> -> vector<48x196xf32>
    %114 = arith.addf %110, %113 : vector<48x196xf32>
    %c2_73 = arith.constant 2 : index
    %c0_74 = arith.constant 0 : index
    %c0_75 = arith.constant 0 : index
    %115 = vector.load %arg11[%c2_73, %c0_74, %c0_75] : memref<3x148x196xbf16, #tpu.memory_space<vmem>>, vector<1x148x196xbf16>
    %116 = vector.shape_cast %115 : vector<1x148x196xbf16> to vector<148x196xbf16>
    %cst_76 = arith.constant dense<0.000000e+00> : vector<48x196xf32>
    %117 = tpu.matmul %106, %116, %cst_76 {dimension_numbers = #tpu.dot_dimension_numbers<[1], [0], [0], [1], [0, 0, 1, 1], [], []>} : vector<48x148xbf16>, vector<148x196xbf16>, vector<48x196xf32> -> vector<48x196xf32>
    %118 = arith.addf %114, %117 : vector<48x196xf32>
    %c0_77 = arith.constant 0 : index
    %c0_78 = arith.constant 0 : index
    %119 = vector.load %arg12[%c0_77, %c0_78] : memref<1x196xf32, #tpu.memory_space<vmem>>, vector<1x196xf32>
    %120 = vector.broadcast %119 : vector<1x196xf32> to vector<48x196xf32>
    %121 = arith.addf %118, %120 : vector<48x196xf32>
    %cst_79 = arith.constant 0.000000e+00 : f32
    %122 = vector.broadcast %cst_79 : f32 to vector<48x196xf32>
    %123 = arith.maximumf %121, %122 : vector<48x196xf32>
    %cst_80 = arith.constant 0.000000e+00 : f32
    %124 = vector.shape_cast %9 : vector<48x1xi1> to vector<48x1xi1>
    %125 = vector.broadcast %124 : vector<48x1xi1> to vector<48x196xi1>
    %126 = vector.broadcast %cst_80 : f32 to vector<48x196xf32>
    %127 = arith.select %125, %123, %126 : vector<48x196xi1>, vector<48x196xf32>
    %128 = arith.truncf %127 : vector<48x196xf32> to vector<48x196xbf16>
    %cst_81 = arith.constant 0.000000e+00 : f32
    %129 = vector.broadcast %cst_81 : f32 to vector<48x244xf32>
    %cst_82 = arith.constant 0.000000e+00 : bf16
    %130 = vector.broadcast %cst_82 : bf16 to vector<1x196xbf16>
    %131 = vector.extract_strided_slice %128 {offsets = [0, 0], sizes = [47, 196], strides = [1, 1]} : vector<48x196xbf16> to vector<47x196xbf16>
    %132 = tpu.concatenate %130, %131 in 0 : vector<1x196xbf16>, vector<47x196xbf16> -> vector<48x196xbf16>
    %133 = vector.extract_strided_slice %128 {offsets = [1, 0], sizes = [47, 196], strides = [1, 1]} : vector<48x196xbf16> to vector<47x196xbf16>
    %134 = tpu.concatenate %133, %130 in 0 : vector<47x196xbf16>, vector<1x196xbf16> -> vector<48x196xbf16>
    %c0_83 = arith.constant 0 : index
    %c0_84 = arith.constant 0 : index
    %c0_85 = arith.constant 0 : index
    %135 = vector.load %arg13[%c0_83, %c0_84, %c0_85] : memref<3x196x244xbf16, #tpu.memory_space<vmem>>, vector<1x196x244xbf16>
    %136 = vector.shape_cast %135 : vector<1x196x244xbf16> to vector<196x244xbf16>
    %cst_86 = arith.constant dense<0.000000e+00> : vector<48x244xf32>
    %137 = tpu.matmul %132, %136, %cst_86 {dimension_numbers = #tpu.dot_dimension_numbers<[1], [0], [0], [1], [0, 0, 1, 1], [], []>} : vector<48x196xbf16>, vector<196x244xbf16>, vector<48x244xf32> -> vector<48x244xf32>
    %138 = arith.addf %129, %137 : vector<48x244xf32>
    %c1_87 = arith.constant 1 : index
    %c0_88 = arith.constant 0 : index
    %c0_89 = arith.constant 0 : index
    %139 = vector.load %arg13[%c1_87, %c0_88, %c0_89] : memref<3x196x244xbf16, #tpu.memory_space<vmem>>, vector<1x196x244xbf16>
    %140 = vector.shape_cast %139 : vector<1x196x244xbf16> to vector<196x244xbf16>
    %cst_90 = arith.constant dense<0.000000e+00> : vector<48x244xf32>
    %141 = tpu.matmul %128, %140, %cst_90 {dimension_numbers = #tpu.dot_dimension_numbers<[1], [0], [0], [1], [0, 0, 1, 1], [], []>} : vector<48x196xbf16>, vector<196x244xbf16>, vector<48x244xf32> -> vector<48x244xf32>
    %142 = arith.addf %138, %141 : vector<48x244xf32>
    %c2_91 = arith.constant 2 : index
    %c0_92 = arith.constant 0 : index
    %c0_93 = arith.constant 0 : index
    %143 = vector.load %arg13[%c2_91, %c0_92, %c0_93] : memref<3x196x244xbf16, #tpu.memory_space<vmem>>, vector<1x196x244xbf16>
    %144 = vector.shape_cast %143 : vector<1x196x244xbf16> to vector<196x244xbf16>
    %cst_94 = arith.constant dense<0.000000e+00> : vector<48x244xf32>
    %145 = tpu.matmul %134, %144, %cst_94 {dimension_numbers = #tpu.dot_dimension_numbers<[1], [0], [0], [1], [0, 0, 1, 1], [], []>} : vector<48x196xbf16>, vector<196x244xbf16>, vector<48x244xf32> -> vector<48x244xf32>
    %146 = arith.addf %142, %145 : vector<48x244xf32>
    %c0_95 = arith.constant 0 : index
    %c0_96 = arith.constant 0 : index
    %147 = vector.load %arg14[%c0_95, %c0_96] : memref<1x244xf32, #tpu.memory_space<vmem>>, vector<1x244xf32>
    %148 = vector.broadcast %147 : vector<1x244xf32> to vector<48x244xf32>
    %149 = arith.addf %146, %148 : vector<48x244xf32>
    %cst_97 = arith.constant 0.000000e+00 : f32
    %150 = vector.broadcast %cst_97 : f32 to vector<48x244xf32>
    %151 = arith.maximumf %149, %150 : vector<48x244xf32>
    %cst_98 = arith.constant 0.000000e+00 : f32
    %152 = vector.shape_cast %9 : vector<48x1xi1> to vector<48x1xi1>
    %153 = vector.broadcast %152 : vector<48x1xi1> to vector<48x244xi1>
    %154 = vector.broadcast %cst_98 : f32 to vector<48x244xf32>
    %155 = arith.select %153, %151, %154 : vector<48x244xi1>, vector<48x244xf32>
    %156 = arith.truncf %155 : vector<48x244xf32> to vector<48x244xbf16>
    %cst_99 = arith.constant 0.000000e+00 : f32
    %157 = vector.broadcast %cst_99 : f32 to vector<48x244xf32>
    %cst_100 = arith.constant 0.000000e+00 : bf16
    %158 = vector.broadcast %cst_100 : bf16 to vector<1x244xbf16>
    %159 = vector.extract_strided_slice %156 {offsets = [0, 0], sizes = [47, 244], strides = [1, 1]} : vector<48x244xbf16> to vector<47x244xbf16>
    %160 = tpu.concatenate %158, %159 in 0 : vector<1x244xbf16>, vector<47x244xbf16> -> vector<48x244xbf16>
    %161 = vector.extract_strided_slice %156 {offsets = [1, 0], sizes = [47, 244], strides = [1, 1]} : vector<48x244xbf16> to vector<47x244xbf16>
    %162 = tpu.concatenate %161, %158 in 0 : vector<47x244xbf16>, vector<1x244xbf16> -> vector<48x244xbf16>
    %c0_101 = arith.constant 0 : index
    %c0_102 = arith.constant 0 : index
    %c0_103 = arith.constant 0 : index
    %163 = vector.load %arg15[%c0_101, %c0_102, %c0_103] : memref<3x244x244xbf16, #tpu.memory_space<vmem>>, vector<1x244x244xbf16>
    %164 = vector.shape_cast %163 : vector<1x244x244xbf16> to vector<244x244xbf16>
    %cst_104 = arith.constant dense<0.000000e+00> : vector<48x244xf32>
    %165 = tpu.matmul %160, %164, %cst_104 {dimension_numbers = #tpu.dot_dimension_numbers<[1], [0], [0], [1], [0, 0, 1, 1], [], []>} : vector<48x244xbf16>, vector<244x244xbf16>, vector<48x244xf32> -> vector<48x244xf32>
    %166 = arith.addf %157, %165 : vector<48x244xf32>
    %c1_105 = arith.constant 1 : index
    %c0_106 = arith.constant 0 : index
    %c0_107 = arith.constant 0 : index
    %167 = vector.load %arg15[%c1_105, %c0_106, %c0_107] : memref<3x244x244xbf16, #tpu.memory_space<vmem>>, vector<1x244x244xbf16>
    %168 = vector.shape_cast %167 : vector<1x244x244xbf16> to vector<244x244xbf16>
    %cst_108 = arith.constant dense<0.000000e+00> : vector<48x244xf32>
    %169 = tpu.matmul %156, %168, %cst_108 {dimension_numbers = #tpu.dot_dimension_numbers<[1], [0], [0], [1], [0, 0, 1, 1], [], []>} : vector<48x244xbf16>, vector<244x244xbf16>, vector<48x244xf32> -> vector<48x244xf32>
    %170 = arith.addf %166, %169 : vector<48x244xf32>
    %c2_109 = arith.constant 2 : index
    %c0_110 = arith.constant 0 : index
    %c0_111 = arith.constant 0 : index
    %171 = vector.load %arg15[%c2_109, %c0_110, %c0_111] : memref<3x244x244xbf16, #tpu.memory_space<vmem>>, vector<1x244x244xbf16>
    %172 = vector.shape_cast %171 : vector<1x244x244xbf16> to vector<244x244xbf16>
    %cst_112 = arith.constant dense<0.000000e+00> : vector<48x244xf32>
    %173 = tpu.matmul %162, %172, %cst_112 {dimension_numbers = #tpu.dot_dimension_numbers<[1], [0], [0], [1], [0, 0, 1, 1], [], []>} : vector<48x244xbf16>, vector<244x244xbf16>, vector<48x244xf32> -> vector<48x244xf32>
    %174 = arith.addf %170, %173 : vector<48x244xf32>
    %c0_113 = arith.constant 0 : index
    %c0_114 = arith.constant 0 : index
    %175 = vector.load %arg16[%c0_113, %c0_114] : memref<1x244xf32, #tpu.memory_space<vmem>>, vector<1x244xf32>
    %176 = vector.broadcast %175 : vector<1x244xf32> to vector<48x244xf32>
    %177 = arith.addf %174, %176 : vector<48x244xf32>
    %cst_115 = arith.constant 0.000000e+00 : f32
    %178 = vector.broadcast %cst_115 : f32 to vector<48x244xf32>
    %179 = arith.maximumf %177, %178 : vector<48x244xf32>
    %cst_116 = arith.constant 0.000000e+00 : f32
    %180 = vector.shape_cast %9 : vector<48x1xi1> to vector<48x1xi1>
    %181 = vector.broadcast %180 : vector<48x1xi1> to vector<48x244xi1>
    %182 = vector.broadcast %cst_116 : f32 to vector<48x244xf32>
    %183 = arith.select %181, %179, %182 : vector<48x244xi1>, vector<48x244xf32>
    %184 = arith.truncf %183 : vector<48x244xf32> to vector<48x244xbf16>
    %cst_117 = arith.constant 0.000000e+00 : f32
    %185 = vector.broadcast %cst_117 : f32 to vector<48x244xf32>
    %cst_118 = arith.constant 0.000000e+00 : bf16
    %186 = vector.broadcast %cst_118 : bf16 to vector<1x244xbf16>
    %187 = vector.extract_strided_slice %184 {offsets = [0, 0], sizes = [47, 244], strides = [1, 1]} : vector<48x244xbf16> to vector<47x244xbf16>
    %188 = tpu.concatenate %186, %187 in 0 : vector<1x244xbf16>, vector<47x244xbf16> -> vector<48x244xbf16>
    %189 = vector.extract_strided_slice %184 {offsets = [1, 0], sizes = [47, 244], strides = [1, 1]} : vector<48x244xbf16> to vector<47x244xbf16>
    %190 = tpu.concatenate %189, %186 in 0 : vector<47x244xbf16>, vector<1x244xbf16> -> vector<48x244xbf16>
    %c0_119 = arith.constant 0 : index
    %c0_120 = arith.constant 0 : index
    %c0_121 = arith.constant 0 : index
    %191 = vector.load %arg17[%c0_119, %c0_120, %c0_121] : memref<3x244x244xbf16, #tpu.memory_space<vmem>>, vector<1x244x244xbf16>
    %192 = vector.shape_cast %191 : vector<1x244x244xbf16> to vector<244x244xbf16>
    %cst_122 = arith.constant dense<0.000000e+00> : vector<48x244xf32>
    %193 = tpu.matmul %188, %192, %cst_122 {dimension_numbers = #tpu.dot_dimension_numbers<[1], [0], [0], [1], [0, 0, 1, 1], [], []>} : vector<48x244xbf16>, vector<244x244xbf16>, vector<48x244xf32> -> vector<48x244xf32>
    %194 = arith.addf %185, %193 : vector<48x244xf32>
    %c1_123 = arith.constant 1 : index
    %c0_124 = arith.constant 0 : index
    %c0_125 = arith.constant 0 : index
    %195 = vector.load %arg17[%c1_123, %c0_124, %c0_125] : memref<3x244x244xbf16, #tpu.memory_space<vmem>>, vector<1x244x244xbf16>
    %196 = vector.shape_cast %195 : vector<1x244x244xbf16> to vector<244x244xbf16>
    %cst_126 = arith.constant dense<0.000000e+00> : vector<48x244xf32>
    %197 = tpu.matmul %184, %196, %cst_126 {dimension_numbers = #tpu.dot_dimension_numbers<[1], [0], [0], [1], [0, 0, 1, 1], [], []>} : vector<48x244xbf16>, vector<244x244xbf16>, vector<48x244xf32> -> vector<48x244xf32>
    %198 = arith.addf %194, %197 : vector<48x244xf32>
    %c2_127 = arith.constant 2 : index
    %c0_128 = arith.constant 0 : index
    %c0_129 = arith.constant 0 : index
    %199 = vector.load %arg17[%c2_127, %c0_128, %c0_129] : memref<3x244x244xbf16, #tpu.memory_space<vmem>>, vector<1x244x244xbf16>
    %200 = vector.shape_cast %199 : vector<1x244x244xbf16> to vector<244x244xbf16>
    %cst_130 = arith.constant dense<0.000000e+00> : vector<48x244xf32>
    %201 = tpu.matmul %190, %200, %cst_130 {dimension_numbers = #tpu.dot_dimension_numbers<[1], [0], [0], [1], [0, 0, 1, 1], [], []>} : vector<48x244xbf16>, vector<244x244xbf16>, vector<48x244xf32> -> vector<48x244xf32>
    %202 = arith.addf %198, %201 : vector<48x244xf32>
    %c0_131 = arith.constant 0 : index
    %c0_132 = arith.constant 0 : index
    %203 = vector.load %arg18[%c0_131, %c0_132] : memref<1x244xf32, #tpu.memory_space<vmem>>, vector<1x244xf32>
    %204 = vector.broadcast %203 : vector<1x244xf32> to vector<48x244xf32>
    %205 = arith.addf %202, %204 : vector<48x244xf32>
    %cst_133 = arith.constant 0.000000e+00 : f32
    %206 = vector.broadcast %cst_133 : f32 to vector<48x244xf32>
    %207 = arith.maximumf %205, %206 : vector<48x244xf32>
    %cst_134 = arith.constant 0.000000e+00 : f32
    %208 = vector.shape_cast %9 : vector<48x1xi1> to vector<48x1xi1>
    %209 = vector.broadcast %208 : vector<48x1xi1> to vector<48x244xi1>
    %210 = vector.broadcast %cst_134 : f32 to vector<48x244xf32>
    %211 = arith.select %209, %207, %210 : vector<48x244xi1>, vector<48x244xf32>
    %212 = arith.truncf %211 : vector<48x244xf32> to vector<48x244xbf16>
    %cst_135 = arith.constant 0.000000e+00 : f32
    %213 = vector.broadcast %cst_135 : f32 to vector<48x196xf32>
    %cst_136 = arith.constant 0.000000e+00 : bf16
    %214 = vector.broadcast %cst_136 : bf16 to vector<1x244xbf16>
    %215 = vector.extract_strided_slice %212 {offsets = [0, 0], sizes = [47, 244], strides = [1, 1]} : vector<48x244xbf16> to vector<47x244xbf16>
    %216 = tpu.concatenate %214, %215 in 0 : vector<1x244xbf16>, vector<47x244xbf16> -> vector<48x244xbf16>
    %217 = vector.extract_strided_slice %212 {offsets = [1, 0], sizes = [47, 244], strides = [1, 1]} : vector<48x244xbf16> to vector<47x244xbf16>
    %218 = tpu.concatenate %217, %214 in 0 : vector<47x244xbf16>, vector<1x244xbf16> -> vector<48x244xbf16>
    %c0_137 = arith.constant 0 : index
    %c0_138 = arith.constant 0 : index
    %c0_139 = arith.constant 0 : index
    %219 = vector.load %arg19[%c0_137, %c0_138, %c0_139] : memref<3x244x196xbf16, #tpu.memory_space<vmem>>, vector<1x244x196xbf16>
    %220 = vector.shape_cast %219 : vector<1x244x196xbf16> to vector<244x196xbf16>
    %cst_140 = arith.constant dense<0.000000e+00> : vector<48x196xf32>
    %221 = tpu.matmul %216, %220, %cst_140 {dimension_numbers = #tpu.dot_dimension_numbers<[1], [0], [0], [1], [0, 0, 1, 1], [], []>} : vector<48x244xbf16>, vector<244x196xbf16>, vector<48x196xf32> -> vector<48x196xf32>
    %222 = arith.addf %213, %221 : vector<48x196xf32>
    %c1_141 = arith.constant 1 : index
    %c0_142 = arith.constant 0 : index
    %c0_143 = arith.constant 0 : index
    %223 = vector.load %arg19[%c1_141, %c0_142, %c0_143] : memref<3x244x196xbf16, #tpu.memory_space<vmem>>, vector<1x244x196xbf16>
    %224 = vector.shape_cast %223 : vector<1x244x196xbf16> to vector<244x196xbf16>
    %cst_144 = arith.constant dense<0.000000e+00> : vector<48x196xf32>
    %225 = tpu.matmul %212, %224, %cst_144 {dimension_numbers = #tpu.dot_dimension_numbers<[1], [0], [0], [1], [0, 0, 1, 1], [], []>} : vector<48x244xbf16>, vector<244x196xbf16>, vector<48x196xf32> -> vector<48x196xf32>
    %226 = arith.addf %222, %225 : vector<48x196xf32>
    %c2_145 = arith.constant 2 : index
    %c0_146 = arith.constant 0 : index
    %c0_147 = arith.constant 0 : index
    %227 = vector.load %arg19[%c2_145, %c0_146, %c0_147] : memref<3x244x196xbf16, #tpu.memory_space<vmem>>, vector<1x244x196xbf16>
    %228 = vector.shape_cast %227 : vector<1x244x196xbf16> to vector<244x196xbf16>
    %cst_148 = arith.constant dense<0.000000e+00> : vector<48x196xf32>
    %229 = tpu.matmul %218, %228, %cst_148 {dimension_numbers = #tpu.dot_dimension_numbers<[1], [0], [0], [1], [0, 0, 1, 1], [], []>} : vector<48x244xbf16>, vector<244x196xbf16>, vector<48x196xf32> -> vector<48x196xf32>
    %230 = arith.addf %226, %229 : vector<48x196xf32>
    %cst_149 = arith.constant 0.000000e+00 : bf16
    %231 = vector.broadcast %cst_149 : bf16 to vector<1x196xbf16>
    %232 = vector.extract_strided_slice %128 {offsets = [0, 0], sizes = [47, 196], strides = [1, 1]} : vector<48x196xbf16> to vector<47x196xbf16>
    %233 = tpu.concatenate %231, %232 in 0 : vector<1x196xbf16>, vector<47x196xbf16> -> vector<48x196xbf16>
    %234 = vector.extract_strided_slice %128 {offsets = [1, 0], sizes = [47, 196], strides = [1, 1]} : vector<48x196xbf16> to vector<47x196xbf16>
    %235 = tpu.concatenate %234, %231 in 0 : vector<47x196xbf16>, vector<1x196xbf16> -> vector<48x196xbf16>
    %c0_150 = arith.constant 0 : index
    %c0_151 = arith.constant 0 : index
    %c0_152 = arith.constant 0 : index
    %236 = vector.load %arg20[%c0_150, %c0_151, %c0_152] : memref<3x196x196xbf16, #tpu.memory_space<vmem>>, vector<1x196x196xbf16>
    %237 = vector.shape_cast %236 : vector<1x196x196xbf16> to vector<196x196xbf16>
    %cst_153 = arith.constant dense<0.000000e+00> : vector<48x196xf32>
    %238 = tpu.matmul %233, %237, %cst_153 {dimension_numbers = #tpu.dot_dimension_numbers<[1], [0], [0], [1], [0, 0, 1, 1], [], []>} : vector<48x196xbf16>, vector<196x196xbf16>, vector<48x196xf32> -> vector<48x196xf32>
    %239 = arith.addf %230, %238 : vector<48x196xf32>
    %c1_154 = arith.constant 1 : index
    %c0_155 = arith.constant 0 : index
    %c0_156 = arith.constant 0 : index
    %240 = vector.load %arg20[%c1_154, %c0_155, %c0_156] : memref<3x196x196xbf16, #tpu.memory_space<vmem>>, vector<1x196x196xbf16>
    %241 = vector.shape_cast %240 : vector<1x196x196xbf16> to vector<196x196xbf16>
    %cst_157 = arith.constant dense<0.000000e+00> : vector<48x196xf32>
    %242 = tpu.matmul %128, %241, %cst_157 {dimension_numbers = #tpu.dot_dimension_numbers<[1], [0], [0], [1], [0, 0, 1, 1], [], []>} : vector<48x196xbf16>, vector<196x196xbf16>, vector<48x196xf32> -> vector<48x196xf32>
    %243 = arith.addf %239, %242 : vector<48x196xf32>
    %c2_158 = arith.constant 2 : index
    %c0_159 = arith.constant 0 : index
    %c0_160 = arith.constant 0 : index
    %244 = vector.load %arg20[%c2_158, %c0_159, %c0_160] : memref<3x196x196xbf16, #tpu.memory_space<vmem>>, vector<1x196x196xbf16>
    %245 = vector.shape_cast %244 : vector<1x196x196xbf16> to vector<196x196xbf16>
    %cst_161 = arith.constant dense<0.000000e+00> : vector<48x196xf32>
    %246 = tpu.matmul %235, %245, %cst_161 {dimension_numbers = #tpu.dot_dimension_numbers<[1], [0], [0], [1], [0, 0, 1, 1], [], []>} : vector<48x196xbf16>, vector<196x196xbf16>, vector<48x196xf32> -> vector<48x196xf32>
    %247 = arith.addf %243, %246 : vector<48x196xf32>
    %c0_162 = arith.constant 0 : index
    %c0_163 = arith.constant 0 : index
    %248 = vector.load %arg21[%c0_162, %c0_163] : memref<1x196xf32, #tpu.memory_space<vmem>>, vector<1x196xf32>
    %249 = vector.broadcast %248 : vector<1x196xf32> to vector<48x196xf32>
    %250 = arith.addf %247, %249 : vector<48x196xf32>
    %cst_164 = arith.constant 0.000000e+00 : f32
    %251 = vector.broadcast %cst_164 : f32 to vector<48x196xf32>
    %252 = arith.maximumf %250, %251 : vector<48x196xf32>
    %cst_165 = arith.constant 0.000000e+00 : f32
    %253 = vector.shape_cast %9 : vector<48x1xi1> to vector<48x1xi1>
    %254 = vector.broadcast %253 : vector<48x1xi1> to vector<48x196xi1>
    %255 = vector.broadcast %cst_165 : f32 to vector<48x196xf32>
    %256 = arith.select %254, %252, %255 : vector<48x196xi1>, vector<48x196xf32>
    %257 = arith.truncf %256 : vector<48x196xf32> to vector<48x196xbf16>
    %cst_166 = arith.constant 0.000000e+00 : f32
    %258 = vector.broadcast %cst_166 : f32 to vector<48x148xf32>
    %cst_167 = arith.constant 0.000000e+00 : bf16
    %259 = vector.broadcast %cst_167 : bf16 to vector<1x196xbf16>
    %260 = vector.extract_strided_slice %257 {offsets = [0, 0], sizes = [47, 196], strides = [1, 1]} : vector<48x196xbf16> to vector<47x196xbf16>
    %261 = tpu.concatenate %259, %260 in 0 : vector<1x196xbf16>, vector<47x196xbf16> -> vector<48x196xbf16>
    %262 = vector.extract_strided_slice %257 {offsets = [1, 0], sizes = [47, 196], strides = [1, 1]} : vector<48x196xbf16> to vector<47x196xbf16>
    %263 = tpu.concatenate %262, %259 in 0 : vector<47x196xbf16>, vector<1x196xbf16> -> vector<48x196xbf16>
    %c0_168 = arith.constant 0 : index
    %c0_169 = arith.constant 0 : index
    %c0_170 = arith.constant 0 : index
    %264 = vector.load %arg22[%c0_168, %c0_169, %c0_170] : memref<3x196x148xbf16, #tpu.memory_space<vmem>>, vector<1x196x148xbf16>
    %265 = vector.shape_cast %264 : vector<1x196x148xbf16> to vector<196x148xbf16>
    %cst_171 = arith.constant dense<0.000000e+00> : vector<48x148xf32>
    %266 = tpu.matmul %261, %265, %cst_171 {dimension_numbers = #tpu.dot_dimension_numbers<[1], [0], [0], [1], [0, 0, 1, 1], [], []>} : vector<48x196xbf16>, vector<196x148xbf16>, vector<48x148xf32> -> vector<48x148xf32>
    %267 = arith.addf %258, %266 : vector<48x148xf32>
    %c1_172 = arith.constant 1 : index
    %c0_173 = arith.constant 0 : index
    %c0_174 = arith.constant 0 : index
    %268 = vector.load %arg22[%c1_172, %c0_173, %c0_174] : memref<3x196x148xbf16, #tpu.memory_space<vmem>>, vector<1x196x148xbf16>
    %269 = vector.shape_cast %268 : vector<1x196x148xbf16> to vector<196x148xbf16>
    %cst_175 = arith.constant dense<0.000000e+00> : vector<48x148xf32>
    %270 = tpu.matmul %257, %269, %cst_175 {dimension_numbers = #tpu.dot_dimension_numbers<[1], [0], [0], [1], [0, 0, 1, 1], [], []>} : vector<48x196xbf16>, vector<196x148xbf16>, vector<48x148xf32> -> vector<48x148xf32>
    %271 = arith.addf %267, %270 : vector<48x148xf32>
    %c2_176 = arith.constant 2 : index
    %c0_177 = arith.constant 0 : index
    %c0_178 = arith.constant 0 : index
    %272 = vector.load %arg22[%c2_176, %c0_177, %c0_178] : memref<3x196x148xbf16, #tpu.memory_space<vmem>>, vector<1x196x148xbf16>
    %273 = vector.shape_cast %272 : vector<1x196x148xbf16> to vector<196x148xbf16>
    %cst_179 = arith.constant dense<0.000000e+00> : vector<48x148xf32>
    %274 = tpu.matmul %263, %273, %cst_179 {dimension_numbers = #tpu.dot_dimension_numbers<[1], [0], [0], [1], [0, 0, 1, 1], [], []>} : vector<48x196xbf16>, vector<196x148xbf16>, vector<48x148xf32> -> vector<48x148xf32>
    %275 = arith.addf %271, %274 : vector<48x148xf32>
    %cst_180 = arith.constant 0.000000e+00 : bf16
    %276 = vector.broadcast %cst_180 : bf16 to vector<1x148xbf16>
    %277 = vector.extract_strided_slice %100 {offsets = [0, 0], sizes = [47, 148], strides = [1, 1]} : vector<48x148xbf16> to vector<47x148xbf16>
    %278 = tpu.concatenate %276, %277 in 0 : vector<1x148xbf16>, vector<47x148xbf16> -> vector<48x148xbf16>
    %279 = vector.extract_strided_slice %100 {offsets = [1, 0], sizes = [47, 148], strides = [1, 1]} : vector<48x148xbf16> to vector<47x148xbf16>
    %280 = tpu.concatenate %279, %276 in 0 : vector<47x148xbf16>, vector<1x148xbf16> -> vector<48x148xbf16>
    %c0_181 = arith.constant 0 : index
    %c0_182 = arith.constant 0 : index
    %c0_183 = arith.constant 0 : index
    %281 = vector.load %arg23[%c0_181, %c0_182, %c0_183] : memref<3x148x148xbf16, #tpu.memory_space<vmem>>, vector<1x148x148xbf16>
    %282 = vector.shape_cast %281 : vector<1x148x148xbf16> to vector<148x148xbf16>
    %cst_184 = arith.constant dense<0.000000e+00> : vector<48x148xf32>
    %283 = tpu.matmul %278, %282, %cst_184 {dimension_numbers = #tpu.dot_dimension_numbers<[1], [0], [0], [1], [0, 0, 1, 1], [], []>} : vector<48x148xbf16>, vector<148x148xbf16>, vector<48x148xf32> -> vector<48x148xf32>
    %284 = arith.addf %275, %283 : vector<48x148xf32>
    %c1_185 = arith.constant 1 : index
    %c0_186 = arith.constant 0 : index
    %c0_187 = arith.constant 0 : index
    %285 = vector.load %arg23[%c1_185, %c0_186, %c0_187] : memref<3x148x148xbf16, #tpu.memory_space<vmem>>, vector<1x148x148xbf16>
    %286 = vector.shape_cast %285 : vector<1x148x148xbf16> to vector<148x148xbf16>
    %cst_188 = arith.constant dense<0.000000e+00> : vector<48x148xf32>
    %287 = tpu.matmul %100, %286, %cst_188 {dimension_numbers = #tpu.dot_dimension_numbers<[1], [0], [0], [1], [0, 0, 1, 1], [], []>} : vector<48x148xbf16>, vector<148x148xbf16>, vector<48x148xf32> -> vector<48x148xf32>
    %288 = arith.addf %284, %287 : vector<48x148xf32>
    %c2_189 = arith.constant 2 : index
    %c0_190 = arith.constant 0 : index
    %c0_191 = arith.constant 0 : index
    %289 = vector.load %arg23[%c2_189, %c0_190, %c0_191] : memref<3x148x148xbf16, #tpu.memory_space<vmem>>, vector<1x148x148xbf16>
    %290 = vector.shape_cast %289 : vector<1x148x148xbf16> to vector<148x148xbf16>
    %cst_192 = arith.constant dense<0.000000e+00> : vector<48x148xf32>
    %291 = tpu.matmul %280, %290, %cst_192 {dimension_numbers = #tpu.dot_dimension_numbers<[1], [0], [0], [1], [0, 0, 1, 1], [], []>} : vector<48x148xbf16>, vector<148x148xbf16>, vector<48x148xf32> -> vector<48x148xf32>
    %292 = arith.addf %288, %291 : vector<48x148xf32>
    %c0_193 = arith.constant 0 : index
    %c0_194 = arith.constant 0 : index
    %293 = vector.load %arg24[%c0_193, %c0_194] : memref<1x148xf32, #tpu.memory_space<vmem>>, vector<1x148xf32>
    %294 = vector.broadcast %293 : vector<1x148xf32> to vector<48x148xf32>
    %295 = arith.addf %292, %294 : vector<48x148xf32>
    %cst_195 = arith.constant 0.000000e+00 : f32
    %296 = vector.broadcast %cst_195 : f32 to vector<48x148xf32>
    %297 = arith.maximumf %295, %296 : vector<48x148xf32>
    %cst_196 = arith.constant 0.000000e+00 : f32
    %298 = vector.shape_cast %9 : vector<48x1xi1> to vector<48x1xi1>
    %299 = vector.broadcast %298 : vector<48x1xi1> to vector<48x148xi1>
    %300 = vector.broadcast %cst_196 : f32 to vector<48x148xf32>
    %301 = arith.select %299, %297, %300 : vector<48x148xi1>, vector<48x148xf32>
    %302 = arith.truncf %301 : vector<48x148xf32> to vector<48x148xbf16>
    %cst_197 = arith.constant 0.000000e+00 : f32
    %303 = vector.broadcast %cst_197 : f32 to vector<48x100xf32>
    %cst_198 = arith.constant 0.000000e+00 : bf16
    %304 = vector.broadcast %cst_198 : bf16 to vector<1x148xbf16>
    %305 = vector.extract_strided_slice %302 {offsets = [0, 0], sizes = [47, 148], strides = [1, 1]} : vector<48x148xbf16> to vector<47x148xbf16>
    %306 = tpu.concatenate %304, %305 in 0 : vector<1x148xbf16>, vector<47x148xbf16> -> vector<48x148xbf16>
    %307 = vector.extract_strided_slice %302 {offsets = [1, 0], sizes = [47, 148], strides = [1, 1]} : vector<48x148xbf16> to vector<47x148xbf16>
    %308 = tpu.concatenate %307, %304 in 0 : vector<47x148xbf16>, vector<1x148xbf16> -> vector<48x148xbf16>
    %c0_199 = arith.constant 0 : index
    %c0_200 = arith.constant 0 : index
    %c0_201 = arith.constant 0 : index
    %309 = vector.load %arg25[%c0_199, %c0_200, %c0_201] : memref<3x148x100xbf16, #tpu.memory_space<vmem>>, vector<1x148x100xbf16>
    %310 = vector.shape_cast %309 : vector<1x148x100xbf16> to vector<148x100xbf16>
    %cst_202 = arith.constant dense<0.000000e+00> : vector<48x100xf32>
    %311 = tpu.matmul %306, %310, %cst_202 {dimension_numbers = #tpu.dot_dimension_numbers<[1], [0], [0], [1], [0, 0, 1, 1], [], []>} : vector<48x148xbf16>, vector<148x100xbf16>, vector<48x100xf32> -> vector<48x100xf32>
    %312 = arith.addf %303, %311 : vector<48x100xf32>
    %c1_203 = arith.constant 1 : index
    %c0_204 = arith.constant 0 : index
    %c0_205 = arith.constant 0 : index
    %313 = vector.load %arg25[%c1_203, %c0_204, %c0_205] : memref<3x148x100xbf16, #tpu.memory_space<vmem>>, vector<1x148x100xbf16>
    %314 = vector.shape_cast %313 : vector<1x148x100xbf16> to vector<148x100xbf16>
    %cst_206 = arith.constant dense<0.000000e+00> : vector<48x100xf32>
    %315 = tpu.matmul %302, %314, %cst_206 {dimension_numbers = #tpu.dot_dimension_numbers<[1], [0], [0], [1], [0, 0, 1, 1], [], []>} : vector<48x148xbf16>, vector<148x100xbf16>, vector<48x100xf32> -> vector<48x100xf32>
    %316 = arith.addf %312, %315 : vector<48x100xf32>
    %c2_207 = arith.constant 2 : index
    %c0_208 = arith.constant 0 : index
    %c0_209 = arith.constant 0 : index
    %317 = vector.load %arg25[%c2_207, %c0_208, %c0_209] : memref<3x148x100xbf16, #tpu.memory_space<vmem>>, vector<1x148x100xbf16>
    %318 = vector.shape_cast %317 : vector<1x148x100xbf16> to vector<148x100xbf16>
    %cst_210 = arith.constant dense<0.000000e+00> : vector<48x100xf32>
    %319 = tpu.matmul %308, %318, %cst_210 {dimension_numbers = #tpu.dot_dimension_numbers<[1], [0], [0], [1], [0, 0, 1, 1], [], []>} : vector<48x148xbf16>, vector<148x100xbf16>, vector<48x100xf32> -> vector<48x100xf32>
    %320 = arith.addf %316, %319 : vector<48x100xf32>
    %cst_211 = arith.constant 0.000000e+00 : bf16
    %321 = vector.broadcast %cst_211 : bf16 to vector<1x100xbf16>
    %322 = vector.extract_strided_slice %72 {offsets = [0, 0], sizes = [47, 100], strides = [1, 1]} : vector<48x100xbf16> to vector<47x100xbf16>
    %323 = tpu.concatenate %321, %322 in 0 : vector<1x100xbf16>, vector<47x100xbf16> -> vector<48x100xbf16>
    %324 = vector.extract_strided_slice %72 {offsets = [1, 0], sizes = [47, 100], strides = [1, 1]} : vector<48x100xbf16> to vector<47x100xbf16>
    %325 = tpu.concatenate %324, %321 in 0 : vector<47x100xbf16>, vector<1x100xbf16> -> vector<48x100xbf16>
    %c0_212 = arith.constant 0 : index
    %c0_213 = arith.constant 0 : index
    %c0_214 = arith.constant 0 : index
    %326 = vector.load %arg26[%c0_212, %c0_213, %c0_214] : memref<3x100x100xbf16, #tpu.memory_space<vmem>>, vector<1x100x100xbf16>
    %327 = vector.shape_cast %326 : vector<1x100x100xbf16> to vector<100x100xbf16>
    %cst_215 = arith.constant dense<0.000000e+00> : vector<48x100xf32>
    %328 = tpu.matmul %323, %327, %cst_215 {dimension_numbers = #tpu.dot_dimension_numbers<[1], [0], [0], [1], [0, 0, 1, 1], [], []>} : vector<48x100xbf16>, vector<100x100xbf16>, vector<48x100xf32> -> vector<48x100xf32>
    %329 = arith.addf %320, %328 : vector<48x100xf32>
    %c1_216 = arith.constant 1 : index
    %c0_217 = arith.constant 0 : index
    %c0_218 = arith.constant 0 : index
    %330 = vector.load %arg26[%c1_216, %c0_217, %c0_218] : memref<3x100x100xbf16, #tpu.memory_space<vmem>>, vector<1x100x100xbf16>
    %331 = vector.shape_cast %330 : vector<1x100x100xbf16> to vector<100x100xbf16>
    %cst_219 = arith.constant dense<0.000000e+00> : vector<48x100xf32>
    %332 = tpu.matmul %72, %331, %cst_219 {dimension_numbers = #tpu.dot_dimension_numbers<[1], [0], [0], [1], [0, 0, 1, 1], [], []>} : vector<48x100xbf16>, vector<100x100xbf16>, vector<48x100xf32> -> vector<48x100xf32>
    %333 = arith.addf %329, %332 : vector<48x100xf32>
    %c2_220 = arith.constant 2 : index
    %c0_221 = arith.constant 0 : index
    %c0_222 = arith.constant 0 : index
    %334 = vector.load %arg26[%c2_220, %c0_221, %c0_222] : memref<3x100x100xbf16, #tpu.memory_space<vmem>>, vector<1x100x100xbf16>
    %335 = vector.shape_cast %334 : vector<1x100x100xbf16> to vector<100x100xbf16>
    %cst_223 = arith.constant dense<0.000000e+00> : vector<48x100xf32>
    %336 = tpu.matmul %325, %335, %cst_223 {dimension_numbers = #tpu.dot_dimension_numbers<[1], [0], [0], [1], [0, 0, 1, 1], [], []>} : vector<48x100xbf16>, vector<100x100xbf16>, vector<48x100xf32> -> vector<48x100xf32>
    %337 = arith.addf %333, %336 : vector<48x100xf32>
    %c0_224 = arith.constant 0 : index
    %c0_225 = arith.constant 0 : index
    %338 = vector.load %arg27[%c0_224, %c0_225] : memref<1x100xf32, #tpu.memory_space<vmem>>, vector<1x100xf32>
    %339 = vector.broadcast %338 : vector<1x100xf32> to vector<48x100xf32>
    %340 = arith.addf %337, %339 : vector<48x100xf32>
    %cst_226 = arith.constant 0.000000e+00 : f32
    %341 = vector.broadcast %cst_226 : f32 to vector<48x100xf32>
    %342 = arith.maximumf %340, %341 : vector<48x100xf32>
    %cst_227 = arith.constant 0.000000e+00 : f32
    %343 = vector.shape_cast %9 : vector<48x1xi1> to vector<48x1xi1>
    %344 = vector.broadcast %343 : vector<48x1xi1> to vector<48x100xi1>
    %345 = vector.broadcast %cst_227 : f32 to vector<48x100xf32>
    %346 = arith.select %344, %342, %345 : vector<48x100xi1>, vector<48x100xf32>
    %347 = arith.truncf %346 : vector<48x100xf32> to vector<48x100xbf16>
    %cst_228 = arith.constant 0.000000e+00 : f32
    %348 = vector.broadcast %cst_228 : f32 to vector<48x52xf32>
    %cst_229 = arith.constant 0.000000e+00 : bf16
    %349 = vector.broadcast %cst_229 : bf16 to vector<1x100xbf16>
    %350 = vector.extract_strided_slice %347 {offsets = [0, 0], sizes = [47, 100], strides = [1, 1]} : vector<48x100xbf16> to vector<47x100xbf16>
    %351 = tpu.concatenate %349, %350 in 0 : vector<1x100xbf16>, vector<47x100xbf16> -> vector<48x100xbf16>
    %352 = vector.extract_strided_slice %347 {offsets = [1, 0], sizes = [47, 100], strides = [1, 1]} : vector<48x100xbf16> to vector<47x100xbf16>
    %353 = tpu.concatenate %352, %349 in 0 : vector<47x100xbf16>, vector<1x100xbf16> -> vector<48x100xbf16>
    %c0_230 = arith.constant 0 : index
    %c0_231 = arith.constant 0 : index
    %c0_232 = arith.constant 0 : index
    %354 = vector.load %arg28[%c0_230, %c0_231, %c0_232] : memref<3x100x52xbf16, #tpu.memory_space<vmem>>, vector<1x100x52xbf16>
    %355 = vector.shape_cast %354 : vector<1x100x52xbf16> to vector<100x52xbf16>
    %cst_233 = arith.constant dense<0.000000e+00> : vector<48x52xf32>
    %356 = tpu.matmul %351, %355, %cst_233 {dimension_numbers = #tpu.dot_dimension_numbers<[1], [0], [0], [1], [0, 0, 1, 1], [], []>} : vector<48x100xbf16>, vector<100x52xbf16>, vector<48x52xf32> -> vector<48x52xf32>
    %357 = arith.addf %348, %356 : vector<48x52xf32>
    %c1_234 = arith.constant 1 : index
    %c0_235 = arith.constant 0 : index
    %c0_236 = arith.constant 0 : index
    %358 = vector.load %arg28[%c1_234, %c0_235, %c0_236] : memref<3x100x52xbf16, #tpu.memory_space<vmem>>, vector<1x100x52xbf16>
    %359 = vector.shape_cast %358 : vector<1x100x52xbf16> to vector<100x52xbf16>
    %cst_237 = arith.constant dense<0.000000e+00> : vector<48x52xf32>
    %360 = tpu.matmul %347, %359, %cst_237 {dimension_numbers = #tpu.dot_dimension_numbers<[1], [0], [0], [1], [0, 0, 1, 1], [], []>} : vector<48x100xbf16>, vector<100x52xbf16>, vector<48x52xf32> -> vector<48x52xf32>
    %361 = arith.addf %357, %360 : vector<48x52xf32>
    %c2_238 = arith.constant 2 : index
    %c0_239 = arith.constant 0 : index
    %c0_240 = arith.constant 0 : index
    %362 = vector.load %arg28[%c2_238, %c0_239, %c0_240] : memref<3x100x52xbf16, #tpu.memory_space<vmem>>, vector<1x100x52xbf16>
    %363 = vector.shape_cast %362 : vector<1x100x52xbf16> to vector<100x52xbf16>
    %cst_241 = arith.constant dense<0.000000e+00> : vector<48x52xf32>
    %364 = tpu.matmul %353, %363, %cst_241 {dimension_numbers = #tpu.dot_dimension_numbers<[1], [0], [0], [1], [0, 0, 1, 1], [], []>} : vector<48x100xbf16>, vector<100x52xbf16>, vector<48x52xf32> -> vector<48x52xf32>
    %365 = arith.addf %361, %364 : vector<48x52xf32>
    %cst_242 = arith.constant 0.000000e+00 : bf16
    %366 = vector.broadcast %cst_242 : bf16 to vector<1x52xbf16>
    %367 = vector.extract_strided_slice %44 {offsets = [0, 0], sizes = [47, 52], strides = [1, 1]} : vector<48x52xbf16> to vector<47x52xbf16>
    %368 = tpu.concatenate %366, %367 in 0 : vector<1x52xbf16>, vector<47x52xbf16> -> vector<48x52xbf16>
    %369 = vector.extract_strided_slice %44 {offsets = [1, 0], sizes = [47, 52], strides = [1, 1]} : vector<48x52xbf16> to vector<47x52xbf16>
    %370 = tpu.concatenate %369, %366 in 0 : vector<47x52xbf16>, vector<1x52xbf16> -> vector<48x52xbf16>
    %c0_243 = arith.constant 0 : index
    %c0_244 = arith.constant 0 : index
    %c0_245 = arith.constant 0 : index
    %371 = vector.load %arg29[%c0_243, %c0_244, %c0_245] : memref<3x52x52xbf16, #tpu.memory_space<vmem>>, vector<1x52x52xbf16>
    %372 = vector.shape_cast %371 : vector<1x52x52xbf16> to vector<52x52xbf16>
    %cst_246 = arith.constant dense<0.000000e+00> : vector<48x52xf32>
    %373 = tpu.matmul %368, %372, %cst_246 {dimension_numbers = #tpu.dot_dimension_numbers<[1], [0], [0], [1], [0, 0, 1, 1], [], []>} : vector<48x52xbf16>, vector<52x52xbf16>, vector<48x52xf32> -> vector<48x52xf32>
    %374 = arith.addf %365, %373 : vector<48x52xf32>
    %c1_247 = arith.constant 1 : index
    %c0_248 = arith.constant 0 : index
    %c0_249 = arith.constant 0 : index
    %375 = vector.load %arg29[%c1_247, %c0_248, %c0_249] : memref<3x52x52xbf16, #tpu.memory_space<vmem>>, vector<1x52x52xbf16>
    %376 = vector.shape_cast %375 : vector<1x52x52xbf16> to vector<52x52xbf16>
    %cst_250 = arith.constant dense<0.000000e+00> : vector<48x52xf32>
    %377 = tpu.matmul %44, %376, %cst_250 {dimension_numbers = #tpu.dot_dimension_numbers<[1], [0], [0], [1], [0, 0, 1, 1], [], []>} : vector<48x52xbf16>, vector<52x52xbf16>, vector<48x52xf32> -> vector<48x52xf32>
    %378 = arith.addf %374, %377 : vector<48x52xf32>
    %c2_251 = arith.constant 2 : index
    %c0_252 = arith.constant 0 : index
    %c0_253 = arith.constant 0 : index
    %379 = vector.load %arg29[%c2_251, %c0_252, %c0_253] : memref<3x52x52xbf16, #tpu.memory_space<vmem>>, vector<1x52x52xbf16>
    %380 = vector.shape_cast %379 : vector<1x52x52xbf16> to vector<52x52xbf16>
    %cst_254 = arith.constant dense<0.000000e+00> : vector<48x52xf32>
    %381 = tpu.matmul %370, %380, %cst_254 {dimension_numbers = #tpu.dot_dimension_numbers<[1], [0], [0], [1], [0, 0, 1, 1], [], []>} : vector<48x52xbf16>, vector<52x52xbf16>, vector<48x52xf32> -> vector<48x52xf32>
    %382 = arith.addf %378, %381 : vector<48x52xf32>
    %c0_255 = arith.constant 0 : index
    %c0_256 = arith.constant 0 : index
    %383 = vector.load %arg30[%c0_255, %c0_256] : memref<1x52xf32, #tpu.memory_space<vmem>>, vector<1x52xf32>
    %384 = vector.broadcast %383 : vector<1x52xf32> to vector<48x52xf32>
    %385 = arith.addf %382, %384 : vector<48x52xf32>
    %cst_257 = arith.constant 0.000000e+00 : f32
    %386 = vector.broadcast %cst_257 : f32 to vector<48x52xf32>
    %387 = arith.maximumf %385, %386 : vector<48x52xf32>
    %cst_258 = arith.constant 0.000000e+00 : f32
    %388 = vector.shape_cast %9 : vector<48x1xi1> to vector<48x1xi1>
    %389 = vector.broadcast %388 : vector<48x1xi1> to vector<48x52xi1>
    %390 = vector.broadcast %cst_258 : f32 to vector<48x52xf32>
    %391 = arith.select %389, %387, %390 : vector<48x52xi1>, vector<48x52xf32>
    %392 = arith.truncf %391 : vector<48x52xf32> to vector<48x52xbf16>
    %cst_259 = arith.constant 0.000000e+00 : f32
    %393 = vector.broadcast %cst_259 : f32 to vector<48x4xf32>
    %cst_260 = arith.constant 0.000000e+00 : bf16
    %394 = vector.broadcast %cst_260 : bf16 to vector<1x52xbf16>
    %395 = vector.extract_strided_slice %392 {offsets = [0, 0], sizes = [47, 52], strides = [1, 1]} : vector<48x52xbf16> to vector<47x52xbf16>
    %396 = tpu.concatenate %394, %395 in 0 : vector<1x52xbf16>, vector<47x52xbf16> -> vector<48x52xbf16>
    %397 = vector.extract_strided_slice %392 {offsets = [1, 0], sizes = [47, 52], strides = [1, 1]} : vector<48x52xbf16> to vector<47x52xbf16>
    %398 = tpu.concatenate %397, %394 in 0 : vector<47x52xbf16>, vector<1x52xbf16> -> vector<48x52xbf16>
    %c0_261 = arith.constant 0 : index
    %c0_262 = arith.constant 0 : index
    %c0_263 = arith.constant 0 : index
    %399 = vector.load %arg31[%c0_261, %c0_262, %c0_263] : memref<3x52x4xbf16, #tpu.memory_space<vmem>>, vector<1x52x4xbf16>
    %400 = vector.shape_cast %399 : vector<1x52x4xbf16> to vector<52x4xbf16>
    %cst_264 = arith.constant dense<0.000000e+00> : vector<48x4xf32>
    %401 = tpu.matmul %396, %400, %cst_264 {dimension_numbers = #tpu.dot_dimension_numbers<[1], [0], [0], [1], [0, 0, 1, 1], [], []>} : vector<48x52xbf16>, vector<52x4xbf16>, vector<48x4xf32> -> vector<48x4xf32>
    %402 = arith.addf %393, %401 : vector<48x4xf32>
    %c1_265 = arith.constant 1 : index
    %c0_266 = arith.constant 0 : index
    %c0_267 = arith.constant 0 : index
    %403 = vector.load %arg31[%c1_265, %c0_266, %c0_267] : memref<3x52x4xbf16, #tpu.memory_space<vmem>>, vector<1x52x4xbf16>
    %404 = vector.shape_cast %403 : vector<1x52x4xbf16> to vector<52x4xbf16>
    %cst_268 = arith.constant dense<0.000000e+00> : vector<48x4xf32>
    %405 = tpu.matmul %392, %404, %cst_268 {dimension_numbers = #tpu.dot_dimension_numbers<[1], [0], [0], [1], [0, 0, 1, 1], [], []>} : vector<48x52xbf16>, vector<52x4xbf16>, vector<48x4xf32> -> vector<48x4xf32>
    %406 = arith.addf %402, %405 : vector<48x4xf32>
    %c2_269 = arith.constant 2 : index
    %c0_270 = arith.constant 0 : index
    %c0_271 = arith.constant 0 : index
    %407 = vector.load %arg31[%c2_269, %c0_270, %c0_271] : memref<3x52x4xbf16, #tpu.memory_space<vmem>>, vector<1x52x4xbf16>
    %408 = vector.shape_cast %407 : vector<1x52x4xbf16> to vector<52x4xbf16>
    %cst_272 = arith.constant dense<0.000000e+00> : vector<48x4xf32>
    %409 = tpu.matmul %398, %408, %cst_272 {dimension_numbers = #tpu.dot_dimension_numbers<[1], [0], [0], [1], [0, 0, 1, 1], [], []>} : vector<48x52xbf16>, vector<52x4xbf16>, vector<48x4xf32> -> vector<48x4xf32>
    %410 = arith.addf %406, %409 : vector<48x4xf32>
    %cst_273 = arith.constant 0.000000e+00 : bf16
    %411 = vector.broadcast %cst_273 : bf16 to vector<1x4xbf16>
    %412 = vector.extract_strided_slice %16 {offsets = [0, 0], sizes = [47, 4], strides = [1, 1]} : vector<48x4xbf16> to vector<47x4xbf16>
    %413 = tpu.concatenate %411, %412 in 0 : vector<1x4xbf16>, vector<47x4xbf16> -> vector<48x4xbf16>
    %414 = vector.extract_strided_slice %16 {offsets = [1, 0], sizes = [47, 4], strides = [1, 1]} : vector<48x4xbf16> to vector<47x4xbf16>
    %415 = tpu.concatenate %414, %411 in 0 : vector<47x4xbf16>, vector<1x4xbf16> -> vector<48x4xbf16>
    %c0_274 = arith.constant 0 : index
    %c0_275 = arith.constant 0 : index
    %c0_276 = arith.constant 0 : index
    %416 = vector.load %arg32[%c0_274, %c0_275, %c0_276] : memref<3x4x4xbf16, #tpu.memory_space<vmem>>, vector<1x4x4xbf16>
    %417 = vector.shape_cast %416 : vector<1x4x4xbf16> to vector<4x4xbf16>
    %cst_277 = arith.constant dense<0.000000e+00> : vector<48x4xf32>
    %418 = tpu.matmul %413, %417, %cst_277 {dimension_numbers = #tpu.dot_dimension_numbers<[1], [0], [0], [1], [0, 0, 1, 1], [], []>} : vector<48x4xbf16>, vector<4x4xbf16>, vector<48x4xf32> -> vector<48x4xf32>
    %419 = arith.addf %410, %418 : vector<48x4xf32>
    %c1_278 = arith.constant 1 : index
    %c0_279 = arith.constant 0 : index
    %c0_280 = arith.constant 0 : index
    %420 = vector.load %arg32[%c1_278, %c0_279, %c0_280] : memref<3x4x4xbf16, #tpu.memory_space<vmem>>, vector<1x4x4xbf16>
    %421 = vector.shape_cast %420 : vector<1x4x4xbf16> to vector<4x4xbf16>
    %cst_281 = arith.constant dense<0.000000e+00> : vector<48x4xf32>
    %422 = tpu.matmul %16, %421, %cst_281 {dimension_numbers = #tpu.dot_dimension_numbers<[1], [0], [0], [1], [0, 0, 1, 1], [], []>} : vector<48x4xbf16>, vector<4x4xbf16>, vector<48x4xf32> -> vector<48x4xf32>
    %423 = arith.addf %419, %422 : vector<48x4xf32>
    %c2_282 = arith.constant 2 : index
    %c0_283 = arith.constant 0 : index
    %c0_284 = arith.constant 0 : index
    %424 = vector.load %arg32[%c2_282, %c0_283, %c0_284] : memref<3x4x4xbf16, #tpu.memory_space<vmem>>, vector<1x4x4xbf16>
    %425 = vector.shape_cast %424 : vector<1x4x4xbf16> to vector<4x4xbf16>
    %cst_285 = arith.constant dense<0.000000e+00> : vector<48x4xf32>
    %426 = tpu.matmul %415, %425, %cst_285 {dimension_numbers = #tpu.dot_dimension_numbers<[1], [0], [0], [1], [0, 0, 1, 1], [], []>} : vector<48x4xbf16>, vector<4x4xbf16>, vector<48x4xf32> -> vector<48x4xf32>
    %427 = arith.addf %423, %426 : vector<48x4xf32>
    %c0_286 = arith.constant 0 : index
    %c0_287 = arith.constant 0 : index
    %428 = vector.load %arg33[%c0_286, %c0_287] : memref<1x4xf32, #tpu.memory_space<vmem>>, vector<1x4xf32>
    %429 = vector.broadcast %428 : vector<1x4xf32> to vector<48x4xf32>
    %430 = arith.addf %427, %429 : vector<48x4xf32>
    %cst_288 = arith.constant 0.000000e+00 : f32
    %431 = vector.broadcast %cst_288 : f32 to vector<48x4xf32>
    %432 = arith.maximumf %430, %431 : vector<48x4xf32>
    %cst_289 = arith.constant 0.000000e+00 : f32
    %433 = vector.shape_cast %9 : vector<48x1xi1> to vector<48x1xi1>
    %434 = vector.broadcast %433 : vector<48x1xi1> to vector<48x4xi1>
    %435 = vector.broadcast %cst_289 : f32 to vector<48x4xf32>
    %436 = arith.select %434, %432, %435 : vector<48x4xi1>, vector<48x4xf32>
    %437 = arith.truncf %436 : vector<48x4xf32> to vector<48x4xbf16>
    %cst_290 = arith.constant 0.000000e+00 : f32
    %438 = vector.broadcast %cst_290 : f32 to vector<48x4xf32>
    %cst_291 = arith.constant 0.000000e+00 : bf16
    %439 = vector.broadcast %cst_291 : bf16 to vector<1x4xbf16>
    %440 = vector.extract_strided_slice %437 {offsets = [0, 0], sizes = [47, 4], strides = [1, 1]} : vector<48x4xbf16> to vector<47x4xbf16>
    %441 = tpu.concatenate %439, %440 in 0 : vector<1x4xbf16>, vector<47x4xbf16> -> vector<48x4xbf16>
    %442 = vector.extract_strided_slice %437 {offsets = [1, 0], sizes = [47, 4], strides = [1, 1]} : vector<48x4xbf16> to vector<47x4xbf16>
    %443 = tpu.concatenate %442, %439 in 0 : vector<47x4xbf16>, vector<1x4xbf16> -> vector<48x4xbf16>
    %c0_292 = arith.constant 0 : index
    %c0_293 = arith.constant 0 : index
    %c0_294 = arith.constant 0 : index
    %444 = vector.load %arg34[%c0_292, %c0_293, %c0_294] : memref<3x4x4xbf16, #tpu.memory_space<vmem>>, vector<1x4x4xbf16>
    %445 = vector.shape_cast %444 : vector<1x4x4xbf16> to vector<4x4xbf16>
    %cst_295 = arith.constant dense<0.000000e+00> : vector<48x4xf32>
    %446 = tpu.matmul %441, %445, %cst_295 {dimension_numbers = #tpu.dot_dimension_numbers<[1], [0], [0], [1], [0, 0, 1, 1], [], []>} : vector<48x4xbf16>, vector<4x4xbf16>, vector<48x4xf32> -> vector<48x4xf32>
    %447 = arith.addf %438, %446 : vector<48x4xf32>
    %c1_296 = arith.constant 1 : index
    %c0_297 = arith.constant 0 : index
    %c0_298 = arith.constant 0 : index
    %448 = vector.load %arg34[%c1_296, %c0_297, %c0_298] : memref<3x4x4xbf16, #tpu.memory_space<vmem>>, vector<1x4x4xbf16>
    %449 = vector.shape_cast %448 : vector<1x4x4xbf16> to vector<4x4xbf16>
    %cst_299 = arith.constant dense<0.000000e+00> : vector<48x4xf32>
    %450 = tpu.matmul %437, %449, %cst_299 {dimension_numbers = #tpu.dot_dimension_numbers<[1], [0], [0], [1], [0, 0, 1, 1], [], []>} : vector<48x4xbf16>, vector<4x4xbf16>, vector<48x4xf32> -> vector<48x4xf32>
    %451 = arith.addf %447, %450 : vector<48x4xf32>
    %c2_300 = arith.constant 2 : index
    %c0_301 = arith.constant 0 : index
    %c0_302 = arith.constant 0 : index
    %452 = vector.load %arg34[%c2_300, %c0_301, %c0_302] : memref<3x4x4xbf16, #tpu.memory_space<vmem>>, vector<1x4x4xbf16>
    %453 = vector.shape_cast %452 : vector<1x4x4xbf16> to vector<4x4xbf16>
    %cst_303 = arith.constant dense<0.000000e+00> : vector<48x4xf32>
    %454 = tpu.matmul %443, %453, %cst_303 {dimension_numbers = #tpu.dot_dimension_numbers<[1], [0], [0], [1], [0, 0, 1, 1], [], []>} : vector<48x4xbf16>, vector<4x4xbf16>, vector<48x4xf32> -> vector<48x4xf32>
    %455 = arith.addf %451, %454 : vector<48x4xf32>
    %c0_304 = arith.constant 0 : index
    %c0_305 = arith.constant 0 : index
    %456 = vector.load %arg35[%c0_304, %c0_305] : memref<1x4xf32, #tpu.memory_space<vmem>>, vector<1x4xf32>
    %457 = vector.broadcast %456 : vector<1x4xf32> to vector<48x4xf32>
    %458 = arith.addf %455, %457 : vector<48x4xf32>
    %459 = vector.extract_strided_slice %458 {offsets = [16, 0], sizes = [16, 4], strides = [1, 1]} : vector<48x4xf32> to vector<16x4xf32>
    %c0_306 = arith.constant 0 : index
    %c0_307 = arith.constant 0 : index
    %c0_308 = arith.constant 0 : index
    %460 = vector.load %arg36[%c0_306, %c0_307, %c0_308] : memref<1x16x4xf32, #tpu.memory_space<vmem>>, vector<1x16x4xf32>
    %461 = vector.shape_cast %460 : vector<1x16x4xf32> to vector<16x4xf32>
    %462 = vector.shape_cast %459 : vector<16x4xf32> to vector<1x16x4xf32>
    tpu.vector_store %arg36[%c0_306, %c0_307, %c0_308], %462 {strides = array<i32>} : memref<1x16x4xf32, #tpu.memory_space<vmem>>, vector<1x16x4xf32>,
    return
  }
  func.func @transform_0(%arg0: i32, %arg1: i32) -> (i32, i32, i32) {
    %c0_i32 = arith.constant 0 : i32
    %c0_i32_0 = arith.constant 0 : i32
    return %arg0, %arg1, %c0_i32 : i32, i32, i32
  }
  func.func @transform_1(%arg0: i32, %arg1: i32) -> (i32, i32, i32, i32) {
    %c0_i32 = arith.constant 0 : i32
    %c0_i32_0 = arith.constant 0 : i32
    %c0_i32_1 = arith.constant 0 : i32
    return %arg0, %arg1, %c0_i32, %c0_i32_0 : i32, i32, i32, i32
  }
  func.func @transform_2(%arg0: i32, %arg1: i32) -> (i32, i32, i32, i32) {
    %c0_i32 = arith.constant 0 : i32
    %c0_i32_0 = arith.constant 0 : i32
    %c0_i32_1 = arith.constant 0 : i32
    return %arg0, %arg1, %c0_i32, %c0_i32_0 : i32, i32, i32, i32
  }
  func.func @transform_3(%arg0: i32, %arg1: i32) -> (i32, i32, i32) {
    %c0_i32 = arith.constant 0 : i32
    %c0_i32_0 = arith.constant 0 : i32
    %c0_i32_1 = arith.constant 0 : i32
    %c0_i32_2 = arith.constant 0 : i32
    return %c0_i32, %c0_i32_0, %c0_i32_1 : i32, i32, i32
  }
  func.func @transform_4(%arg0: i32, %arg1: i32) -> (i32, i32) {
    %c0_i32 = arith.constant 0 : i32
    %c0_i32_0 = arith.constant 0 : i32
    %c0_i32_1 = arith.constant 0 : i32
    return %c0_i32, %c0_i32_0 : i32, i32
  }
  func.func @transform_5(%arg0: i32, %arg1: i32) -> (i32, i32, i32) {
    %c0_i32 = arith.constant 0 : i32
    %c0_i32_0 = arith.constant 0 : i32
    %c0_i32_1 = arith.constant 0 : i32
    %c0_i32_2 = arith.constant 0 : i32
    return %c0_i32, %c0_i32_0, %c0_i32_1 : i32, i32, i32
  }
  func.func @transform_6(%arg0: i32, %arg1: i32) -> (i32, i32) {
    %c0_i32 = arith.constant 0 : i32
    %c0_i32_0 = arith.constant 0 : i32
    %c0_i32_1 = arith.constant 0 : i32
    return %c0_i32, %c0_i32_0 : i32, i32
  }
  func.func @transform_7(%arg0: i32, %arg1: i32) -> (i32, i32, i32) {
    %c0_i32 = arith.constant 0 : i32
    %c0_i32_0 = arith.constant 0 : i32
    %c0_i32_1 = arith.constant 0 : i32
    %c0_i32_2 = arith.constant 0 : i32
    return %c0_i32, %c0_i32_0, %c0_i32_1 : i32, i32, i32
  }
  func.func @transform_8(%arg0: i32, %arg1: i32) -> (i32, i32) {
    %c0_i32 = arith.constant 0 : i32
    %c0_i32_0 = arith.constant 0 : i32
    %c0_i32_1 = arith.constant 0 : i32
    return %c0_i32, %c0_i32_0 : i32, i32
  }
  func.func @transform_9(%arg0: i32, %arg1: i32) -> (i32, i32, i32) {
    %c0_i32 = arith.constant 0 : i32
    %c0_i32_0 = arith.constant 0 : i32
    %c0_i32_1 = arith.constant 0 : i32
    %c0_i32_2 = arith.constant 0 : i32
    return %c0_i32, %c0_i32_0, %c0_i32_1 : i32, i32, i32
  }
  func.func @transform_10(%arg0: i32, %arg1: i32) -> (i32, i32) {
    %c0_i32 = arith.constant 0 : i32
    %c0_i32_0 = arith.constant 0 : i32
    %c0_i32_1 = arith.constant 0 : i32
    return %c0_i32, %c0_i32_0 : i32, i32
  }
  func.func @transform_11(%arg0: i32, %arg1: i32) -> (i32, i32, i32) {
    %c0_i32 = arith.constant 0 : i32
    %c0_i32_0 = arith.constant 0 : i32
    %c0_i32_1 = arith.constant 0 : i32
    %c0_i32_2 = arith.constant 0 : i32
    return %c0_i32, %c0_i32_0, %c0_i32_1 : i32, i32, i32
  }
  func.func @transform_12(%arg0: i32, %arg1: i32) -> (i32, i32) {
    %c0_i32 = arith.constant 0 : i32
    %c0_i32_0 = arith.constant 0 : i32
    %c0_i32_1 = arith.constant 0 : i32
    return %c0_i32, %c0_i32_0 : i32, i32
  }
  func.func @transform_13(%arg0: i32, %arg1: i32) -> (i32, i32, i32) {
    %c0_i32 = arith.constant 0 : i32
    %c0_i32_0 = arith.constant 0 : i32
    %c0_i32_1 = arith.constant 0 : i32
    %c0_i32_2 = arith.constant 0 : i32
    return %c0_i32, %c0_i32_0, %c0_i32_1 : i32, i32, i32
  }
  func.func @transform_14(%arg0: i32, %arg1: i32) -> (i32, i32) {
    %c0_i32 = arith.constant 0 : i32
    %c0_i32_0 = arith.constant 0 : i32
    %c0_i32_1 = arith.constant 0 : i32
    return %c0_i32, %c0_i32_0 : i32, i32
  }
  func.func @transform_15(%arg0: i32, %arg1: i32) -> (i32, i32, i32) {
    %c0_i32 = arith.constant 0 : i32
    %c0_i32_0 = arith.constant 0 : i32
    %c0_i32_1 = arith.constant 0 : i32
    %c0_i32_2 = arith.constant 0 : i32
    return %c0_i32, %c0_i32_0, %c0_i32_1 : i32, i32, i32
  }
  func.func @transform_16(%arg0: i32, %arg1: i32) -> (i32, i32) {
    %c0_i32 = arith.constant 0 : i32
    %c0_i32_0 = arith.constant 0 : i32
    %c0_i32_1 = arith.constant 0 : i32
    return %c0_i32, %c0_i32_0 : i32, i32
  }
  func.func @transform_17(%arg0: i32, %arg1: i32) -> (i32, i32, i32) {
    %c0_i32 = arith.constant 0 : i32
    %c0_i32_0 = arith.constant 0 : i32
    %c0_i32_1 = arith.constant 0 : i32
    %c0_i32_2 = arith.constant 0 : i32
    return %c0_i32, %c0_i32_0, %c0_i32_1 : i32, i32, i32
  }
  func.func @transform_18(%arg0: i32, %arg1: i32) -> (i32, i32, i32) {
    %c0_i32 = arith.constant 0 : i32
    %c0_i32_0 = arith.constant 0 : i32
    %c0_i32_1 = arith.constant 0 : i32
    %c0_i32_2 = arith.constant 0 : i32
    return %c0_i32, %c0_i32_0, %c0_i32_1 : i32, i32, i32
  }
  func.func @transform_19(%arg0: i32, %arg1: i32) -> (i32, i32) {
    %c0_i32 = arith.constant 0 : i32
    %c0_i32_0 = arith.constant 0 : i32
    %c0_i32_1 = arith.constant 0 : i32
    return %c0_i32, %c0_i32_0 : i32, i32
  }
  func.func @transform_20(%arg0: i32, %arg1: i32) -> (i32, i32, i32) {
    %c0_i32 = arith.constant 0 : i32
    %c0_i32_0 = arith.constant 0 : i32
    %c0_i32_1 = arith.constant 0 : i32
    %c0_i32_2 = arith.constant 0 : i32
    return %c0_i32, %c0_i32_0, %c0_i32_1 : i32, i32, i32
  }
  func.func @transform_21(%arg0: i32, %arg1: i32) -> (i32, i32, i32) {
    %c0_i32 = arith.constant 0 : i32
    %c0_i32_0 = arith.constant 0 : i32
    %c0_i32_1 = arith.constant 0 : i32
    %c0_i32_2 = arith.constant 0 : i32
    return %c0_i32, %c0_i32_0, %c0_i32_1 : i32, i32, i32
  }
  func.func @transform_22(%arg0: i32, %arg1: i32) -> (i32, i32) {
    %c0_i32 = arith.constant 0 : i32
    %c0_i32_0 = arith.constant 0 : i32
    %c0_i32_1 = arith.constant 0 : i32
    return %c0_i32, %c0_i32_0 : i32, i32
  }
  func.func @transform_23(%arg0: i32, %arg1: i32) -> (i32, i32, i32) {
    %c0_i32 = arith.constant 0 : i32
    %c0_i32_0 = arith.constant 0 : i32
    %c0_i32_1 = arith.constant 0 : i32
    %c0_i32_2 = arith.constant 0 : i32
    return %c0_i32, %c0_i32_0, %c0_i32_1 : i32, i32, i32
  }
  func.func @transform_24(%arg0: i32, %arg1: i32) -> (i32, i32, i32) {
    %c0_i32 = arith.constant 0 : i32
    %c0_i32_0 = arith.constant 0 : i32
    %c0_i32_1 = arith.constant 0 : i32
    %c0_i32_2 = arith.constant 0 : i32
    return %c0_i32, %c0_i32_0, %c0_i32_1 : i32, i32, i32
  }
  func.func @transform_25(%arg0: i32, %arg1: i32) -> (i32, i32) {
    %c0_i32 = arith.constant 0 : i32
    %c0_i32_0 = arith.constant 0 : i32
    %c0_i32_1 = arith.constant 0 : i32
    return %c0_i32, %c0_i32_0 : i32, i32
  }
  func.func @transform_26(%arg0: i32, %arg1: i32) -> (i32, i32, i32) {
    %c0_i32 = arith.constant 0 : i32
    %c0_i32_0 = arith.constant 0 : i32
    %c0_i32_1 = arith.constant 0 : i32
    %c0_i32_2 = arith.constant 0 : i32
    return %c0_i32, %c0_i32_0, %c0_i32_1 : i32, i32, i32
  }
  func.func @transform_27(%arg0: i32, %arg1: i32) -> (i32, i32, i32) {
    %c0_i32 = arith.constant 0 : i32
    %c0_i32_0 = arith.constant 0 : i32
    %c0_i32_1 = arith.constant 0 : i32
    %c0_i32_2 = arith.constant 0 : i32
    return %c0_i32, %c0_i32_0, %c0_i32_1 : i32, i32, i32
  }
  func.func @transform_28(%arg0: i32, %arg1: i32) -> (i32, i32) {
    %c0_i32 = arith.constant 0 : i32
    %c0_i32_0 = arith.constant 0 : i32
    %c0_i32_1 = arith.constant 0 : i32
    return %c0_i32, %c0_i32_0 : i32, i32
  }
  func.func @transform_29(%arg0: i32, %arg1: i32) -> (i32, i32, i32) {
    %c0_i32 = arith.constant 0 : i32
    %c0_i32_0 = arith.constant 0 : i32
    %c0_i32_1 = arith.constant 0 : i32
    %c0_i32_2 = arith.constant 0 : i32
    return %c0_i32, %c0_i32_0, %c0_i32_1 : i32, i32, i32
  }
  func.func @transform_30(%arg0: i32, %arg1: i32) -> (i32, i32, i32) {
    %c0_i32 = arith.constant 0 : i32
    %c0_i32_0 = arith.constant 0 : i32
    %c0_i32_1 = arith.constant 0 : i32
    %c0_i32_2 = arith.constant 0 : i32
    return %c0_i32, %c0_i32_0, %c0_i32_1 : i32, i32, i32
  }
  func.func @transform_31(%arg0: i32, %arg1: i32) -> (i32, i32) {
    %c0_i32 = arith.constant 0 : i32
    %c0_i32_0 = arith.constant 0 : i32
    %c0_i32_1 = arith.constant 0 : i32
    return %c0_i32, %c0_i32_0 : i32, i32
  }
  func.func @transform_32(%arg0: i32, %arg1: i32) -> (i32, i32, i32) {
    %c0_i32 = arith.constant 0 : i32
    %c0_i32_0 = arith.constant 0 : i32
    %c0_i32_1 = arith.constant 0 : i32
    %c0_i32_2 = arith.constant 0 : i32
    return %c0_i32, %c0_i32_0, %c0_i32_1 : i32, i32, i32
  }
  func.func @transform_33(%arg0: i32, %arg1: i32) -> (i32, i32) {
    %c0_i32 = arith.constant 0 : i32
    %c0_i32_0 = arith.constant 0 : i32
    %c0_i32_1 = arith.constant 0 : i32
    return %c0_i32, %c0_i32_0 : i32, i32
  }
  func.func @transform_34(%arg0: i32, %arg1: i32) -> (i32, i32, i32) {
    %c0_i32 = arith.constant 0 : i32
    %c0_i32_0 = arith.constant 0 : i32
    return %arg0, %arg1, %c0_i32 : i32, i32, i32
  }
}

</mosaic_0001>

<llo_original>
// kernel: _lambda_.1
$region0: #{_lambda_.1}
  #allocation0 [shape = 'u32[]', space=smem, size = 0x4, offset = 0x4, fixed_abs, tag = 'smem constant byte address 0x4 - core index']
  #allocation1 [shape = 'u32[72,128]{1,0:T(1,128)}', space=vmem, size = 0x9000, scoped, tag = 'internal scratch']
  %s0 = inlined_call_operand.smem [shape: u32[35], index: -1, kind: input, shape index: {}]
  %s1 = sld [smem:[%s0]]
  %s2 = scalar_lea.smem %s0, 1
  %s3 = sld [smem:[%s2]]
  %s4 = scalar_lea.smem %s0, 2
  %s5 = sld [smem:[%s4]]
  %s6 = scalar_lea.smem %s0, 3
  %s7 = sld [smem:[%s6]]
  %s8 = scalar_lea.smem %s0, 4
  %s9 = sld [smem:[%s8]]
  %s10 = scalar_lea.smem %s0, 5
  %s11 = sld [smem:[%s10]]
  %s12 = scalar_lea.smem %s0, 6
  %s13 = sld [smem:[%s12]]
  %s14 = scalar_lea.smem %s0, 7
  %s15 = sld [smem:[%s14]]
  %s16 = scalar_lea.smem %s0, 8
  %s17 = sld [smem:[%s16]]
  %s18 = scalar_lea.smem %s0, 9
  %s19 = sld [smem:[%s18]]
  %s20 = scalar_lea.smem %s0, 10
  %s21 = sld [smem:[%s20]]
  %s22 = scalar_lea.smem %s0, 11
  %s23 = sld [smem:[%s22]]
  %s24 = scalar_lea.smem %s0, 12
  %s25 = sld [smem:[%s24]]
  %s26 = scalar_lea.smem %s0, 13
  %s27 = sld [smem:[%s26]]
  %s28 = scalar_lea.smem %s0, 14
  %s29 = sld [smem:[%s28]]
  %s30 = scalar_lea.smem %s0, 15
  %s31 = sld [smem:[%s30]]
  %s32 = scalar_lea.smem %s0, 16
  %s33 = sld [smem:[%s32]]
  %s34 = scalar_lea.smem %s0, 17
  %s35 = sld [smem:[%s34]]
  %s36 = scalar_lea.smem %s0, 18
  %s37 = sld [smem:[%s36]]
  %s38 = scalar_lea.smem %s0, 19
  %s39 = sld [smem:[%s38]]
  %s40 = scalar_lea.smem %s0, 20
  %s41 = sld [smem:[%s40]]
  %s42 = scalar_lea.smem %s0, 21
  %s43 = sld [smem:[%s42]]
  %s44 = scalar_lea.smem %s0, 22
  %s45 = sld [smem:[%s44]]
  %s46 = scalar_lea.smem %s0, 23
  %s47 = sld [smem:[%s46]]
  %s48 = scalar_lea.smem %s0, 24
  %s49 = sld [smem:[%s48]]
  %s50 = scalar_lea.smem %s0, 25
  %s51 = sld [smem:[%s50]]
  %s52 = scalar_lea.smem %s0, 26
  %s53 = sld [smem:[%s52]]
  %s54 = scalar_lea.smem %s0, 27
  %s55 = sld [smem:[%s54]]
  %s56 = scalar_lea.smem %s0, 28
  %s57 = sld [smem:[%s56]]
  %s58 = scalar_lea.smem %s0, 29
  %s59 = sld [smem:[%s58]]
  %s60 = scalar_lea.smem %s0, 30
  %s61 = sld [smem:[%s60]]
  %s62 = scalar_lea.smem %s0, 31
  %s63 = sld [smem:[%s62]]
  %s64 = scalar_lea.smem %s0, 32
  %s65 = sld [smem:[%s64]]
  %s66 = scalar_lea.smem %s0, 33
  %s67 = sld [smem:[%s66]]
  %s68 = scalar_lea.smem %s0, 34
  %s69 = sld [smem:[%s68]]
  %s70 = sld [smem:[#allocation0]]
  $region169: #{_lambda_.1} parent=0
    _
  %s72 = ssub.s32 1, %s70
  %s73 = scalar_select 0, %s72, %s70
  loop: start=0, step=1, limit=4
  $region2: #{_lambda_.1} parent=0 // loop_pre_header
    _
  $region3: #{_lambda_.1} parent=0 // loop_header
    %s75 = sphi 0, %s79
    %p76 = scmp.ge.s32.totalorder %s75, 4
    %s82 = sphi 0, %s94
    %s83 = sphi 0, %s90
    %s84 = sphi 0, %s82
    %s85 = sphi 0, %s83
    %s86 = sphi 0, %s84
    %s87 = sphi 0, %s85
    %s99 = sphi 0, %s101
    %s102 = sphi 0, %s99
    %s103 = sphi 0, %s102
    %s119 = sphi 0, %s103
    %s127 = sphi 0, %s129
    %s130 = sphi 0, %s127
    %s131 = sphi 0, %s130
    %s147 = sphi 0, %s131
    %s155 = sphi 0, %s157
    %s158 = sphi 0, %s155
    %s159 = sphi 0, %s158
    %s175 = sphi 0, %s159
    %s179 = sphi 0, %s179
    %s181 = sphi 0, %s179
    %s182 = sphi 0, %s181
    %s196 = sphi 0, %s182
    %s200 = sphi 0, %s200
    %s202 = sphi 0, %s200
    %s203 = sphi 0, %s202
    %s217 = sphi 0, %s203
    %s221 = sphi 0, %s221
    %s223 = sphi 0, %s221
    %s224 = sphi 0, %s223
    %s238 = sphi 0, %s224
    %s242 = sphi 0, %s242
    %s244 = sphi 0, %s242
    %s245 = sphi 0, %s244
    %s259 = sphi 0, %s245
    %s263 = sphi 0, %s263
    %s265 = sphi 0, %s263
    %s266 = sphi 0, %s265
    %s280 = sphi 0, %s266
    %s284 = sphi 0, %s284
    %s286 = sphi 0, %s284
    %s287 = sphi 0, %s286
    %s301 = sphi 0, %s287
    %s305 = sphi 0, %s305
    %s307 = sphi 0, %s305
    %s308 = sphi 0, %s307
    %s322 = sphi 0, %s308
    %s326 = sphi 0, %s326
    %s328 = sphi 0, %s326
    %s329 = sphi 0, %s328
    %s343 = sphi 0, %s329
    %s347 = sphi 0, %s347
    %s349 = sphi 0, %s347
    %s350 = sphi 0, %s349
    %s364 = sphi 0, %s350
    %s368 = sphi 0, %s368
    %s370 = sphi 0, %s368
    %s371 = sphi 0, %s370
    %s385 = sphi 0, %s371
    %s389 = sphi 0, %s389
    %s391 = sphi 0, %s389
    %s392 = sphi 0, %s391
    %s406 = sphi 0, %s392
    %s410 = sphi 0, %s410
    %s412 = sphi 0, %s410
    %s413 = sphi 0, %s412
    %s427 = sphi 0, %s413
    %s431 = sphi 0, %s431
    %s433 = sphi 0, %s431
    %s434 = sphi 0, %s433
    %s448 = sphi 0, %s434
    %s452 = sphi 0, %s452
    %s454 = sphi 0, %s452
    %s455 = sphi 0, %s454
    %s469 = sphi 0, %s455
    %s473 = sphi 0, %s473
    %s475 = sphi 0, %s473
    %s476 = sphi 0, %s475
    %s490 = sphi 0, %s476
    %s494 = sphi 0, %s494
    %s496 = sphi 0, %s494
    %s497 = sphi 0, %s496
    %s511 = sphi 0, %s497
    %s515 = sphi 0, %s515
    %s517 = sphi 0, %s515
    %s518 = sphi 0, %s517
    %s532 = sphi 0, %s518
    %s536 = sphi 0, %s536
    %s538 = sphi 0, %s536
    %s539 = sphi 0, %s538
    %s553 = sphi 0, %s539
    %s557 = sphi 0, %s557
    %s559 = sphi 0, %s557
    %s560 = sphi 0, %s559
    %s574 = sphi 0, %s560
    %s578 = sphi 0, %s578
    %s580 = sphi 0, %s578
    %s581 = sphi 0, %s580
    %s595 = sphi 0, %s581
    %s599 = sphi 0, %s599
    %s601 = sphi 0, %s599
    %s602 = sphi 0, %s601
    %s616 = sphi 0, %s602
    %s620 = sphi 0, %s620
    %s622 = sphi 0, %s620
    %s623 = sphi 0, %s622
    %s637 = sphi 0, %s623
    %s641 = sphi 0, %s641
    %s643 = sphi 0, %s641
    %s644 = sphi 0, %s643
    %s658 = sphi 0, %s644
    %s662 = sphi 0, %s662
    %s664 = sphi 0, %s662
    %s665 = sphi 0, %s664
    %s679 = sphi 0, %s665
    %s683 = sphi 0, %s683
    %s685 = sphi 0, %s683
    %s686 = sphi 0, %s685
    %s700 = sphi 0, %s686
    %s704 = sphi 0, %s704
    %s706 = sphi 0, %s704
    %s707 = sphi 0, %s706
    %s721 = sphi 0, %s707
    %s725 = sphi 0, %s725
    %s727 = sphi 0, %s725
    %s728 = sphi 0, %s727
    %s742 = sphi 0, %s728
    %s746 = sphi 0, %s746
    %s748 = sphi 0, %s746
    %s749 = sphi 0, %s748
    %s763 = sphi 0, %s749
    %s767 = sphi 0, %s767
    %s769 = sphi 0, %s767
    %s770 = sphi 0, %s769
    %s784 = sphi 0, %s770
    %s788 = sphi 0, %s788
    %s790 = sphi 0, %s788
    %s791 = sphi 0, %s790
    %s805 = sphi 0, %s791
    %s809 = sphi 0, %s809
    %s811 = sphi 0, %s809
    %s812 = sphi 0, %s811
    %s826 = sphi 0, %s812
    %s834 = sphi 0, %s836
    %s837 = sphi 0, %s834
    %s838 = sphi 0, %s837
    %s854 = sphi 0, %s838
  $region4: #{_lambda_.1} parent=0 // loop_header_branch
    %78 = sbr.rel (%p76) target = $region8
  $region5: #{_lambda_.1} parent=0 // loop_body
    %s80 = ssub.s32 %s75, 1
    %s81 = ssub.s32 %s75, 2
    %s88 = sadd.s32 1, %s83
    %p89 = scmp.ge.s32.totalorder %s88, 1
    %s90 = scalar_select %p89, 0, %s88
    %s91 = sadd.s32 1, %s82
    %s92 = scalar_select %p89, %s91, %s82
    %p93 = scmp.ge.s32.totalorder %s92, 2
    %s94 = scalar_select %p93, 0, %s92
    %s95 = ssub.s32 %s82, %s94
    %s96 = ssub.s32 %s83, %s90
    %s97 = sor.u32 %s95, %s96
    %p98 = scmp.eq.s32.totalorder %s97, 0
    %s100 = sadd.s32 %s99, 1
    %s101 = scalar_select %p98, %s99, %s100
    %p104 = pneg %p98
    %p105 = scmp.eq.s32.totalorder %s75, 1
    %p106 = por %p104, %p105
    %p107 = scmp.ne.s32.totalorder %s99, %s102
    %p108 = scmp.eq.s32.totalorder %s75, 0
    %p109 = por %p107, %p108
    %p110 = scmp.ne.s32.totalorder %s99, %s102
    %p111 = scmp.eq.s32.totalorder %s80, 1
    %p112 = por %p110, %p111
    %p113 = scmp.ne.s32.totalorder %s102, %s103
    %p114 = scmp.eq.s32.totalorder %s80, 0
    %p115 = por %p113, %p114
    %p116 = scmp.ne.s32.totalorder %s102, %s103
    %p117 = scmp.eq.s32.totalorder %s81, 1
    %p118 = por %p116, %p117
    %p120 = scmp.ne.s32.totalorder %s103, %s119
    %p121 = scmp.eq.s32.totalorder %s81, 0
    %p122 = por %p120, %p121
    %s123 = ssub.s32 %s82, %s94
    %s124 = ssub.s32 %s83, %s90
    %s125 = sor.u32 %s123, %s124
    %p126 = scmp.eq.s32.totalorder %s125, 0
    %s128 = sadd.s32 %s127, 1
    %s129 = scalar_select %p126, %s127, %s128
    %p132 = pneg %p126
    %p133 = scmp.eq.s32.totalorder %s75, 1
    %p134 = por %p132, %p133
    %p135 = scmp.ne.s32.totalorder %s127, %s130
    %p136 = scmp.eq.s32.totalorder %s75, 0
    %p137 = por %p135, %p136
    %p138 = scmp.ne.s32.totalorder %s127, %s130
    %p139 = scmp.eq.s32.totalorder %s80, 1
    %p140 = por %p138, %p139
    %p141 = scmp.ne.s32.totalorder %s130, %s131
    %p142 = scmp.eq.s32.totalorder %s80, 0
    %p143 = por %p141, %p142
    %p144 = scmp.ne.s32.totalorder %s130, %s131
    %p145 = scmp.eq.s32.totalorder %s81, 1
    %p146 = por %p144, %p145
    %p148 = scmp.ne.s32.totalorder %s131, %s147
    %p149 = scmp.eq.s32.totalorder %s81, 0
    %p150 = por %p148, %p149
    %s151 = ssub.s32 %s82, %s94
    %s152 = ssub.s32 %s83, %s90
    %s153 = sor.u32 %s151, %s152
    %p154 = scmp.eq.s32.totalorder %s153, 0
    %s156 = sadd.s32 %s155, 1
    %s157 = scalar_select %p154, %s155, %s156
    %p160 = pneg %p154
    %p161 = scmp.eq.s32.totalorder %s75, 1
    %p162 = por %p160, %p161
    %p163 = scmp.ne.s32.totalorder %s155, %s158
    %p164 = scmp.eq.s32.totalorder %s75, 0
    %p165 = por %p163, %p164
    %p166 = scmp.ne.s32.totalorder %s155, %s158
    %p167 = scmp.eq.s32.totalorder %s80, 1
    %p168 = por %p166, %p167
    %p169 = scmp.ne.s32.totalorder %s158, %s159
    %p170 = scmp.eq.s32.totalorder %s80, 0
    %p171 = por %p169, %p170
    %p172 = scmp.ne.s32.totalorder %s158, %s159
    %p173 = scmp.eq.s32.totalorder %s81, 1
    %p174 = por %p172, %p173
    %p176 = scmp.ne.s32.totalorder %s159, %s175
    %p177 = scmp.eq.s32.totalorder %s81, 0
    %p178 = por %p176, %p177
    %s180 = sadd.s32 %s179, 1
    %p183 = scmp.eq.s32.totalorder %s75, 1
    %p184 = scmp.ne.s32.totalorder %s179, %s181
    %p185 = scmp.eq.s32.totalorder %s75, 0
    %p186 = por %p184, %p185
    %p187 = scmp.ne.s32.totalorder %s179, %s181
    %p188 = scmp.eq.s32.totalorder %s80, 1
    %p189 = por %p187, %p188
    %p190 = scmp.ne.s32.totalorder %s181, %s182
    %p191 = scmp.eq.s32.totalorder %s80, 0
    %p192 = por %p190, %p191
    %p193 = scmp.ne.s32.totalorder %s181, %s182
    %p194 = scmp.eq.s32.totalorder %s81, 1
    %p195 = por %p193, %p194
    %p197 = scmp.ne.s32.totalorder %s182, %s196
    %p198 = scmp.eq.s32.totalorder %s81, 0
    %p199 = por %p197, %p198
    %s201 = sadd.s32 %s200, 1
    %p204 = scmp.eq.s32.totalorder %s75, 1
    %p205 = scmp.ne.s32.totalorder %s200, %s202
    %p206 = scmp.eq.s32.totalorder %s75, 0
    %p207 = por %p205, %p206
    %p208 = scmp.ne.s32.totalorder %s200, %s202
    %p209 = scmp.eq.s32.totalorder %s80, 1
    %p210 = por %p208, %p209
    %p211 = scmp.ne.s32.totalorder %s202, %s203
    %p212 = scmp.eq.s32.totalorder %s80, 0
    %p213 = por %p211, %p212
    %p214 = scmp.ne.s32.totalorder %s202, %s203
    %p215 = scmp.eq.s32.totalorder %s81, 1
    %p216 = por %p214, %p215
    %p218 = scmp.ne.s32.totalorder %s203, %s217
    %p219 = scmp.eq.s32.totalorder %s81, 0
    %p220 = por %p218, %p219
    %s222 = sadd.s32 %s221, 1
    %p225 = scmp.eq.s32.totalorder %s75, 1
    %p226 = scmp.ne.s32.totalorder %s221, %s223
    %p227 = scmp.eq.s32.totalorder %s75, 0
    %p228 = por %p226, %p227
    %p229 = scmp.ne.s32.totalorder %s221, %s223
    %p230 = scmp.eq.s32.totalorder %s80, 1
    %p231 = por %p229, %p230
    %p232 = scmp.ne.s32.totalorder %s223, %s224
    %p233 = scmp.eq.s32.totalorder %s80, 0
    %p234 = por %p232, %p233
    %p235 = scmp.ne.s32.totalorder %s223, %s224
    %p236 = scmp.eq.s32.totalorder %s81, 1
    %p237 = por %p235, %p236
    %p239 = scmp.ne.s32.totalorder %s224, %s238
    %p240 = scmp.eq.s32.totalorder %s81, 0
    %p241 = por %p239, %p240
    %s243 = sadd.s32 %s242, 1
    %p246 = scmp.eq.s32.totalorder %s75, 1
    %p247 = scmp.ne.s32.totalorder %s242, %s244
    %p248 = scmp.eq.s32.totalorder %s75, 0
    %p249 = por %p247, %p248
    %p250 = scmp.ne.s32.totalorder %s242, %s244
    %p251 = scmp.eq.s32.totalorder %s80, 1
    %p252 = por %p250, %p251
    %p253 = scmp.ne.s32.totalorder %s244, %s245
    %p254 = scmp.eq.s32.totalorder %s80, 0
    %p255 = por %p253, %p254
    %p256 = scmp.ne.s32.totalorder %s244, %s245
    %p257 = scmp.eq.s32.totalorder %s81, 1
    %p258 = por %p256, %p257
    %p260 = scmp.ne.s32.totalorder %s245, %s259
    %p261 = scmp.eq.s32.totalorder %s81, 0
    %p262 = por %p260, %p261
    %s264 = sadd.s32 %s263, 1
    %p267 = scmp.eq.s32.totalorder %s75, 1
    %p268 = scmp.ne.s32.totalorder %s263, %s265
    %p269 = scmp.eq.s32.totalorder %s75, 0
    %p270 = por %p268, %p269
    %p271 = scmp.ne.s32.totalorder %s263, %s265
    %p272 = scmp.eq.s32.totalorder %s80, 1
    %p273 = por %p271, %p272
    %p274 = scmp.ne.s32.totalorder %s265, %s266
    %p275 = scmp.eq.s32.totalorder %s80, 0
    %p276 = por %p274, %p275
    %p277 = scmp.ne.s32.totalorder %s265, %s266
    %p278 = scmp.eq.s32.totalorder %s81, 1
    %p279 = por %p277, %p278
    %p281 = scmp.ne.s32.totalorder %s266, %s280
    %p282 = scmp.eq.s32.totalorder %s81, 0
    %p283 = por %p281, %p282
    %s285 = sadd.s32 %s284, 1
    %p288 = scmp.eq.s32.totalorder %s75, 1
    %p289 = scmp.ne.s32.totalorder %s284, %s286
    %p290 = scmp.eq.s32.totalorder %s75, 0
    %p291 = por %p289, %p290
    %p292 = scmp.ne.s32.totalorder %s284, %s286
    %p293 = scmp.eq.s32.totalorder %s80, 1
    %p294 = por %p292, %p293
    %p295 = scmp.ne.s32.totalorder %s286, %s287
    %p296 = scmp.eq.s32.totalorder %s80, 0
    %p297 = por %p295, %p296
    %p298 = scmp.ne.s32.totalorder %s286, %s287
    %p299 = scmp.eq.s32.totalorder %s81, 1
    %p300 = por %p298, %p299
    %p302 = scmp.ne.s32.totalorder %s287, %s301
    %p303 = scmp.eq.s32.totalorder %s81, 0
    %p304 = por %p302, %p303
    %s306 = sadd.s32 %s305, 1
    %p309 = scmp.eq.s32.totalorder %s75, 1
    %p310 = scmp.ne.s32.totalorder %s305, %s307
    %p311 = scmp.eq.s32.totalorder %s75, 0
    %p312 = por %p310, %p311
    %p313 = scmp.ne.s32.totalorder %s305, %s307
    %p314 = scmp.eq.s32.totalorder %s80, 1
    %p315 = por %p313, %p314
    %p316 = scmp.ne.s32.totalorder %s307, %s308
    %p317 = scmp.eq.s32.totalorder %s80, 0
    %p318 = por %p316, %p317
    %p319 = scmp.ne.s32.totalorder %s307, %s308
    %p320 = scmp.eq.s32.totalorder %s81, 1
    %p321 = por %p319, %p320
    %p323 = scmp.ne.s32.totalorder %s308, %s322
    %p324 = scmp.eq.s32.totalorder %s81, 0
    %p325 = por %p323, %p324
    %s327 = sadd.s32 %s326, 1
    %p330 = scmp.eq.s32.totalorder %s75, 1
    %p331 = scmp.ne.s32.totalorder %s326, %s328
    %p332 = scmp.eq.s32.totalorder %s75, 0
    %p333 = por %p331, %p332
    %p334 = scmp.ne.s32.totalorder %s326, %s328
    %p335 = scmp.eq.s32.totalorder %s80, 1
    %p336 = por %p334, %p335
    %p337 = scmp.ne.s32.totalorder %s328, %s329
    %p338 = scmp.eq.s32.totalorder %s80, 0
    %p339 = por %p337, %p338
    %p340 = scmp.ne.s32.totalorder %s328, %s329
    %p341 = scmp.eq.s32.totalorder %s81, 1
    %p342 = por %p340, %p341
    %p344 = scmp.ne.s32.totalorder %s329, %s343
    %p345 = scmp.eq.s32.totalorder %s81, 0
    %p346 = por %p344, %p345
    %s348 = sadd.s32 %s347, 1
    %p351 = scmp.eq.s32.totalorder %s75, 1
    %p352 = scmp.ne.s32.totalorder %s347, %s349
    %p353 = scmp.eq.s32.totalorder %s75, 0
    %p354 = por %p352, %p353
    %p355 = scmp.ne.s32.totalorder %s347, %s349
    %p356 = scmp.eq.s32.totalorder %s80, 1
    %p357 = por %p355, %p356
    %p358 = scmp.ne.s32.totalorder %s349, %s350
    %p359 = scmp.eq.s32.totalorder %s80, 0
    %p360 = por %p358, %p359
    %p361 = scmp.ne.s32.totalorder %s349, %s350
    %p362 = scmp.eq.s32.totalorder %s81, 1
    %p363 = por %p361, %p362
    %p365 = scmp.ne.s32.totalorder %s350, %s364
    %p366 = scmp.eq.s32.totalorder %s81, 0
    %p367 = por %p365, %p366
    %s369 = sadd.s32 %s368, 1
    %p372 = scmp.eq.s32.totalorder %s75, 1
    %p373 = scmp.ne.s32.totalorder %s368, %s370
    %p374 = scmp.eq.s32.totalorder %s75, 0
    %p375 = por %p373, %p374
    %p376 = scmp.ne.s32.totalorder %s368, %s370
    %p377 = scmp.eq.s32.totalorder %s80, 1
    %p378 = por %p376, %p377
    %p379 = scmp.ne.s32.totalorder %s370, %s371
    %p380 = scmp.eq.s32.totalorder %s80, 0
    %p381 = por %p379, %p380
    %p382 = scmp.ne.s32.totalorder %s370, %s371
    %p383 = scmp.eq.s32.totalorder %s81, 1
    %p384 = por %p382, %p383
    %p386 = scmp.ne.s32.totalorder %s371, %s385
    %p387 = scmp.eq.s32.totalorder %s81, 0
    %p388 = por %p386, %p387
    %s390 = sadd.s32 %s389, 1
    %p393 = scmp.eq.s32.totalorder %s75, 1
    %p394 = scmp.ne.s32.totalorder %s389, %s391
    %p395 = scmp.eq.s32.totalorder %s75, 0
    %p396 = por %p394, %p395
    %p397 = scmp.ne.s32.totalorder %s389, %s391
    %p398 = scmp.eq.s32.totalorder %s80, 1
    %p399 = por %p397, %p398
    %p400 = scmp.ne.s32.totalorder %s391, %s392
    %p401 = scmp.eq.s32.totalorder %s80, 0
    %p402 = por %p400, %p401
    %p403 = scmp.ne.s32.totalorder %s391, %s392
    %p404 = scmp.eq.s32.totalorder %s81, 1
    %p405 = por %p403, %p404
    %p407 = scmp.ne.s32.totalorder %s392, %s406
    %p408 = scmp.eq.s32.totalorder %s81, 0
    %p409 = por %p407, %p408
    %s411 = sadd.s32 %s410, 1
    %p414 = scmp.eq.s32.totalorder %s75, 1
    %p415 = scmp.ne.s32.totalorder %s410, %s412
    %p416 = scmp.eq.s32.totalorder %s75, 0
    %p417 = por %p415, %p416
    %p418 = scmp.ne.s32.totalorder %s410, %s412
    %p419 = scmp.eq.s32.totalorder %s80, 1
    %p420 = por %p418, %p419
    %p421 = scmp.ne.s32.totalorder %s412, %s413
    %p422 = scmp.eq.s32.totalorder %s80, 0
    %p423 = por %p421, %p422
    %p424 = scmp.ne.s32.totalorder %s412, %s413
    %p425 = scmp.eq.s32.totalorder %s81, 1
    %p426 = por %p424, %p425
    %p428 = scmp.ne.s32.totalorder %s413, %s427
    %p429 = scmp.eq.s32.totalorder %s81, 0
    %p430 = por %p428, %p429
    %s432 = sadd.s32 %s431, 1
    %p435 = scmp.eq.s32.totalorder %s75, 1
    %p436 = scmp.ne.s32.totalorder %s431, %s433
    %p437 = scmp.eq.s32.totalorder %s75, 0
    %p438 = por %p436, %p437
    %p439 = scmp.ne.s32.totalorder %s431, %s433
    %p440 = scmp.eq.s32.totalorder %s80, 1
    %p441 = por %p439, %p440
    %p442 = scmp.ne.s32.totalorder %s433, %s434
    %p443 = scmp.eq.s32.totalorder %s80, 0
    %p444 = por %p442, %p443
    %p445 = scmp.ne.s32.totalorder %s433, %s434
    %p446 = scmp.eq.s32.totalorder %s81, 1
    %p447 = por %p445, %p446
    %p449 = scmp.ne.s32.totalorder %s434, %s448
    %p450 = scmp.eq.s32.totalorder %s81, 0
    %p451 = por %p449, %p450
    %s453 = sadd.s32 %s452, 1
    %p456 = scmp.eq.s32.totalorder %s75, 1
    %p457 = scmp.ne.s32.totalorder %s452, %s454
    %p458 = scmp.eq.s32.totalorder %s75, 0
    %p459 = por %p457, %p458
    %p460 = scmp.ne.s32.totalorder %s452, %s454
    %p461 = scmp.eq.s32.totalorder %s80, 1
    %p462 = por %p460, %p461
    %p463 = scmp.ne.s32.totalorder %s454, %s455
    %p464 = scmp.eq.s32.totalorder %s80, 0
    %p465 = por %p463, %p464
    %p466 = scmp.ne.s32.totalorder %s454, %s455
    %p467 = scmp.eq.s32.totalorder %s81, 1
    %p468 = por %p466, %p467
    %p470 = scmp.ne.s32.totalorder %s455, %s469
    %p471 = scmp.eq.s32.totalorder %s81, 0
    %p472 = por %p470, %p471
    %s474 = sadd.s32 %s473, 1
    %p477 = scmp.eq.s32.totalorder %s75, 1
    %p478 = scmp.ne.s32.totalorder %s473, %s475
    %p479 = scmp.eq.s32.totalorder %s75, 0
    %p480 = por %p478, %p479
    %p481 = scmp.ne.s32.totalorder %s473, %s475
    %p482 = scmp.eq.s32.totalorder %s80, 1
    %p483 = por %p481, %p482
    %p484 = scmp.ne.s32.totalorder %s475, %s476
    %p485 = scmp.eq.s32.totalorder %s80, 0
    %p486 = por %p484, %p485
    %p487 = scmp.ne.s32.totalorder %s475, %s476
    %p488 = scmp.eq.s32.totalorder %s81, 1
    %p489 = por %p487, %p488
    %p491 = scmp.ne.s32.totalorder %s476, %s490
    %p492 = scmp.eq.s32.totalorder %s81, 0
    %p493 = por %p491, %p492
    %s495 = sadd.s32 %s494, 1
    %p498 = scmp.eq.s32.totalorder %s75, 1
    %p499 = scmp.ne.s32.totalorder %s494, %s496
    %p500 = scmp.eq.s32.totalorder %s75, 0
    %p501 = por %p499, %p500
    %p502 = scmp.ne.s32.totalorder %s494, %s496
    %p503 = scmp.eq.s32.totalorder %s80, 1
    %p504 = por %p502, %p503
    %p505 = scmp.ne.s32.totalorder %s496, %s497
    %p506 = scmp.eq.s32.totalorder %s80, 0
    %p507 = por %p505, %p506
    %p508 = scmp.ne.s32.totalorder %s496, %s497
    %p509 = scmp.eq.s32.totalorder %s81, 1
    %p510 = por %p508, %p509
    %p512 = scmp.ne.s32.totalorder %s497, %s511
    %p513 = scmp.eq.s32.totalorder %s81, 0
    %p514 = por %p512, %p513
    %s516 = sadd.s32 %s515, 1
    %p519 = scmp.eq.s32.totalorder %s75, 1
    %p520 = scmp.ne.s32.totalorder %s515, %s517
    %p521 = scmp.eq.s32.totalorder %s75, 0
    %p522 = por %p520, %p521
    %p523 = scmp.ne.s32.totalorder %s515, %s517
    %p524 = scmp.eq.s32.totalorder %s80, 1
    %p525 = por %p523, %p524
    %p526 = scmp.ne.s32.totalorder %s517, %s518
    %p527 = scmp.eq.s32.totalorder %s80, 0
    %p528 = por %p526, %p527
    %p529 = scmp.ne.s32.totalorder %s517, %s518
    %p530 = scmp.eq.s32.totalorder %s81, 1
    %p531 = por %p529, %p530
    %p533 = scmp.ne.s32.totalorder %s518, %s532
    %p534 = scmp.eq.s32.totalorder %s81, 0
    %p535 = por %p533, %p534
    %s537 = sadd.s32 %s536, 1
    %p540 = scmp.eq.s32.totalorder %s75, 1
    %p541 = scmp.ne.s32.totalorder %s536, %s538
    %p542 = scmp.eq.s32.totalorder %s75, 0
    %p543 = por %p541, %p542
    %p544 = scmp.ne.s32.totalorder %s536, %s538
    %p545 = scmp.eq.s32.totalorder %s80, 1
    %p546 = por %p544, %p545
    %p547 = scmp.ne.s32.totalorder %s538, %s539
    %p548 = scmp.eq.s32.totalorder %s80, 0
    %p549 = por %p547, %p548
    %p550 = scmp.ne.s32.totalorder %s538, %s539
    %p551 = scmp.eq.s32.totalorder %s81, 1
    %p552 = por %p550, %p551
    %p554 = scmp.ne.s32.totalorder %s539, %s553
    %p555 = scmp.eq.s32.totalorder %s81, 0
    %p556 = por %p554, %p555
    %s558 = sadd.s32 %s557, 1
    %p561 = scmp.eq.s32.totalorder %s75, 1
    %p562 = scmp.ne.s32.totalorder %s557, %s559
    %p563 = scmp.eq.s32.totalorder %s75, 0
    %p564 = por %p562, %p563
    %p565 = scmp.ne.s32.totalorder %s557, %s559
    %p566 = scmp.eq.s32.totalorder %s80, 1
    %p567 = por %p565, %p566
    %p568 = scmp.ne.s32.totalorder %s559, %s560
    %p569 = scmp.eq.s32.totalorder %s80, 0
    %p570 = por %p568, %p569
    %p571 = scmp.ne.s32.totalorder %s559, %s560
    %p572 = scmp.eq.s32.totalorder %s81, 1
    %p573 = por %p571, %p572
    %p575 = scmp.ne.s32.totalorder %s560, %s574
    %p576 = scmp.eq.s32.totalorder %s81, 0
    %p577 = por %p575, %p576
    %s579 = sadd.s32 %s578, 1
    %p582 = scmp.eq.s32.totalorder %s75, 1
    %p583 = scmp.ne.s32.totalorder %s578, %s580
    %p584 = scmp.eq.s32.totalorder %s75, 0
    %p585 = por %p583, %p584
    %p586 = scmp.ne.s32.totalorder %s578, %s580
    %p587 = scmp.eq.s32.totalorder %s80, 1
    %p588 = por %p586, %p587
    %p589 = scmp.ne.s32.totalorder %s580, %s581
    %p590 = scmp.eq.s32.totalorder %s80, 0
    %p591 = por %p589, %p590
    %p592 = scmp.ne.s32.totalorder %s580, %s581
    %p593 = scmp.eq.s32.totalorder %s81, 1
    %p594 = por %p592, %p593
    %p596 = scmp.ne.s32.totalorder %s581, %s595
    %p597 = scmp.eq.s32.totalorder %s81, 0
    %p598 = por %p596, %p597
    %s600 = sadd.s32 %s599, 1
    %p603 = scmp.eq.s32.totalorder %s75, 1
    %p604 = scmp.ne.s32.totalorder %s599, %s601
    %p605 = scmp.eq.s32.totalorder %s75, 0
    %p606 = por %p604, %p605
    %p607 = scmp.ne.s32.totalorder %s599, %s601
    %p608 = scmp.eq.s32.totalorder %s80, 1
    %p609 = por %p607, %p608
    %p610 = scmp.ne.s32.totalorder %s601, %s602
    %p611 = scmp.eq.s32.totalorder %s80, 0
    %p612 = por %p610, %p611
    %p613 = scmp.ne.s32.totalorder %s601, %s602
    %p614 = scmp.eq.s32.totalorder %s81, 1
    %p615 = por %p613, %p614
    %p617 = scmp.ne.s32.totalorder %s602, %s616
    %p618 = scmp.eq.s32.totalorder %s81, 0
    %p619 = por %p617, %p618
    %s621 = sadd.s32 %s620, 1
    %p624 = scmp.eq.s32.totalorder %s75, 1
    %p625 = scmp.ne.s32.totalorder %s620, %s622
    %p626 = scmp.eq.s32.totalorder %s75, 0
    %p627 = por %p625, %p626
    %p628 = scmp.ne.s32.totalorder %s620, %s622
    %p629 = scmp.eq.s32.totalorder %s80, 1
    %p630 = por %p628, %p629
    %p631 = scmp.ne.s32.totalorder %s622, %s623
    %p632 = scmp.eq.s32.totalorder %s80, 0
    %p633 = por %p631, %p632
    %p634 = scmp.ne.s32.totalorder %s622, %s623
    %p635 = scmp.eq.s32.totalorder %s81, 1
    %p636 = por %p634, %p635
    %p638 = scmp.ne.s32.totalorder %s623, %s637
    %p639 = scmp.eq.s32.totalorder %s81, 0
    %p640 = por %p638, %p639
    %s642 = sadd.s32 %s641, 1
    %p645 = scmp.eq.s32.totalorder %s75, 1
    %p646 = scmp.ne.s32.totalorder %s641, %s643
    %p647 = scmp.eq.s32.totalorder %s75, 0
    %p648 = por %p646, %p647
    %p649 = scmp.ne.s32.totalorder %s641, %s643
    %p650 = scmp.eq.s32.totalorder %s80, 1
    %p651 = por %p649, %p650
    %p652 = scmp.ne.s32.totalorder %s643, %s644
    %p653 = scmp.eq.s32.totalorder %s80, 0
    %p654 = por %p652, %p653
    %p655 = scmp.ne.s32.totalorder %s643, %s644
    %p656 = scmp.eq.s32.totalorder %s81, 1
    %p657 = por %p655, %p656
    %p659 = scmp.ne.s32.totalorder %s644, %s658
    %p660 = scmp.eq.s32.totalorder %s81, 0
    %p661 = por %p659, %p660
    %s663 = sadd.s32 %s662, 1
    %p666 = scmp.eq.s32.totalorder %s75, 1
    %p667 = scmp.ne.s32.totalorder %s662, %s664
    %p668 = scmp.eq.s32.totalorder %s75, 0
    %p669 = por %p667, %p668
    %p670 = scmp.ne.s32.totalorder %s662, %s664
    %p671 = scmp.eq.s32.totalorder %s80, 1
    %p672 = por %p670, %p671
    %p673 = scmp.ne.s32.totalorder %s664, %s665
    %p674 = scmp.eq.s32.totalorder %s80, 0
    %p675 = por %p673, %p674
    %p676 = scmp.ne.s32.totalorder %s664, %s665
    %p677 = scmp.eq.s32.totalorder %s81, 1
    %p678 = por %p676, %p677
    %p680 = scmp.ne.s32.totalorder %s665, %s679
    %p681 = scmp.eq.s32.totalorder %s81, 0
    %p682 = por %p680, %p681
    %s684 = sadd.s32 %s683, 1
    %p687 = scmp.eq.s32.totalorder %s75, 1
    %p688 = scmp.ne.s32.totalorder %s683, %s685
    %p689 = scmp.eq.s32.totalorder %s75, 0
    %p690 = por %p688, %p689
    %p691 = scmp.ne.s32.totalorder %s683, %s685
    %p692 = scmp.eq.s32.totalorder %s80, 1
    %p693 = por %p691, %p692
    %p694 = scmp.ne.s32.totalorder %s685, %s686
    %p695 = scmp.eq.s32.totalorder %s80, 0
    %p696 = por %p694, %p695
    %p697 = scmp.ne.s32.totalorder %s685, %s686
    %p698 = scmp.eq.s32.totalorder %s81, 1
    %p699 = por %p697, %p698
    %p701 = scmp.ne.s32.totalorder %s686, %s700
    %p702 = scmp.eq.s32.totalorder %s81, 0
    %p703 = por %p701, %p702
    %s705 = sadd.s32 %s704, 1
    %p708 = scmp.eq.s32.totalorder %s75, 1
    %p709 = scmp.ne.s32.totalorder %s704, %s706
    %p710 = scmp.eq.s32.totalorder %s75, 0
    %p711 = por %p709, %p710
    %p712 = scmp.ne.s32.totalorder %s704, %s706
    %p713 = scmp.eq.s32.totalorder %s80, 1
    %p714 = por %p712, %p713
    %p715 = scmp.ne.s32.totalorder %s706, %s707
    %p716 = scmp.eq.s32.totalorder %s80, 0
    %p717 = por %p715, %p716
    %p718 = scmp.ne.s32.totalorder %s706, %s707
    %p719 = scmp.eq.s32.totalorder %s81, 1
    %p720 = por %p718, %p719
    %p722 = scmp.ne.s32.totalorder %s707, %s721
    %p723 = scmp.eq.s32.totalorder %s81, 0
    %p724 = por %p722, %p723
    %s726 = sadd.s32 %s725, 1
    %p729 = scmp.eq.s32.totalorder %s75, 1
    %p730 = scmp.ne.s32.totalorder %s725, %s727
    %p731 = scmp.eq.s32.totalorder %s75, 0
    %p732 = por %p730, %p731
    %p733 = scmp.ne.s32.totalorder %s725, %s727
    %p734 = scmp.eq.s32.totalorder %s80, 1
    %p735 = por %p733, %p734
    %p736 = scmp.ne.s32.totalorder %s727, %s728
    %p737 = scmp.eq.s32.totalorder %s80, 0
    %p738 = por %p736, %p737
    %p739 = scmp.ne.s32.totalorder %s727, %s728
    %p740 = scmp.eq.s32.totalorder %s81, 1
    %p741 = por %p739, %p740
    %p743 = scmp.ne.s32.totalorder %s728, %s742
    %p744 = scmp.eq.s32.totalorder %s81, 0
    %p745 = por %p743, %p744
    %s747 = sadd.s32 %s746, 1
    %p750 = scmp.eq.s32.totalorder %s75, 1
    %p751 = scmp.ne.s32.totalorder %s746, %s748
    %p752 = scmp.eq.s32.totalorder %s75, 0
    %p753 = por %p751, %p752
    %p754 = scmp.ne.s32.totalorder %s746, %s748
    %p755 = scmp.eq.s32.totalorder %s80, 1
    %p756 = por %p754, %p755
    %p757 = scmp.ne.s32.totalorder %s748, %s749
    %p758 = scmp.eq.s32.totalorder %s80, 0
    %p759 = por %p757, %p758
    %p760 = scmp.ne.s32.totalorder %s748, %s749
    %p761 = scmp.eq.s32.totalorder %s81, 1
    %p762 = por %p760, %p761
    %p764 = scmp.ne.s32.totalorder %s749, %s763
    %p765 = scmp.eq.s32.totalorder %s81, 0
    %p766 = por %p764, %p765
    %s768 = sadd.s32 %s767, 1
    %p771 = scmp.eq.s32.totalorder %s75, 1
    %p772 = scmp.ne.s32.totalorder %s767, %s769
    %p773 = scmp.eq.s32.totalorder %s75, 0
    %p774 = por %p772, %p773
    %p775 = scmp.ne.s32.totalorder %s767, %s769
    %p776 = scmp.eq.s32.totalorder %s80, 1
    %p777 = por %p775, %p776
    %p778 = scmp.ne.s32.totalorder %s769, %s770
    %p779 = scmp.eq.s32.totalorder %s80, 0
    %p780 = por %p778, %p779
    %p781 = scmp.ne.s32.totalorder %s769, %s770
    %p782 = scmp.eq.s32.totalorder %s81, 1
    %p783 = por %p781, %p782
    %p785 = scmp.ne.s32.totalorder %s770, %s784
    %p786 = scmp.eq.s32.totalorder %s81, 0
    %p787 = por %p785, %p786
    %s789 = sadd.s32 %s788, 1
    %p792 = scmp.eq.s32.totalorder %s75, 1
    %p793 = scmp.ne.s32.totalorder %s788, %s790
    %p794 = scmp.eq.s32.totalorder %s75, 0
    %p795 = por %p793, %p794
    %p796 = scmp.ne.s32.totalorder %s788, %s790
    %p797 = scmp.eq.s32.totalorder %s80, 1
    %p798 = por %p796, %p797
    %p799 = scmp.ne.s32.totalorder %s790, %s791
    %p800 = scmp.eq.s32.totalorder %s80, 0
    %p801 = por %p799, %p800
    %p802 = scmp.ne.s32.totalorder %s790, %s791
    %p803 = scmp.eq.s32.totalorder %s81, 1
    %p804 = por %p802, %p803
    %p806 = scmp.ne.s32.totalorder %s791, %s805
    %p807 = scmp.eq.s32.totalorder %s81, 0
    %p808 = por %p806, %p807
    %s810 = sadd.s32 %s809, 1
    %p813 = scmp.eq.s32.totalorder %s75, 1
    %p814 = scmp.ne.s32.totalorder %s809, %s811
    %p815 = scmp.eq.s32.totalorder %s75, 0
    %p816 = por %p814, %p815
    %p817 = scmp.ne.s32.totalorder %s809, %s811
    %p818 = scmp.eq.s32.totalorder %s80, 1
    %p819 = por %p817, %p818
    %p820 = scmp.ne.s32.totalorder %s811, %s812
    %p821 = scmp.eq.s32.totalorder %s80, 0
    %p822 = por %p820, %p821
    %p823 = scmp.ne.s32.totalorder %s811, %s812
    %p824 = scmp.eq.s32.totalorder %s81, 1
    %p825 = por %p823, %p824
    %p827 = scmp.ne.s32.totalorder %s812, %s826
    %p828 = scmp.eq.s32.totalorder %s81, 0
    %p829 = por %p827, %p828
    %s830 = ssub.s32 %s82, %s94
    %s831 = ssub.s32 %s83, %s90
    %s832 = sor.u32 %s830, %s831
    %p833 = scmp.eq.s32.totalorder %s832, 0
    %s835 = sadd.s32 %s834, 1
    %s836 = scalar_select %p833, %s834, %s835
    %p839 = pneg %p833
    %p840 = scmp.eq.s32.totalorder %s75, 1
    %p841 = por %p839, %p840
    %p842 = scmp.ne.s32.totalorder %s834, %s837
    %p843 = scmp.eq.s32.totalorder %s75, 0
    %p844 = por %p842, %p843
    %p845 = scmp.ne.s32.totalorder %s834, %s837
    %p846 = scmp.eq.s32.totalorder %s80, 1
    %p847 = por %p845, %p846
    %p848 = scmp.ne.s32.totalorder %s837, %s838
    %p849 = scmp.eq.s32.totalorder %s80, 0
    %p850 = por %p848, %p849
    %p851 = scmp.ne.s32.totalorder %s837, %s838
    %p852 = scmp.eq.s32.totalorder %s81, 1
    %p853 = por %p851, %p852
    %p855 = scmp.ne.s32.totalorder %s838, %s854
    %p856 = scmp.eq.s32.totalorder %s81, 0
    %p857 = por %p855, %p856
    %p858 = scmp.le.s32.totalorder 1, %s75
    %p859 = scmp.lt.s32.totalorder %s75, 3
    %p860 = pnand %p858, %p859
    %p861 = pneg %p860
    // Predicated region
    $region9: #{_lambda_.1} parent=5 // pred_check
      _
    $region10: #{_lambda_.1} parent=5 // pred_check_branch
      %863 = sbr.rel (%p860) target = $region12
    $region11: #{_lambda_.1} parent=5 // pred_region
      %s864 = ssub.s32 %s75, 1
      // Predicated region
      $region13: #{_lambda_.1} parent=11 // pred_check
        %p865 = pneg %p192
      $region14: #{_lambda_.1} parent=11 // pred_check_branch
        %867 = sbr.rel (%p865) target = $region16
      $region15: #{_lambda_.1} parent=11 // pred_region
        _
      $region16: #{_lambda_.1} parent=11 // pred_fallthru
        _
      // Predicated region
      $region17: #{_lambda_.1} parent=11 // pred_check
        %p868 = pneg %p213
      $region18: #{_lambda_.1} parent=11 // pred_check_branch
        %870 = sbr.rel (%p868) target = $region20
      $region19: #{_lambda_.1} parent=11 // pred_region
        _
      $region20: #{_lambda_.1} parent=11 // pred_fallthru
        _
      // Predicated region
      $region21: #{_lambda_.1} parent=11 // pred_check
        %p871 = pneg %p234
      $region22: #{_lambda_.1} parent=11 // pred_check_branch
        %873 = sbr.rel (%p871) target = $region24
      $region23: #{_lambda_.1} parent=11 // pred_region
        _
      $region24: #{_lambda_.1} parent=11 // pred_fallthru
        _
      // Predicated region
      $region25: #{_lambda_.1} parent=11 // pred_check
        %p874 = pneg %p255
      $region26: #{_lambda_.1} parent=11 // pred_check_branch
        %876 = sbr.rel (%p874) target = $region28
      $region27: #{_lambda_.1} parent=11 // pred_region
        _
      $region28: #{_lambda_.1} parent=11 // pred_fallthru
        _
      // Predicated region
      $region29: #{_lambda_.1} parent=11 // pred_check
        %p877 = pneg %p276
      $region30: #{_lambda_.1} parent=11 // pred_check_branch
        %879 = sbr.rel (%p877) target = $region32
      $region31: #{_lambda_.1} parent=11 // pred_region
        _
      $region32: #{_lambda_.1} parent=11 // pred_fallthru
        _
      // Predicated region
      $region33: #{_lambda_.1} parent=11 // pred_check
        %p880 = pneg %p297
      $region34: #{_lambda_.1} parent=11 // pred_check_branch
        %882 = sbr.rel (%p880) target = $region36
      $region35: #{_lambda_.1} parent=11 // pred_region
        _
      $region36: #{_lambda_.1} parent=11 // pred_fallthru
        _
      // Predicated region
      $region37: #{_lambda_.1} parent=11 // pred_check
        %p883 = pneg %p318
      $region38: #{_lambda_.1} parent=11 // pred_check_branch
        %885 = sbr.rel (%p883) target = $region40
      $region39: #{_lambda_.1} parent=11 // pred_region
        _
      $region40: #{_lambda_.1} parent=11 // pred_fallthru
        _
      // Predicated region
      $region41: #{_lambda_.1} parent=11 // pred_check
        %p886 = pneg %p339
      $region42: #{_lambda_.1} parent=11 // pred_check_branch
        %888 = sbr.rel (%p886) target = $region44
      $region43: #{_lambda_.1} parent=11 // pred_region
        _
      $region44: #{_lambda_.1} parent=11 // pred_fallthru
        _
      // Predicated region
      $region45: #{_lambda_.1} parent=11 // pred_check
        %p889 = pneg %p360
      $region46: #{_lambda_.1} parent=11 // pred_check_branch
        %891 = sbr.rel (%p889) target = $region48
      $region47: #{_lambda_.1} parent=11 // pred_region
        _
      $region48: #{_lambda_.1} parent=11 // pred_fallthru
        _
      // Predicated region
      $region49: #{_lambda_.1} parent=11 // pred_check
        %p892 = pneg %p381
      $region50: #{_lambda_.1} parent=11 // pred_check_branch
        %894 = sbr.rel (%p892) target = $region52
      $region51: #{_lambda_.1} parent=11 // pred_region
        _
      $region52: #{_lambda_.1} parent=11 // pred_fallthru
        _
      // Predicated region
      $region53: #{_lambda_.1} parent=11 // pred_check
        %p895 = pneg %p402
      $region54: #{_lambda_.1} parent=11 // pred_check_branch
        %897 = sbr.rel (%p895) target = $region56
      $region55: #{_lambda_.1} parent=11 // pred_region
        _
      $region56: #{_lambda_.1} parent=11 // pred_fallthru
        _
      // Predicated region
      $region57: #{_lambda_.1} parent=11 // pred_check
        %p898 = pneg %p423
      $region58: #{_lambda_.1} parent=11 // pred_check_branch
        %900 = sbr.rel (%p898) target = $region60
      $region59: #{_lambda_.1} parent=11 // pred_region
        _
      $region60: #{_lambda_.1} parent=11 // pred_fallthru
        _
      // Predicated region
      $region61: #{_lambda_.1} parent=11 // pred_check
        %p901 = pneg %p444
      $region62: #{_lambda_.1} parent=11 // pred_check_branch
        %903 = sbr.rel (%p901) target = $region64
      $region63: #{_lambda_.1} parent=11 // pred_region
        _
      $region64: #{_lambda_.1} parent=11 // pred_fallthru
        _
      // Predicated region
      $region65: #{_lambda_.1} parent=11 // pred_check
        %p904 = pneg %p465
      $region66: #{_lambda_.1} parent=11 // pred_check_branch
        %906 = sbr.rel (%p904) target = $region68
      $region67: #{_lambda_.1} parent=11 // pred_region
        _
      $region68: #{_lambda_.1} parent=11 // pred_fallthru
        _
      // Predicated region
      $region69: #{_lambda_.1} parent=11 // pred_check
        %p907 = pneg %p486
      $region70: #{_lambda_.1} parent=11 // pred_check_branch
        %909 = sbr.rel (%p907) target = $region72
      $region71: #{_lambda_.1} parent=11 // pred_region
        _
      $region72: #{_lambda_.1} parent=11 // pred_fallthru
        _
      // Predicated region
      $region73: #{_lambda_.1} parent=11 // pred_check
        %p910 = pneg %p507
      $region74: #{_lambda_.1} parent=11 // pred_check_branch
        %912 = sbr.rel (%p910) target = $region76
      $region75: #{_lambda_.1} parent=11 // pred_region
        _
      $region76: #{_lambda_.1} parent=11 // pred_fallthru
        _
      // Predicated region
      $region77: #{_lambda_.1} parent=11 // pred_check
        %p913 = pneg %p528
      $region78: #{_lambda_.1} parent=11 // pred_check_branch
        %915 = sbr.rel (%p913) target = $region80
      $region79: #{_lambda_.1} parent=11 // pred_region
        _
      $region80: #{_lambda_.1} parent=11 // pred_fallthru
        _
      // Predicated region
      $region81: #{_lambda_.1} parent=11 // pred_check
        %p916 = pneg %p549
      $region82: #{_lambda_.1} parent=11 // pred_check_branch
        %918 = sbr.rel (%p916) target = $region84
      $region83: #{_lambda_.1} parent=11 // pred_region
        _
      $region84: #{_lambda_.1} parent=11 // pred_fallthru
        _
      // Predicated region
      $region85: #{_lambda_.1} parent=11 // pred_check
        %p919 = pneg %p570
      $region86: #{_lambda_.1} parent=11 // pred_check_branch
        %921 = sbr.rel (%p919) target = $region88
      $region87: #{_lambda_.1} parent=11 // pred_region
        _
      $region88: #{_lambda_.1} parent=11 // pred_fallthru
        _
      // Predicated region
      $region89: #{_lambda_.1} parent=11 // pred_check
        %p922 = pneg %p591
      $region90: #{_lambda_.1} parent=11 // pred_check_branch
        %924 = sbr.rel (%p922) target = $region92
      $region91: #{_lambda_.1} parent=11 // pred_region
        _
      $region92: #{_lambda_.1} parent=11 // pred_fallthru
        _
      // Predicated region
      $region93: #{_lambda_.1} parent=11 // pred_check
        %p925 = pneg %p612
      $region94: #{_lambda_.1} parent=11 // pred_check_branch
        %927 = sbr.rel (%p925) target = $region96
      $region95: #{_lambda_.1} parent=11 // pred_region
        _
      $region96: #{_lambda_.1} parent=11 // pred_fallthru
        _
      // Predicated region
      $region97: #{_lambda_.1} parent=11 // pred_check
        %p928 = pneg %p633
      $region98: #{_lambda_.1} parent=11 // pred_check_branch
        %930 = sbr.rel (%p928) target = $region100
      $region99: #{_lambda_.1} parent=11 // pred_region
        _
      $region100: #{_lambda_.1} parent=11 // pred_fallthru
        _
      // Predicated region
      $region101: #{_lambda_.1} parent=11 // pred_check
        %p931 = pneg %p654
      $region102: #{_lambda_.1} parent=11 // pred_check_branch
        %933 = sbr.rel (%p931) target = $region104
      $region103: #{_lambda_.1} parent=11 // pred_region
        _
      $region104: #{_lambda_.1} parent=11 // pred_fallthru
        _
      // Predicated region
      $region105: #{_lambda_.1} parent=11 // pred_check
        %p934 = pneg %p675
      $region106: #{_lambda_.1} parent=11 // pred_check_branch
        %936 = sbr.rel (%p934) target = $region108
      $region107: #{_lambda_.1} parent=11 // pred_region
        _
      $region108: #{_lambda_.1} parent=11 // pred_fallthru
        _
      // Predicated region
      $region109: #{_lambda_.1} parent=11 // pred_check
        %p937 = pneg %p696
      $region110: #{_lambda_.1} parent=11 // pred_check_branch
        %939 = sbr.rel (%p937) target = $region112
      $region111: #{_lambda_.1} parent=11 // pred_region
        _
      $region112: #{_lambda_.1} parent=11 // pred_fallthru
        _
      // Predicated region
      $region113: #{_lambda_.1} parent=11 // pred_check
        %p940 = pneg %p717
      $region114: #{_lambda_.1} parent=11 // pred_check_branch
        %942 = sbr.rel (%p940) target = $region116
      $region115: #{_lambda_.1} parent=11 // pred_region
        _
      $region116: #{_lambda_.1} parent=11 // pred_fallthru
        _
      // Predicated region
      $region117: #{_lambda_.1} parent=11 // pred_check
        %p943 = pneg %p738
      $region118: #{_lambda_.1} parent=11 // pred_check_branch
        %945 = sbr.rel (%p943) target = $region120
      $region119: #{_lambda_.1} parent=11 // pred_region
        _
      $region120: #{_lambda_.1} parent=11 // pred_fallthru
        _
      // Predicated region
      $region121: #{_lambda_.1} parent=11 // pred_check
        %p946 = pneg %p759
      $region122: #{_lambda_.1} parent=11 // pred_check_branch
        %948 = sbr.rel (%p946) target = $region124
      $region123: #{_lambda_.1} parent=11 // pred_region
        _
      $region124: #{_lambda_.1} parent=11 // pred_fallthru
        _
      // Predicated region
      $region125: #{_lambda_.1} parent=11 // pred_check
        %p949 = pneg %p780
      $region126: #{_lambda_.1} parent=11 // pred_check_branch
        %951 = sbr.rel (%p949) target = $region128
      $region127: #{_lambda_.1} parent=11 // pred_region
        _
      $region128: #{_lambda_.1} parent=11 // pred_fallthru
        _
      // Predicated region
      $region129: #{_lambda_.1} parent=11 // pred_check
        %p952 = pneg %p801
      $region130: #{_lambda_.1} parent=11 // pred_check_branch
        %954 = sbr.rel (%p952) target = $region132
      $region131: #{_lambda_.1} parent=11 // pred_region
        _
      $region132: #{_lambda_.1} parent=11 // pred_fallthru
        _
      // Predicated region
      $region133: #{_lambda_.1} parent=11 // pred_check
        %p955 = pneg %p822
      $region134: #{_lambda_.1} parent=11 // pred_check_branch
        %957 = sbr.rel (%p955) target = $region136
      $region135: #{_lambda_.1} parent=11 // pred_region
        _
      $region136: #{_lambda_.1} parent=11 // pred_fallthru
        _
    $region12: #{_lambda_.1} parent=5 // pred_fallthru
      _
    %p958 = scmp.lt.s32.totalorder %s75, 2
    // Predicated region
    $region137: #{_lambda_.1} parent=5 // pred_check
      %p959 = pneg %p958
    $region138: #{_lambda_.1} parent=5 // pred_check_branch
      %961 = sbr.rel (%p959) target = $region140
    $region139: #{_lambda_.1} parent=5 // pred_region
      // Predicated region
      $region141: #{_lambda_.1} parent=139 // pred_check
        %p962 = pneg %p109
      $region142: #{_lambda_.1} parent=139 // pred_check_branch
        %964 = sbr.rel (%p962) target = $region144
      $region143: #{_lambda_.1} parent=139 // pred_region
        %s965 = smul.u32 2, %s83
        %p966 = scmp.lt.s32.totalorder %s82, 1
        %s967 = scalar_select %p966, %s82, 1
        %p968 = scmp.lt.s32.totalorder %s965, 1
        %s969 = scalar_select %p968, %s965, 1
        %s970 = smul.addr %s967, 2
        %s971 = sadd.s32 %s969, %s970
        %s972 = smul.addr %s971, 4
        %s973 = scalar_lea.vmem %s1, %s972
        %s974 = smul.u32 2, %s83
      $region144: #{_lambda_.1} parent=139 // pred_fallthru
        _
      // Predicated region
      $region145: #{_lambda_.1} parent=139 // pred_check
        %p975 = pneg %p137
      $region146: #{_lambda_.1} parent=139 // pred_check_branch
        %977 = sbr.rel (%p975) target = $region148
      $region147: #{_lambda_.1} parent=139 // pred_region
        %p978 = scmp.lt.s32.totalorder %s82, 1
        %s979 = scalar_select %p978, %s82, 1
        %p980 = scmp.lt.s32.totalorder %s83, 0
        %s981 = scalar_select %p980, %s83, 0
        %s982 = smul.addr %s981, 2
        %s983 = smul.addr %s979, 2
        %s984 = sadd.s32 %s982, %s983
        %s985 = smul.addr %s984, 4
        %s986 = scalar_lea.vmem %s3, %s985
      $region148: #{_lambda_.1} parent=139 // pred_fallthru
        _
      // Predicated region
      $region149: #{_lambda_.1} parent=139 // pred_check
        %p987 = pneg %p165
      $region150: #{_lambda_.1} parent=139 // pred_check_branch
        %989 = sbr.rel (%p987) target = $region152
      $region151: #{_lambda_.1} parent=139 // pred_region
        %p990 = scmp.lt.s32.totalorder %s82, 1
        %s991 = scalar_select %p990, %s82, 1
        %p992 = scmp.lt.s32.totalorder %s83, 0
        %s993 = scalar_select %p992, %s83, 0
        %s994 = smul.addr %s993, 2
        %s995 = smul.addr %s991, 2
        %s996 = sadd.s32 %s994, %s995
        %s997 = smul.addr %s996, 4
        %s998 = scalar_lea.vmem %s5, %s997
      $region152: #{_lambda_.1} parent=139 // pred_fallthru
        _
    $region140: #{_lambda_.1} parent=5 // pred_fallthru
      _
    %p999 = scmp.le.s32.totalorder 1, %s75
    %p1000 = scmp.lt.s32.totalorder %s75, 3
    %p1001 = pnand %p999, %p1000
    %p1002 = pneg %p1001
    // Predicated region
    $region153: #{_lambda_.1} parent=5 // pred_check
      _
    $region154: #{_lambda_.1} parent=5 // pred_check_branch
      %1004 = sbr.rel (%p1001) target = $region156
    $region155: #{_lambda_.1} parent=5 // pred_region
      %s1005 = ssub.s32 %s75, 1
      %s1006 = smul.u32 2, %s85
      %p1007 = scmp.lt.s32.totalorder %s84, 1
      %s1008 = scalar_select %p1007, %s84, 1
      %p1009 = scmp.lt.s32.totalorder %s1006, 1
      %s1010 = scalar_select %p1009, %s1006, 1
      %s1011 = smul.addr %s1008, 2
      %s1012 = sadd.s32 %s1010, %s1011
      %s1013 = smul.addr %s1012, 4
      %s1014 = scalar_lea.vmem %s1, %s1013
      %p1015 = pneg %p115
      %p1016 = pneg %p112
      %p1017 = scmp.lt.s32.totalorder %s84, 1
      %s1018 = scalar_select %p1017, %s84, 1
      %p1019 = scmp.lt.s32.totalorder %s85, 0
      %s1020 = scalar_select %p1019, %s85, 0
      %s1021 = smul.addr %s1020, 2
      %s1022 = smul.addr %s1018, 2
      %s1023 = sadd.s32 %s1021, %s1022
      %s1024 = smul.addr %s1023, 4
      %s1025 = scalar_lea.vmem %s3, %s1024
      %p1026 = pneg %p143
      %p1027 = pneg %p140
      %p1028 = scmp.lt.s32.totalorder %s84, 1
      %s1029 = scalar_select %p1028, %s84, 1
      %p1030 = scmp.lt.s32.totalorder %s85, 0
      %s1031 = scalar_select %p1030, %s85, 0
      %s1032 = smul.addr %s1031, 2
      %s1033 = smul.addr %s1029, 2
      %s1034 = sadd.s32 %s1032, %s1033
      %s1035 = smul.addr %s1034, 4
      %s1036 = scalar_lea.vmem %s5, %s1035
      %p1037 = pneg %p171
      %p1038 = pneg %p168
      %p1039 = pneg %p192
      %p1040 = pneg %p189
      %p1041 = pneg %p213
      %p1042 = pneg %p210
      %p1043 = pneg %p234
      %p1044 = pneg %p231
      %p1045 = pneg %p255
      %p1046 = pneg %p252
      %p1047 = pneg %p276
      %p1048 = pneg %p273
      %p1049 = pneg %p297
      %p1050 = pneg %p294
      %p1051 = pneg %p318
      %p1052 = pneg %p315
      %p1053 = pneg %p339
      %p1054 = pneg %p336
      %p1055 = pneg %p360
      %p1056 = pneg %p357
      %p1057 = pneg %p381
      %p1058 = pneg %p378
      %p1059 = pneg %p402
      %p1060 = pneg %p399
      %p1061 = pneg %p423
      %p1062 = pneg %p420
      %p1063 = pneg %p444
      %p1064 = pneg %p441
      %p1065 = pneg %p465
      %p1066 = pneg %p462
      %p1067 = pneg %p486
      %p1068 = pneg %p483
      %p1069 = pneg %p507
      %p1070 = pneg %p504
      %p1071 = pneg %p528
      %p1072 = pneg %p525
      %p1073 = pneg %p549
      %p1074 = pneg %p546
      %p1075 = pneg %p570
      %p1076 = pneg %p567
      %p1077 = pneg %p591
      %p1078 = pneg %p588
      %p1079 = pneg %p612
      %p1080 = pneg %p609
      %p1081 = pneg %p633
      %p1082 = pneg %p630
      %p1083 = pneg %p654
      %p1084 = pneg %p651
      %p1085 = pneg %p675
      %p1086 = pneg %p672
      %p1087 = pneg %p696
      %p1088 = pneg %p693
      %p1089 = pneg %p717
      %p1090 = pneg %p714
      %p1091 = pneg %p738
      %p1092 = pneg %p735
      %p1093 = pneg %p759
      %p1094 = pneg %p756
      %p1095 = pneg %p780
      %p1096 = pneg %p777
      %p1097 = pneg %p801
      %p1098 = pneg %p798
      %p1099 = pneg %p822
      %p1100 = pneg %p819
      %p1101 = pneg %p850
      %p1102 = pneg %p847
      %s1103 = smul.u32 2, %s85
      %p1104 = scmp.lt.s32.totalorder %s84, 1
      %s1105 = scalar_select %p1104, %s84, 1
      %p1106 = scmp.lt.s32.totalorder %s1103, 1
      %s1107 = scalar_select %p1106, %s1103, 1
      %s1108 = smul.addr %s1105, 2
      %s1109 = sadd.s32 %s1107, %s1108
      %s1110 = smul.addr %s1109, 8
      %s1111 = scalar_lea.vmem %s69, %s1110
      %s1112 = smul.u32 2, %s85
      %p1113 = scmp.lt.s32.totalorder %s84, 1
      %s1114 = scalar_select %p1113, %s84, 1
      %p1115 = scmp.lt.s32.totalorder %s1112, 1
      %s1116 = scalar_select %p1115, %s1112, 1
      %s1117 = smul.addr %s1114, 2
      %s1118 = sadd.s32 %s1116, %s1117
      %s1119 = smul.addr %s1118, 4
      %s1120 = scalar_lea.vmem %s1, %s1119
      %s1121 = smul.u32 2, %s85
      %p1122 = scmp.lt.s32.totalorder %s84, 1
      %s1123 = scalar_select %p1122, %s84, 1
      %p1124 = scmp.lt.s32.totalorder %s85, 0
      %s1125 = scalar_select %p1124, %s85, 0
      %s1126 = smul.addr %s1125, 2
      %s1127 = smul.addr %s1123, 2
      %s1128 = sadd.s32 %s1126, %s1127
      %s1129 = smul.addr %s1128, 4
      %s1130 = scalar_lea.vmem %s3, %s1129
      %p1131 = scmp.lt.s32.totalorder %s84, 1
      %s1132 = scalar_select %p1131, %s84, 1
      %p1133 = scmp.lt.s32.totalorder %s85, 0
      %s1134 = scalar_select %p1133, %s85, 0
      %s1135 = smul.addr %s1134, 2
      %s1136 = smul.addr %s1132, 2
      %s1137 = sadd.s32 %s1135, %s1136
      %s1138 = smul.addr %s1137, 4
      %s1139 = scalar_lea.vmem %s5, %s1138
      %s1140 = smul.u32 2, %s85
      %p1141 = scmp.lt.s32.totalorder %s84, 1
      %s1142 = scalar_select %p1141, %s84, 1
      %p1143 = scmp.lt.s32.totalorder %s1140, 1
      %s1144 = scalar_select %p1143, %s1140, 1
      %s1145 = smul.addr %s1142, 2
      %s1146 = sadd.s32 %s1144, %s1145
      %s1147 = smul.addr %s1146, 8
      %s1148 = scalar_lea.vmem %s69, %s1147
      %s1149 = smul.u32 2, %s85
      %s1151 = smul.u32 %s85, 16
      %s1152 = ssub.s32 %s1151, 16
      %v1153 = vlaneseq
      %v1154 = vshrl.u32 %v1153, 7
      %v1155 = vadd.s32 %v1154, 8
      %v1156 = vadd.s32 %v1154, 16
      %v1157 = vadd.s32 %v1154, 24
      %v1158 = vadd.s32 %v1154, 32
      %v1159 = vadd.s32 %v1154, 40
      %v1160 = vstv %s1152
      %v1161 = vadd.s32 %v1160, %v1154
      %v1162 = vadd.s32 %v1160, %v1155
      %v1163 = vadd.s32 %v1160, %v1156
      %v1164 = vadd.s32 %v1160, %v1157
      %v1165 = vadd.s32 %v1160, %v1158
      %v1166 = vadd.s32 %v1160, %v1159
      %vm1167 = vcmp.ge.s32.totalorder %v1161, 0
      %vm1168 = vcmp.ge.s32.totalorder %v1162, 0
      %vm1169 = vcmp.ge.s32.totalorder %v1163, 0
      %vm1170 = vcmp.ge.s32.totalorder %v1164, 0
      %vm1171 = vcmp.ge.s32.totalorder %v1165, 0
      %vm1172 = vcmp.ge.s32.totalorder %v1166, 0
      %vm1173 = vcmp.lt.s32.totalorder %v1161, 16
      %vm1174 = vcmp.lt.s32.totalorder %v1162, 16
      %vm1175 = vcmp.lt.s32.totalorder %v1163, 16
      %vm1176 = vcmp.lt.s32.totalorder %v1164, 16
      %vm1177 = vcmp.lt.s32.totalorder %v1165, 16
      %vm1178 = vcmp.lt.s32.totalorder %v1166, 16
      %vm1179 = vmand %vm1167, %vm1173
      %vm1180 = vmand %vm1168, %vm1174
      %vm1181 = vmand %vm1169, %vm1175
      %vm1182 = vmand %vm1170, %vm1176
      %vm1183 = vmand %vm1171, %vm1177
      %vm1184 = vmand %vm1172, %vm1178
      %v1185 = vld [vmem:[%s1130] sm:$0xf]
      %v1186 = vld [vmem:[%s1130 + $0x4] sm:$0xf]
      %v1187 = vld [vmem:[%s1120] sm:$0xf]
      %v1188 = vld [vmem:[%s1120 + $0x4] sm:$0xf]
      %v1189 = vld [vmem:[%s1139] sm:$0xf]
      %v1190 = vld [vmem:[%s1139 + $0x4] sm:$0xf]
      %v1193 = vunpack.c.l.b16 %v1185
      %v1194 = vunpack.c.l.b16 %v1186
      %v1195 = vpack.c.b16 %v1194, %v1193
      %v1198 = vunpack.c.l.b16 %v1187
      %v1199 = vunpack.c.l.b16 %v1188
      %v1200 = vpack.c.b16 %v1199, %v1198
      %v1203 = vunpack.c.l.b16 %v1189
      %v1204 = vunpack.c.l.b16 %v1190
      %v1205 = vpack.c.b16 %v1204, %v1203
      %vm1206 = vsmask.f32 256
      %v1208 = vshrl.u32 %v1195, 16
      %v1210 = vrot.slane %v1208, 7
      %v1211 = vshll.u32 %v1195, 16
      %v1213 = vor.u32 %v1210, %v1211
      %v1215 = vshrl.u32 %v1200, 16
      %v1217 = vrot.slane %v1215, 7
      %v1218 = vshll.u32 %v1200, 16
      %v1220 = vor.u32 %v1217, %v1218
      %v1221 = vsel %vm1206, %v1210, %v1220
      %v1223 = vshrl.u32 %v1205, 16
      %v1225 = vrot.slane %v1223, 7
      %v1226 = vshll.u32 %v1205, 16
      %v1228 = vor.u32 %v1225, %v1226
      %v1229 = vsel %vm1206, %v1217, %v1228
      %vm1231 = vcmask 1040384
      %vm1232 = vmand %vm1231, %vm1206
      %v1233 = vsel %vm1232, 0, %v1213
      %vm1234 = vsmask.f32 7424
      %v1235 = vrot.slane %v1211, 1
      %v1236 = vor.u32 %v1208, %v1235
      %v1237 = vrot.slane %v1218, 1
      %v1238 = vsel %vm1234, %v1236, %v1237
      %v1239 = vor.u32 %v1215, %v1237
      %v1240 = vrot.slane %v1226, 1
      %v1241 = vsel %vm1234, %v1239, %v1240
      %v1242 = vor.u32 %v1223, %v1240
      %vm1244 = vcmask 1047552
      %vm1245 = vmand %vm1244, %vm1234
      %v1246 = vsel %vm1245, %v1242, 0
      %v1247 = vld [vmem:[%s7] sm:$0x3]
      %s1248 = scalar_lea.vmem %s7, 2
      %v1249 = vld [vmem:[%s1248] sm:$0x3]
      %vm1250 = vcmask 31744
      %v1251 = vsel %vm1250, %v1195, 0
      %v1253 = vsel %vm1250, %v1200, 0
      %v1255 = vsel %vm1250, %v1205, 0
      %vm1257 = vcmask 1041408
      %v1259 = vsel %vm1257, %v1249, 0
      %1261 = vmatpush.bf16.msra.mxu0 0
      %1262 = vmatpush.bf16.msra.mxu0 0
      %1263 = vmatpush.bf16.msra.mxu0 0
      %1264 = vmatpush.bf16.msra.mxu0 0
      %1265 = vmatpush.bf16.msra.mxu0 0
      %1266 = vmatpush.bf16.msra.mxu0 0
      %1267 = vmatpush.bf16.msra.mxu0 0
      %1268 = vmatpush.bf16.msra.mxu0 %v1259
      %1269 = vmatmul.bf16.gmra.mxu0 %v1251
      %v1270 = vpop.f32.mrf.mxu0
      %v1271 = vadd.f32 0.0, %v1270
      %v1272 = vpop.f32.mrf.mxu0
      %v1273 = vadd.f32 0.0, %v1272
      %1274 = vmatmul.bf16.gmra.mxu0 %v1253
      %v1275 = vpop.f32.mrf.mxu0
      %v1276 = vadd.f32 0.0, %v1275
      %v1277 = vpop.f32.mrf.mxu0
      %v1278 = vadd.f32 0.0, %v1277
      %1279 = vmatmul.bf16.gmra.mxu0 %v1255
      %v1280 = vpop.f32.mrf.mxu0
      %v1281 = vadd.f32 0.0, %v1280
      %v1282 = vpop.f32.mrf.mxu0
      %v1283 = vadd.f32 0.0, %v1282
      %1284 = vdwg.mxu0
      %v1286 = vsel %vm1250, %v1233, 0
      %v1289 = vsel %vm1250, %v1221, 0
      %v1292 = vsel %vm1250, %v1229, 0
      %v1295 = vsel %vm1257, %v1247, 0
      %1297 = vmatpush.bf16.msra.mxu0 0
      %1298 = vmatpush.bf16.msra.mxu0 0
      %1299 = vmatpush.bf16.msra.mxu0 0
      %1300 = vmatpush.bf16.msra.mxu0 0
      %1301 = vmatpush.bf16.msra.mxu0 0
      %1302 = vmatpush.bf16.msra.mxu0 0
      %1303 = vmatpush.bf16.msra.mxu0 0
      %1304 = vmatpush.bf16.msra.mxu0 %v1295
      %1305 = vmatmul.bf16.gmra.mxu0 %v1286
      %v1306 = vpop.f32.mrf.mxu0
      %v1307 = vadd.f32 %v1271, %v1306
      %v1308 = vpop.f32.mrf.mxu0
      %v1309 = vadd.f32 %v1273, %v1308
      %1310 = vmatmul.bf16.gmra.mxu0 %v1289
      %v1311 = vpop.f32.mrf.mxu0
      %v1312 = vadd.f32 %v1276, %v1311
      %v1313 = vpop.f32.mrf.mxu0
      %v1314 = vadd.f32 %v1278, %v1313
      %1315 = vmatmul.bf16.gmra.mxu0 %v1292
      %v1316 = vpop.f32.mrf.mxu0
      %v1317 = vadd.f32 %v1281, %v1316
      %v1318 = vpop.f32.mrf.mxu0
      %v1319 = vadd.f32 %v1283, %v1318
      %1320 = vdwg.mxu0
      %s1321 = scalar_lea.vmem %s7, 4
      %v1322 = vld [vmem:[%s1321] sm:$0x3]
      %v1324 = vsel %vm1250, %v1238, 0
      %v1327 = vsel %vm1250, %v1241, 0
      %v1330 = vsel %vm1250, %v1246, 0
      %v1333 = vsel %vm1257, %v1322, 0
      %1335 = vmatpush.bf16.msra.mxu0 0
      %1336 = vmatpush.bf16.msra.mxu0 0
      %1337 = vmatpush.bf16.msra.mxu0 0
      %1338 = vmatpush.bf16.msra.mxu0 0
      %1339 = vmatpush.bf16.msra.mxu0 0
      %1340 = vmatpush.bf16.msra.mxu0 0
      %1341 = vmatpush.bf16.msra.mxu0 0
      %1342 = vmatpush.bf16.msra.mxu0 %v1333
      %1343 = vmatmul.bf16.gmra.mxu0 %v1324
      %v1344 = vpop.f32.mrf.mxu0
      %v1345 = vadd.f32 0.0, %v1344
      %v1346 = vpop.f32.mrf.mxu0
      %v1347 = vadd.f32 0.0, %v1346
      %1348 = vmatmul.bf16.gmra.mxu0 %v1327
      %v1349 = vpop.f32.mrf.mxu0
      %v1350 = vadd.f32 0.0, %v1349
      %v1351 = vpop.f32.mrf.mxu0
      %v1352 = vadd.f32 0.0, %v1351
      %1353 = vmatmul.bf16.gmra.mxu0 %v1330
      %v1354 = vpop.f32.mrf.mxu0
      %v1355 = vadd.f32 0.0, %v1354
      %v1356 = vpop.f32.mrf.mxu0
      %v1357 = vadd.f32 0.0, %v1356
      %1358 = vdwg.mxu0
      %v1359 = vadd.f32 %v1307, %v1345
      %v1360 = vadd.f32 %v1309, %v1347
      %v1361 = vadd.f32 %v1312, %v1350
      %v1362 = vadd.f32 %v1314, %v1352
      %v1363 = vadd.f32 %v1317, %v1355
      %v1364 = vadd.f32 %v1319, %v1357
      %v1365 = vld [vmem:[%s9] sm:$0x1]
      %v1367 = vperm.slane %v1365, 0
      %v1369 = vadd.f32 %v1359, %v1367
      %v1370 = vadd.f32 %v1360, %v1367
      %v1371 = vadd.f32 %v1361, %v1367
      %v1372 = vadd.f32 %v1362, %v1367
      %v1373 = vadd.f32 %v1363, %v1367
      %v1374 = vadd.f32 %v1364, %v1367
      %v1375 = vmax.f32 %v1369, 0.0
      %v1376 = vmax.f32 %v1370, 0.0
      %v1377 = vmax.f32 %v1371, 0.0
      %v1378 = vmax.f32 %v1372, 0.0
      %v1379 = vmax.f32 %v1373, 0.0
      %v1380 = vmax.f32 %v1374, 0.0
      %v1381 = vsel %vm1179, 1, 0
      %v1382 = vsel %vm1180, 1, 0
      %v1383 = vsel %vm1181, 1, 0
      %v1384 = vsel %vm1182, 1, 0
      %v1385 = vsel %vm1183, 1, 0
      %v1386 = vsel %vm1184, 1, 0
      %vm1387 = vcmp.eq.s32.totalorder %v1381, 1
      %vm1388 = vcmp.eq.s32.totalorder %v1382, 1
      %vm1389 = vcmp.eq.s32.totalorder %v1383, 1
      %vm1390 = vcmp.eq.s32.totalorder %v1384, 1
      %vm1391 = vcmp.eq.s32.totalorder %v1385, 1
      %vm1392 = vcmp.eq.s32.totalorder %v1386, 1
      %v1393 = vsel %vm1387, %v1375, 0.0
      %v1394 = vsel %vm1388, %v1376, 0.0
      %v1395 = vsel %vm1389, %v1377, 0.0
      %v1396 = vsel %vm1390, %v1378, 0.0
      %v1397 = vsel %vm1391, %v1379, 0.0
      %v1398 = vsel %vm1392, %v1380, 0.0
      %v1399 = vpack.c.bf16 %v1393, %v1393
      %v1400 = vpack.c.bf16 %v1394, %v1394
      %v1401 = vpack.c.bf16 %v1395, %v1395
      %v1402 = vpack.c.bf16 %v1396, %v1396
      %v1403 = vpack.c.bf16 %v1397, %v1397
      %v1404 = vpack.c.bf16 %v1398, %v1398
      %v1411 = vunpack.c.l.b16 %v1399
      %v1412 = vunpack.c.l.b16 %v1400
      %v1413 = vunpack.c.l.b16 %v1401
      %v1414 = vunpack.c.l.b16 %v1402
      %v1415 = vunpack.c.l.b16 %v1403
      %v1416 = vunpack.c.l.b16 %v1404
      %v1417 = vpack.c.b16 %v1412, %v1411
      %v1418 = vpack.c.b16 %v1414, %v1413
      %v1419 = vpack.c.b16 %v1416, %v1415
      %v1421 = vshrl.u32 %v1417, 16
      %v1423 = vrot.slane %v1421, 7
      %v1424 = vshll.u32 %v1417, 16
      %v1426 = vor.u32 %v1423, %v1424
      %v1428 = vshrl.u32 %v1418, 16
      %v1430 = vrot.slane %v1428, 7
      %v1431 = vshll.u32 %v1418, 16
      %v1433 = vor.u32 %v1430, %v1431
      %v1434 = vsel %vm1206, %v1423, %v1433
      %v1436 = vshrl.u32 %v1419, 16
      %v1438 = vrot.slane %v1436, 7
      %v1439 = vshll.u32 %v1419, 16
      %v1441 = vor.u32 %v1438, %v1439
      %v1442 = vsel %vm1206, %v1430, %v1441
      %v1444 = vsel %vm1232, 0, %v1426
      %v1445 = vrot.slane %v1424, 1
      %v1446 = vor.u32 %v1421, %v1445
      %v1447 = vrot.slane %v1431, 1
      %v1448 = vsel %vm1234, %v1446, %v1447
      %v1449 = vor.u32 %v1428, %v1447
      %v1450 = vrot.slane %v1439, 1
      %v1451 = vsel %vm1234, %v1449, %v1450
      %v1452 = vor.u32 %v1436, %v1450
      %v1454 = vsel %vm1245, %v1452, 0
      %v1455 = vld [vmem:[%s11] sm:$0xf]
      %v1456 = vld [vmem:[%s11 + $0x4] sm:$0xf]
      %v1457 = vld [vmem:[%s11 + $0x8] sm:$0xf]
      %v1458 = vld [vmem:[%s11 + $0xc] sm:$0xf]
      %v1459 = vld [vmem:[%s11 + $0x10] sm:$0xf]
      %v1460 = vld [vmem:[%s11 + $0x14] sm:$0xf]
      %v1461 = vld [vmem:[%s11 + $0x18] sm:$0x3]
      %s1462 = scalar_lea.vmem %s11, 28
      %v1463 = vld [vmem:[%s1462] sm:$0xf]
      %v1464 = vld [vmem:[%s1462 + $0x4] sm:$0xf]
      %v1465 = vld [vmem:[%s1462 + $0x8] sm:$0xf]
      %v1466 = vld [vmem:[%s1462 + $0xc] sm:$0xf]
      %v1467 = vld [vmem:[%s1462 + $0x10] sm:$0xf]
      %v1468 = vld [vmem:[%s1462 + $0x14] sm:$0xf]
      %v1469 = vld [vmem:[%s1462 + $0x18] sm:$0x3]
      %v1477 = vunpack.c.l.b16 %v1463
      %v1478 = vunpack.c.l.b16 %v1464
      %v1479 = vunpack.c.l.b16 %v1465
      %v1480 = vunpack.c.l.b16 %v1466
      %v1481 = vunpack.c.l.b16 %v1467
      %v1482 = vunpack.c.l.b16 %v1468
      %v1483 = vunpack.c.l.b16 %v1469
      %v1484 = vpack.c.b16 %v1478, %v1477
      %v1485 = vpack.c.b16 %v1480, %v1479
      %v1486 = vpack.c.b16 %v1482, %v1481
      %v1487 = vpack.c.b16 %v1483, %v1483
      %vm1491 = vcmask 424960
      %v1492 = vsel %vm1491, %v1417, 0
      %v1494 = vsel %vm1491, %v1418, 0
      %v1496 = vsel %vm1491, %v1419, 0
      %v1499 = vsel %vm1257, %v1487, 0
      %1501 = vmatpush.bf16.msra.mxu0 0
      %1502 = vmatpush.bf16.msra.mxu0 0
      %1503 = vmatpush.bf16.msra.mxu0 0
      %1504 = vmatpush.bf16.msra.mxu0 0
      %1505 = vmatpush.bf16.msra.mxu0 %v1499
      %1506 = vmatpush.bf16.msra.mxu0 %v1486
      %1507 = vmatpush.bf16.msra.mxu0 %v1485
      %1508 = vmatpush.bf16.msra.mxu0 %v1484
      %1509 = vmatmul.bf16.gmra.mxu0 %v1492
      %v1510 = vpop.f32.mrf.mxu0
      %v1511 = vadd.f32 0.0, %v1510
      %v1512 = vpop.f32.mrf.mxu0
      %v1513 = vadd.f32 0.0, %v1512
      %1514 = vmatmul.bf16.gmra.mxu0 %v1494
      %v1515 = vpop.f32.mrf.mxu0
      %v1516 = vadd.f32 0.0, %v1515
      %v1517 = vpop.f32.mrf.mxu0
      %v1518 = vadd.f32 0.0, %v1517
      %1519 = vmatmul.bf16.gmra.mxu0 %v1496
      %v1520 = vpop.f32.mrf.mxu0
      %v1521 = vadd.f32 0.0, %v1520
      %v1522 = vpop.f32.mrf.mxu0
      %v1523 = vadd.f32 0.0, %v1522
      %1524 = vdwg.mxu0
      %v1532 = vunpack.c.l.b16 %v1455
      %v1533 = vunpack.c.l.b16 %v1456
      %v1534 = vunpack.c.l.b16 %v1457
      %v1535 = vunpack.c.l.b16 %v1458
      %v1536 = vunpack.c.l.b16 %v1459
      %v1537 = vunpack.c.l.b16 %v1460
      %v1538 = vunpack.c.l.b16 %v1461
      %v1539 = vpack.c.b16 %v1533, %v1532
      %v1540 = vpack.c.b16 %v1535, %v1534
      %v1541 = vpack.c.b16 %v1537, %v1536
      %v1542 = vpack.c.b16 %v1538, %v1538
      %v1547 = vsel %vm1491, %v1444, 0
      %v1550 = vsel %vm1491, %v1434, 0
      %v1553 = vsel %vm1491, %v1442, 0
      %v1556 = vsel %vm1257, %v1542, 0
      %1558 = vmatpush.bf16.msra.mxu0 0
      %1559 = vmatpush.bf16.msra.mxu0 0
      %1560 = vmatpush.bf16.msra.mxu0 0
      %1561 = vmatpush.bf16.msra.mxu0 0
      %1562 = vmatpush.bf16.msra.mxu0 %v1556
      %1563 = vmatpush.bf16.msra.mxu0 %v1541
      %1564 = vmatpush.bf16.msra.mxu0 %v1540
      %1565 = vmatpush.bf16.msra.mxu0 %v1539
      %1566 = vmatmul.bf16.gmra.mxu0 %v1547
      %v1567 = vpop.f32.mrf.mxu0
      %v1568 = vadd.f32 %v1511, %v1567
      %v1569 = vpop.f32.mrf.mxu0
      %v1570 = vadd.f32 %v1513, %v1569
      %1571 = vmatmul.bf16.gmra.mxu0 %v1550
      %v1572 = vpop.f32.mrf.mxu0
      %v1573 = vadd.f32 %v1516, %v1572
      %v1574 = vpop.f32.mrf.mxu0
      %v1575 = vadd.f32 %v1518, %v1574
      %1576 = vmatmul.bf16.gmra.mxu0 %v1553
      %v1577 = vpop.f32.mrf.mxu0
      %v1578 = vadd.f32 %v1521, %v1577
      %v1579 = vpop.f32.mrf.mxu0
      %v1580 = vadd.f32 %v1523, %v1579
      %1581 = vdwg.mxu0
      %s1582 = scalar_lea.vmem %s11, 56
      %v1583 = vld [vmem:[%s1582] sm:$0xf]
      %v1584 = vld [vmem:[%s1582 + $0x4] sm:$0xf]
      %v1585 = vld [vmem:[%s1582 + $0x8] sm:$0xf]
      %v1586 = vld [vmem:[%s1582 + $0xc] sm:$0xf]
      %v1587 = vld [vmem:[%s1582 + $0x10] sm:$0xf]
      %v1588 = vld [vmem:[%s1582 + $0x14] sm:$0xf]
      %v1589 = vld [vmem:[%s1582 + $0x18] sm:$0x3]
      %v1597 = vunpack.c.l.b16 %v1583
      %v1598 = vunpack.c.l.b16 %v1584
      %v1599 = vunpack.c.l.b16 %v1585
      %v1600 = vunpack.c.l.b16 %v1586
      %v1601 = vunpack.c.l.b16 %v1587
      %v1602 = vunpack.c.l.b16 %v1588
      %v1603 = vunpack.c.l.b16 %v1589
      %v1604 = vpack.c.b16 %v1598, %v1597
      %v1605 = vpack.c.b16 %v1600, %v1599
      %v1606 = vpack.c.b16 %v1602, %v1601
      %v1607 = vpack.c.b16 %v1603, %v1603
      %v1612 = vsel %vm1491, %v1448, 0
      %v1615 = vsel %vm1491, %v1451, 0
      %v1618 = vsel %vm1491, %v1454, 0
      %v1621 = vsel %vm1257, %v1607, 0
      %1623 = vmatpush.bf16.msra.mxu0 0
      %1624 = vmatpush.bf16.msra.mxu0 0
      %1625 = vmatpush.bf16.msra.mxu0 0
      %1626 = vmatpush.bf16.msra.mxu0 0
      %1627 = vmatpush.bf16.msra.mxu0 %v1621
      %1628 = vmatpush.bf16.msra.mxu0 %v1606
      %1629 = vmatpush.bf16.msra.mxu0 %v1605
      %1630 = vmatpush.bf16.msra.mxu0 %v1604
      %1631 = vmatmul.bf16.gmra.mxu0 %v1612
      %v1632 = vpop.f32.mrf.mxu0
      %v1633 = vadd.f32 0.0, %v1632
      %v1634 = vpop.f32.mrf.mxu0
      %v1635 = vadd.f32 0.0, %v1634
      %1636 = vmatmul.bf16.gmra.mxu0 %v1615
      %v1637 = vpop.f32.mrf.mxu0
      %v1638 = vadd.f32 0.0, %v1637
      %v1639 = vpop.f32.mrf.mxu0
      %v1640 = vadd.f32 0.0, %v1639
      %1641 = vmatmul.bf16.gmra.mxu0 %v1618
      %v1642 = vpop.f32.mrf.mxu0
      %v1643 = vadd.f32 0.0, %v1642
      %v1644 = vpop.f32.mrf.mxu0
      %v1645 = vadd.f32 0.0, %v1644
      %1646 = vdwg.mxu0
      %v1647 = vadd.f32 %v1568, %v1633
      %v1648 = vadd.f32 %v1570, %v1635
      %v1649 = vadd.f32 %v1573, %v1638
      %v1650 = vadd.f32 %v1575, %v1640
      %v1651 = vadd.f32 %v1578, %v1643
      %v1652 = vadd.f32 %v1580, %v1645
      %v1653 = vld [vmem:[%s13] sm:$0x1]
      %v1655 = vperm.slane %v1653, 0
      %v1657 = vadd.f32 %v1647, %v1655
      %v1658 = vadd.f32 %v1648, %v1655
      %v1659 = vadd.f32 %v1649, %v1655
      %v1660 = vadd.f32 %v1650, %v1655
      %v1661 = vadd.f32 %v1651, %v1655
      %v1662 = vadd.f32 %v1652, %v1655
      %v1663 = vmax.f32 %v1657, 0.0
      %v1664 = vmax.f32 %v1658, 0.0
      %v1665 = vmax.f32 %v1659, 0.0
      %v1666 = vmax.f32 %v1660, 0.0
      %v1667 = vmax.f32 %v1661, 0.0
      %v1668 = vmax.f32 %v1662, 0.0
      %v1669 = vsel %vm1387, %v1663, 0.0
      %v1670 = vsel %vm1388, %v1664, 0.0
      %v1671 = vsel %vm1389, %v1665, 0.0
      %v1672 = vsel %vm1390, %v1666, 0.0
      %v1673 = vsel %vm1391, %v1667, 0.0
      %v1674 = vsel %vm1392, %v1668, 0.0
      %v1675 = vpack.c.bf16 %v1669, %v1669
      %v1676 = vpack.c.bf16 %v1670, %v1670
      %v1677 = vpack.c.bf16 %v1671, %v1671
      %v1678 = vpack.c.bf16 %v1672, %v1672
      %v1679 = vpack.c.bf16 %v1673, %v1673
      %v1680 = vpack.c.bf16 %v1674, %v1674
      %v1687 = vunpack.c.l.b16 %v1675
      %v1688 = vunpack.c.l.b16 %v1676
      %v1689 = vunpack.c.l.b16 %v1677
      %v1690 = vunpack.c.l.b16 %v1678
      %v1691 = vunpack.c.l.b16 %v1679
      %v1692 = vunpack.c.l.b16 %v1680
      %v1693 = vpack.c.b16 %v1688, %v1687
      %v1694 = vpack.c.b16 %v1690, %v1689
      %v1695 = vpack.c.b16 %v1692, %v1691
      %v1697 = vshrl.u32 %v1693, 16
      %v1699 = vrot.slane %v1697, 7
      %v1700 = vshll.u32 %v1693, 16
      %v1702 = vor.u32 %v1699, %v1700
      %v1704 = vshrl.u32 %v1694, 16
      %v1706 = vrot.slane %v1704, 7
      %v1707 = vshll.u32 %v1694, 16
      %v1709 = vor.u32 %v1706, %v1707
      %v1710 = vsel %vm1206, %v1699, %v1709
      %v1712 = vshrl.u32 %v1695, 16
      %v1714 = vrot.slane %v1712, 7
      %v1715 = vshll.u32 %v1695, 16
      %v1717 = vor.u32 %v1714, %v1715
      %v1718 = vsel %vm1206, %v1706, %v1717
      %v1720 = vsel %vm1232, 0, %v1702
      %v1721 = vrot.slane %v1700, 1
      %v1722 = vor.u32 %v1697, %v1721
      %v1723 = vrot.slane %v1707, 1
      %v1724 = vsel %vm1234, %v1722, %v1723
      %v1725 = vor.u32 %v1704, %v1723
      %v1726 = vrot.slane %v1715, 1
      %v1727 = vsel %vm1234, %v1725, %v1726
      %v1728 = vor.u32 %v1712, %v1726
      %v1730 = vsel %vm1245, %v1728, 0
      %v1731 = vld [vmem:[%s15] sm:$0xff]
      %v1732 = vld [vmem:[%s15 + $0x8] sm:$0xff]
      %v1733 = vld [vmem:[%s15 + $0x10] sm:$0xff]
      %v1734 = vld [vmem:[%s15 + $0x18] sm:$0xff]
      %v1735 = vld [vmem:[%s15 + $0x20] sm:$0xff]
      %v1736 = vld [vmem:[%s15 + $0x28] sm:$0xff]
      %v1737 = vld [vmem:[%s15 + $0x30] sm:$0xff]
      %v1738 = vld [vmem:[%s15 + $0x38] sm:$0xff]
      %v1739 = vld [vmem:[%s15 + $0x40] sm:$0xff]
      %v1740 = vld [vmem:[%s15 + $0x48] sm:$0xff]
      %v1741 = vld [vmem:[%s15 + $0x50] sm:$0xff]
      %v1742 = vld [vmem:[%s15 + $0x58] sm:$0xff]
      %v1743 = vld [vmem:[%s15 + $0x60] sm:$0x33]
      %s1744 = scalar_lea.vmem %s15, 104
      %v1745 = vld [vmem:[%s1744] sm:$0xff]
      %v1746 = vld [vmem:[%s1744 + $0x8] sm:$0xff]
      %v1747 = vld [vmem:[%s1744 + $0x10] sm:$0xff]
      %v1748 = vld [vmem:[%s1744 + $0x18] sm:$0xff]
      %v1749 = vld [vmem:[%s1744 + $0x20] sm:$0xff]
      %v1750 = vld [vmem:[%s1744 + $0x28] sm:$0xff]
      %v1751 = vld [vmem:[%s1744 + $0x30] sm:$0xff]
      %v1752 = vld [vmem:[%s1744 + $0x38] sm:$0xff]
      %v1753 = vld [vmem:[%s1744 + $0x40] sm:$0xff]
      %v1754 = vld [vmem:[%s1744 + $0x48] sm:$0xff]
      %v1755 = vld [vmem:[%s1744 + $0x50] sm:$0xff]
      %v1756 = vld [vmem:[%s1744 + $0x58] sm:$0xff]
      %v1757 = vld [vmem:[%s1744 + $0x60] sm:$0x33]
      %v1771 = vunpack.c.l.b16 %v1745
      %v1772 = vunpack.c.h.b16 %v1745
      %v1773 = vunpack.c.l.b16 %v1746
      %v1774 = vunpack.c.h.b16 %v1746
      %v1775 = vunpack.c.l.b16 %v1747
      %v1776 = vunpack.c.h.b16 %v1747
      %v1777 = vunpack.c.l.b16 %v1748
      %v1778 = vunpack.c.h.b16 %v1748
      %v1779 = vunpack.c.l.b16 %v1749
      %v1780 = vunpack.c.h.b16 %v1749
      %v1781 = vunpack.c.l.b16 %v1750
      %v1782 = vunpack.c.h.b16 %v1750
      %v1783 = vunpack.c.l.b16 %v1751
      %v1784 = vunpack.c.h.b16 %v1751
      %v1785 = vunpack.c.l.b16 %v1752
      %v1786 = vunpack.c.h.b16 %v1752
      %v1787 = vunpack.c.l.b16 %v1753
      %v1788 = vunpack.c.h.b16 %v1753
      %v1789 = vunpack.c.l.b16 %v1754
      %v1790 = vunpack.c.h.b16 %v1754
      %v1791 = vunpack.c.l.b16 %v1755
      %v1792 = vunpack.c.h.b16 %v1755
      %v1793 = vunpack.c.l.b16 %v1756
      %v1794 = vunpack.c.h.b16 %v1756
      %v1795 = vunpack.c.l.b16 %v1757
      %v1796 = vunpack.c.h.b16 %v1757
      %v1797 = vpack.c.b16 %v1773, %v1771
      %v1798 = vpack.c.b16 %v1774, %v1772
      %v1799 = vpack.c.b16 %v1777, %v1775
      %v1800 = vpack.c.b16 %v1778, %v1776
      %v1801 = vpack.c.b16 %v1781, %v1779
      %v1802 = vpack.c.b16 %v1782, %v1780
      %v1803 = vpack.c.b16 %v1785, %v1783
      %v1804 = vpack.c.b16 %v1786, %v1784
      %v1805 = vpack.c.b16 %v1789, %v1787
      %v1806 = vpack.c.b16 %v1790, %v1788
      %v1807 = vpack.c.b16 %v1793, %v1791
      %v1808 = vpack.c.b16 %v1794, %v1792
      %v1809 = vpack.c.b16 %v1795, %v1795
      %v1810 = vpack.c.b16 %v1796, %v1796
      %vm1823 = vcmask 818176
      %v1824 = vsel %vm1823, %v1693, 0
      %v1826 = vsel %vm1823, %v1694, 0
      %v1828 = vsel %vm1823, %v1695, 0
      %v1831 = vsel %vm1257, %v1809, 0
      %v1834 = vsel %vm1257, %v1810, 0
      %1836 = vmatpush.bf16.msra.mxu0 0
      %1837 = vmatpush.bf16.msra.mxu0 %v1831
      %1838 = vmatpush.bf16.msra.mxu0 %v1807
      %1839 = vmatpush.bf16.msra.mxu0 %v1805
      %1840 = vmatpush.bf16.msra.mxu0 %v1803
      %1841 = vmatpush.bf16.msra.mxu0 %v1801
      %1842 = vmatpush.bf16.msra.mxu0 %v1799
      %1843 = vmatpush.bf16.msra.mxu0 %v1797
      %1844 = vmatmul.bf16.gmra.mxu0 %v1824
      %v1845 = vpop.f32.mrf.mxu0
      %v1846 = vadd.f32 0.0, %v1845
      %v1847 = vpop.f32.mrf.mxu0
      %v1848 = vadd.f32 0.0, %v1847
      %1849 = vmatmul.bf16.gmra.mxu0 %v1826
      %v1850 = vpop.f32.mrf.mxu0
      %v1851 = vadd.f32 0.0, %v1850
      %v1852 = vpop.f32.mrf.mxu0
      %v1853 = vadd.f32 0.0, %v1852
      %1854 = vmatmul.bf16.gmra.mxu0 %v1828
      %v1855 = vpop.f32.mrf.mxu0
      %v1856 = vadd.f32 0.0, %v1855
      %v1857 = vpop.f32.mrf.mxu0
      %v1858 = vadd.f32 0.0, %v1857
      %1859 = vdwg.mxu0
      %1860 = vmatpush.bf16.msra.mxu0 0
      %1861 = vmatpush.bf16.msra.mxu0 %v1834
      %1862 = vmatpush.bf16.msra.mxu0 %v1808
      %1863 = vmatpush.bf16.msra.mxu0 %v1806
      %1864 = vmatpush.bf16.msra.mxu0 %v1804
      %1865 = vmatpush.bf16.msra.mxu0 %v1802
      %1866 = vmatpush.bf16.msra.mxu0 %v1800
      %1867 = vmatpush.bf16.msra.mxu0 %v1798
      %1868 = vmatmul.bf16.gmra.mxu0 %v1824
      %v1869 = vpop.f32.mrf.mxu0
      %v1870 = vadd.f32 0.0, %v1869
      %v1871 = vpop.f32.mrf.mxu0
      %v1872 = vadd.f32 0.0, %v1871
      %1873 = vmatmul.bf16.gmra.mxu0 %v1826
      %v1874 = vpop.f32.mrf.mxu0
      %v1875 = vadd.f32 0.0, %v1874
      %v1876 = vpop.f32.mrf.mxu0
      %v1877 = vadd.f32 0.0, %v1876
      %1878 = vmatmul.bf16.gmra.mxu0 %v1828
      %v1879 = vpop.f32.mrf.mxu0
      %v1880 = vadd.f32 0.0, %v1879
      %v1881 = vpop.f32.mrf.mxu0
      %v1882 = vadd.f32 0.0, %v1881
      %1883 = vdwg.mxu0
      %v1897 = vunpack.c.l.b16 %v1731
      %v1898 = vunpack.c.h.b16 %v1731
      %v1899 = vunpack.c.l.b16 %v1732
      %v1900 = vunpack.c.h.b16 %v1732
      %v1901 = vunpack.c.l.b16 %v1733
      %v1902 = vunpack.c.h.b16 %v1733
      %v1903 = vunpack.c.l.b16 %v1734
      %v1904 = vunpack.c.h.b16 %v1734
      %v1905 = vunpack.c.l.b16 %v1735
      %v1906 = vunpack.c.h.b16 %v1735
      %v1907 = vunpack.c.l.b16 %v1736
      %v1908 = vunpack.c.h.b16 %v1736
      %v1909 = vunpack.c.l.b16 %v1737
      %v1910 = vunpack.c.h.b16 %v1737
      %v1911 = vunpack.c.l.b16 %v1738
      %v1912 = vunpack.c.h.b16 %v1738
      %v1913 = vunpack.c.l.b16 %v1739
      %v1914 = vunpack.c.h.b16 %v1739
      %v1915 = vunpack.c.l.b16 %v1740
      %v1916 = vunpack.c.h.b16 %v1740
      %v1917 = vunpack.c.l.b16 %v1741
      %v1918 = vunpack.c.h.b16 %v1741
      %v1919 = vunpack.c.l.b16 %v1742
      %v1920 = vunpack.c.h.b16 %v1742
      %v1921 = vunpack.c.l.b16 %v1743
      %v1922 = vunpack.c.h.b16 %v1743
      %v1923 = vpack.c.b16 %v1899, %v1897
      %v1924 = vpack.c.b16 %v1900, %v1898
      %v1925 = vpack.c.b16 %v1903, %v1901
      %v1926 = vpack.c.b16 %v1904, %v1902
      %v1927 = vpack.c.b16 %v1907, %v1905
      %v1928 = vpack.c.b16 %v1908, %v1906
      %v1929 = vpack.c.b16 %v1911, %v1909
      %v1930 = vpack.c.b16 %v1912, %v1910
      %v1931 = vpack.c.b16 %v1915, %v1913
      %v1932 = vpack.c.b16 %v1916, %v1914
      %v1933 = vpack.c.b16 %v1919, %v1917
      %v1934 = vpack.c.b16 %v1920, %v1918
      %v1935 = vpack.c.b16 %v1921, %v1921
      %v1936 = vpack.c.b16 %v1922, %v1922
      %v1950 = vsel %vm1823, %v1720, 0
      %v1953 = vsel %vm1823, %v1710, 0
      %v1956 = vsel %vm1823, %v1718, 0
      %v1959 = vsel %vm1257, %v1935, 0
      %v1962 = vsel %vm1257, %v1936, 0
      %1964 = vmatpush.bf16.msra.mxu0 0
      %1965 = vmatpush.bf16.msra.mxu0 %v1959
      %1966 = vmatpush.bf16.msra.mxu0 %v1933
      %1967 = vmatpush.bf16.msra.mxu0 %v1931
      %1968 = vmatpush.bf16.msra.mxu0 %v1929
      %1969 = vmatpush.bf16.msra.mxu0 %v1927
      %1970 = vmatpush.bf16.msra.mxu0 %v1925
      %1971 = vmatpush.bf16.msra.mxu0 %v1923
      %1972 = vmatmul.bf16.gmra.mxu0 %v1950
      %v1973 = vpop.f32.mrf.mxu0
      %v1974 = vadd.f32 %v1846, %v1973
      %v1975 = vpop.f32.mrf.mxu0
      %v1976 = vadd.f32 %v1848, %v1975
      %1977 = vmatmul.bf16.gmra.mxu0 %v1953
      %v1978 = vpop.f32.mrf.mxu0
      %v1979 = vadd.f32 %v1851, %v1978
      %v1980 = vpop.f32.mrf.mxu0
      %v1981 = vadd.f32 %v1853, %v1980
      %1982 = vmatmul.bf16.gmra.mxu0 %v1956
      %v1983 = vpop.f32.mrf.mxu0
      %v1984 = vadd.f32 %v1856, %v1983
      %v1985 = vpop.f32.mrf.mxu0
      %v1986 = vadd.f32 %v1858, %v1985
      %1987 = vdwg.mxu0
      %1988 = vmatpush.bf16.msra.mxu0 0
      %1989 = vmatpush.bf16.msra.mxu0 %v1962
      %1990 = vmatpush.bf16.msra.mxu0 %v1934
      %1991 = vmatpush.bf16.msra.mxu0 %v1932
      %1992 = vmatpush.bf16.msra.mxu0 %v1930
      %1993 = vmatpush.bf16.msra.mxu0 %v1928
      %1994 = vmatpush.bf16.msra.mxu0 %v1926
      %1995 = vmatpush.bf16.msra.mxu0 %v1924
      %1996 = vmatmul.bf16.gmra.mxu0 %v1950
      %v1997 = vpop.f32.mrf.mxu0
      %v1998 = vadd.f32 %v1870, %v1997
      %v1999 = vpop.f32.mrf.mxu0
      %v2000 = vadd.f32 %v1872, %v1999
      %2001 = vmatmul.bf16.gmra.mxu0 %v1953
      %v2002 = vpop.f32.mrf.mxu0
      %v2003 = vadd.f32 %v1875, %v2002
      %v2004 = vpop.f32.mrf.mxu0
      %v2005 = vadd.f32 %v1877, %v2004
      %2006 = vmatmul.bf16.gmra.mxu0 %v1956
      %v2007 = vpop.f32.mrf.mxu0
      %v2008 = vadd.f32 %v1880, %v2007
      %v2009 = vpop.f32.mrf.mxu0
      %v2010 = vadd.f32 %v1882, %v2009
      %2011 = vdwg.mxu0
      %s2012 = scalar_lea.vmem %s15, 208
      %v2013 = vld [vmem:[%s2012] sm:$0xff]
      %v2014 = vld [vmem:[%s2012 + $0x8] sm:$0xff]
      %v2015 = vld [vmem:[%s2012 + $0x10] sm:$0xff]
      %v2016 = vld [vmem:[%s2012 + $0x18] sm:$0xff]
      %v2017 = vld [vmem:[%s2012 + $0x20] sm:$0xff]
      %v2018 = vld [vmem:[%s2012 + $0x28] sm:$0xff]
      %v2019 = vld [vmem:[%s2012 + $0x30] sm:$0xff]
      %v2020 = vld [vmem:[%s2012 + $0x38] sm:$0xff]
      %v2021 = vld [vmem:[%s2012 + $0x40] sm:$0xff]
      %v2022 = vld [vmem:[%s2012 + $0x48] sm:$0xff]
      %v2023 = vld [vmem:[%s2012 + $0x50] sm:$0xff]
      %v2024 = vld [vmem:[%s2012 + $0x58] sm:$0xff]
      %v2025 = vld [vmem:[%s2012 + $0x60] sm:$0x33]
      %v2039 = vunpack.c.l.b16 %v2013
      %v2040 = vunpack.c.h.b16 %v2013
      %v2041 = vunpack.c.l.b16 %v2014
      %v2042 = vunpack.c.h.b16 %v2014
      %v2043 = vunpack.c.l.b16 %v2015
      %v2044 = vunpack.c.h.b16 %v2015
      %v2045 = vunpack.c.l.b16 %v2016
      %v2046 = vunpack.c.h.b16 %v2016
      %v2047 = vunpack.c.l.b16 %v2017
      %v2048 = vunpack.c.h.b16 %v2017
      %v2049 = vunpack.c.l.b16 %v2018
      %v2050 = vunpack.c.h.b16 %v2018
      %v2051 = vunpack.c.l.b16 %v2019
      %v2052 = vunpack.c.h.b16 %v2019
      %v2053 = vunpack.c.l.b16 %v2020
      %v2054 = vunpack.c.h.b16 %v2020
      %v2055 = vunpack.c.l.b16 %v2021
      %v2056 = vunpack.c.h.b16 %v2021
      %v2057 = vunpack.c.l.b16 %v2022
      %v2058 = vunpack.c.h.b16 %v2022
      %v2059 = vunpack.c.l.b16 %v2023
      %v2060 = vunpack.c.h.b16 %v2023
      %v2061 = vunpack.c.l.b16 %v2024
      %v2062 = vunpack.c.h.b16 %v2024
      %v2063 = vunpack.c.l.b16 %v2025
      %v2064 = vunpack.c.h.b16 %v2025
      %v2065 = vpack.c.b16 %v2041, %v2039
      %v2066 = vpack.c.b16 %v2042, %v2040
      %v2067 = vpack.c.b16 %v2045, %v2043
      %v2068 = vpack.c.b16 %v2046, %v2044
      %v2069 = vpack.c.b16 %v2049, %v2047
      %v2070 = vpack.c.b16 %v2050, %v2048
      %v2071 = vpack.c.b16 %v2053, %v2051
      %v2072 = vpack.c.b16 %v2054, %v2052
      %v2073 = vpack.c.b16 %v2057, %v2055
      %v2074 = vpack.c.b16 %v2058, %v2056
      %v2075 = vpack.c.b16 %v2061, %v2059
      %v2076 = vpack.c.b16 %v2062, %v2060
      %v2077 = vpack.c.b16 %v2063, %v2063
      %v2078 = vpack.c.b16 %v2064, %v2064
      %v2092 = vsel %vm1823, %v1724, 0
      %v2095 = vsel %vm1823, %v1727, 0
      %v2098 = vsel %vm1823, %v1730, 0
      %v2101 = vsel %vm1257, %v2077, 0
      %v2104 = vsel %vm1257, %v2078, 0
      %2106 = vmatpush.bf16.msra.mxu0 0
      %2107 = vmatpush.bf16.msra.mxu0 %v2101
      %2108 = vmatpush.bf16.msra.mxu0 %v2075
      %2109 = vmatpush.bf16.msra.mxu0 %v2073
      %2110 = vmatpush.bf16.msra.mxu0 %v2071
      %2111 = vmatpush.bf16.msra.mxu0 %v2069
      %2112 = vmatpush.bf16.msra.mxu0 %v2067
      %2113 = vmatpush.bf16.msra.mxu0 %v2065
      %2114 = vmatmul.bf16.gmra.mxu0 %v2092
      %v2115 = vpop.f32.mrf.mxu0
      %v2116 = vadd.f32 0.0, %v2115
      %v2117 = vpop.f32.mrf.mxu0
      %v2118 = vadd.f32 0.0, %v2117
      %2119 = vmatmul.bf16.gmra.mxu0 %v2095
      %v2120 = vpop.f32.mrf.mxu0
      %v2121 = vadd.f32 0.0, %v2120
      %v2122 = vpop.f32.mrf.mxu0
      %v2123 = vadd.f32 0.0, %v2122
      %2124 = vmatmul.bf16.gmra.mxu0 %v2098
      %v2125 = vpop.f32.mrf.mxu0
      %v2126 = vadd.f32 0.0, %v2125
      %v2127 = vpop.f32.mrf.mxu0
      %v2128 = vadd.f32 0.0, %v2127
      %2129 = vdwg.mxu0
      %2130 = vmatpush.bf16.msra.mxu0 0
      %2131 = vmatpush.bf16.msra.mxu0 %v2104
      %2132 = vmatpush.bf16.msra.mxu0 %v2076
      %2133 = vmatpush.bf16.msra.mxu0 %v2074
      %2134 = vmatpush.bf16.msra.mxu0 %v2072
      %2135 = vmatpush.bf16.msra.mxu0 %v2070
      %2136 = vmatpush.bf16.msra.mxu0 %v2068
      %2137 = vmatpush.bf16.msra.mxu0 %v2066
      %2138 = vmatmul.bf16.gmra.mxu0 %v2092
      %v2139 = vpop.f32.mrf.mxu0
      %v2140 = vadd.f32 0.0, %v2139
      %v2141 = vpop.f32.mrf.mxu0
      %v2142 = vadd.f32 0.0, %v2141
      %2143 = vmatmul.bf16.gmra.mxu0 %v2095
      %v2144 = vpop.f32.mrf.mxu0
      %v2145 = vadd.f32 0.0, %v2144
      %v2146 = vpop.f32.mrf.mxu0
      %v2147 = vadd.f32 0.0, %v2146
      %2148 = vmatmul.bf16.gmra.mxu0 %v2098
      %v2149 = vpop.f32.mrf.mxu0
      %v2150 = vadd.f32 0.0, %v2149
      %v2151 = vpop.f32.mrf.mxu0
      %v2152 = vadd.f32 0.0, %v2151
      %2153 = vdwg.mxu0
      %v2154 = vadd.f32 %v1974, %v2116
      %v2155 = vadd.f32 %v1998, %v2140
      %v2156 = vadd.f32 %v1976, %v2118
      %v2157 = vadd.f32 %v2000, %v2142
      %v2158 = vadd.f32 %v1979, %v2121
      %v2159 = vadd.f32 %v2003, %v2145
      %v2160 = vadd.f32 %v1981, %v2123
      %v2161 = vadd.f32 %v2005, %v2147
      %v2162 = vadd.f32 %v1984, %v2126
      %v2163 = vadd.f32 %v2008, %v2150
      %v2164 = vadd.f32 %v1986, %v2128
      %v2165 = vadd.f32 %v2010, %v2152
      %v2166 = vld [vmem:[%s17] sm:$0x3]
      %v2168 = vperm.slane %v2166, 0
      %v2169 = vperm.slane %v2166, 1
      %v2172 = vadd.f32 %v2154, %v2168
      %v2173 = vadd.f32 %v2155, %v2169
      %v2174 = vadd.f32 %v2156, %v2168
      %v2175 = vadd.f32 %v2157, %v2169
      %v2176 = vadd.f32 %v2158, %v2168
      %v2177 = vadd.f32 %v2159, %v2169
      %v2178 = vadd.f32 %v2160, %v2168
      %v2179 = vadd.f32 %v2161, %v2169
      %v2180 = vadd.f32 %v2162, %v2168
      %v2181 = vadd.f32 %v2163, %v2169
      %v2182 = vadd.f32 %v2164, %v2168
      %v2183 = vadd.f32 %v2165, %v2169
      %v2184 = vmax.f32 %v2172, 0.0
      %v2185 = vmax.f32 %v2173, 0.0
      %v2186 = vmax.f32 %v2174, 0.0
      %v2187 = vmax.f32 %v2175, 0.0
      %v2188 = vmax.f32 %v2176, 0.0
      %v2189 = vmax.f32 %v2177, 0.0
      %v2190 = vmax.f32 %v2178, 0.0
      %v2191 = vmax.f32 %v2179, 0.0
      %v2192 = vmax.f32 %v2180, 0.0
      %v2193 = vmax.f32 %v2181, 0.0
      %v2194 = vmax.f32 %v2182, 0.0
      %v2195 = vmax.f32 %v2183, 0.0
      %v2196 = vsel %vm1387, %v2184, 0.0
      %v2197 = vsel %vm1387, %v2185, 0.0
      %v2198 = vsel %vm1388, %v2186, 0.0
      %v2199 = vsel %vm1388, %v2187, 0.0
      %v2200 = vsel %vm1389, %v2188, 0.0
      %v2201 = vsel %vm1389, %v2189, 0.0
      %v2202 = vsel %vm1390, %v2190, 0.0
      %v2203 = vsel %vm1390, %v2191, 0.0
      %v2204 = vsel %vm1391, %v2192, 0.0
      %v2205 = vsel %vm1391, %v2193, 0.0
      %v2206 = vsel %vm1392, %v2194, 0.0
      %v2207 = vsel %vm1392, %v2195, 0.0
      %v2208 = vpack.c.bf16 %v2197, %v2196
      %v2209 = vpack.c.bf16 %v2199, %v2198
      %v2210 = vpack.c.bf16 %v2201, %v2200
      %v2211 = vpack.c.bf16 %v2203, %v2202
      %v2212 = vpack.c.bf16 %v2205, %v2204
      %v2213 = vpack.c.bf16 %v2207, %v2206
      %v2220 = vunpack.c.l.b16 %v2208
      %v2221 = vunpack.c.h.b16 %v2208
      %v2222 = vunpack.c.l.b16 %v2209
      %v2223 = vunpack.c.h.b16 %v2209
      %v2224 = vunpack.c.l.b16 %v2210
      %v2225 = vunpack.c.h.b16 %v2210
      %v2226 = vunpack.c.l.b16 %v2211
      %v2227 = vunpack.c.h.b16 %v2211
      %v2228 = vunpack.c.l.b16 %v2212
      %v2229 = vunpack.c.h.b16 %v2212
      %v2230 = vunpack.c.l.b16 %v2213
      %v2231 = vunpack.c.h.b16 %v2213
      %v2232 = vpack.c.b16 %v2222, %v2220
      %v2233 = vpack.c.b16 %v2223, %v2221
      %v2234 = vpack.c.b16 %v2226, %v2224
      %v2235 = vpack.c.b16 %v2227, %v2225
      %v2236 = vpack.c.b16 %v2230, %v2228
      %v2237 = vpack.c.b16 %v2231, %v2229
      %v2239 = vshrl.u32 %v2232, 16
      %v2241 = vrot.slane %v2239, 7
      %v2242 = vshll.u32 %v2232, 16
      %v2244 = vor.u32 %v2241, %v2242
      %v2246 = vshrl.u32 %v2233, 16
      %v2248 = vrot.slane %v2246, 7
      %v2249 = vshll.u32 %v2233, 16
      %v2251 = vor.u32 %v2248, %v2249
      %v2253 = vshrl.u32 %v2234, 16
      %v2255 = vrot.slane %v2253, 7
      %v2256 = vshll.u32 %v2234, 16
      %v2258 = vor.u32 %v2255, %v2256
      %v2259 = vsel %vm1206, %v2241, %v2258
      %v2261 = vshrl.u32 %v2235, 16
      %v2263 = vrot.slane %v2261, 7
      %v2264 = vshll.u32 %v2235, 16
      %v2266 = vor.u32 %v2263, %v2264
      %v2267 = vsel %vm1206, %v2248, %v2266
      %v2269 = vshrl.u32 %v2236, 16
      %v2271 = vrot.slane %v2269, 7
      %v2272 = vshll.u32 %v2236, 16
      %v2274 = vor.u32 %v2271, %v2272
      %v2275 = vsel %vm1206, %v2255, %v2274
      %v2277 = vshrl.u32 %v2237, 16
      %v2279 = vrot.slane %v2277, 7
      %v2280 = vshll.u32 %v2237, 16
      %v2282 = vor.u32 %v2279, %v2280
      %v2283 = vsel %vm1206, %v2263, %v2282
      %v2288 = vsel %vm1232, 0, %v2244
      %v2289 = vsel %vm1232, 0, %v2251
      %v2290 = vrot.slane %v2242, 1
      %v2291 = vor.u32 %v2239, %v2290
      %v2292 = vrot.slane %v2256, 1
      %v2293 = vsel %vm1234, %v2291, %v2292
      %v2294 = vrot.slane %v2249, 1
      %v2295 = vor.u32 %v2246, %v2294
      %v2296 = vrot.slane %v2264, 1
      %v2297 = vsel %vm1234, %v2295, %v2296
      %v2298 = vor.u32 %v2253, %v2292
      %v2299 = vrot.slane %v2272, 1
      %v2300 = vsel %vm1234, %v2298, %v2299
      %v2301 = vor.u32 %v2261, %v2296
      %v2302 = vrot.slane %v2280, 1
      %v2303 = vsel %vm1234, %v2301, %v2302
      %v2304 = vor.u32 %v2269, %v2299
      %v2305 = vor.u32 %v2277, %v2302
      %v2310 = vsel %vm1245, %v2304, 0
      %v2311 = vsel %vm1245, %v2305, 0
      %v2312 = vld [vmem:[%s19] sm:$0xff]
      %v2313 = vld [vmem:[%s19 + $0x8] sm:$0xff]
      %v2314 = vld [vmem:[%s19 + $0x10] sm:$0xff]
      %v2315 = vld [vmem:[%s19 + $0x18] sm:$0xff]
      %v2316 = vld [vmem:[%s19 + $0x20] sm:$0xff]
      %v2317 = vld [vmem:[%s19 + $0x28] sm:$0xff]
      %v2318 = vld [vmem:[%s19 + $0x30] sm:$0xff]
      %v2319 = vld [vmem:[%s19 + $0x38] sm:$0xff]
      %v2320 = vld [vmem:[%s19 + $0x40] sm:$0xff]
      %v2321 = vld [vmem:[%s19 + $0x48] sm:$0xff]
      %v2322 = vld [vmem:[%s19 + $0x50] sm:$0xff]
      %v2323 = vld [vmem:[%s19 + $0x58] sm:$0xff]
      %v2324 = vld [vmem:[%s19 + $0x60] sm:$0xff]
      %v2325 = vld [vmem:[%s19 + $0x68] sm:$0xff]
      %v2326 = vld [vmem:[%s19 + $0x70] sm:$0xff]
      %v2327 = vld [vmem:[%s19 + $0x78] sm:$0xff]
      %v2328 = vld [vmem:[%s19 + $0x80] sm:$0xff]
      %v2329 = vld [vmem:[%s19 + $0x88] sm:$0xff]
      %v2330 = vld [vmem:[%s19 + $0x90] sm:$0x33]
      %s2331 = scalar_lea.vmem %s19, 152
      %v2332 = vld [vmem:[%s2331] sm:$0xff]
      %v2333 = vld [vmem:[%s2331 + $0x8] sm:$0xff]
      %v2334 = vld [vmem:[%s2331 + $0x10] sm:$0xff]
      %v2335 = vld [vmem:[%s2331 + $0x18] sm:$0xff]
      %v2336 = vld [vmem:[%s2331 + $0x20] sm:$0xff]
      %v2337 = vld [vmem:[%s2331 + $0x28] sm:$0xff]
      %v2338 = vld [vmem:[%s2331 + $0x30] sm:$0xff]
      %v2339 = vld [vmem:[%s2331 + $0x38] sm:$0xff]
      %v2340 = vld [vmem:[%s2331 + $0x40] sm:$0xff]
      %v2341 = vld [vmem:[%s2331 + $0x48] sm:$0xff]
      %v2342 = vld [vmem:[%s2331 + $0x50] sm:$0xff]
      %v2343 = vld [vmem:[%s2331 + $0x58] sm:$0xff]
      %v2344 = vld [vmem:[%s2331 + $0x60] sm:$0xff]
      %v2345 = vld [vmem:[%s2331 + $0x68] sm:$0xff]
      %v2346 = vld [vmem:[%s2331 + $0x70] sm:$0xff]
      %v2347 = vld [vmem:[%s2331 + $0x78] sm:$0xff]
      %v2348 = vld [vmem:[%s2331 + $0x80] sm:$0xff]
      %v2349 = vld [vmem:[%s2331 + $0x88] sm:$0xff]
      %v2350 = vld [vmem:[%s2331 + $0x90] sm:$0x33]
      %v2373 = vunpack.c.l.b16 %v2332
      %v2374 = vunpack.c.h.b16 %v2332
      %v2375 = vunpack.c.l.b16 %v2333
      %v2376 = vunpack.c.h.b16 %v2333
      %v2377 = vunpack.c.l.b16 %v2334
      %v2378 = vunpack.c.h.b16 %v2334
      %v2379 = vunpack.c.l.b16 %v2335
      %v2380 = vunpack.c.h.b16 %v2335
      %v2381 = vunpack.c.l.b16 %v2336
      %v2382 = vunpack.c.h.b16 %v2336
      %v2383 = vunpack.c.l.b16 %v2337
      %v2384 = vunpack.c.h.b16 %v2337
      %v2385 = vunpack.c.l.b16 %v2338
      %v2386 = vunpack.c.h.b16 %v2338
      %v2387 = vunpack.c.l.b16 %v2339
      %v2388 = vunpack.c.h.b16 %v2339
      %v2389 = vunpack.c.l.b16 %v2340
      %v2390 = vunpack.c.h.b16 %v2340
      %v2391 = vunpack.c.l.b16 %v2341
      %v2392 = vunpack.c.h.b16 %v2341
      %v2393 = vunpack.c.l.b16 %v2342
      %v2394 = vunpack.c.h.b16 %v2342
      %v2395 = vunpack.c.l.b16 %v2343
      %v2396 = vunpack.c.h.b16 %v2343
      %v2397 = vunpack.c.l.b16 %v2344
      %v2398 = vunpack.c.h.b16 %v2344
      %v2399 = vunpack.c.l.b16 %v2345
      %v2400 = vunpack.c.h.b16 %v2345
      %v2401 = vunpack.c.l.b16 %v2346
      %v2402 = vunpack.c.h.b16 %v2346
      %v2403 = vunpack.c.l.b16 %v2347
      %v2404 = vunpack.c.h.b16 %v2347
      %v2405 = vunpack.c.l.b16 %v2348
      %v2406 = vunpack.c.h.b16 %v2348
      %v2407 = vunpack.c.l.b16 %v2349
      %v2408 = vunpack.c.h.b16 %v2349
      %v2409 = vunpack.c.l.b16 %v2350
      %v2410 = vunpack.c.h.b16 %v2350
      %v2411 = vpack.c.b16 %v2375, %v2373
      %v2412 = vpack.c.b16 %v2376, %v2374
      %v2413 = vpack.c.b16 %v2379, %v2377
      %v2414 = vpack.c.b16 %v2380, %v2378
      %v2415 = vpack.c.b16 %v2383, %v2381
      %v2416 = vpack.c.b16 %v2384, %v2382
      %v2417 = vpack.c.b16 %v2387, %v2385
      %v2418 = vpack.c.b16 %v2388, %v2386
      %v2419 = vpack.c.b16 %v2391, %v2389
      %v2420 = vpack.c.b16 %v2392, %v2390
      %v2421 = vpack.c.b16 %v2395, %v2393
      %v2422 = vpack.c.b16 %v2396, %v2394
      %v2423 = vpack.c.b16 %v2399, %v2397
      %v2424 = vpack.c.b16 %v2400, %v2398
      %v2425 = vpack.c.b16 %v2403, %v2401
      %v2426 = vpack.c.b16 %v2404, %v2402
      %v2427 = vpack.c.b16 %v2407, %v2405
      %v2428 = vpack.c.b16 %v2408, %v2406
      %v2429 = vpack.c.b16 %v2409, %v2409
      %v2430 = vpack.c.b16 %v2410, %v2410
      %vm2449 = vcmask 162816
      %v2450 = vsel %vm2449, %v2233, 0
      %v2452 = vsel %vm2449, %v2235, 0
      %v2454 = vsel %vm2449, %v2237, 0
      %v2457 = vsel %vm1257, %v2429, 0
      %v2460 = vsel %vm1257, %v2430, 0
      %2462 = vmatpush.bf16.msra.mxu0 %v2425
      %2463 = vmatpush.bf16.msra.mxu0 %v2423
      %2464 = vmatpush.bf16.msra.mxu0 %v2421
      %2465 = vmatpush.bf16.msra.mxu0 %v2419
      %2466 = vmatpush.bf16.msra.mxu0 %v2417
      %2467 = vmatpush.bf16.msra.mxu0 %v2415
      %2468 = vmatpush.bf16.msra.mxu0 %v2413
      %2469 = vmatpush.bf16.msra.mxu0 %v2411
      %2470 = vmatmul.bf16.gmra.mxu0 %v2232
      %v2471 = vpop.f32.mrf.mxu0
      %v2472 = vadd.f32 0.0, %v2471
      %v2473 = vpop.f32.mrf.mxu0
      %v2474 = vadd.f32 0.0, %v2473
      %2475 = vmatmul.bf16.gmra.mxu0 %v2234
      %v2476 = vpop.f32.mrf.mxu0
      %v2477 = vadd.f32 0.0, %v2476
      %v2478 = vpop.f32.mrf.mxu0
      %v2479 = vadd.f32 0.0, %v2478
      %2480 = vmatmul.bf16.gmra.mxu0 %v2236
      %v2481 = vpop.f32.mrf.mxu0
      %v2482 = vadd.f32 0.0, %v2481
      %v2483 = vpop.f32.mrf.mxu0
      %v2484 = vadd.f32 0.0, %v2483
      %2485 = vdwg.mxu0
      %2486 = vmatpush.bf16.msra.mxu0 0
      %2487 = vmatpush.bf16.msra.mxu0 0
      %2488 = vmatpush.bf16.msra.mxu0 0
      %2489 = vmatpush.bf16.msra.mxu0 0
      %2490 = vmatpush.bf16.msra.mxu0 0
      %2491 = vmatpush.bf16.msra.mxu0 0
      %2492 = vmatpush.bf16.msra.mxu0 %v2457
      %2493 = vmatpush.bf16.msra.mxu0 %v2427
      %2494 = vmatmul.bf16.gmra.mxu0 %v2450
      %v2495 = vpop.f32.mrf.mxu0
      %v2496 = vadd.f32 %v2472, %v2495
      %v2497 = vpop.f32.mrf.mxu0
      %v2498 = vadd.f32 %v2474, %v2497
      %2499 = vmatmul.bf16.gmra.mxu0 %v2452
      %v2500 = vpop.f32.mrf.mxu0
      %v2501 = vadd.f32 %v2477, %v2500
      %v2502 = vpop.f32.mrf.mxu0
      %v2503 = vadd.f32 %v2479, %v2502
      %2504 = vmatmul.bf16.gmra.mxu0 %v2454
      %v2505 = vpop.f32.mrf.mxu0
      %v2506 = vadd.f32 %v2482, %v2505
      %v2507 = vpop.f32.mrf.mxu0
      %v2508 = vadd.f32 %v2484, %v2507
      %2509 = vdwg.mxu0
      %2510 = vmatpush.bf16.msra.mxu0 %v2426
      %2511 = vmatpush.bf16.msra.mxu0 %v2424
      %2512 = vmatpush.bf16.msra.mxu0 %v2422
      %2513 = vmatpush.bf16.msra.mxu0 %v2420
      %2514 = vmatpush.bf16.msra.mxu0 %v2418
      %2515 = vmatpush.bf16.msra.mxu0 %v2416
      %2516 = vmatpush.bf16.msra.mxu0 %v2414
      %2517 = vmatpush.bf16.msra.mxu0 %v2412
      %2518 = vmatmul.bf16.gmra.mxu0 %v2232
      %v2519 = vpop.f32.mrf.mxu0
      %v2520 = vadd.f32 0.0, %v2519
      %v2521 = vpop.f32.mrf.mxu0
      %v2522 = vadd.f32 0.0, %v2521
      %2523 = vmatmul.bf16.gmra.mxu0 %v2234
      %v2524 = vpop.f32.mrf.mxu0
      %v2525 = vadd.f32 0.0, %v2524
      %v2526 = vpop.f32.mrf.mxu0
      %v2527 = vadd.f32 0.0, %v2526
      %2528 = vmatmul.bf16.gmra.mxu0 %v2236
      %v2529 = vpop.f32.mrf.mxu0
      %v2530 = vadd.f32 0.0, %v2529
      %v2531 = vpop.f32.mrf.mxu0
      %v2532 = vadd.f32 0.0, %v2531
      %2533 = vdwg.mxu0
      %2534 = vmatpush.bf16.msra.mxu0 0
      %2535 = vmatpush.bf16.msra.mxu0 0
      %2536 = vmatpush.bf16.msra.mxu0 0
      %2537 = vmatpush.bf16.msra.mxu0 0
      %2538 = vmatpush.bf16.msra.mxu0 0
      %2539 = vmatpush.bf16.msra.mxu0 0
      %2540 = vmatpush.bf16.msra.mxu0 %v2460
      %2541 = vmatpush.bf16.msra.mxu0 %v2428
      %2542 = vmatmul.bf16.gmra.mxu0 %v2450
      %v2543 = vpop.f32.mrf.mxu0
      %v2544 = vadd.f32 %v2520, %v2543
      %v2545 = vpop.f32.mrf.mxu0
      %v2546 = vadd.f32 %v2522, %v2545
      %2547 = vmatmul.bf16.gmra.mxu0 %v2452
      %v2548 = vpop.f32.mrf.mxu0
      %v2549 = vadd.f32 %v2525, %v2548
      %v2550 = vpop.f32.mrf.mxu0
      %v2551 = vadd.f32 %v2527, %v2550
      %2552 = vmatmul.bf16.gmra.mxu0 %v2454
      %v2553 = vpop.f32.mrf.mxu0
      %v2554 = vadd.f32 %v2530, %v2553
      %v2555 = vpop.f32.mrf.mxu0
      %v2556 = vadd.f32 %v2532, %v2555
      %2557 = vdwg.mxu0
      %v2577 = vunpack.c.l.b16 %v2312
      %v2578 = vunpack.c.h.b16 %v2312
      %v2579 = vunpack.c.l.b16 %v2313
      %v2580 = vunpack.c.h.b16 %v2313
      %v2581 = vunpack.c.l.b16 %v2314
      %v2582 = vunpack.c.h.b16 %v2314
      %v2583 = vunpack.c.l.b16 %v2315
      %v2584 = vunpack.c.h.b16 %v2315
      %v2585 = vunpack.c.l.b16 %v2316
      %v2586 = vunpack.c.h.b16 %v2316
      %v2587 = vunpack.c.l.b16 %v2317
      %v2588 = vunpack.c.h.b16 %v2317
      %v2589 = vunpack.c.l.b16 %v2318
      %v2590 = vunpack.c.h.b16 %v2318
      %v2591 = vunpack.c.l.b16 %v2319
      %v2592 = vunpack.c.h.b16 %v2319
      %v2593 = vunpack.c.l.b16 %v2320
      %v2594 = vunpack.c.h.b16 %v2320
      %v2595 = vunpack.c.l.b16 %v2321
      %v2596 = vunpack.c.h.b16 %v2321
      %v2597 = vunpack.c.l.b16 %v2322
      %v2598 = vunpack.c.h.b16 %v2322
      %v2599 = vunpack.c.l.b16 %v2323
      %v2600 = vunpack.c.h.b16 %v2323
      %v2601 = vunpack.c.l.b16 %v2324
      %v2602 = vunpack.c.h.b16 %v2324
      %v2603 = vunpack.c.l.b16 %v2325
      %v2604 = vunpack.c.h.b16 %v2325
      %v2605 = vunpack.c.l.b16 %v2326
      %v2606 = vunpack.c.h.b16 %v2326
      %v2607 = vunpack.c.l.b16 %v2327
      %v2608 = vunpack.c.h.b16 %v2327
      %v2609 = vunpack.c.l.b16 %v2328
      %v2610 = vunpack.c.h.b16 %v2328
      %v2611 = vunpack.c.l.b16 %v2329
      %v2612 = vunpack.c.h.b16 %v2329
      %v2613 = vunpack.c.l.b16 %v2330
      %v2614 = vunpack.c.h.b16 %v2330
      %v2615 = vpack.c.b16 %v2579, %v2577
      %v2616 = vpack.c.b16 %v2580, %v2578
      %v2617 = vpack.c.b16 %v2583, %v2581
      %v2618 = vpack.c.b16 %v2584, %v2582
      %v2619 = vpack.c.b16 %v2587, %v2585
      %v2620 = vpack.c.b16 %v2588, %v2586
      %v2621 = vpack.c.b16 %v2591, %v2589
      %v2622 = vpack.c.b16 %v2592, %v2590
      %v2623 = vpack.c.b16 %v2595, %v2593
      %v2624 = vpack.c.b16 %v2596, %v2594
      %v2625 = vpack.c.b16 %v2599, %v2597
      %v2626 = vpack.c.b16 %v2600, %v2598
      %v2627 = vpack.c.b16 %v2603, %v2601
      %v2628 = vpack.c.b16 %v2604, %v2602
      %v2629 = vpack.c.b16 %v2607, %v2605
      %v2630 = vpack.c.b16 %v2608, %v2606
      %v2631 = vpack.c.b16 %v2611, %v2609
      %v2632 = vpack.c.b16 %v2612, %v2610
      %v2633 = vpack.c.b16 %v2613, %v2613
      %v2634 = vpack.c.b16 %v2614, %v2614
      %v2654 = vsel %vm2449, %v2289, 0
      %v2657 = vsel %vm2449, %v2267, 0
      %v2660 = vsel %vm2449, %v2283, 0
      %v2663 = vsel %vm1257, %v2633, 0
      %v2666 = vsel %vm1257, %v2634, 0
      %2668 = vmatpush.bf16.msra.mxu0 %v2629
      %2669 = vmatpush.bf16.msra.mxu0 %v2627
      %2670 = vmatpush.bf16.msra.mxu0 %v2625
      %2671 = vmatpush.bf16.msra.mxu0 %v2623
      %2672 = vmatpush.bf16.msra.mxu0 %v2621
      %2673 = vmatpush.bf16.msra.mxu0 %v2619
      %2674 = vmatpush.bf16.msra.mxu0 %v2617
      %2675 = vmatpush.bf16.msra.mxu0 %v2615
      %2676 = vmatmul.bf16.gmra.mxu0 %v2288
      %v2677 = vpop.f32.mrf.mxu0
      %v2678 = vadd.f32 %v2496, %v2677
      %v2679 = vpop.f32.mrf.mxu0
      %v2680 = vadd.f32 %v2498, %v2679
      %2681 = vmatmul.bf16.gmra.mxu0 %v2259
      %v2682 = vpop.f32.mrf.mxu0
      %v2683 = vadd.f32 %v2501, %v2682
      %v2684 = vpop.f32.mrf.mxu0
      %v2685 = vadd.f32 %v2503, %v2684
      %2686 = vmatmul.bf16.gmra.mxu0 %v2275
      %v2687 = vpop.f32.mrf.mxu0
      %v2688 = vadd.f32 %v2506, %v2687
      %v2689 = vpop.f32.mrf.mxu0
      %v2690 = vadd.f32 %v2508, %v2689
      %2691 = vdwg.mxu0
      %2692 = vmatpush.bf16.msra.mxu0 0
      %2693 = vmatpush.bf16.msra.mxu0 0
      %2694 = vmatpush.bf16.msra.mxu0 0
      %2695 = vmatpush.bf16.msra.mxu0 0
      %2696 = vmatpush.bf16.msra.mxu0 0
      %2697 = vmatpush.bf16.msra.mxu0 0
      %2698 = vmatpush.bf16.msra.mxu0 %v2663
      %2699 = vmatpush.bf16.msra.mxu0 %v2631
      %2700 = vmatmul.bf16.gmra.mxu0 %v2654
      %v2701 = vpop.f32.mrf.mxu0
      %v2702 = vadd.f32 %v2678, %v2701
      %v2703 = vpop.f32.mrf.mxu0
      %v2704 = vadd.f32 %v2680, %v2703
      %2705 = vmatmul.bf16.gmra.mxu0 %v2657
      %v2706 = vpop.f32.mrf.mxu0
      %v2707 = vadd.f32 %v2683, %v2706
      %v2708 = vpop.f32.mrf.mxu0
      %v2709 = vadd.f32 %v2685, %v2708
      %2710 = vmatmul.bf16.gmra.mxu0 %v2660
      %v2711 = vpop.f32.mrf.mxu0
      %v2712 = vadd.f32 %v2688, %v2711
      %v2713 = vpop.f32.mrf.mxu0
      %v2714 = vadd.f32 %v2690, %v2713
      %2715 = vdwg.mxu0
      %2716 = vmatpush.bf16.msra.mxu0 %v2630
      %2717 = vmatpush.bf16.msra.mxu0 %v2628
      %2718 = vmatpush.bf16.msra.mxu0 %v2626
      %2719 = vmatpush.bf16.msra.mxu0 %v2624
      %2720 = vmatpush.bf16.msra.mxu0 %v2622
      %2721 = vmatpush.bf16.msra.mxu0 %v2620
      %2722 = vmatpush.bf16.msra.mxu0 %v2618
      %2723 = vmatpush.bf16.msra.mxu0 %v2616
      %2724 = vmatmul.bf16.gmra.mxu0 %v2288
      %v2725 = vpop.f32.mrf.mxu0
      %v2726 = vadd.f32 %v2544, %v2725
      %v2727 = vpop.f32.mrf.mxu0
      %v2728 = vadd.f32 %v2546, %v2727
      %2729 = vmatmul.bf16.gmra.mxu0 %v2259
      %v2730 = vpop.f32.mrf.mxu0
      %v2731 = vadd.f32 %v2549, %v2730
      %v2732 = vpop.f32.mrf.mxu0
      %v2733 = vadd.f32 %v2551, %v2732
      %2734 = vmatmul.bf16.gmra.mxu0 %v2275
      %v2735 = vpop.f32.mrf.mxu0
      %v2736 = vadd.f32 %v2554, %v2735
      %v2737 = vpop.f32.mrf.mxu0
      %v2738 = vadd.f32 %v2556, %v2737
      %2739 = vdwg.mxu0
      %2740 = vmatpush.bf16.msra.mxu0 0
      %2741 = vmatpush.bf16.msra.mxu0 0
      %2742 = vmatpush.bf16.msra.mxu0 0
      %2743 = vmatpush.bf16.msra.mxu0 0
      %2744 = vmatpush.bf16.msra.mxu0 0
      %2745 = vmatpush.bf16.msra.mxu0 0
      %2746 = vmatpush.bf16.msra.mxu0 %v2666
      %2747 = vmatpush.bf16.msra.mxu0 %v2632
      %2748 = vmatmul.bf16.gmra.mxu0 %v2654
      %v2749 = vpop.f32.mrf.mxu0
      %v2750 = vadd.f32 %v2726, %v2749
      %v2751 = vpop.f32.mrf.mxu0
      %v2752 = vadd.f32 %v2728, %v2751
      %2753 = vmatmul.bf16.gmra.mxu0 %v2657
      %v2754 = vpop.f32.mrf.mxu0
      %v2755 = vadd.f32 %v2731, %v2754
      %v2756 = vpop.f32.mrf.mxu0
      %v2757 = vadd.f32 %v2733, %v2756
      %2758 = vmatmul.bf16.gmra.mxu0 %v2660
      %v2759 = vpop.f32.mrf.mxu0
      %v2760 = vadd.f32 %v2736, %v2759
      %v2761 = vpop.f32.mrf.mxu0
      %v2762 = vadd.f32 %v2738, %v2761
      %2763 = vdwg.mxu0
      %s2764 = scalar_lea.vmem %s19, 304
      %v2765 = vld [vmem:[%s2764] sm:$0xff]
      %v2766 = vld [vmem:[%s2764 + $0x8] sm:$0xff]
      %v2767 = vld [vmem:[%s2764 + $0x10] sm:$0xff]
      %v2768 = vld [vmem:[%s2764 + $0x18] sm:$0xff]
      %v2769 = vld [vmem:[%s2764 + $0x20] sm:$0xff]
      %v2770 = vld [vmem:[%s2764 + $0x28] sm:$0xff]
      %v2771 = vld [vmem:[%s2764 + $0x30] sm:$0xff]
      %v2772 = vld [vmem:[%s2764 + $0x38] sm:$0xff]
      %v2773 = vld [vmem:[%s2764 + $0x40] sm:$0xff]
      %v2774 = vld [vmem:[%s2764 + $0x48] sm:$0xff]
      %v2775 = vld [vmem:[%s2764 + $0x50] sm:$0xff]
      %v2776 = vld [vmem:[%s2764 + $0x58] sm:$0xff]
      %v2777 = vld [vmem:[%s2764 + $0x60] sm:$0xff]
      %v2778 = vld [vmem:[%s2764 + $0x68] sm:$0xff]
      %v2779 = vld [vmem:[%s2764 + $0x70] sm:$0xff]
      %v2780 = vld [vmem:[%s2764 + $0x78] sm:$0xff]
      %v2781 = vld [vmem:[%s2764 + $0x80] sm:$0xff]
      %v2782 = vld [vmem:[%s2764 + $0x88] sm:$0xff]
      %v2783 = vld [vmem:[%s2764 + $0x90] sm:$0x33]
      %v2803 = vunpack.c.l.b16 %v2765
      %v2804 = vunpack.c.h.b16 %v2765
      %v2805 = vunpack.c.l.b16 %v2766
      %v2806 = vunpack.c.h.b16 %v2766
      %v2807 = vunpack.c.l.b16 %v2767
      %v2808 = vunpack.c.h.b16 %v2767
      %v2809 = vunpack.c.l.b16 %v2768
      %v2810 = vunpack.c.h.b16 %v2768
      %v2811 = vunpack.c.l.b16 %v2769
      %v2812 = vunpack.c.h.b16 %v2769
      %v2813 = vunpack.c.l.b16 %v2770
      %v2814 = vunpack.c.h.b16 %v2770
      %v2815 = vunpack.c.l.b16 %v2771
      %v2816 = vunpack.c.h.b16 %v2771
      %v2817 = vunpack.c.l.b16 %v2772
      %v2818 = vunpack.c.h.b16 %v2772
      %v2819 = vunpack.c.l.b16 %v2773
      %v2820 = vunpack.c.h.b16 %v2773
      %v2821 = vunpack.c.l.b16 %v2774
      %v2822 = vunpack.c.h.b16 %v2774
      %v2823 = vunpack.c.l.b16 %v2775
      %v2824 = vunpack.c.h.b16 %v2775
      %v2825 = vunpack.c.l.b16 %v2776
      %v2826 = vunpack.c.h.b16 %v2776
      %v2827 = vunpack.c.l.b16 %v2777
      %v2828 = vunpack.c.h.b16 %v2777
      %v2829 = vunpack.c.l.b16 %v2778
      %v2830 = vunpack.c.h.b16 %v2778
      %v2831 = vunpack.c.l.b16 %v2779
      %v2832 = vunpack.c.h.b16 %v2779
      %v2833 = vunpack.c.l.b16 %v2780
      %v2834 = vunpack.c.h.b16 %v2780
      %v2835 = vunpack.c.l.b16 %v2781
      %v2836 = vunpack.c.h.b16 %v2781
      %v2837 = vunpack.c.l.b16 %v2782
      %v2838 = vunpack.c.h.b16 %v2782
      %v2839 = vunpack.c.l.b16 %v2783
      %v2840 = vunpack.c.h.b16 %v2783
      %v2841 = vpack.c.b16 %v2805, %v2803
      %v2842 = vpack.c.b16 %v2806, %v2804
      %v2843 = vpack.c.b16 %v2809, %v2807
      %v2844 = vpack.c.b16 %v2810, %v2808
      %v2845 = vpack.c.b16 %v2813, %v2811
      %v2846 = vpack.c.b16 %v2814, %v2812
      %v2847 = vpack.c.b16 %v2817, %v2815
      %v2848 = vpack.c.b16 %v2818, %v2816
      %v2849 = vpack.c.b16 %v2821, %v2819
      %v2850 = vpack.c.b16 %v2822, %v2820
      %v2851 = vpack.c.b16 %v2825, %v2823
      %v2852 = vpack.c.b16 %v2826, %v2824
      %v2853 = vpack.c.b16 %v2829, %v2827
      %v2854 = vpack.c.b16 %v2830, %v2828
      %v2855 = vpack.c.b16 %v2833, %v2831
      %v2856 = vpack.c.b16 %v2834, %v2832
      %v2857 = vpack.c.b16 %v2837, %v2835
      %v2858 = vpack.c.b16 %v2838, %v2836
      %v2859 = vpack.c.b16 %v2839, %v2839
      %v2860 = vpack.c.b16 %v2840, %v2840
      %v2880 = vsel %vm2449, %v2297, 0
      %v2883 = vsel %vm2449, %v2303, 0
      %v2886 = vsel %vm2449, %v2311, 0
      %v2889 = vsel %vm1257, %v2859, 0
      %v2892 = vsel %vm1257, %v2860, 0
      %2894 = vmatpush.bf16.msra.mxu0 %v2855
      %2895 = vmatpush.bf16.msra.mxu0 %v2853
      %2896 = vmatpush.bf16.msra.mxu0 %v2851
      %2897 = vmatpush.bf16.msra.mxu0 %v2849
      %2898 = vmatpush.bf16.msra.mxu0 %v2847
      %2899 = vmatpush.bf16.msra.mxu0 %v2845
      %2900 = vmatpush.bf16.msra.mxu0 %v2843
      %2901 = vmatpush.bf16.msra.mxu0 %v2841
      %2902 = vmatmul.bf16.gmra.mxu0 %v2293
      %v2903 = vpop.f32.mrf.mxu0
      %v2904 = vadd.f32 0.0, %v2903
      %v2905 = vpop.f32.mrf.mxu0
      %v2906 = vadd.f32 0.0, %v2905
      %2907 = vmatmul.bf16.gmra.mxu0 %v2300
      %v2908 = vpop.f32.mrf.mxu0
      %v2909 = vadd.f32 0.0, %v2908
      %v2910 = vpop.f32.mrf.mxu0
      %v2911 = vadd.f32 0.0, %v2910
      %2912 = vmatmul.bf16.gmra.mxu0 %v2310
      %v2913 = vpop.f32.mrf.mxu0
      %v2914 = vadd.f32 0.0, %v2913
      %v2915 = vpop.f32.mrf.mxu0
      %v2916 = vadd.f32 0.0, %v2915
      %2917 = vdwg.mxu0
      %2918 = vmatpush.bf16.msra.mxu0 0
      %2919 = vmatpush.bf16.msra.mxu0 0
      %2920 = vmatpush.bf16.msra.mxu0 0
      %2921 = vmatpush.bf16.msra.mxu0 0
      %2922 = vmatpush.bf16.msra.mxu0 0
      %2923 = vmatpush.bf16.msra.mxu0 0
      %2924 = vmatpush.bf16.msra.mxu0 %v2889
      %2925 = vmatpush.bf16.msra.mxu0 %v2857
      %2926 = vmatmul.bf16.gmra.mxu0 %v2880
      %v2927 = vpop.f32.mrf.mxu0
      %v2928 = vadd.f32 %v2904, %v2927
      %v2929 = vpop.f32.mrf.mxu0
      %v2930 = vadd.f32 %v2906, %v2929
      %2931 = vmatmul.bf16.gmra.mxu0 %v2883
      %v2932 = vpop.f32.mrf.mxu0
      %v2933 = vadd.f32 %v2909, %v2932
      %v2934 = vpop.f32.mrf.mxu0
      %v2935 = vadd.f32 %v2911, %v2934
      %2936 = vmatmul.bf16.gmra.mxu0 %v2886
      %v2937 = vpop.f32.mrf.mxu0
      %v2938 = vadd.f32 %v2914, %v2937
      %v2939 = vpop.f32.mrf.mxu0
      %v2940 = vadd.f32 %v2916, %v2939
      %2941 = vdwg.mxu0
      %2942 = vmatpush.bf16.msra.mxu0 %v2856
      %2943 = vmatpush.bf16.msra.mxu0 %v2854
      %2944 = vmatpush.bf16.msra.mxu0 %v2852
      %2945 = vmatpush.bf16.msra.mxu0 %v2850
      %2946 = vmatpush.bf16.msra.mxu0 %v2848
      %2947 = vmatpush.bf16.msra.mxu0 %v2846
      %2948 = vmatpush.bf16.msra.mxu0 %v2844
      %2949 = vmatpush.bf16.msra.mxu0 %v2842
      %2950 = vmatmul.bf16.gmra.mxu0 %v2293
      %v2951 = vpop.f32.mrf.mxu0
      %v2952 = vadd.f32 0.0, %v2951
      %v2953 = vpop.f32.mrf.mxu0
      %v2954 = vadd.f32 0.0, %v2953
      %2955 = vmatmul.bf16.gmra.mxu0 %v2300
      %v2956 = vpop.f32.mrf.mxu0
      %v2957 = vadd.f32 0.0, %v2956
      %v2958 = vpop.f32.mrf.mxu0
      %v2959 = vadd.f32 0.0, %v2958
      %2960 = vmatmul.bf16.gmra.mxu0 %v2310
      %v2961 = vpop.f32.mrf.mxu0
      %v2962 = vadd.f32 0.0, %v2961
      %v2963 = vpop.f32.mrf.mxu0
      %v2964 = vadd.f32 0.0, %v2963
      %2965 = vdwg.mxu0
      %2966 = vmatpush.bf16.msra.mxu0 0
      %2967 = vmatpush.bf16.msra.mxu0 0
      %2968 = vmatpush.bf16.msra.mxu0 0
      %2969 = vmatpush.bf16.msra.mxu0 0
      %2970 = vmatpush.bf16.msra.mxu0 0
      %2971 = vmatpush.bf16.msra.mxu0 0
      %2972 = vmatpush.bf16.msra.mxu0 %v2892
      %2973 = vmatpush.bf16.msra.mxu0 %v2858
      %2974 = vmatmul.bf16.gmra.mxu0 %v2880
      %v2975 = vpop.f32.mrf.mxu0
      %v2976 = vadd.f32 %v2952, %v2975
      %v2977 = vpop.f32.mrf.mxu0
      %v2978 = vadd.f32 %v2954, %v2977
      %2979 = vmatmul.bf16.gmra.mxu0 %v2883
      %v2980 = vpop.f32.mrf.mxu0
      %v2981 = vadd.f32 %v2957, %v2980
      %v2982 = vpop.f32.mrf.mxu0
      %v2983 = vadd.f32 %v2959, %v2982
      %2984 = vmatmul.bf16.gmra.mxu0 %v2886
      %v2985 = vpop.f32.mrf.mxu0
      %v2986 = vadd.f32 %v2962, %v2985
      %v2987 = vpop.f32.mrf.mxu0
      %v2988 = vadd.f32 %v2964, %v2987
      %2989 = vdwg.mxu0
      %v2990 = vadd.f32 %v2702, %v2928
      %v2991 = vadd.f32 %v2750, %v2976
      %v2992 = vadd.f32 %v2704, %v2930
      %v2993 = vadd.f32 %v2752, %v2978
      %v2994 = vadd.f32 %v2707, %v2933
      %v2995 = vadd.f32 %v2755, %v2981
      %v2996 = vadd.f32 %v2709, %v2935
      %v2997 = vadd.f32 %v2757, %v2983
      %v2998 = vadd.f32 %v2712, %v2938
      %v2999 = vadd.f32 %v2760, %v2986
      %v3000 = vadd.f32 %v2714, %v2940
      %v3001 = vadd.f32 %v2762, %v2988
      %v3002 = vld [vmem:[%s21] sm:$0x3]
      %v3004 = vperm.slane %v3002, 0
      %v3005 = vperm.slane %v3002, 1
      %v3008 = vadd.f32 %v2990, %v3004
      %v3009 = vadd.f32 %v2991, %v3005
      %v3010 = vadd.f32 %v2992, %v3004
      %v3011 = vadd.f32 %v2993, %v3005
      %v3012 = vadd.f32 %v2994, %v3004
      %v3013 = vadd.f32 %v2995, %v3005
      %v3014 = vadd.f32 %v2996, %v3004
      %v3015 = vadd.f32 %v2997, %v3005
      %v3016 = vadd.f32 %v2998, %v3004
      %v3017 = vadd.f32 %v2999, %v3005
      %v3018 = vadd.f32 %v3000, %v3004
      %v3019 = vadd.f32 %v3001, %v3005
      %v3020 = vmax.f32 %v3008, 0.0
      %v3021 = vmax.f32 %v3009, 0.0
      %v3022 = vmax.f32 %v3010, 0.0
      %v3023 = vmax.f32 %v3011, 0.0
      %v3024 = vmax.f32 %v3012, 0.0
      %v3025 = vmax.f32 %v3013, 0.0
      %v3026 = vmax.f32 %v3014, 0.0
      %v3027 = vmax.f32 %v3015, 0.0
      %v3028 = vmax.f32 %v3016, 0.0
      %v3029 = vmax.f32 %v3017, 0.0
      %v3030 = vmax.f32 %v3018, 0.0
      %v3031 = vmax.f32 %v3019, 0.0
      %v3032 = vsel %vm1387, %v3020, 0.0
      %v3033 = vsel %vm1387, %v3021, 0.0
      %v3034 = vsel %vm1388, %v3022, 0.0
      %v3035 = vsel %vm1388, %v3023, 0.0
      %v3036 = vsel %vm1389, %v3024, 0.0
      %v3037 = vsel %vm1389, %v3025, 0.0
      %v3038 = vsel %vm1390, %v3026, 0.0
      %v3039 = vsel %vm1390, %v3027, 0.0
      %v3040 = vsel %vm1391, %v3028, 0.0
      %v3041 = vsel %vm1391, %v3029, 0.0
      %v3042 = vsel %vm1392, %v3030, 0.0
      %v3043 = vsel %vm1392, %v3031, 0.0
      %v3044 = vpack.c.bf16 %v3033, %v3032
      %v3045 = vpack.c.bf16 %v3035, %v3034
      %v3046 = vpack.c.bf16 %v3037, %v3036
      %v3047 = vpack.c.bf16 %v3039, %v3038
      %v3048 = vpack.c.bf16 %v3041, %v3040
      %v3049 = vpack.c.bf16 %v3043, %v3042
      %v3056 = vunpack.c.l.b16 %v3044
      %v3057 = vunpack.c.h.b16 %v3044
      %v3058 = vunpack.c.l.b16 %v3045
      %v3059 = vunpack.c.h.b16 %v3045
      %v3060 = vunpack.c.l.b16 %v3046
      %v3061 = vunpack.c.h.b16 %v3046
      %v3062 = vunpack.c.l.b16 %v3047
      %v3063 = vunpack.c.h.b16 %v3047
      %v3064 = vunpack.c.l.b16 %v3048
      %v3065 = vunpack.c.h.b16 %v3048
      %v3066 = vunpack.c.l.b16 %v3049
      %v3067 = vunpack.c.h.b16 %v3049
      %v3068 = vpack.c.b16 %v3058, %v3056
      %v3069 = vpack.c.b16 %v3059, %v3057
      %v3070 = vpack.c.b16 %v3062, %v3060
      %v3071 = vpack.c.b16 %v3063, %v3061
      %v3072 = vpack.c.b16 %v3066, %v3064
      %v3073 = vpack.c.b16 %v3067, %v3065
      %v3075 = vshrl.u32 %v3068, 16
      %v3077 = vrot.slane %v3075, 7
      %v3078 = vshll.u32 %v3068, 16
      %v3080 = vor.u32 %v3077, %v3078
      %v3082 = vshrl.u32 %v3069, 16
      %v3084 = vrot.slane %v3082, 7
      %v3085 = vshll.u32 %v3069, 16
      %v3087 = vor.u32 %v3084, %v3085
      %v3089 = vshrl.u32 %v3070, 16
      %v3091 = vrot.slane %v3089, 7
      %v3092 = vshll.u32 %v3070, 16
      %v3094 = vor.u32 %v3091, %v3092
      %v3095 = vsel %vm1206, %v3077, %v3094
      %v3097 = vshrl.u32 %v3071, 16
      %v3099 = vrot.slane %v3097, 7
      %v3100 = vshll.u32 %v3071, 16
      %v3102 = vor.u32 %v3099, %v3100
      %v3103 = vsel %vm1206, %v3084, %v3102
      %v3105 = vshrl.u32 %v3072, 16
      %v3107 = vrot.slane %v3105, 7
      %v3108 = vshll.u32 %v3072, 16
      %v3110 = vor.u32 %v3107, %v3108
      %v3111 = vsel %vm1206, %v3091, %v3110
      %v3113 = vshrl.u32 %v3073, 16
      %v3115 = vrot.slane %v3113, 7
      %v3116 = vshll.u32 %v3073, 16
      %v3118 = vor.u32 %v3115, %v3116
      %v3119 = vsel %vm1206, %v3099, %v3118
      %v3124 = vsel %vm1232, 0, %v3080
      %v3125 = vsel %vm1232, 0, %v3087
      %v3126 = vrot.slane %v3078, 1
      %v3127 = vor.u32 %v3075, %v3126
      %v3128 = vrot.slane %v3092, 1
      %v3129 = vsel %vm1234, %v3127, %v3128
      %v3130 = vrot.slane %v3085, 1
      %v3131 = vor.u32 %v3082, %v3130
      %v3132 = vrot.slane %v3100, 1
      %v3133 = vsel %vm1234, %v3131, %v3132
      %v3134 = vor.u32 %v3089, %v3128
      %v3135 = vrot.slane %v3108, 1
      %v3136 = vsel %vm1234, %v3134, %v3135
      %v3137 = vor.u32 %v3097, %v3132
      %v3138 = vrot.slane %v3116, 1
      %v3139 = vsel %vm1234, %v3137, %v3138
      %v3140 = vor.u32 %v3105, %v3135
      %v3141 = vor.u32 %v3113, %v3138
      %v3146 = vsel %vm1245, %v3140, 0
      %v3147 = vsel %vm1245, %v3141, 0
      %v3148 = vld [vmem:[%s23] sm:$0xff]
      %v3149 = vld [vmem:[%s23 + $0x8] sm:$0xff]
      %v3150 = vld [vmem:[%s23 + $0x10] sm:$0xff]
      %v3151 = vld [vmem:[%s23 + $0x18] sm:$0xff]
      %v3152 = vld [vmem:[%s23 + $0x20] sm:$0xff]
      %v3153 = vld [vmem:[%s23 + $0x28] sm:$0xff]
      %v3154 = vld [vmem:[%s23 + $0x30] sm:$0xff]
      %v3155 = vld [vmem:[%s23 + $0x38] sm:$0xff]
      %v3156 = vld [vmem:[%s23 + $0x40] sm:$0xff]
      %v3157 = vld [vmem:[%s23 + $0x48] sm:$0xff]
      %v3158 = vld [vmem:[%s23 + $0x50] sm:$0xff]
      %v3159 = vld [vmem:[%s23 + $0x58] sm:$0xff]
      %v3160 = vld [vmem:[%s23 + $0x60] sm:$0xff]
      %v3161 = vld [vmem:[%s23 + $0x68] sm:$0xff]
      %v3162 = vld [vmem:[%s23 + $0x70] sm:$0xff]
      %v3163 = vld [vmem:[%s23 + $0x78] sm:$0xff]
      %v3164 = vld [vmem:[%s23 + $0x80] sm:$0xff]
      %v3165 = vld [vmem:[%s23 + $0x88] sm:$0xff]
      %v3166 = vld [vmem:[%s23 + $0x90] sm:$0xff]
      %v3167 = vld [vmem:[%s23 + $0x98] sm:$0xff]
      %v3168 = vld [vmem:[%s23 + $0xa0] sm:$0xff]
      %v3169 = vld [vmem:[%s23 + $0xa8] sm:$0xff]
      %v3170 = vld [vmem:[%s23 + $0xb0] sm:$0xff]
      %v3171 = vld [vmem:[%s23 + $0xb8] sm:$0xff]
      %v3172 = vld [vmem:[%s23 + $0xc0] sm:$0x33]
      %s3173 = scalar_lea.vmem %s23, 200
      %v3174 = vld [vmem:[%s3173] sm:$0xff]
      %v3175 = vld [vmem:[%s3173 + $0x8] sm:$0xff]
      %v3176 = vld [vmem:[%s3173 + $0x10] sm:$0xff]
      %v3177 = vld [vmem:[%s3173 + $0x18] sm:$0xff]
      %v3178 = vld [vmem:[%s3173 + $0x20] sm:$0xff]
      %v3179 = vld [vmem:[%s3173 + $0x28] sm:$0xff]
      %v3180 = vld [vmem:[%s3173 + $0x30] sm:$0xff]
      %v3181 = vld [vmem:[%s3173 + $0x38] sm:$0xff]
      %v3182 = vld [vmem:[%s3173 + $0x40] sm:$0xff]
      %v3183 = vld [vmem:[%s3173 + $0x48] sm:$0xff]
      %v3184 = vld [vmem:[%s3173 + $0x50] sm:$0xff]
      %v3185 = vld [vmem:[%s3173 + $0x58] sm:$0xff]
      %v3186 = vld [vmem:[%s3173 + $0x60] sm:$0xff]
      %v3187 = vld [vmem:[%s3173 + $0x68] sm:$0xff]
      %v3188 = vld [vmem:[%s3173 + $0x70] sm:$0xff]
      %v3189 = vld [vmem:[%s3173 + $0x78] sm:$0xff]
      %v3190 = vld [vmem:[%s3173 + $0x80] sm:$0xff]
      %v3191 = vld [vmem:[%s3173 + $0x88] sm:$0xff]
      %v3192 = vld [vmem:[%s3173 + $0x90] sm:$0xff]
      %v3193 = vld [vmem:[%s3173 + $0x98] sm:$0xff]
      %v3194 = vld [vmem:[%s3173 + $0xa0] sm:$0xff]
      %v3195 = vld [vmem:[%s3173 + $0xa8] sm:$0xff]
      %v3196 = vld [vmem:[%s3173 + $0xb0] sm:$0xff]
      %v3197 = vld [vmem:[%s3173 + $0xb8] sm:$0xff]
      %v3198 = vld [vmem:[%s3173 + $0xc0] sm:$0x33]
      %v3227 = vunpack.c.l.b16 %v3174
      %v3228 = vunpack.c.h.b16 %v3174
      %v3229 = vunpack.c.l.b16 %v3175
      %v3230 = vunpack.c.h.b16 %v3175
      %v3231 = vunpack.c.l.b16 %v3176
      %v3232 = vunpack.c.h.b16 %v3176
      %v3233 = vunpack.c.l.b16 %v3177
      %v3234 = vunpack.c.h.b16 %v3177
      %v3235 = vunpack.c.l.b16 %v3178
      %v3236 = vunpack.c.h.b16 %v3178
      %v3237 = vunpack.c.l.b16 %v3179
      %v3238 = vunpack.c.h.b16 %v3179
      %v3239 = vunpack.c.l.b16 %v3180
      %v3240 = vunpack.c.h.b16 %v3180
      %v3241 = vunpack.c.l.b16 %v3181
      %v3242 = vunpack.c.h.b16 %v3181
      %v3243 = vunpack.c.l.b16 %v3182
      %v3244 = vunpack.c.h.b16 %v3182
      %v3245 = vunpack.c.l.b16 %v3183
      %v3246 = vunpack.c.h.b16 %v3183
      %v3247 = vunpack.c.l.b16 %v3184
      %v3248 = vunpack.c.h.b16 %v3184
      %v3249 = vunpack.c.l.b16 %v3185
      %v3250 = vunpack.c.h.b16 %v3185
      %v3251 = vunpack.c.l.b16 %v3186
      %v3252 = vunpack.c.h.b16 %v3186
      %v3253 = vunpack.c.l.b16 %v3187
      %v3254 = vunpack.c.h.b16 %v3187
      %v3255 = vunpack.c.l.b16 %v3188
      %v3256 = vunpack.c.h.b16 %v3188
      %v3257 = vunpack.c.l.b16 %v3189
      %v3258 = vunpack.c.h.b16 %v3189
      %v3259 = vunpack.c.l.b16 %v3190
      %v3260 = vunpack.c.h.b16 %v3190
      %v3261 = vunpack.c.l.b16 %v3191
      %v3262 = vunpack.c.h.b16 %v3191
      %v3263 = vunpack.c.l.b16 %v3192
      %v3264 = vunpack.c.h.b16 %v3192
      %v3265 = vunpack.c.l.b16 %v3193
      %v3266 = vunpack.c.h.b16 %v3193
      %v3267 = vunpack.c.l.b16 %v3194
      %v3268 = vunpack.c.h.b16 %v3194
      %v3269 = vunpack.c.l.b16 %v3195
      %v3270 = vunpack.c.h.b16 %v3195
      %v3271 = vunpack.c.l.b16 %v3196
      %v3272 = vunpack.c.h.b16 %v3196
      %v3273 = vunpack.c.l.b16 %v3197
      %v3274 = vunpack.c.h.b16 %v3197
      %v3275 = vunpack.c.l.b16 %v3198
      %v3276 = vunpack.c.h.b16 %v3198
      %v3277 = vpack.c.b16 %v3229, %v3227
      %v3278 = vpack.c.b16 %v3230, %v3228
      %v3279 = vpack.c.b16 %v3233, %v3231
      %v3280 = vpack.c.b16 %v3234, %v3232
      %v3281 = vpack.c.b16 %v3237, %v3235
      %v3282 = vpack.c.b16 %v3238, %v3236
      %v3283 = vpack.c.b16 %v3241, %v3239
      %v3284 = vpack.c.b16 %v3242, %v3240
      %v3285 = vpack.c.b16 %v3245, %v3243
      %v3286 = vpack.c.b16 %v3246, %v3244
      %v3287 = vpack.c.b16 %v3249, %v3247
      %v3288 = vpack.c.b16 %v3250, %v3248
      %v3289 = vpack.c.b16 %v3253, %v3251
      %v3290 = vpack.c.b16 %v3254, %v3252
      %v3291 = vpack.c.b16 %v3257, %v3255
      %v3292 = vpack.c.b16 %v3258, %v3256
      %v3293 = vpack.c.b16 %v3261, %v3259
      %v3294 = vpack.c.b16 %v3262, %v3260
      %v3295 = vpack.c.b16 %v3265, %v3263
      %v3296 = vpack.c.b16 %v3266, %v3264
      %v3297 = vpack.c.b16 %v3269, %v3267
      %v3298 = vpack.c.b16 %v3270, %v3268
      %v3299 = vpack.c.b16 %v3273, %v3271
      %v3300 = vpack.c.b16 %v3274, %v3272
      %v3301 = vpack.c.b16 %v3275, %v3275
      %v3302 = vpack.c.b16 %v3276, %v3276
      %vm3327 = vcmask 556032
      %v3328 = vsel %vm3327, %v3069, 0
      %v3330 = vsel %vm3327, %v3071, 0
      %v3332 = vsel %vm3327, %v3073, 0
      %v3335 = vsel %vm1257, %v3301, 0
      %v3338 = vsel %vm1257, %v3302, 0
      %3340 = vmatpush.bf16.msra.mxu0 %v3291
      %3341 = vmatpush.bf16.msra.mxu0 %v3289
      %3342 = vmatpush.bf16.msra.mxu0 %v3287
      %3343 = vmatpush.bf16.msra.mxu0 %v3285
      %3344 = vmatpush.bf16.msra.mxu0 %v3283
      %3345 = vmatpush.bf16.msra.mxu0 %v3281
      %3346 = vmatpush.bf16.msra.mxu0 %v3279
      %3347 = vmatpush.bf16.msra.mxu0 %v3277
      %3348 = vmatmul.bf16.gmra.mxu0 %v3068
      %v3349 = vpop.f32.mrf.mxu0
      %v3350 = vadd.f32 0.0, %v3349
      %v3351 = vpop.f32.mrf.mxu0
      %v3352 = vadd.f32 0.0, %v3351
      %3353 = vmatmul.bf16.gmra.mxu0 %v3070
      %v3354 = vpop.f32.mrf.mxu0
      %v3355 = vadd.f32 0.0, %v3354
      %v3356 = vpop.f32.mrf.mxu0
      %v3357 = vadd.f32 0.0, %v3356
      %3358 = vmatmul.bf16.gmra.mxu0 %v3072
      %v3359 = vpop.f32.mrf.mxu0
      %v3360 = vadd.f32 0.0, %v3359
      %v3361 = vpop.f32.mrf.mxu0
      %v3362 = vadd.f32 0.0, %v3361
      %3363 = vdwg.mxu0
      %3364 = vmatpush.bf16.msra.mxu0 0
      %3365 = vmatpush.bf16.msra.mxu0 0
      %3366 = vmatpush.bf16.msra.mxu0 0
      %3367 = vmatpush.bf16.msra.mxu0 %v3335
      %3368 = vmatpush.bf16.msra.mxu0 %v3299
      %3369 = vmatpush.bf16.msra.mxu0 %v3297
      %3370 = vmatpush.bf16.msra.mxu0 %v3295
      %3371 = vmatpush.bf16.msra.mxu0 %v3293
      %3372 = vmatmul.bf16.gmra.mxu0 %v3328
      %v3373 = vpop.f32.mrf.mxu0
      %v3374 = vadd.f32 %v3350, %v3373
      %v3375 = vpop.f32.mrf.mxu0
      %v3376 = vadd.f32 %v3352, %v3375
      %3377 = vmatmul.bf16.gmra.mxu0 %v3330
      %v3378 = vpop.f32.mrf.mxu0
      %v3379 = vadd.f32 %v3355, %v3378
      %v3380 = vpop.f32.mrf.mxu0
      %v3381 = vadd.f32 %v3357, %v3380
      %3382 = vmatmul.bf16.gmra.mxu0 %v3332
      %v3383 = vpop.f32.mrf.mxu0
      %v3384 = vadd.f32 %v3360, %v3383
      %v3385 = vpop.f32.mrf.mxu0
      %v3386 = vadd.f32 %v3362, %v3385
      %3387 = vdwg.mxu0
      %3388 = vmatpush.bf16.msra.mxu0 %v3292
      %3389 = vmatpush.bf16.msra.mxu0 %v3290
      %3390 = vmatpush.bf16.msra.mxu0 %v3288
      %3391 = vmatpush.bf16.msra.mxu0 %v3286
      %3392 = vmatpush.bf16.msra.mxu0 %v3284
      %3393 = vmatpush.bf16.msra.mxu0 %v3282
      %3394 = vmatpush.bf16.msra.mxu0 %v3280
      %3395 = vmatpush.bf16.msra.mxu0 %v3278
      %3396 = vmatmul.bf16.gmra.mxu0 %v3068
      %v3397 = vpop.f32.mrf.mxu0
      %v3398 = vadd.f32 0.0, %v3397
      %v3399 = vpop.f32.mrf.mxu0
      %v3400 = vadd.f32 0.0, %v3399
      %3401 = vmatmul.bf16.gmra.mxu0 %v3070
      %v3402 = vpop.f32.mrf.mxu0
      %v3403 = vadd.f32 0.0, %v3402
      %v3404 = vpop.f32.mrf.mxu0
      %v3405 = vadd.f32 0.0, %v3404
      %3406 = vmatmul.bf16.gmra.mxu0 %v3072
      %v3407 = vpop.f32.mrf.mxu0
      %v3408 = vadd.f32 0.0, %v3407
      %v3409 = vpop.f32.mrf.mxu0
      %v3410 = vadd.f32 0.0, %v3409
      %3411 = vdwg.mxu0
      %3412 = vmatpush.bf16.msra.mxu0 0
      %3413 = vmatpush.bf16.msra.mxu0 0
      %3414 = vmatpush.bf16.msra.mxu0 0
      %3415 = vmatpush.bf16.msra.mxu0 %v3338
      %3416 = vmatpush.bf16.msra.mxu0 %v3300
      %3417 = vmatpush.bf16.msra.mxu0 %v3298
      %3418 = vmatpush.bf16.msra.mxu0 %v3296
      %3419 = vmatpush.bf16.msra.mxu0 %v3294
      %3420 = vmatmul.bf16.gmra.mxu0 %v3328
      %v3421 = vpop.f32.mrf.mxu0
      %v3422 = vadd.f32 %v3398, %v3421
      %v3423 = vpop.f32.mrf.mxu0
      %v3424 = vadd.f32 %v3400, %v3423
      %3425 = vmatmul.bf16.gmra.mxu0 %v3330
      %v3426 = vpop.f32.mrf.mxu0
      %v3427 = vadd.f32 %v3403, %v3426
      %v3428 = vpop.f32.mrf.mxu0
      %v3429 = vadd.f32 %v3405, %v3428
      %3430 = vmatmul.bf16.gmra.mxu0 %v3332
      %v3431 = vpop.f32.mrf.mxu0
      %v3432 = vadd.f32 %v3408, %v3431
      %v3433 = vpop.f32.mrf.mxu0
      %v3434 = vadd.f32 %v3410, %v3433
      %3435 = vdwg.mxu0
      %v3461 = vunpack.c.l.b16 %v3148
      %v3462 = vunpack.c.h.b16 %v3148
      %v3463 = vunpack.c.l.b16 %v3149
      %v3464 = vunpack.c.h.b16 %v3149
      %v3465 = vunpack.c.l.b16 %v3150
      %v3466 = vunpack.c.h.b16 %v3150
      %v3467 = vunpack.c.l.b16 %v3151
      %v3468 = vunpack.c.h.b16 %v3151
      %v3469 = vunpack.c.l.b16 %v3152
      %v3470 = vunpack.c.h.b16 %v3152
      %v3471 = vunpack.c.l.b16 %v3153
      %v3472 = vunpack.c.h.b16 %v3153
      %v3473 = vunpack.c.l.b16 %v3154
      %v3474 = vunpack.c.h.b16 %v3154
      %v3475 = vunpack.c.l.b16 %v3155
      %v3476 = vunpack.c.h.b16 %v3155
      %v3477 = vunpack.c.l.b16 %v3156
      %v3478 = vunpack.c.h.b16 %v3156
      %v3479 = vunpack.c.l.b16 %v3157
      %v3480 = vunpack.c.h.b16 %v3157
      %v3481 = vunpack.c.l.b16 %v3158
      %v3482 = vunpack.c.h.b16 %v3158
      %v3483 = vunpack.c.l.b16 %v3159
      %v3484 = vunpack.c.h.b16 %v3159
      %v3485 = vunpack.c.l.b16 %v3160
      %v3486 = vunpack.c.h.b16 %v3160
      %v3487 = vunpack.c.l.b16 %v3161
      %v3488 = vunpack.c.h.b16 %v3161
      %v3489 = vunpack.c.l.b16 %v3162
      %v3490 = vunpack.c.h.b16 %v3162
      %v3491 = vunpack.c.l.b16 %v3163
      %v3492 = vunpack.c.h.b16 %v3163
      %v3493 = vunpack.c.l.b16 %v3164
      %v3494 = vunpack.c.h.b16 %v3164
      %v3495 = vunpack.c.l.b16 %v3165
      %v3496 = vunpack.c.h.b16 %v3165
      %v3497 = vunpack.c.l.b16 %v3166
      %v3498 = vunpack.c.h.b16 %v3166
      %v3499 = vunpack.c.l.b16 %v3167
      %v3500 = vunpack.c.h.b16 %v3167
      %v3501 = vunpack.c.l.b16 %v3168
      %v3502 = vunpack.c.h.b16 %v3168
      %v3503 = vunpack.c.l.b16 %v3169
      %v3504 = vunpack.c.h.b16 %v3169
      %v3505 = vunpack.c.l.b16 %v3170
      %v3506 = vunpack.c.h.b16 %v3170
      %v3507 = vunpack.c.l.b16 %v3171
      %v3508 = vunpack.c.h.b16 %v3171
      %v3509 = vunpack.c.l.b16 %v3172
      %v3510 = vunpack.c.h.b16 %v3172
      %v3511 = vpack.c.b16 %v3463, %v3461
      %v3512 = vpack.c.b16 %v3464, %v3462
      %v3513 = vpack.c.b16 %v3467, %v3465
      %v3514 = vpack.c.b16 %v3468, %v3466
      %v3515 = vpack.c.b16 %v3471, %v3469
      %v3516 = vpack.c.b16 %v3472, %v3470
      %v3517 = vpack.c.b16 %v3475, %v3473
      %v3518 = vpack.c.b16 %v3476, %v3474
      %v3519 = vpack.c.b16 %v3479, %v3477
      %v3520 = vpack.c.b16 %v3480, %v3478
      %v3521 = vpack.c.b16 %v3483, %v3481
      %v3522 = vpack.c.b16 %v3484, %v3482
      %v3523 = vpack.c.b16 %v3487, %v3485
      %v3524 = vpack.c.b16 %v3488, %v3486
      %v3525 = vpack.c.b16 %v3491, %v3489
      %v3526 = vpack.c.b16 %v3492, %v3490
      %v3527 = vpack.c.b16 %v3495, %v3493
      %v3528 = vpack.c.b16 %v3496, %v3494
      %v3529 = vpack.c.b16 %v3499, %v3497
      %v3530 = vpack.c.b16 %v3500, %v3498
      %v3531 = vpack.c.b16 %v3503, %v3501
      %v3532 = vpack.c.b16 %v3504, %v3502
      %v3533 = vpack.c.b16 %v3507, %v3505
      %v3534 = vpack.c.b16 %v3508, %v3506
      %v3535 = vpack.c.b16 %v3509, %v3509
      %v3536 = vpack.c.b16 %v3510, %v3510
      %v3562 = vsel %vm3327, %v3125, 0
      %v3565 = vsel %vm3327, %v3103, 0
      %v3568 = vsel %vm3327, %v3119, 0
      %v3571 = vsel %vm1257, %v3535, 0
      %v3574 = vsel %vm1257, %v3536, 0
      %3576 = vmatpush.bf16.msra.mxu0 %v3525
      %3577 = vmatpush.bf16.msra.mxu0 %v3523
      %3578 = vmatpush.bf16.msra.mxu0 %v3521
      %3579 = vmatpush.bf16.msra.mxu0 %v3519
      %3580 = vmatpush.bf16.msra.mxu0 %v3517
      %3581 = vmatpush.bf16.msra.mxu0 %v3515
      %3582 = vmatpush.bf16.msra.mxu0 %v3513
      %3583 = vmatpush.bf16.msra.mxu0 %v3511
      %3584 = vmatmul.bf16.gmra.mxu0 %v3124
      %v3585 = vpop.f32.mrf.mxu0
      %v3586 = vadd.f32 %v3374, %v3585
      %v3587 = vpop.f32.mrf.mxu0
      %v3588 = vadd.f32 %v3376, %v3587
      %3589 = vmatmul.bf16.gmra.mxu0 %v3095
      %v3590 = vpop.f32.mrf.mxu0
      %v3591 = vadd.f32 %v3379, %v3590
      %v3592 = vpop.f32.mrf.mxu0
      %v3593 = vadd.f32 %v3381, %v3592
      %3594 = vmatmul.bf16.gmra.mxu0 %v3111
      %v3595 = vpop.f32.mrf.mxu0
      %v3596 = vadd.f32 %v3384, %v3595
      %v3597 = vpop.f32.mrf.mxu0
      %v3598 = vadd.f32 %v3386, %v3597
      %3599 = vdwg.mxu0
      %3600 = vmatpush.bf16.msra.mxu0 0
      %3601 = vmatpush.bf16.msra.mxu0 0
      %3602 = vmatpush.bf16.msra.mxu0 0
      %3603 = vmatpush.bf16.msra.mxu0 %v3571
      %3604 = vmatpush.bf16.msra.mxu0 %v3533
      %3605 = vmatpush.bf16.msra.mxu0 %v3531
      %3606 = vmatpush.bf16.msra.mxu0 %v3529
      %3607 = vmatpush.bf16.msra.mxu0 %v3527
      %3608 = vmatmul.bf16.gmra.mxu0 %v3562
      %v3609 = vpop.f32.mrf.mxu0
      %v3610 = vadd.f32 %v3586, %v3609
      %v3611 = vpop.f32.mrf.mxu0
      %v3612 = vadd.f32 %v3588, %v3611
      %3613 = vmatmul.bf16.gmra.mxu0 %v3565
      %v3614 = vpop.f32.mrf.mxu0
      %v3615 = vadd.f32 %v3591, %v3614
      %v3616 = vpop.f32.mrf.mxu0
      %v3617 = vadd.f32 %v3593, %v3616
      %3618 = vmatmul.bf16.gmra.mxu0 %v3568
      %v3619 = vpop.f32.mrf.mxu0
      %v3620 = vadd.f32 %v3596, %v3619
      %v3621 = vpop.f32.mrf.mxu0
      %v3622 = vadd.f32 %v3598, %v3621
      %3623 = vdwg.mxu0
      %3624 = vmatpush.bf16.msra.mxu0 %v3526
      %3625 = vmatpush.bf16.msra.mxu0 %v3524
      %3626 = vmatpush.bf16.msra.mxu0 %v3522
      %3627 = vmatpush.bf16.msra.mxu0 %v3520
      %3628 = vmatpush.bf16.msra.mxu0 %v3518
      %3629 = vmatpush.bf16.msra.mxu0 %v3516
      %3630 = vmatpush.bf16.msra.mxu0 %v3514
      %3631 = vmatpush.bf16.msra.mxu0 %v3512
      %3632 = vmatmul.bf16.gmra.mxu0 %v3124
      %v3633 = vpop.f32.mrf.mxu0
      %v3634 = vadd.f32 %v3422, %v3633
      %v3635 = vpop.f32.mrf.mxu0
      %v3636 = vadd.f32 %v3424, %v3635
      %3637 = vmatmul.bf16.gmra.mxu0 %v3095
      %v3638 = vpop.f32.mrf.mxu0
      %v3639 = vadd.f32 %v3427, %v3638
      %v3640 = vpop.f32.mrf.mxu0
      %v3641 = vadd.f32 %v3429, %v3640
      %3642 = vmatmul.bf16.gmra.mxu0 %v3111
      %v3643 = vpop.f32.mrf.mxu0
      %v3644 = vadd.f32 %v3432, %v3643
      %v3645 = vpop.f32.mrf.mxu0
      %v3646 = vadd.f32 %v3434, %v3645
      %3647 = vdwg.mxu0
      %3648 = vmatpush.bf16.msra.mxu0 0
      %3649 = vmatpush.bf16.msra.mxu0 0
      %3650 = vmatpush.bf16.msra.mxu0 0
      %3651 = vmatpush.bf16.msra.mxu0 %v3574
      %3652 = vmatpush.bf16.msra.mxu0 %v3534
      %3653 = vmatpush.bf16.msra.mxu0 %v3532
      %3654 = vmatpush.bf16.msra.mxu0 %v3530
      %3655 = vmatpush.bf16.msra.mxu0 %v3528
      %3656 = vmatmul.bf16.gmra.mxu0 %v3562
      %v3657 = vpop.f32.mrf.mxu0
      %v3658 = vadd.f32 %v3634, %v3657
      %v3659 = vpop.f32.mrf.mxu0
      %v3660 = vadd.f32 %v3636, %v3659
      %3661 = vmatmul.bf16.gmra.mxu0 %v3565
      %v3662 = vpop.f32.mrf.mxu0
      %v3663 = vadd.f32 %v3639, %v3662
      %v3664 = vpop.f32.mrf.mxu0
      %v3665 = vadd.f32 %v3641, %v3664
      %3666 = vmatmul.bf16.gmra.mxu0 %v3568
      %v3667 = vpop.f32.mrf.mxu0
      %v3668 = vadd.f32 %v3644, %v3667
      %v3669 = vpop.f32.mrf.mxu0
      %v3670 = vadd.f32 %v3646, %v3669
      %3671 = vdwg.mxu0
      %s3672 = scalar_lea.vmem %s23, 400
      %v3673 = vld [vmem:[%s3672] sm:$0xff]
      %v3674 = vld [vmem:[%s3672 + $0x8] sm:$0xff]
      %v3675 = vld [vmem:[%s3672 + $0x10] sm:$0xff]
      %v3676 = vld [vmem:[%s3672 + $0x18] sm:$0xff]
      %v3677 = vld [vmem:[%s3672 + $0x20] sm:$0xff]
      %v3678 = vld [vmem:[%s3672 + $0x28] sm:$0xff]
      %v3679 = vld [vmem:[%s3672 + $0x30] sm:$0xff]
      %v3680 = vld [vmem:[%s3672 + $0x38] sm:$0xff]
      %v3681 = vld [vmem:[%s3672 + $0x40] sm:$0xff]
      %v3682 = vld [vmem:[%s3672 + $0x48] sm:$0xff]
      %v3683 = vld [vmem:[%s3672 + $0x50] sm:$0xff]
      %v3684 = vld [vmem:[%s3672 + $0x58] sm:$0xff]
      %v3685 = vld [vmem:[%s3672 + $0x60] sm:$0xff]
      %v3686 = vld [vmem:[%s3672 + $0x68] sm:$0xff]
      %v3687 = vld [vmem:[%s3672 + $0x70] sm:$0xff]
      %v3688 = vld [vmem:[%s3672 + $0x78] sm:$0xff]
      %v3689 = vld [vmem:[%s3672 + $0x80] sm:$0xff]
      %v3690 = vld [vmem:[%s3672 + $0x88] sm:$0xff]
      %v3691 = vld [vmem:[%s3672 + $0x90] sm:$0xff]
      %v3692 = vld [vmem:[%s3672 + $0x98] sm:$0xff]
      %v3693 = vld [vmem:[%s3672 + $0xa0] sm:$0xff]
      %v3694 = vld [vmem:[%s3672 + $0xa8] sm:$0xff]
      %v3695 = vld [vmem:[%s3672 + $0xb0] sm:$0xff]
      %v3696 = vld [vmem:[%s3672 + $0xb8] sm:$0xff]
      %v3697 = vld [vmem:[%s3672 + $0xc0] sm:$0x33]
      %v3723 = vunpack.c.l.b16 %v3673
      %v3724 = vunpack.c.h.b16 %v3673
      %v3725 = vunpack.c.l.b16 %v3674
      %v3726 = vunpack.c.h.b16 %v3674
      %v3727 = vunpack.c.l.b16 %v3675
      %v3728 = vunpack.c.h.b16 %v3675
      %v3729 = vunpack.c.l.b16 %v3676
      %v3730 = vunpack.c.h.b16 %v3676
      %v3731 = vunpack.c.l.b16 %v3677
      %v3732 = vunpack.c.h.b16 %v3677
      %v3733 = vunpack.c.l.b16 %v3678
      %v3734 = vunpack.c.h.b16 %v3678
      %v3735 = vunpack.c.l.b16 %v3679
      %v3736 = vunpack.c.h.b16 %v3679
      %v3737 = vunpack.c.l.b16 %v3680
      %v3738 = vunpack.c.h.b16 %v3680
      %v3739 = vunpack.c.l.b16 %v3681
      %v3740 = vunpack.c.h.b16 %v3681
      %v3741 = vunpack.c.l.b16 %v3682
      %v3742 = vunpack.c.h.b16 %v3682
      %v3743 = vunpack.c.l.b16 %v3683
      %v3744 = vunpack.c.h.b16 %v3683
      %v3745 = vunpack.c.l.b16 %v3684
      %v3746 = vunpack.c.h.b16 %v3684
      %v3747 = vunpack.c.l.b16 %v3685
      %v3748 = vunpack.c.h.b16 %v3685
      %v3749 = vunpack.c.l.b16 %v3686
      %v3750 = vunpack.c.h.b16 %v3686
      %v3751 = vunpack.c.l.b16 %v3687
      %v3752 = vunpack.c.h.b16 %v3687
      %v3753 = vunpack.c.l.b16 %v3688
      %v3754 = vunpack.c.h.b16 %v3688
      %v3755 = vunpack.c.l.b16 %v3689
      %v3756 = vunpack.c.h.b16 %v3689
      %v3757 = vunpack.c.l.b16 %v3690
      %v3758 = vunpack.c.h.b16 %v3690
      %v3759 = vunpack.c.l.b16 %v3691
      %v3760 = vunpack.c.h.b16 %v3691
      %v3761 = vunpack.c.l.b16 %v3692
      %v3762 = vunpack.c.h.b16 %v3692
      %v3763 = vunpack.c.l.b16 %v3693
      %v3764 = vunpack.c.h.b16 %v3693
      %v3765 = vunpack.c.l.b16 %v3694
      %v3766 = vunpack.c.h.b16 %v3694
      %v3767 = vunpack.c.l.b16 %v3695
      %v3768 = vunpack.c.h.b16 %v3695
      %v3769 = vunpack.c.l.b16 %v3696
      %v3770 = vunpack.c.h.b16 %v3696
      %v3771 = vunpack.c.l.b16 %v3697
      %v3772 = vunpack.c.h.b16 %v3697
      %v3773 = vpack.c.b16 %v3725, %v3723
      %v3774 = vpack.c.b16 %v3726, %v3724
      %v3775 = vpack.c.b16 %v3729, %v3727
      %v3776 = vpack.c.b16 %v3730, %v3728
      %v3777 = vpack.c.b16 %v3733, %v3731
      %v3778 = vpack.c.b16 %v3734, %v3732
      %v3779 = vpack.c.b16 %v3737, %v3735
      %v3780 = vpack.c.b16 %v3738, %v3736
      %v3781 = vpack.c.b16 %v3741, %v3739
      %v3782 = vpack.c.b16 %v3742, %v3740
      %v3783 = vpack.c.b16 %v3745, %v3743
      %v3784 = vpack.c.b16 %v3746, %v3744
      %v3785 = vpack.c.b16 %v3749, %v3747
      %v3786 = vpack.c.b16 %v3750, %v3748
      %v3787 = vpack.c.b16 %v3753, %v3751
      %v3788 = vpack.c.b16 %v3754, %v3752
      %v3789 = vpack.c.b16 %v3757, %v3755
      %v3790 = vpack.c.b16 %v3758, %v3756
      %v3791 = vpack.c.b16 %v3761, %v3759
      %v3792 = vpack.c.b16 %v3762, %v3760
      %v3793 = vpack.c.b16 %v3765, %v3763
      %v3794 = vpack.c.b16 %v3766, %v3764
      %v3795 = vpack.c.b16 %v3769, %v3767
      %v3796 = vpack.c.b16 %v3770, %v3768
      %v3797 = vpack.c.b16 %v3771, %v3771
      %v3798 = vpack.c.b16 %v3772, %v3772
      %v3824 = vsel %vm3327, %v3133, 0
      %v3827 = vsel %vm3327, %v3139, 0
      %v3830 = vsel %vm3327, %v3147, 0
      %v3833 = vsel %vm1257, %v3797, 0
      %v3836 = vsel %vm1257, %v3798, 0
      %3838 = vmatpush.bf16.msra.mxu0 %v3787
      %3839 = vmatpush.bf16.msra.mxu0 %v3785
      %3840 = vmatpush.bf16.msra.mxu0 %v3783
      %3841 = vmatpush.bf16.msra.mxu0 %v3781
      %3842 = vmatpush.bf16.msra.mxu0 %v3779
      %3843 = vmatpush.bf16.msra.mxu0 %v3777
      %3844 = vmatpush.bf16.msra.mxu0 %v3775
      %3845 = vmatpush.bf16.msra.mxu0 %v3773
      %3846 = vmatmul.bf16.gmra.mxu0 %v3129
      %v3847 = vpop.f32.mrf.mxu0
      %v3848 = vadd.f32 0.0, %v3847
      %v3849 = vpop.f32.mrf.mxu0
      %v3850 = vadd.f32 0.0, %v3849
      %3851 = vmatmul.bf16.gmra.mxu0 %v3136
      %v3852 = vpop.f32.mrf.mxu0
      %v3853 = vadd.f32 0.0, %v3852
      %v3854 = vpop.f32.mrf.mxu0
      %v3855 = vadd.f32 0.0, %v3854
      %3856 = vmatmul.bf16.gmra.mxu0 %v3146
      %v3857 = vpop.f32.mrf.mxu0
      %v3858 = vadd.f32 0.0, %v3857
      %v3859 = vpop.f32.mrf.mxu0
      %v3860 = vadd.f32 0.0, %v3859
      %3861 = vdwg.mxu0
      %3862 = vmatpush.bf16.msra.mxu0 0
      %3863 = vmatpush.bf16.msra.mxu0 0
      %3864 = vmatpush.bf16.msra.mxu0 0
      %3865 = vmatpush.bf16.msra.mxu0 %v3833
      %3866 = vmatpush.bf16.msra.mxu0 %v3795
      %3867 = vmatpush.bf16.msra.mxu0 %v3793
      %3868 = vmatpush.bf16.msra.mxu0 %v3791
      %3869 = vmatpush.bf16.msra.mxu0 %v3789
      %3870 = vmatmul.bf16.gmra.mxu0 %v3824
      %v3871 = vpop.f32.mrf.mxu0
      %v3872 = vadd.f32 %v3848, %v3871
      %v3873 = vpop.f32.mrf.mxu0
      %v3874 = vadd.f32 %v3850, %v3873
      %3875 = vmatmul.bf16.gmra.mxu0 %v3827
      %v3876 = vpop.f32.mrf.mxu0
      %v3877 = vadd.f32 %v3853, %v3876
      %v3878 = vpop.f32.mrf.mxu0
      %v3879 = vadd.f32 %v3855, %v3878
      %3880 = vmatmul.bf16.gmra.mxu0 %v3830
      %v3881 = vpop.f32.mrf.mxu0
      %v3882 = vadd.f32 %v3858, %v3881
      %v3883 = vpop.f32.mrf.mxu0
      %v3884 = vadd.f32 %v3860, %v3883
      %3885 = vdwg.mxu0
      %3886 = vmatpush.bf16.msra.mxu0 %v3788
      %3887 = vmatpush.bf16.msra.mxu0 %v3786
      %3888 = vmatpush.bf16.msra.mxu0 %v3784
      %3889 = vmatpush.bf16.msra.mxu0 %v3782
      %3890 = vmatpush.bf16.msra.mxu0 %v3780
      %3891 = vmatpush.bf16.msra.mxu0 %v3778
      %3892 = vmatpush.bf16.msra.mxu0 %v3776
      %3893 = vmatpush.bf16.msra.mxu0 %v3774
      %3894 = vmatmul.bf16.gmra.mxu0 %v3129
      %v3895 = vpop.f32.mrf.mxu0
      %v3896 = vadd.f32 0.0, %v3895
      %v3897 = vpop.f32.mrf.mxu0
      %v3898 = vadd.f32 0.0, %v3897
      %3899 = vmatmul.bf16.gmra.mxu0 %v3136
      %v3900 = vpop.f32.mrf.mxu0
      %v3901 = vadd.f32 0.0, %v3900
      %v3902 = vpop.f32.mrf.mxu0
      %v3903 = vadd.f32 0.0, %v3902
      %3904 = vmatmul.bf16.gmra.mxu0 %v3146
      %v3905 = vpop.f32.mrf.mxu0
      %v3906 = vadd.f32 0.0, %v3905
      %v3907 = vpop.f32.mrf.mxu0
      %v3908 = vadd.f32 0.0, %v3907
      %3909 = vdwg.mxu0
      %3910 = vmatpush.bf16.msra.mxu0 0
      %3911 = vmatpush.bf16.msra.mxu0 0
      %3912 = vmatpush.bf16.msra.mxu0 0
      %3913 = vmatpush.bf16.msra.mxu0 %v3836
      %3914 = vmatpush.bf16.msra.mxu0 %v3796
      %3915 = vmatpush.bf16.msra.mxu0 %v3794
      %3916 = vmatpush.bf16.msra.mxu0 %v3792
      %3917 = vmatpush.bf16.msra.mxu0 %v3790
      %3918 = vmatmul.bf16.gmra.mxu0 %v3824
      %v3919 = vpop.f32.mrf.mxu0
      %v3920 = vadd.f32 %v3896, %v3919
      %v3921 = vpop.f32.mrf.mxu0
      %v3922 = vadd.f32 %v3898, %v3921
      %3923 = vmatmul.bf16.gmra.mxu0 %v3827
      %v3924 = vpop.f32.mrf.mxu0
      %v3925 = vadd.f32 %v3901, %v3924
      %v3926 = vpop.f32.mrf.mxu0
      %v3927 = vadd.f32 %v3903, %v3926
      %3928 = vmatmul.bf16.gmra.mxu0 %v3830
      %v3929 = vpop.f32.mrf.mxu0
      %v3930 = vadd.f32 %v3906, %v3929
      %v3931 = vpop.f32.mrf.mxu0
      %v3932 = vadd.f32 %v3908, %v3931
      %3933 = vdwg.mxu0
      %v3934 = vadd.f32 %v3610, %v3872
      %v3935 = vadd.f32 %v3658, %v3920
      %v3936 = vadd.f32 %v3612, %v3874
      %v3937 = vadd.f32 %v3660, %v3922
      %v3938 = vadd.f32 %v3615, %v3877
      %v3939 = vadd.f32 %v3663, %v3925
      %v3940 = vadd.f32 %v3617, %v3879
      %v3941 = vadd.f32 %v3665, %v3927
      %v3942 = vadd.f32 %v3620, %v3882
      %v3943 = vadd.f32 %v3668, %v3930
      %v3944 = vadd.f32 %v3622, %v3884
      %v3945 = vadd.f32 %v3670, %v3932
      %v3946 = vld [vmem:[%s25] sm:$0x3]
      %v3948 = vperm.slane %v3946, 0
      %v3949 = vperm.slane %v3946, 1
      %v3952 = vadd.f32 %v3934, %v3948
      %v3953 = vadd.f32 %v3935, %v3949
      %v3954 = vadd.f32 %v3936, %v3948
      %v3955 = vadd.f32 %v3937, %v3949
      %v3956 = vadd.f32 %v3938, %v3948
      %v3957 = vadd.f32 %v3939, %v3949
      %v3958 = vadd.f32 %v3940, %v3948
      %v3959 = vadd.f32 %v3941, %v3949
      %v3960 = vadd.f32 %v3942, %v3948
      %v3961 = vadd.f32 %v3943, %v3949
      %v3962 = vadd.f32 %v3944, %v3948
      %v3963 = vadd.f32 %v3945, %v3949
      %v3964 = vmax.f32 %v3952, 0.0
      %v3965 = vmax.f32 %v3953, 0.0
      %v3966 = vmax.f32 %v3954, 0.0
      %v3967 = vmax.f32 %v3955, 0.0
      %v3968 = vmax.f32 %v3956, 0.0
      %v3969 = vmax.f32 %v3957, 0.0
      %v3970 = vmax.f32 %v3958, 0.0
      %v3971 = vmax.f32 %v3959, 0.0
      %v3972 = vmax.f32 %v3960, 0.0
      %v3973 = vmax.f32 %v3961, 0.0
      %v3974 = vmax.f32 %v3962, 0.0
      %v3975 = vmax.f32 %v3963, 0.0
      %v3976 = vsel %vm1387, %v3964, 0.0
      %v3977 = vsel %vm1387, %v3965, 0.0
      %v3978 = vsel %vm1388, %v3966, 0.0
      %v3979 = vsel %vm1388, %v3967, 0.0
      %v3980 = vsel %vm1389, %v3968, 0.0
      %v3981 = vsel %vm1389, %v3969, 0.0
      %v3982 = vsel %vm1390, %v3970, 0.0
      %v3983 = vsel %vm1390, %v3971, 0.0
      %v3984 = vsel %vm1391, %v3972, 0.0
      %v3985 = vsel %vm1391, %v3973, 0.0
      %v3986 = vsel %vm1392, %v3974, 0.0
      %v3987 = vsel %vm1392, %v3975, 0.0
      %v3988 = vpack.c.bf16 %v3977, %v3976
      %v3989 = vpack.c.bf16 %v3979, %v3978
      %v3990 = vpack.c.bf16 %v3981, %v3980
      %v3991 = vpack.c.bf16 %v3983, %v3982
      %v3992 = vpack.c.bf16 %v3985, %v3984
      %v3993 = vpack.c.bf16 %v3987, %v3986
      %v4000 = vunpack.c.l.b16 %v3988
      %v4001 = vunpack.c.h.b16 %v3988
      %v4002 = vunpack.c.l.b16 %v3989
      %v4003 = vunpack.c.h.b16 %v3989
      %v4004 = vunpack.c.l.b16 %v3990
      %v4005 = vunpack.c.h.b16 %v3990
      %v4006 = vunpack.c.l.b16 %v3991
      %v4007 = vunpack.c.h.b16 %v3991
      %v4008 = vunpack.c.l.b16 %v3992
      %v4009 = vunpack.c.h.b16 %v3992
      %v4010 = vunpack.c.l.b16 %v3993
      %v4011 = vunpack.c.h.b16 %v3993
      %v4012 = vpack.c.b16 %v4002, %v4000
      %v4013 = vpack.c.b16 %v4003, %v4001
      %v4014 = vpack.c.b16 %v4006, %v4004
      %v4015 = vpack.c.b16 %v4007, %v4005
      %v4016 = vpack.c.b16 %v4010, %v4008
      %v4017 = vpack.c.b16 %v4011, %v4009
      %v4019 = vshrl.u32 %v4012, 16
      %v4021 = vrot.slane %v4019, 7
      %v4022 = vshll.u32 %v4012, 16
      %v4024 = vor.u32 %v4021, %v4022
      %v4026 = vshrl.u32 %v4013, 16
      %v4028 = vrot.slane %v4026, 7
      %v4029 = vshll.u32 %v4013, 16
      %v4031 = vor.u32 %v4028, %v4029
      %v4033 = vshrl.u32 %v4014, 16
      %v4035 = vrot.slane %v4033, 7
      %v4036 = vshll.u32 %v4014, 16
      %v4038 = vor.u32 %v4035, %v4036
      %v4039 = vsel %vm1206, %v4021, %v4038
      %v4041 = vshrl.u32 %v4015, 16
      %v4043 = vrot.slane %v4041, 7
      %v4044 = vshll.u32 %v4015, 16
      %v4046 = vor.u32 %v4043, %v4044
      %v4047 = vsel %vm1206, %v4028, %v4046
      %v4049 = vshrl.u32 %v4016, 16
      %v4051 = vrot.slane %v4049, 7
      %v4052 = vshll.u32 %v4016, 16
      %v4054 = vor.u32 %v4051, %v4052
      %v4055 = vsel %vm1206, %v4035, %v4054
      %v4057 = vshrl.u32 %v4017, 16
      %v4059 = vrot.slane %v4057, 7
      %v4060 = vshll.u32 %v4017, 16
      %v4062 = vor.u32 %v4059, %v4060
      %v4063 = vsel %vm1206, %v4043, %v4062
      %v4068 = vsel %vm1232, 0, %v4024
      %v4069 = vsel %vm1232, 0, %v4031
      %v4070 = vrot.slane %v4022, 1
      %v4071 = vor.u32 %v4019, %v4070
      %v4072 = vrot.slane %v4036, 1
      %v4073 = vsel %vm1234, %v4071, %v4072
      %v4074 = vrot.slane %v4029, 1
      %v4075 = vor.u32 %v4026, %v4074
      %v4076 = vrot.slane %v4044, 1
      %v4077 = vsel %vm1234, %v4075, %v4076
      %v4078 = vor.u32 %v4033, %v4072
      %v4079 = vrot.slane %v4052, 1
      %v4080 = vsel %vm1234, %v4078, %v4079
      %v4081 = vor.u32 %v4041, %v4076
      %v4082 = vrot.slane %v4060, 1
      %v4083 = vsel %vm1234, %v4081, %v4082
      %v4084 = vor.u32 %v4049, %v4079
      %v4085 = vor.u32 %v4057, %v4082
      %v4090 = vsel %vm1245, %v4084, 0
      %v4091 = vsel %vm1245, %v4085, 0
      %v4092 = vld [vmem:[%s27] sm:$0xff]
      %v4093 = vld [vmem:[%s27 + $0x8] sm:$0xff]
      %v4094 = vld [vmem:[%s27 + $0x10] sm:$0xff]
      %v4095 = vld [vmem:[%s27 + $0x18] sm:$0xff]
      %v4096 = vld [vmem:[%s27 + $0x20] sm:$0xff]
      %v4097 = vld [vmem:[%s27 + $0x28] sm:$0xff]
      %v4098 = vld [vmem:[%s27 + $0x30] sm:$0xff]
      %v4099 = vld [vmem:[%s27 + $0x38] sm:$0xff]
      %v4100 = vld [vmem:[%s27 + $0x40] sm:$0xff]
      %v4101 = vld [vmem:[%s27 + $0x48] sm:$0xff]
      %v4102 = vld [vmem:[%s27 + $0x50] sm:$0xff]
      %v4103 = vld [vmem:[%s27 + $0x58] sm:$0xff]
      %v4104 = vld [vmem:[%s27 + $0x60] sm:$0xff]
      %v4105 = vld [vmem:[%s27 + $0x68] sm:$0xff]
      %v4106 = vld [vmem:[%s27 + $0x70] sm:$0xff]
      %v4107 = vld [vmem:[%s27 + $0x78] sm:$0xff]
      %v4108 = vld [vmem:[%s27 + $0x80] sm:$0xff]
      %v4109 = vld [vmem:[%s27 + $0x88] sm:$0xff]
      %v4110 = vld [vmem:[%s27 + $0x90] sm:$0xff]
      %v4111 = vld [vmem:[%s27 + $0x98] sm:$0xff]
      %v4112 = vld [vmem:[%s27 + $0xa0] sm:$0xff]
      %v4113 = vld [vmem:[%s27 + $0xa8] sm:$0xff]
      %v4114 = vld [vmem:[%s27 + $0xb0] sm:$0xff]
      %v4115 = vld [vmem:[%s27 + $0xb8] sm:$0xff]
      %v4116 = vld [vmem:[%s27 + $0xc0] sm:$0xff]
      %v4117 = vld [vmem:[%s27 + $0xc8] sm:$0xff]
      %v4118 = vld [vmem:[%s27 + $0xd0] sm:$0xff]
      %v4119 = vld [vmem:[%s27 + $0xd8] sm:$0xff]
      %v4120 = vld [vmem:[%s27 + $0xe0] sm:$0xff]
      %v4121 = vld [vmem:[%s27 + $0xe8] sm:$0xff]
      %v4122 = vld [vmem:[%s27 + $0xf0] sm:$0x33]
      %s4123 = scalar_lea.vmem %s27, 248
      %v4124 = vld [vmem:[%s4123] sm:$0xff]
      %v4125 = vld [vmem:[%s4123 + $0x8] sm:$0xff]
      %v4126 = vld [vmem:[%s4123 + $0x10] sm:$0xff]
      %v4127 = vld [vmem:[%s4123 + $0x18] sm:$0xff]
      %v4128 = vld [vmem:[%s4123 + $0x20] sm:$0xff]
      %v4129 = vld [vmem:[%s4123 + $0x28] sm:$0xff]
      %v4130 = vld [vmem:[%s4123 + $0x30] sm:$0xff]
      %v4131 = vld [vmem:[%s4123 + $0x38] sm:$0xff]
      %v4132 = vld [vmem:[%s4123 + $0x40] sm:$0xff]
      %v4133 = vld [vmem:[%s4123 + $0x48] sm:$0xff]
      %v4134 = vld [vmem:[%s4123 + $0x50] sm:$0xff]
      %v4135 = vld [vmem:[%s4123 + $0x58] sm:$0xff]
      %v4136 = vld [vmem:[%s4123 + $0x60] sm:$0xff]
      %v4137 = vld [vmem:[%s4123 + $0x68] sm:$0xff]
      %v4138 = vld [vmem:[%s4123 + $0x70] sm:$0xff]
      %v4139 = vld [vmem:[%s4123 + $0x78] sm:$0xff]
      %v4140 = vld [vmem:[%s4123 + $0x80] sm:$0xff]
      %v4141 = vld [vmem:[%s4123 + $0x88] sm:$0xff]
      %v4142 = vld [vmem:[%s4123 + $0x90] sm:$0xff]
      %v4143 = vld [vmem:[%s4123 + $0x98] sm:$0xff]
      %v4144 = vld [vmem:[%s4123 + $0xa0] sm:$0xff]
      %v4145 = vld [vmem:[%s4123 + $0xa8] sm:$0xff]
      %v4146 = vld [vmem:[%s4123 + $0xb0] sm:$0xff]
      %v4147 = vld [vmem:[%s4123 + $0xb8] sm:$0xff]
      %v4148 = vld [vmem:[%s4123 + $0xc0] sm:$0xff]
      %v4149 = vld [vmem:[%s4123 + $0xc8] sm:$0xff]
      %v4150 = vld [vmem:[%s4123 + $0xd0] sm:$0xff]
      %v4151 = vld [vmem:[%s4123 + $0xd8] sm:$0xff]
      %v4152 = vld [vmem:[%s4123 + $0xe0] sm:$0xff]
      %v4153 = vld [vmem:[%s4123 + $0xe8] sm:$0xff]
      %v4154 = vld [vmem:[%s4123 + $0xf0] sm:$0x33]
      %v4189 = vunpack.c.l.b16 %v4124
      %v4190 = vunpack.c.h.b16 %v4124
      %v4191 = vunpack.c.l.b16 %v4125
      %v4192 = vunpack.c.h.b16 %v4125
      %v4193 = vunpack.c.l.b16 %v4126
      %v4194 = vunpack.c.h.b16 %v4126
      %v4195 = vunpack.c.l.b16 %v4127
      %v4196 = vunpack.c.h.b16 %v4127
      %v4197 = vunpack.c.l.b16 %v4128
      %v4198 = vunpack.c.h.b16 %v4128
      %v4199 = vunpack.c.l.b16 %v4129
      %v4200 = vunpack.c.h.b16 %v4129
      %v4201 = vunpack.c.l.b16 %v4130
      %v4202 = vunpack.c.h.b16 %v4130
      %v4203 = vunpack.c.l.b16 %v4131
      %v4204 = vunpack.c.h.b16 %v4131
      %v4205 = vunpack.c.l.b16 %v4132
      %v4206 = vunpack.c.h.b16 %v4132
      %v4207 = vunpack.c.l.b16 %v4133
      %v4208 = vunpack.c.h.b16 %v4133
      %v4209 = vunpack.c.l.b16 %v4134
      %v4210 = vunpack.c.h.b16 %v4134
      %v4211 = vunpack.c.l.b16 %v4135
      %v4212 = vunpack.c.h.b16 %v4135
      %v4213 = vunpack.c.l.b16 %v4136
      %v4214 = vunpack.c.h.b16 %v4136
      %v4215 = vunpack.c.l.b16 %v4137
      %v4216 = vunpack.c.h.b16 %v4137
      %v4217 = vunpack.c.l.b16 %v4138
      %v4218 = vunpack.c.h.b16 %v4138
      %v4219 = vunpack.c.l.b16 %v4139
      %v4220 = vunpack.c.h.b16 %v4139
      %v4221 = vunpack.c.l.b16 %v4140
      %v4222 = vunpack.c.h.b16 %v4140
      %v4223 = vunpack.c.l.b16 %v4141
      %v4224 = vunpack.c.h.b16 %v4141
      %v4225 = vunpack.c.l.b16 %v4142
      %v4226 = vunpack.c.h.b16 %v4142
      %v4227 = vunpack.c.l.b16 %v4143
      %v4228 = vunpack.c.h.b16 %v4143
      %v4229 = vunpack.c.l.b16 %v4144
      %v4230 = vunpack.c.h.b16 %v4144
      %v4231 = vunpack.c.l.b16 %v4145
      %v4232 = vunpack.c.h.b16 %v4145
      %v4233 = vunpack.c.l.b16 %v4146
      %v4234 = vunpack.c.h.b16 %v4146
      %v4235 = vunpack.c.l.b16 %v4147
      %v4236 = vunpack.c.h.b16 %v4147
      %v4237 = vunpack.c.l.b16 %v4148
      %v4238 = vunpack.c.h.b16 %v4148
      %v4239 = vunpack.c.l.b16 %v4149
      %v4240 = vunpack.c.h.b16 %v4149
      %v4241 = vunpack.c.l.b16 %v4150
      %v4242 = vunpack.c.h.b16 %v4150
      %v4243 = vunpack.c.l.b16 %v4151
      %v4244 = vunpack.c.h.b16 %v4151
      %v4245 = vunpack.c.l.b16 %v4152
      %v4246 = vunpack.c.h.b16 %v4152
      %v4247 = vunpack.c.l.b16 %v4153
      %v4248 = vunpack.c.h.b16 %v4153
      %v4249 = vunpack.c.l.b16 %v4154
      %v4250 = vunpack.c.h.b16 %v4154
      %v4251 = vpack.c.b16 %v4191, %v4189
      %v4252 = vpack.c.b16 %v4192, %v4190
      %v4253 = vpack.c.b16 %v4195, %v4193
      %v4254 = vpack.c.b16 %v4196, %v4194
      %v4255 = vpack.c.b16 %v4199, %v4197
      %v4256 = vpack.c.b16 %v4200, %v4198
      %v4257 = vpack.c.b16 %v4203, %v4201
      %v4258 = vpack.c.b16 %v4204, %v4202
      %v4259 = vpack.c.b16 %v4207, %v4205
      %v4260 = vpack.c.b16 %v4208, %v4206
      %v4261 = vpack.c.b16 %v4211, %v4209
      %v4262 = vpack.c.b16 %v4212, %v4210
      %v4263 = vpack.c.b16 %v4215, %v4213
      %v4264 = vpack.c.b16 %v4216, %v4214
      %v4265 = vpack.c.b16 %v4219, %v4217
      %v4266 = vpack.c.b16 %v4220, %v4218
      %v4267 = vpack.c.b16 %v4223, %v4221
      %v4268 = vpack.c.b16 %v4224, %v4222
      %v4269 = vpack.c.b16 %v4227, %v4225
      %v4270 = vpack.c.b16 %v4228, %v4226
      %v4271 = vpack.c.b16 %v4231, %v4229
      %v4272 = vpack.c.b16 %v4232, %v4230
      %v4273 = vpack.c.b16 %v4235, %v4233
      %v4274 = vpack.c.b16 %v4236, %v4234
      %v4275 = vpack.c.b16 %v4239, %v4237
      %v4276 = vpack.c.b16 %v4240, %v4238
      %v4277 = vpack.c.b16 %v4243, %v4241
      %v4278 = vpack.c.b16 %v4244, %v4242
      %v4279 = vpack.c.b16 %v4247, %v4245
      %v4280 = vpack.c.b16 %v4248, %v4246
      %v4281 = vpack.c.b16 %v4249, %v4249
      %v4282 = vpack.c.b16 %v4250, %v4250
      %vm4313 = vcmask 949248
      %v4314 = vsel %vm4313, %v4013, 0
      %v4316 = vsel %vm4313, %v4015, 0
      %v4318 = vsel %vm4313, %v4017, 0
      %v4321 = vsel %vm1257, %v4281, 0
      %v4324 = vsel %vm1257, %v4282, 0
      %4326 = vmatpush.bf16.msra.mxu0 %v4265
      %4327 = vmatpush.bf16.msra.mxu0 %v4263
      %4328 = vmatpush.bf16.msra.mxu0 %v4261
      %4329 = vmatpush.bf16.msra.mxu0 %v4259
      %4330 = vmatpush.bf16.msra.mxu0 %v4257
      %4331 = vmatpush.bf16.msra.mxu0 %v4255
      %4332 = vmatpush.bf16.msra.mxu0 %v4253
      %4333 = vmatpush.bf16.msra.mxu0 %v4251
      %4334 = vmatmul.bf16.gmra.mxu0 %v4012
      %v4335 = vpop.f32.mrf.mxu0
      %v4336 = vadd.f32 0.0, %v4335
      %v4337 = vpop.f32.mrf.mxu0
      %v4338 = vadd.f32 0.0, %v4337
      %4339 = vmatmul.bf16.gmra.mxu0 %v4014
      %v4340 = vpop.f32.mrf.mxu0
      %v4341 = vadd.f32 0.0, %v4340
      %v4342 = vpop.f32.mrf.mxu0
      %v4343 = vadd.f32 0.0, %v4342
      %4344 = vmatmul.bf16.gmra.mxu0 %v4016
      %v4345 = vpop.f32.mrf.mxu0
      %v4346 = vadd.f32 0.0, %v4345
      %v4347 = vpop.f32.mrf.mxu0
      %v4348 = vadd.f32 0.0, %v4347
      %4349 = vdwg.mxu0
      %4350 = vmatpush.bf16.msra.mxu0 %v4321
      %4351 = vmatpush.bf16.msra.mxu0 %v4279
      %4352 = vmatpush.bf16.msra.mxu0 %v4277
      %4353 = vmatpush.bf16.msra.mxu0 %v4275
      %4354 = vmatpush.bf16.msra.mxu0 %v4273
      %4355 = vmatpush.bf16.msra.mxu0 %v4271
      %4356 = vmatpush.bf16.msra.mxu0 %v4269
      %4357 = vmatpush.bf16.msra.mxu0 %v4267
      %4358 = vmatmul.bf16.gmra.mxu0 %v4314
      %v4359 = vpop.f32.mrf.mxu0
      %v4360 = vadd.f32 %v4336, %v4359
      %v4361 = vpop.f32.mrf.mxu0
      %v4362 = vadd.f32 %v4338, %v4361
      %4363 = vmatmul.bf16.gmra.mxu0 %v4316
      %v4364 = vpop.f32.mrf.mxu0
      %v4365 = vadd.f32 %v4341, %v4364
      %v4366 = vpop.f32.mrf.mxu0
      %v4367 = vadd.f32 %v4343, %v4366
      %4368 = vmatmul.bf16.gmra.mxu0 %v4318
      %v4369 = vpop.f32.mrf.mxu0
      %v4370 = vadd.f32 %v4346, %v4369
      %v4371 = vpop.f32.mrf.mxu0
      %v4372 = vadd.f32 %v4348, %v4371
      %4373 = vdwg.mxu0
      %4374 = vmatpush.bf16.msra.mxu0 %v4266
      %4375 = vmatpush.bf16.msra.mxu0 %v4264
      %4376 = vmatpush.bf16.msra.mxu0 %v4262
      %4377 = vmatpush.bf16.msra.mxu0 %v4260
      %4378 = vmatpush.bf16.msra.mxu0 %v4258
      %4379 = vmatpush.bf16.msra.mxu0 %v4256
      %4380 = vmatpush.bf16.msra.mxu0 %v4254
      %4381 = vmatpush.bf16.msra.mxu0 %v4252
      %4382 = vmatmul.bf16.gmra.mxu0 %v4012
      %v4383 = vpop.f32.mrf.mxu0
      %v4384 = vadd.f32 0.0, %v4383
      %v4385 = vpop.f32.mrf.mxu0
      %v4386 = vadd.f32 0.0, %v4385
      %4387 = vmatmul.bf16.gmra.mxu0 %v4014
      %v4388 = vpop.f32.mrf.mxu0
      %v4389 = vadd.f32 0.0, %v4388
      %v4390 = vpop.f32.mrf.mxu0
      %v4391 = vadd.f32 0.0, %v4390
      %4392 = vmatmul.bf16.gmra.mxu0 %v4016
      %v4393 = vpop.f32.mrf.mxu0
      %v4394 = vadd.f32 0.0, %v4393
      %v4395 = vpop.f32.mrf.mxu0
      %v4396 = vadd.f32 0.0, %v4395
      %4397 = vdwg.mxu0
      %4398 = vmatpush.bf16.msra.mxu0 %v4324
      %4399 = vmatpush.bf16.msra.mxu0 %v4280
      %4400 = vmatpush.bf16.msra.mxu0 %v4278
      %4401 = vmatpush.bf16.msra.mxu0 %v4276
      %4402 = vmatpush.bf16.msra.mxu0 %v4274
      %4403 = vmatpush.bf16.msra.mxu0 %v4272
      %4404 = vmatpush.bf16.msra.mxu0 %v4270
      %4405 = vmatpush.bf16.msra.mxu0 %v4268
      %4406 = vmatmul.bf16.gmra.mxu0 %v4314
      %v4407 = vpop.f32.mrf.mxu0
      %v4408 = vadd.f32 %v4384, %v4407
      %v4409 = vpop.f32.mrf.mxu0
      %v4410 = vadd.f32 %v4386, %v4409
      %4411 = vmatmul.bf16.gmra.mxu0 %v4316
      %v4412 = vpop.f32.mrf.mxu0
      %v4413 = vadd.f32 %v4389, %v4412
      %v4414 = vpop.f32.mrf.mxu0
      %v4415 = vadd.f32 %v4391, %v4414
      %4416 = vmatmul.bf16.gmra.mxu0 %v4318
      %v4417 = vpop.f32.mrf.mxu0
      %v4418 = vadd.f32 %v4394, %v4417
      %v4419 = vpop.f32.mrf.mxu0
      %v4420 = vadd.f32 %v4396, %v4419
      %4421 = vdwg.mxu0
      %v4453 = vunpack.c.l.b16 %v4092
      %v4454 = vunpack.c.h.b16 %v4092
      %v4455 = vunpack.c.l.b16 %v4093
      %v4456 = vunpack.c.h.b16 %v4093
      %v4457 = vunpack.c.l.b16 %v4094
      %v4458 = vunpack.c.h.b16 %v4094
      %v4459 = vunpack.c.l.b16 %v4095
      %v4460 = vunpack.c.h.b16 %v4095
      %v4461 = vunpack.c.l.b16 %v4096
      %v4462 = vunpack.c.h.b16 %v4096
      %v4463 = vunpack.c.l.b16 %v4097
      %v4464 = vunpack.c.h.b16 %v4097
      %v4465 = vunpack.c.l.b16 %v4098
      %v4466 = vunpack.c.h.b16 %v4098
      %v4467 = vunpack.c.l.b16 %v4099
      %v4468 = vunpack.c.h.b16 %v4099
      %v4469 = vunpack.c.l.b16 %v4100
      %v4470 = vunpack.c.h.b16 %v4100
      %v4471 = vunpack.c.l.b16 %v4101
      %v4472 = vunpack.c.h.b16 %v4101
      %v4473 = vunpack.c.l.b16 %v4102
      %v4474 = vunpack.c.h.b16 %v4102
      %v4475 = vunpack.c.l.b16 %v4103
      %v4476 = vunpack.c.h.b16 %v4103
      %v4477 = vunpack.c.l.b16 %v4104
      %v4478 = vunpack.c.h.b16 %v4104
      %v4479 = vunpack.c.l.b16 %v4105
      %v4480 = vunpack.c.h.b16 %v4105
      %v4481 = vunpack.c.l.b16 %v4106
      %v4482 = vunpack.c.h.b16 %v4106
      %v4483 = vunpack.c.l.b16 %v4107
      %v4484 = vunpack.c.h.b16 %v4107
      %v4485 = vunpack.c.l.b16 %v4108
      %v4486 = vunpack.c.h.b16 %v4108
      %v4487 = vunpack.c.l.b16 %v4109
      %v4488 = vunpack.c.h.b16 %v4109
      %v4489 = vunpack.c.l.b16 %v4110
      %v4490 = vunpack.c.h.b16 %v4110
      %v4491 = vunpack.c.l.b16 %v4111
      %v4492 = vunpack.c.h.b16 %v4111
      %v4493 = vunpack.c.l.b16 %v4112
      %v4494 = vunpack.c.h.b16 %v4112
      %v4495 = vunpack.c.l.b16 %v4113
      %v4496 = vunpack.c.h.b16 %v4113
      %v4497 = vunpack.c.l.b16 %v4114
      %v4498 = vunpack.c.h.b16 %v4114
      %v4499 = vunpack.c.l.b16 %v4115
      %v4500 = vunpack.c.h.b16 %v4115
      %v4501 = vunpack.c.l.b16 %v4116
      %v4502 = vunpack.c.h.b16 %v4116
      %v4503 = vunpack.c.l.b16 %v4117
      %v4504 = vunpack.c.h.b16 %v4117
      %v4505 = vunpack.c.l.b16 %v4118
      %v4506 = vunpack.c.h.b16 %v4118
      %v4507 = vunpack.c.l.b16 %v4119
      %v4508 = vunpack.c.h.b16 %v4119
      %v4509 = vunpack.c.l.b16 %v4120
      %v4510 = vunpack.c.h.b16 %v4120
      %v4511 = vunpack.c.l.b16 %v4121
      %v4512 = vunpack.c.h.b16 %v4121
      %v4513 = vunpack.c.l.b16 %v4122
      %v4514 = vunpack.c.h.b16 %v4122
      %v4515 = vpack.c.b16 %v4455, %v4453
      %v4516 = vpack.c.b16 %v4456, %v4454
      %v4517 = vpack.c.b16 %v4459, %v4457
      %v4518 = vpack.c.b16 %v4460, %v4458
      %v4519 = vpack.c.b16 %v4463, %v4461
      %v4520 = vpack.c.b16 %v4464, %v4462
      %v4521 = vpack.c.b16 %v4467, %v4465
      %v4522 = vpack.c.b16 %v4468, %v4466
      %v4523 = vpack.c.b16 %v4471, %v4469
      %v4524 = vpack.c.b16 %v4472, %v4470
      %v4525 = vpack.c.b16 %v4475, %v4473
      %v4526 = vpack.c.b16 %v4476, %v4474
      %v4527 = vpack.c.b16 %v4479, %v4477
      %v4528 = vpack.c.b16 %v4480, %v4478
      %v4529 = vpack.c.b16 %v4483, %v4481
      %v4530 = vpack.c.b16 %v4484, %v4482
      %v4531 = vpack.c.b16 %v4487, %v4485
      %v4532 = vpack.c.b16 %v4488, %v4486
      %v4533 = vpack.c.b16 %v4491, %v4489
      %v4534 = vpack.c.b16 %v4492, %v4490
      %v4535 = vpack.c.b16 %v4495, %v4493
      %v4536 = vpack.c.b16 %v4496, %v4494
      %v4537 = vpack.c.b16 %v4499, %v4497
      %v4538 = vpack.c.b16 %v4500, %v4498
      %v4539 = vpack.c.b16 %v4503, %v4501
      %v4540 = vpack.c.b16 %v4504, %v4502
      %v4541 = vpack.c.b16 %v4507, %v4505
      %v4542 = vpack.c.b16 %v4508, %v4506
      %v4543 = vpack.c.b16 %v4511, %v4509
      %v4544 = vpack.c.b16 %v4512, %v4510
      %v4545 = vpack.c.b16 %v4513, %v4513
      %v4546 = vpack.c.b16 %v4514, %v4514
      %v4578 = vsel %vm4313, %v4069, 0
      %v4581 = vsel %vm4313, %v4047, 0
      %v4584 = vsel %vm4313, %v4063, 0
      %v4587 = vsel %vm1257, %v4545, 0
      %v4590 = vsel %vm1257, %v4546, 0
      %4592 = vmatpush.bf16.msra.mxu0 %v4529
      %4593 = vmatpush.bf16.msra.mxu0 %v4527
      %4594 = vmatpush.bf16.msra.mxu0 %v4525
      %4595 = vmatpush.bf16.msra.mxu0 %v4523
      %4596 = vmatpush.bf16.msra.mxu0 %v4521
      %4597 = vmatpush.bf16.msra.mxu0 %v4519
      %4598 = vmatpush.bf16.msra.mxu0 %v4517
      %4599 = vmatpush.bf16.msra.mxu0 %v4515
      %4600 = vmatmul.bf16.gmra.mxu0 %v4068
      %v4601 = vpop.f32.mrf.mxu0
      %v4602 = vadd.f32 %v4360, %v4601
      %v4603 = vpop.f32.mrf.mxu0
      %v4604 = vadd.f32 %v4362, %v4603
      %4605 = vmatmul.bf16.gmra.mxu0 %v4039
      %v4606 = vpop.f32.mrf.mxu0
      %v4607 = vadd.f32 %v4365, %v4606
      %v4608 = vpop.f32.mrf.mxu0
      %v4609 = vadd.f32 %v4367, %v4608
      %4610 = vmatmul.bf16.gmra.mxu0 %v4055
      %v4611 = vpop.f32.mrf.mxu0
      %v4612 = vadd.f32 %v4370, %v4611
      %v4613 = vpop.f32.mrf.mxu0
      %v4614 = vadd.f32 %v4372, %v4613
      %4615 = vdwg.mxu0
      %4616 = vmatpush.bf16.msra.mxu0 %v4587
      %4617 = vmatpush.bf16.msra.mxu0 %v4543
      %4618 = vmatpush.bf16.msra.mxu0 %v4541
      %4619 = vmatpush.bf16.msra.mxu0 %v4539
      %4620 = vmatpush.bf16.msra.mxu0 %v4537
      %4621 = vmatpush.bf16.msra.mxu0 %v4535
      %4622 = vmatpush.bf16.msra.mxu0 %v4533
      %4623 = vmatpush.bf16.msra.mxu0 %v4531
      %4624 = vmatmul.bf16.gmra.mxu0 %v4578
      %v4625 = vpop.f32.mrf.mxu0
      %v4626 = vadd.f32 %v4602, %v4625
      %v4627 = vpop.f32.mrf.mxu0
      %v4628 = vadd.f32 %v4604, %v4627
      %4629 = vmatmul.bf16.gmra.mxu0 %v4581
      %v4630 = vpop.f32.mrf.mxu0
      %v4631 = vadd.f32 %v4607, %v4630
      %v4632 = vpop.f32.mrf.mxu0
      %v4633 = vadd.f32 %v4609, %v4632
      %4634 = vmatmul.bf16.gmra.mxu0 %v4584
      %v4635 = vpop.f32.mrf.mxu0
      %v4636 = vadd.f32 %v4612, %v4635
      %v4637 = vpop.f32.mrf.mxu0
      %v4638 = vadd.f32 %v4614, %v4637
      %4639 = vdwg.mxu0
      %4640 = vmatpush.bf16.msra.mxu0 %v4530
      %4641 = vmatpush.bf16.msra.mxu0 %v4528
      %4642 = vmatpush.bf16.msra.mxu0 %v4526
      %4643 = vmatpush.bf16.msra.mxu0 %v4524
      %4644 = vmatpush.bf16.msra.mxu0 %v4522
      %4645 = vmatpush.bf16.msra.mxu0 %v4520
      %4646 = vmatpush.bf16.msra.mxu0 %v4518
      %4647 = vmatpush.bf16.msra.mxu0 %v4516
      %4648 = vmatmul.bf16.gmra.mxu0 %v4068
      %v4649 = vpop.f32.mrf.mxu0
      %v4650 = vadd.f32 %v4408, %v4649
      %v4651 = vpop.f32.mrf.mxu0
      %v4652 = vadd.f32 %v4410, %v4651
      %4653 = vmatmul.bf16.gmra.mxu0 %v4039
      %v4654 = vpop.f32.mrf.mxu0
      %v4655 = vadd.f32 %v4413, %v4654
      %v4656 = vpop.f32.mrf.mxu0
      %v4657 = vadd.f32 %v4415, %v4656
      %4658 = vmatmul.bf16.gmra.mxu0 %v4055
      %v4659 = vpop.f32.mrf.mxu0
      %v4660 = vadd.f32 %v4418, %v4659
      %v4661 = vpop.f32.mrf.mxu0
      %v4662 = vadd.f32 %v4420, %v4661
      %4663 = vdwg.mxu0
      %4664 = vmatpush.bf16.msra.mxu0 %v4590
      %4665 = vmatpush.bf16.msra.mxu0 %v4544
      %4666 = vmatpush.bf16.msra.mxu0 %v4542
      %4667 = vmatpush.bf16.msra.mxu0 %v4540
      %4668 = vmatpush.bf16.msra.mxu0 %v4538
      %4669 = vmatpush.bf16.msra.mxu0 %v4536
      %4670 = vmatpush.bf16.msra.mxu0 %v4534
      %4671 = vmatpush.bf16.msra.mxu0 %v4532
      %4672 = vmatmul.bf16.gmra.mxu0 %v4578
      %v4673 = vpop.f32.mrf.mxu0
      %v4674 = vadd.f32 %v4650, %v4673
      %v4675 = vpop.f32.mrf.mxu0
      %v4676 = vadd.f32 %v4652, %v4675
      %4677 = vmatmul.bf16.gmra.mxu0 %v4581
      %v4678 = vpop.f32.mrf.mxu0
      %v4679 = vadd.f32 %v4655, %v4678
      %v4680 = vpop.f32.mrf.mxu0
      %v4681 = vadd.f32 %v4657, %v4680
      %4682 = vmatmul.bf16.gmra.mxu0 %v4584
      %v4683 = vpop.f32.mrf.mxu0
      %v4684 = vadd.f32 %v4660, %v4683
      %v4685 = vpop.f32.mrf.mxu0
      %v4686 = vadd.f32 %v4662, %v4685
      %4687 = vdwg.mxu0
      %s4688 = scalar_lea.vmem %s27, 496
      %v4689 = vld [vmem:[%s4688] sm:$0xff]
      %v4690 = vld [vmem:[%s4688 + $0x8] sm:$0xff]
      %v4691 = vld [vmem:[%s4688 + $0x10] sm:$0xff]
      %v4692 = vld [vmem:[%s4688 + $0x18] sm:$0xff]
      %v4693 = vld [vmem:[%s4688 + $0x20] sm:$0xff]
      %v4694 = vld [vmem:[%s4688 + $0x28] sm:$0xff]
      %v4695 = vld [vmem:[%s4688 + $0x30] sm:$0xff]
      %v4696 = vld [vmem:[%s4688 + $0x38] sm:$0xff]
      %v4697 = vld [vmem:[%s4688 + $0x40] sm:$0xff]
      %v4698 = vld [vmem:[%s4688 + $0x48] sm:$0xff]
      %v4699 = vld [vmem:[%s4688 + $0x50] sm:$0xff]
      %v4700 = vld [vmem:[%s4688 + $0x58] sm:$0xff]
      %v4701 = vld [vmem:[%s4688 + $0x60] sm:$0xff]
      %v4702 = vld [vmem:[%s4688 + $0x68] sm:$0xff]
      %v4703 = vld [vmem:[%s4688 + $0x70] sm:$0xff]
      %v4704 = vld [vmem:[%s4688 + $0x78] sm:$0xff]
      %v4705 = vld [vmem:[%s4688 + $0x80] sm:$0xff]
      %v4706 = vld [vmem:[%s4688 + $0x88] sm:$0xff]
      %v4707 = vld [vmem:[%s4688 + $0x90] sm:$0xff]
      %v4708 = vld [vmem:[%s4688 + $0x98] sm:$0xff]
      %v4709 = vld [vmem:[%s4688 + $0xa0] sm:$0xff]
      %v4710 = vld [vmem:[%s4688 + $0xa8] sm:$0xff]
      %v4711 = vld [vmem:[%s4688 + $0xb0] sm:$0xff]
      %v4712 = vld [vmem:[%s4688 + $0xb8] sm:$0xff]
      %v4713 = vld [vmem:[%s4688 + $0xc0] sm:$0xff]
      %v4714 = vld [vmem:[%s4688 + $0xc8] sm:$0xff]
      %v4715 = vld [vmem:[%s4688 + $0xd0] sm:$0xff]
      %v4716 = vld [vmem:[%s4688 + $0xd8] sm:$0xff]
      %v4717 = vld [vmem:[%s4688 + $0xe0] sm:$0xff]
      %v4718 = vld [vmem:[%s4688 + $0xe8] sm:$0xff]
      %v4719 = vld [vmem:[%s4688 + $0xf0] sm:$0x33]
      %v4751 = vunpack.c.l.b16 %v4689
      %v4752 = vunpack.c.h.b16 %v4689
      %v4753 = vunpack.c.l.b16 %v4690
      %v4754 = vunpack.c.h.b16 %v4690
      %v4755 = vunpack.c.l.b16 %v4691
      %v4756 = vunpack.c.h.b16 %v4691
      %v4757 = vunpack.c.l.b16 %v4692
      %v4758 = vunpack.c.h.b16 %v4692
      %v4759 = vunpack.c.l.b16 %v4693
      %v4760 = vunpack.c.h.b16 %v4693
      %v4761 = vunpack.c.l.b16 %v4694
      %v4762 = vunpack.c.h.b16 %v4694
      %v4763 = vunpack.c.l.b16 %v4695
      %v4764 = vunpack.c.h.b16 %v4695
      %v4765 = vunpack.c.l.b16 %v4696
      %v4766 = vunpack.c.h.b16 %v4696
      %v4767 = vunpack.c.l.b16 %v4697
      %v4768 = vunpack.c.h.b16 %v4697
      %v4769 = vunpack.c.l.b16 %v4698
      %v4770 = vunpack.c.h.b16 %v4698
      %v4771 = vunpack.c.l.b16 %v4699
      %v4772 = vunpack.c.h.b16 %v4699
      %v4773 = vunpack.c.l.b16 %v4700
      %v4774 = vunpack.c.h.b16 %v4700
      %v4775 = vunpack.c.l.b16 %v4701
      %v4776 = vunpack.c.h.b16 %v4701
      %v4777 = vunpack.c.l.b16 %v4702
      %v4778 = vunpack.c.h.b16 %v4702
      %v4779 = vunpack.c.l.b16 %v4703
      %v4780 = vunpack.c.h.b16 %v4703
      %v4781 = vunpack.c.l.b16 %v4704
      %v4782 = vunpack.c.h.b16 %v4704
      %v4783 = vunpack.c.l.b16 %v4705
      %v4784 = vunpack.c.h.b16 %v4705
      %v4785 = vunpack.c.l.b16 %v4706
      %v4786 = vunpack.c.h.b16 %v4706
      %v4787 = vunpack.c.l.b16 %v4707
      %v4788 = vunpack.c.h.b16 %v4707
      %v4789 = vunpack.c.l.b16 %v4708
      %v4790 = vunpack.c.h.b16 %v4708
      %v4791 = vunpack.c.l.b16 %v4709
      %v4792 = vunpack.c.h.b16 %v4709
      %v4793 = vunpack.c.l.b16 %v4710
      %v4794 = vunpack.c.h.b16 %v4710
      %v4795 = vunpack.c.l.b16 %v4711
      %v4796 = vunpack.c.h.b16 %v4711
      %v4797 = vunpack.c.l.b16 %v4712
      %v4798 = vunpack.c.h.b16 %v4712
      %v4799 = vunpack.c.l.b16 %v4713
      %v4800 = vunpack.c.h.b16 %v4713
      %v4801 = vunpack.c.l.b16 %v4714
      %v4802 = vunpack.c.h.b16 %v4714
      %v4803 = vunpack.c.l.b16 %v4715
      %v4804 = vunpack.c.h.b16 %v4715
      %v4805 = vunpack.c.l.b16 %v4716
      %v4806 = vunpack.c.h.b16 %v4716
      %v4807 = vunpack.c.l.b16 %v4717
      %v4808 = vunpack.c.h.b16 %v4717
      %v4809 = vunpack.c.l.b16 %v4718
      %v4810 = vunpack.c.h.b16 %v4718
      %v4811 = vunpack.c.l.b16 %v4719
      %v4812 = vunpack.c.h.b16 %v4719
      %v4813 = vpack.c.b16 %v4753, %v4751
      %v4814 = vpack.c.b16 %v4754, %v4752
      %v4815 = vpack.c.b16 %v4757, %v4755
      %v4816 = vpack.c.b16 %v4758, %v4756
      %v4817 = vpack.c.b16 %v4761, %v4759
      %v4818 = vpack.c.b16 %v4762, %v4760
      %v4819 = vpack.c.b16 %v4765, %v4763
      %v4820 = vpack.c.b16 %v4766, %v4764
      %v4821 = vpack.c.b16 %v4769, %v4767
      %v4822 = vpack.c.b16 %v4770, %v4768
      %v4823 = vpack.c.b16 %v4773, %v4771
      %v4824 = vpack.c.b16 %v4774, %v4772
      %v4825 = vpack.c.b16 %v4777, %v4775
      %v4826 = vpack.c.b16 %v4778, %v4776
      %v4827 = vpack.c.b16 %v4781, %v4779
      %v4828 = vpack.c.b16 %v4782, %v4780
      %v4829 = vpack.c.b16 %v4785, %v4783
      %v4830 = vpack.c.b16 %v4786, %v4784
      %v4831 = vpack.c.b16 %v4789, %v4787
      %v4832 = vpack.c.b16 %v4790, %v4788
      %v4833 = vpack.c.b16 %v4793, %v4791
      %v4834 = vpack.c.b16 %v4794, %v4792
      %v4835 = vpack.c.b16 %v4797, %v4795
      %v4836 = vpack.c.b16 %v4798, %v4796
      %v4837 = vpack.c.b16 %v4801, %v4799
      %v4838 = vpack.c.b16 %v4802, %v4800
      %v4839 = vpack.c.b16 %v4805, %v4803
      %v4840 = vpack.c.b16 %v4806, %v4804
      %v4841 = vpack.c.b16 %v4809, %v4807
      %v4842 = vpack.c.b16 %v4810, %v4808
      %v4843 = vpack.c.b16 %v4811, %v4811
      %v4844 = vpack.c.b16 %v4812, %v4812
      %v4876 = vsel %vm4313, %v4077, 0
      %v4879 = vsel %vm4313, %v4083, 0
      %v4882 = vsel %vm4313, %v4091, 0
      %v4885 = vsel %vm1257, %v4843, 0
      %v4888 = vsel %vm1257, %v4844, 0
      %4890 = vmatpush.bf16.msra.mxu0 %v4827
      %4891 = vmatpush.bf16.msra.mxu0 %v4825
      %4892 = vmatpush.bf16.msra.mxu0 %v4823
      %4893 = vmatpush.bf16.msra.mxu0 %v4821
      %4894 = vmatpush.bf16.msra.mxu0 %v4819
      %4895 = vmatpush.bf16.msra.mxu0 %v4817
      %4896 = vmatpush.bf16.msra.mxu0 %v4815
      %4897 = vmatpush.bf16.msra.mxu0 %v4813
      %4898 = vmatmul.bf16.gmra.mxu0 %v4073
      %v4899 = vpop.f32.mrf.mxu0
      %v4900 = vadd.f32 0.0, %v4899
      %v4901 = vpop.f32.mrf.mxu0
      %v4902 = vadd.f32 0.0, %v4901
      %4903 = vmatmul.bf16.gmra.mxu0 %v4080
      %v4904 = vpop.f32.mrf.mxu0
      %v4905 = vadd.f32 0.0, %v4904
      %v4906 = vpop.f32.mrf.mxu0
      %v4907 = vadd.f32 0.0, %v4906
      %4908 = vmatmul.bf16.gmra.mxu0 %v4090
      %v4909 = vpop.f32.mrf.mxu0
      %v4910 = vadd.f32 0.0, %v4909
      %v4911 = vpop.f32.mrf.mxu0
      %v4912 = vadd.f32 0.0, %v4911
      %4913 = vdwg.mxu0
      %4914 = vmatpush.bf16.msra.mxu0 %v4885
      %4915 = vmatpush.bf16.msra.mxu0 %v4841
      %4916 = vmatpush.bf16.msra.mxu0 %v4839
      %4917 = vmatpush.bf16.msra.mxu0 %v4837
      %4918 = vmatpush.bf16.msra.mxu0 %v4835
      %4919 = vmatpush.bf16.msra.mxu0 %v4833
      %4920 = vmatpush.bf16.msra.mxu0 %v4831
      %4921 = vmatpush.bf16.msra.mxu0 %v4829
      %4922 = vmatmul.bf16.gmra.mxu0 %v4876
      %v4923 = vpop.f32.mrf.mxu0
      %v4924 = vadd.f32 %v4900, %v4923
      %v4925 = vpop.f32.mrf.mxu0
      %v4926 = vadd.f32 %v4902, %v4925
      %4927 = vmatmul.bf16.gmra.mxu0 %v4879
      %v4928 = vpop.f32.mrf.mxu0
      %v4929 = vadd.f32 %v4905, %v4928
      %v4930 = vpop.f32.mrf.mxu0
      %v4931 = vadd.f32 %v4907, %v4930
      %4932 = vmatmul.bf16.gmra.mxu0 %v4882
      %v4933 = vpop.f32.mrf.mxu0
      %v4934 = vadd.f32 %v4910, %v4933
      %v4935 = vpop.f32.mrf.mxu0
      %v4936 = vadd.f32 %v4912, %v4935
      %4937 = vdwg.mxu0
      %4938 = vmatpush.bf16.msra.mxu0 %v4828
      %4939 = vmatpush.bf16.msra.mxu0 %v4826
      %4940 = vmatpush.bf16.msra.mxu0 %v4824
      %4941 = vmatpush.bf16.msra.mxu0 %v4822
      %4942 = vmatpush.bf16.msra.mxu0 %v4820
      %4943 = vmatpush.bf16.msra.mxu0 %v4818
      %4944 = vmatpush.bf16.msra.mxu0 %v4816
      %4945 = vmatpush.bf16.msra.mxu0 %v4814
      %4946 = vmatmul.bf16.gmra.mxu0 %v4073
      %v4947 = vpop.f32.mrf.mxu0
      %v4948 = vadd.f32 0.0, %v4947
      %v4949 = vpop.f32.mrf.mxu0
      %v4950 = vadd.f32 0.0, %v4949
      %4951 = vmatmul.bf16.gmra.mxu0 %v4080
      %v4952 = vpop.f32.mrf.mxu0
      %v4953 = vadd.f32 0.0, %v4952
      %v4954 = vpop.f32.mrf.mxu0
      %v4955 = vadd.f32 0.0, %v4954
      %4956 = vmatmul.bf16.gmra.mxu0 %v4090
      %v4957 = vpop.f32.mrf.mxu0
      %v4958 = vadd.f32 0.0, %v4957
      %v4959 = vpop.f32.mrf.mxu0
      %v4960 = vadd.f32 0.0, %v4959
      %4961 = vdwg.mxu0
      %4962 = vmatpush.bf16.msra.mxu0 %v4888
      %4963 = vmatpush.bf16.msra.mxu0 %v4842
      %4964 = vmatpush.bf16.msra.mxu0 %v4840
      %4965 = vmatpush.bf16.msra.mxu0 %v4838
      %4966 = vmatpush.bf16.msra.mxu0 %v4836
      %4967 = vmatpush.bf16.msra.mxu0 %v4834
      %4968 = vmatpush.bf16.msra.mxu0 %v4832
      %4969 = vmatpush.bf16.msra.mxu0 %v4830
      %4970 = vmatmul.bf16.gmra.mxu0 %v4876
      %v4971 = vpop.f32.mrf.mxu0
      %v4972 = vadd.f32 %v4948, %v4971
      %v4973 = vpop.f32.mrf.mxu0
      %v4974 = vadd.f32 %v4950, %v4973
      %4975 = vmatmul.bf16.gmra.mxu0 %v4879
      %v4976 = vpop.f32.mrf.mxu0
      %v4977 = vadd.f32 %v4953, %v4976
      %v4978 = vpop.f32.mrf.mxu0
      %v4979 = vadd.f32 %v4955, %v4978
      %4980 = vmatmul.bf16.gmra.mxu0 %v4882
      %v4981 = vpop.f32.mrf.mxu0
      %v4982 = vadd.f32 %v4958, %v4981
      %v4983 = vpop.f32.mrf.mxu0
      %v4984 = vadd.f32 %v4960, %v4983
      %4985 = vdwg.mxu0
      %v4986 = vadd.f32 %v4626, %v4924
      %v4987 = vadd.f32 %v4674, %v4972
      %v4988 = vadd.f32 %v4628, %v4926
      %v4989 = vadd.f32 %v4676, %v4974
      %v4990 = vadd.f32 %v4631, %v4929
      %v4991 = vadd.f32 %v4679, %v4977
      %v4992 = vadd.f32 %v4633, %v4931
      %v4993 = vadd.f32 %v4681, %v4979
      %v4994 = vadd.f32 %v4636, %v4934
      %v4995 = vadd.f32 %v4684, %v4982
      %v4996 = vadd.f32 %v4638, %v4936
      %v4997 = vadd.f32 %v4686, %v4984
      %v4998 = vld [vmem:[%s29] sm:$0x3]
      %v5000 = vperm.slane %v4998, 0
      %v5001 = vperm.slane %v4998, 1
      %v5004 = vadd.f32 %v4986, %v5000
      %v5005 = vadd.f32 %v4987, %v5001
      %v5006 = vadd.f32 %v4988, %v5000
      %v5007 = vadd.f32 %v4989, %v5001
      %v5008 = vadd.f32 %v4990, %v5000
      %v5009 = vadd.f32 %v4991, %v5001
      %v5010 = vadd.f32 %v4992, %v5000
      %v5011 = vadd.f32 %v4993, %v5001
      %v5012 = vadd.f32 %v4994, %v5000
      %v5013 = vadd.f32 %v4995, %v5001
      %v5014 = vadd.f32 %v4996, %v5000
      %v5015 = vadd.f32 %v4997, %v5001
      %v5016 = vmax.f32 %v5004, 0.0
      %v5017 = vmax.f32 %v5005, 0.0
      %v5018 = vmax.f32 %v5006, 0.0
      %v5019 = vmax.f32 %v5007, 0.0
      %v5020 = vmax.f32 %v5008, 0.0
      %v5021 = vmax.f32 %v5009, 0.0
      %v5022 = vmax.f32 %v5010, 0.0
      %v5023 = vmax.f32 %v5011, 0.0
      %v5024 = vmax.f32 %v5012, 0.0
      %v5025 = vmax.f32 %v5013, 0.0
      %v5026 = vmax.f32 %v5014, 0.0
      %v5027 = vmax.f32 %v5015, 0.0
      %v5028 = vsel %vm1387, %v5016, 0.0
      %v5029 = vsel %vm1387, %v5017, 0.0
      %v5030 = vsel %vm1388, %v5018, 0.0
      %v5031 = vsel %vm1388, %v5019, 0.0
      %v5032 = vsel %vm1389, %v5020, 0.0
      %v5033 = vsel %vm1389, %v5021, 0.0
      %v5034 = vsel %vm1390, %v5022, 0.0
      %v5035 = vsel %vm1390, %v5023, 0.0
      %v5036 = vsel %vm1391, %v5024, 0.0
      %v5037 = vsel %vm1391, %v5025, 0.0
      %v5038 = vsel %vm1392, %v5026, 0.0
      %v5039 = vsel %vm1392, %v5027, 0.0
      %v5040 = vpack.c.bf16 %v5029, %v5028
      %v5041 = vpack.c.bf16 %v5031, %v5030
      %v5042 = vpack.c.bf16 %v5033, %v5032
      %v5043 = vpack.c.bf16 %v5035, %v5034
      %v5044 = vpack.c.bf16 %v5037, %v5036
      %v5045 = vpack.c.bf16 %v5039, %v5038
      %v5052 = vunpack.c.l.b16 %v5040
      %v5053 = vunpack.c.h.b16 %v5040
      %v5054 = vunpack.c.l.b16 %v5041
      %v5055 = vunpack.c.h.b16 %v5041
      %v5056 = vunpack.c.l.b16 %v5042
      %v5057 = vunpack.c.h.b16 %v5042
      %v5058 = vunpack.c.l.b16 %v5043
      %v5059 = vunpack.c.h.b16 %v5043
      %v5060 = vunpack.c.l.b16 %v5044
      %v5061 = vunpack.c.h.b16 %v5044
      %v5062 = vunpack.c.l.b16 %v5045
      %v5063 = vunpack.c.h.b16 %v5045
      %v5064 = vpack.c.b16 %v5054, %v5052
      %v5065 = vpack.c.b16 %v5055, %v5053
      %v5066 = vpack.c.b16 %v5058, %v5056
      %v5067 = vpack.c.b16 %v5059, %v5057
      %v5068 = vpack.c.b16 %v5062, %v5060
      %v5069 = vpack.c.b16 %v5063, %v5061
      %v5071 = vshrl.u32 %v5064, 16
      %v5073 = vrot.slane %v5071, 7
      %v5074 = vshll.u32 %v5064, 16
      %v5076 = vor.u32 %v5073, %v5074
      %v5078 = vshrl.u32 %v5065, 16
      %v5080 = vrot.slane %v5078, 7
      %v5081 = vshll.u32 %v5065, 16
      %v5083 = vor.u32 %v5080, %v5081
      %v5085 = vshrl.u32 %v5066, 16
      %v5087 = vrot.slane %v5085, 7
      %v5088 = vshll.u32 %v5066, 16
      %v5090 = vor.u32 %v5087, %v5088
      %v5091 = vsel %vm1206, %v5073, %v5090
      %v5093 = vshrl.u32 %v5067, 16
      %v5095 = vrot.slane %v5093, 7
      %v5096 = vshll.u32 %v5067, 16
      %v5098 = vor.u32 %v5095, %v5096
      %v5099 = vsel %vm1206, %v5080, %v5098
      %v5101 = vshrl.u32 %v5068, 16
      %v5103 = vrot.slane %v5101, 7
      %v5104 = vshll.u32 %v5068, 16
      %v5106 = vor.u32 %v5103, %v5104
      %v5107 = vsel %vm1206, %v5087, %v5106
      %v5109 = vshrl.u32 %v5069, 16
      %v5111 = vrot.slane %v5109, 7
      %v5112 = vshll.u32 %v5069, 16
      %v5114 = vor.u32 %v5111, %v5112
      %v5115 = vsel %vm1206, %v5095, %v5114
      %v5120 = vsel %vm1232, 0, %v5076
      %v5121 = vsel %vm1232, 0, %v5083
      %v5122 = vrot.slane %v5074, 1
      %v5123 = vor.u32 %v5071, %v5122
      %v5124 = vrot.slane %v5088, 1
      %v5125 = vsel %vm1234, %v5123, %v5124
      %v5126 = vrot.slane %v5081, 1
      %v5127 = vor.u32 %v5078, %v5126
      %v5128 = vrot.slane %v5096, 1
      %v5129 = vsel %vm1234, %v5127, %v5128
      %v5130 = vor.u32 %v5085, %v5124
      %v5131 = vrot.slane %v5104, 1
      %v5132 = vsel %vm1234, %v5130, %v5131
      %v5133 = vor.u32 %v5093, %v5128
      %v5134 = vrot.slane %v5112, 1
      %v5135 = vsel %vm1234, %v5133, %v5134
      %v5136 = vor.u32 %v5101, %v5131
      %v5137 = vor.u32 %v5109, %v5134
      %v5142 = vsel %vm1245, %v5136, 0
      %v5143 = vsel %vm1245, %v5137, 0
      %v5144 = vld [vmem:[%s31] sm:$0xff]
      %v5145 = vld [vmem:[%s31 + $0x8] sm:$0xff]
      %v5146 = vld [vmem:[%s31 + $0x10] sm:$0xff]
      %v5147 = vld [vmem:[%s31 + $0x18] sm:$0xff]
      %v5148 = vld [vmem:[%s31 + $0x20] sm:$0xff]
      %v5149 = vld [vmem:[%s31 + $0x28] sm:$0xff]
      %v5150 = vld [vmem:[%s31 + $0x30] sm:$0xff]
      %v5151 = vld [vmem:[%s31 + $0x38] sm:$0xff]
      %v5152 = vld [vmem:[%s31 + $0x40] sm:$0xff]
      %v5153 = vld [vmem:[%s31 + $0x48] sm:$0xff]
      %v5154 = vld [vmem:[%s31 + $0x50] sm:$0xff]
      %v5155 = vld [vmem:[%s31 + $0x58] sm:$0xff]
      %v5156 = vld [vmem:[%s31 + $0x60] sm:$0xff]
      %v5157 = vld [vmem:[%s31 + $0x68] sm:$0xff]
      %v5158 = vld [vmem:[%s31 + $0x70] sm:$0xff]
      %v5159 = vld [vmem:[%s31 + $0x78] sm:$0xff]
      %v5160 = vld [vmem:[%s31 + $0x80] sm:$0xff]
      %v5161 = vld [vmem:[%s31 + $0x88] sm:$0xff]
      %v5162 = vld [vmem:[%s31 + $0x90] sm:$0xff]
      %v5163 = vld [vmem:[%s31 + $0x98] sm:$0xff]
      %v5164 = vld [vmem:[%s31 + $0xa0] sm:$0xff]
      %v5165 = vld [vmem:[%s31 + $0xa8] sm:$0xff]
      %v5166 = vld [vmem:[%s31 + $0xb0] sm:$0xff]
      %v5167 = vld [vmem:[%s31 + $0xb8] sm:$0xff]
      %v5168 = vld [vmem:[%s31 + $0xc0] sm:$0xff]
      %v5169 = vld [vmem:[%s31 + $0xc8] sm:$0xff]
      %v5170 = vld [vmem:[%s31 + $0xd0] sm:$0xff]
      %v5171 = vld [vmem:[%s31 + $0xd8] sm:$0xff]
      %v5172 = vld [vmem:[%s31 + $0xe0] sm:$0xff]
      %v5173 = vld [vmem:[%s31 + $0xe8] sm:$0xff]
      %v5174 = vld [vmem:[%s31 + $0xf0] sm:$0x33]
      %s5175 = scalar_lea.vmem %s31, 248
      %v5176 = vld [vmem:[%s5175] sm:$0xff]
      %v5177 = vld [vmem:[%s5175 + $0x8] sm:$0xff]
      %v5178 = vld [vmem:[%s5175 + $0x10] sm:$0xff]
      %v5179 = vld [vmem:[%s5175 + $0x18] sm:$0xff]
      %v5180 = vld [vmem:[%s5175 + $0x20] sm:$0xff]
      %v5181 = vld [vmem:[%s5175 + $0x28] sm:$0xff]
      %v5182 = vld [vmem:[%s5175 + $0x30] sm:$0xff]
      %v5183 = vld [vmem:[%s5175 + $0x38] sm:$0xff]
      %v5184 = vld [vmem:[%s5175 + $0x40] sm:$0xff]
      %v5185 = vld [vmem:[%s5175 + $0x48] sm:$0xff]
      %v5186 = vld [vmem:[%s5175 + $0x50] sm:$0xff]
      %v5187 = vld [vmem:[%s5175 + $0x58] sm:$0xff]
      %v5188 = vld [vmem:[%s5175 + $0x60] sm:$0xff]
      %v5189 = vld [vmem:[%s5175 + $0x68] sm:$0xff]
      %v5190 = vld [vmem:[%s5175 + $0x70] sm:$0xff]
      %v5191 = vld [vmem:[%s5175 + $0x78] sm:$0xff]
      %v5192 = vld [vmem:[%s5175 + $0x80] sm:$0xff]
      %v5193 = vld [vmem:[%s5175 + $0x88] sm:$0xff]
      %v5194 = vld [vmem:[%s5175 + $0x90] sm:$0xff]
      %v5195 = vld [vmem:[%s5175 + $0x98] sm:$0xff]
      %v5196 = vld [vmem:[%s5175 + $0xa0] sm:$0xff]
      %v5197 = vld [vmem:[%s5175 + $0xa8] sm:$0xff]
      %v5198 = vld [vmem:[%s5175 + $0xb0] sm:$0xff]
      %v5199 = vld [vmem:[%s5175 + $0xb8] sm:$0xff]
      %v5200 = vld [vmem:[%s5175 + $0xc0] sm:$0xff]
      %v5201 = vld [vmem:[%s5175 + $0xc8] sm:$0xff]
      %v5202 = vld [vmem:[%s5175 + $0xd0] sm:$0xff]
      %v5203 = vld [vmem:[%s5175 + $0xd8] sm:$0xff]
      %v5204 = vld [vmem:[%s5175 + $0xe0] sm:$0xff]
      %v5205 = vld [vmem:[%s5175 + $0xe8] sm:$0xff]
      %v5206 = vld [vmem:[%s5175 + $0xf0] sm:$0x33]
      %v5241 = vunpack.c.l.b16 %v5176
      %v5242 = vunpack.c.h.b16 %v5176
      %v5243 = vunpack.c.l.b16 %v5177
      %v5244 = vunpack.c.h.b16 %v5177
      %v5245 = vunpack.c.l.b16 %v5178
      %v5246 = vunpack.c.h.b16 %v5178
      %v5247 = vunpack.c.l.b16 %v5179
      %v5248 = vunpack.c.h.b16 %v5179
      %v5249 = vunpack.c.l.b16 %v5180
      %v5250 = vunpack.c.h.b16 %v5180
      %v5251 = vunpack.c.l.b16 %v5181
      %v5252 = vunpack.c.h.b16 %v5181
      %v5253 = vunpack.c.l.b16 %v5182
      %v5254 = vunpack.c.h.b16 %v5182
      %v5255 = vunpack.c.l.b16 %v5183
      %v5256 = vunpack.c.h.b16 %v5183
      %v5257 = vunpack.c.l.b16 %v5184
      %v5258 = vunpack.c.h.b16 %v5184
      %v5259 = vunpack.c.l.b16 %v5185
      %v5260 = vunpack.c.h.b16 %v5185
      %v5261 = vunpack.c.l.b16 %v5186
      %v5262 = vunpack.c.h.b16 %v5186
      %v5263 = vunpack.c.l.b16 %v5187
      %v5264 = vunpack.c.h.b16 %v5187
      %v5265 = vunpack.c.l.b16 %v5188
      %v5266 = vunpack.c.h.b16 %v5188
      %v5267 = vunpack.c.l.b16 %v5189
      %v5268 = vunpack.c.h.b16 %v5189
      %v5269 = vunpack.c.l.b16 %v5190
      %v5270 = vunpack.c.h.b16 %v5190
      %v5271 = vunpack.c.l.b16 %v5191
      %v5272 = vunpack.c.h.b16 %v5191
      %v5273 = vunpack.c.l.b16 %v5192
      %v5274 = vunpack.c.h.b16 %v5192
      %v5275 = vunpack.c.l.b16 %v5193
      %v5276 = vunpack.c.h.b16 %v5193
      %v5277 = vunpack.c.l.b16 %v5194
      %v5278 = vunpack.c.h.b16 %v5194
      %v5279 = vunpack.c.l.b16 %v5195
      %v5280 = vunpack.c.h.b16 %v5195
      %v5281 = vunpack.c.l.b16 %v5196
      %v5282 = vunpack.c.h.b16 %v5196
      %v5283 = vunpack.c.l.b16 %v5197
      %v5284 = vunpack.c.h.b16 %v5197
      %v5285 = vunpack.c.l.b16 %v5198
      %v5286 = vunpack.c.h.b16 %v5198
      %v5287 = vunpack.c.l.b16 %v5199
      %v5288 = vunpack.c.h.b16 %v5199
      %v5289 = vunpack.c.l.b16 %v5200
      %v5290 = vunpack.c.h.b16 %v5200
      %v5291 = vunpack.c.l.b16 %v5201
      %v5292 = vunpack.c.h.b16 %v5201
      %v5293 = vunpack.c.l.b16 %v5202
      %v5294 = vunpack.c.h.b16 %v5202
      %v5295 = vunpack.c.l.b16 %v5203
      %v5296 = vunpack.c.h.b16 %v5203
      %v5297 = vunpack.c.l.b16 %v5204
      %v5298 = vunpack.c.h.b16 %v5204
      %v5299 = vunpack.c.l.b16 %v5205
      %v5300 = vunpack.c.h.b16 %v5205
      %v5301 = vunpack.c.l.b16 %v5206
      %v5302 = vunpack.c.h.b16 %v5206
      %v5303 = vpack.c.b16 %v5243, %v5241
      %v5304 = vpack.c.b16 %v5244, %v5242
      %v5305 = vpack.c.b16 %v5247, %v5245
      %v5306 = vpack.c.b16 %v5248, %v5246
      %v5307 = vpack.c.b16 %v5251, %v5249
      %v5308 = vpack.c.b16 %v5252, %v5250
      %v5309 = vpack.c.b16 %v5255, %v5253
      %v5310 = vpack.c.b16 %v5256, %v5254
      %v5311 = vpack.c.b16 %v5259, %v5257
      %v5312 = vpack.c.b16 %v5260, %v5258
      %v5313 = vpack.c.b16 %v5263, %v5261
      %v5314 = vpack.c.b16 %v5264, %v5262
      %v5315 = vpack.c.b16 %v5267, %v5265
      %v5316 = vpack.c.b16 %v5268, %v5266
      %v5317 = vpack.c.b16 %v5271, %v5269
      %v5318 = vpack.c.b16 %v5272, %v5270
      %v5319 = vpack.c.b16 %v5275, %v5273
      %v5320 = vpack.c.b16 %v5276, %v5274
      %v5321 = vpack.c.b16 %v5279, %v5277
      %v5322 = vpack.c.b16 %v5280, %v5278
      %v5323 = vpack.c.b16 %v5283, %v5281
      %v5324 = vpack.c.b16 %v5284, %v5282
      %v5325 = vpack.c.b16 %v5287, %v5285
      %v5326 = vpack.c.b16 %v5288, %v5286
      %v5327 = vpack.c.b16 %v5291, %v5289
      %v5328 = vpack.c.b16 %v5292, %v5290
      %v5329 = vpack.c.b16 %v5295, %v5293
      %v5330 = vpack.c.b16 %v5296, %v5294
      %v5331 = vpack.c.b16 %v5299, %v5297
      %v5332 = vpack.c.b16 %v5300, %v5298
      %v5333 = vpack.c.b16 %v5301, %v5301
      %v5334 = vpack.c.b16 %v5302, %v5302
      %v5365 = vsel %vm4313, %v5065, 0
      %v5367 = vsel %vm4313, %v5067, 0
      %v5369 = vsel %vm4313, %v5069, 0
      %v5372 = vsel %vm1257, %v5333, 0
      %v5375 = vsel %vm1257, %v5334, 0
      %5377 = vmatpush.bf16.msra.mxu0 %v5317
      %5378 = vmatpush.bf16.msra.mxu0 %v5315
      %5379 = vmatpush.bf16.msra.mxu0 %v5313
      %5380 = vmatpush.bf16.msra.mxu0 %v5311
      %5381 = vmatpush.bf16.msra.mxu0 %v5309
      %5382 = vmatpush.bf16.msra.mxu0 %v5307
      %5383 = vmatpush.bf16.msra.mxu0 %v5305
      %5384 = vmatpush.bf16.msra.mxu0 %v5303
      %5385 = vmatmul.bf16.gmra.mxu0 %v5064
      %v5386 = vpop.f32.mrf.mxu0
      %v5387 = vadd.f32 0.0, %v5386
      %v5388 = vpop.f32.mrf.mxu0
      %v5389 = vadd.f32 0.0, %v5388
      %5390 = vmatmul.bf16.gmra.mxu0 %v5066
      %v5391 = vpop.f32.mrf.mxu0
      %v5392 = vadd.f32 0.0, %v5391
      %v5393 = vpop.f32.mrf.mxu0
      %v5394 = vadd.f32 0.0, %v5393
      %5395 = vmatmul.bf16.gmra.mxu0 %v5068
      %v5396 = vpop.f32.mrf.mxu0
      %v5397 = vadd.f32 0.0, %v5396
      %v5398 = vpop.f32.mrf.mxu0
      %v5399 = vadd.f32 0.0, %v5398
      %5400 = vdwg.mxu0
      %5401 = vmatpush.bf16.msra.mxu0 %v5372
      %5402 = vmatpush.bf16.msra.mxu0 %v5331
      %5403 = vmatpush.bf16.msra.mxu0 %v5329
      %5404 = vmatpush.bf16.msra.mxu0 %v5327
      %5405 = vmatpush.bf16.msra.mxu0 %v5325
      %5406 = vmatpush.bf16.msra.mxu0 %v5323
      %5407 = vmatpush.bf16.msra.mxu0 %v5321
      %5408 = vmatpush.bf16.msra.mxu0 %v5319
      %5409 = vmatmul.bf16.gmra.mxu0 %v5365
      %v5410 = vpop.f32.mrf.mxu0
      %v5411 = vadd.f32 %v5387, %v5410
      %v5412 = vpop.f32.mrf.mxu0
      %v5413 = vadd.f32 %v5389, %v5412
      %5414 = vmatmul.bf16.gmra.mxu0 %v5367
      %v5415 = vpop.f32.mrf.mxu0
      %v5416 = vadd.f32 %v5392, %v5415
      %v5417 = vpop.f32.mrf.mxu0
      %v5418 = vadd.f32 %v5394, %v5417
      %5419 = vmatmul.bf16.gmra.mxu0 %v5369
      %v5420 = vpop.f32.mrf.mxu0
      %v5421 = vadd.f32 %v5397, %v5420
      %v5422 = vpop.f32.mrf.mxu0
      %v5423 = vadd.f32 %v5399, %v5422
      %5424 = vdwg.mxu0
      %5425 = vmatpush.bf16.msra.mxu0 %v5318
      %5426 = vmatpush.bf16.msra.mxu0 %v5316
      %5427 = vmatpush.bf16.msra.mxu0 %v5314
      %5428 = vmatpush.bf16.msra.mxu0 %v5312
      %5429 = vmatpush.bf16.msra.mxu0 %v5310
      %5430 = vmatpush.bf16.msra.mxu0 %v5308
      %5431 = vmatpush.bf16.msra.mxu0 %v5306
      %5432 = vmatpush.bf16.msra.mxu0 %v5304
      %5433 = vmatmul.bf16.gmra.mxu0 %v5064
      %v5434 = vpop.f32.mrf.mxu0
      %v5435 = vadd.f32 0.0, %v5434
      %v5436 = vpop.f32.mrf.mxu0
      %v5437 = vadd.f32 0.0, %v5436
      %5438 = vmatmul.bf16.gmra.mxu0 %v5066
      %v5439 = vpop.f32.mrf.mxu0
      %v5440 = vadd.f32 0.0, %v5439
      %v5441 = vpop.f32.mrf.mxu0
      %v5442 = vadd.f32 0.0, %v5441
      %5443 = vmatmul.bf16.gmra.mxu0 %v5068
      %v5444 = vpop.f32.mrf.mxu0
      %v5445 = vadd.f32 0.0, %v5444
      %v5446 = vpop.f32.mrf.mxu0
      %v5447 = vadd.f32 0.0, %v5446
      %5448 = vdwg.mxu0
      %5449 = vmatpush.bf16.msra.mxu0 %v5375
      %5450 = vmatpush.bf16.msra.mxu0 %v5332
      %5451 = vmatpush.bf16.msra.mxu0 %v5330
      %5452 = vmatpush.bf16.msra.mxu0 %v5328
      %5453 = vmatpush.bf16.msra.mxu0 %v5326
      %5454 = vmatpush.bf16.msra.mxu0 %v5324
      %5455 = vmatpush.bf16.msra.mxu0 %v5322
      %5456 = vmatpush.bf16.msra.mxu0 %v5320
      %5457 = vmatmul.bf16.gmra.mxu0 %v5365
      %v5458 = vpop.f32.mrf.mxu0
      %v5459 = vadd.f32 %v5435, %v5458
      %v5460 = vpop.f32.mrf.mxu0
      %v5461 = vadd.f32 %v5437, %v5460
      %5462 = vmatmul.bf16.gmra.mxu0 %v5367
      %v5463 = vpop.f32.mrf.mxu0
      %v5464 = vadd.f32 %v5440, %v5463
      %v5465 = vpop.f32.mrf.mxu0
      %v5466 = vadd.f32 %v5442, %v5465
      %5467 = vmatmul.bf16.gmra.mxu0 %v5369
      %v5468 = vpop.f32.mrf.mxu0
      %v5469 = vadd.f32 %v5445, %v5468
      %v5470 = vpop.f32.mrf.mxu0
      %v5471 = vadd.f32 %v5447, %v5470
      %5472 = vdwg.mxu0
      %v5504 = vunpack.c.l.b16 %v5144
      %v5505 = vunpack.c.h.b16 %v5144
      %v5506 = vunpack.c.l.b16 %v5145
      %v5507 = vunpack.c.h.b16 %v5145
      %v5508 = vunpack.c.l.b16 %v5146
      %v5509 = vunpack.c.h.b16 %v5146
      %v5510 = vunpack.c.l.b16 %v5147
      %v5511 = vunpack.c.h.b16 %v5147
      %v5512 = vunpack.c.l.b16 %v5148
      %v5513 = vunpack.c.h.b16 %v5148
      %v5514 = vunpack.c.l.b16 %v5149
      %v5515 = vunpack.c.h.b16 %v5149
      %v5516 = vunpack.c.l.b16 %v5150
      %v5517 = vunpack.c.h.b16 %v5150
      %v5518 = vunpack.c.l.b16 %v5151
      %v5519 = vunpack.c.h.b16 %v5151
      %v5520 = vunpack.c.l.b16 %v5152
      %v5521 = vunpack.c.h.b16 %v5152
      %v5522 = vunpack.c.l.b16 %v5153
      %v5523 = vunpack.c.h.b16 %v5153
      %v5524 = vunpack.c.l.b16 %v5154
      %v5525 = vunpack.c.h.b16 %v5154
      %v5526 = vunpack.c.l.b16 %v5155
      %v5527 = vunpack.c.h.b16 %v5155
      %v5528 = vunpack.c.l.b16 %v5156
      %v5529 = vunpack.c.h.b16 %v5156
      %v5530 = vunpack.c.l.b16 %v5157
      %v5531 = vunpack.c.h.b16 %v5157
      %v5532 = vunpack.c.l.b16 %v5158
      %v5533 = vunpack.c.h.b16 %v5158
      %v5534 = vunpack.c.l.b16 %v5159
      %v5535 = vunpack.c.h.b16 %v5159
      %v5536 = vunpack.c.l.b16 %v5160
      %v5537 = vunpack.c.h.b16 %v5160
      %v5538 = vunpack.c.l.b16 %v5161
      %v5539 = vunpack.c.h.b16 %v5161
      %v5540 = vunpack.c.l.b16 %v5162
      %v5541 = vunpack.c.h.b16 %v5162
      %v5542 = vunpack.c.l.b16 %v5163
      %v5543 = vunpack.c.h.b16 %v5163
      %v5544 = vunpack.c.l.b16 %v5164
      %v5545 = vunpack.c.h.b16 %v5164
      %v5546 = vunpack.c.l.b16 %v5165
      %v5547 = vunpack.c.h.b16 %v5165
      %v5548 = vunpack.c.l.b16 %v5166
      %v5549 = vunpack.c.h.b16 %v5166
      %v5550 = vunpack.c.l.b16 %v5167
      %v5551 = vunpack.c.h.b16 %v5167
      %v5552 = vunpack.c.l.b16 %v5168
      %v5553 = vunpack.c.h.b16 %v5168
      %v5554 = vunpack.c.l.b16 %v5169
      %v5555 = vunpack.c.h.b16 %v5169
      %v5556 = vunpack.c.l.b16 %v5170
      %v5557 = vunpack.c.h.b16 %v5170
      %v5558 = vunpack.c.l.b16 %v5171
      %v5559 = vunpack.c.h.b16 %v5171
      %v5560 = vunpack.c.l.b16 %v5172
      %v5561 = vunpack.c.h.b16 %v5172
      %v5562 = vunpack.c.l.b16 %v5173
      %v5563 = vunpack.c.h.b16 %v5173
      %v5564 = vunpack.c.l.b16 %v5174
      %v5565 = vunpack.c.h.b16 %v5174
      %v5566 = vpack.c.b16 %v5506, %v5504
      %v5567 = vpack.c.b16 %v5507, %v5505
      %v5568 = vpack.c.b16 %v5510, %v5508
      %v5569 = vpack.c.b16 %v5511, %v5509
      %v5570 = vpack.c.b16 %v5514, %v5512
      %v5571 = vpack.c.b16 %v5515, %v5513
      %v5572 = vpack.c.b16 %v5518, %v5516
      %v5573 = vpack.c.b16 %v5519, %v5517
      %v5574 = vpack.c.b16 %v5522, %v5520
      %v5575 = vpack.c.b16 %v5523, %v5521
      %v5576 = vpack.c.b16 %v5526, %v5524
      %v5577 = vpack.c.b16 %v5527, %v5525
      %v5578 = vpack.c.b16 %v5530, %v5528
      %v5579 = vpack.c.b16 %v5531, %v5529
      %v5580 = vpack.c.b16 %v5534, %v5532
      %v5581 = vpack.c.b16 %v5535, %v5533
      %v5582 = vpack.c.b16 %v5538, %v5536
      %v5583 = vpack.c.b16 %v5539, %v5537
      %v5584 = vpack.c.b16 %v5542, %v5540
      %v5585 = vpack.c.b16 %v5543, %v5541
      %v5586 = vpack.c.b16 %v5546, %v5544
      %v5587 = vpack.c.b16 %v5547, %v5545
      %v5588 = vpack.c.b16 %v5550, %v5548
      %v5589 = vpack.c.b16 %v5551, %v5549
      %v5590 = vpack.c.b16 %v5554, %v5552
      %v5591 = vpack.c.b16 %v5555, %v5553
      %v5592 = vpack.c.b16 %v5558, %v5556
      %v5593 = vpack.c.b16 %v5559, %v5557
      %v5594 = vpack.c.b16 %v5562, %v5560
      %v5595 = vpack.c.b16 %v5563, %v5561
      %v5596 = vpack.c.b16 %v5564, %v5564
      %v5597 = vpack.c.b16 %v5565, %v5565
      %v5629 = vsel %vm4313, %v5121, 0
      %v5632 = vsel %vm4313, %v5099, 0
      %v5635 = vsel %vm4313, %v5115, 0
      %v5638 = vsel %vm1257, %v5596, 0
      %v5641 = vsel %vm1257, %v5597, 0
      %5643 = vmatpush.bf16.msra.mxu0 %v5580
      %5644 = vmatpush.bf16.msra.mxu0 %v5578
      %5645 = vmatpush.bf16.msra.mxu0 %v5576
      %5646 = vmatpush.bf16.msra.mxu0 %v5574
      %5647 = vmatpush.bf16.msra.mxu0 %v5572
      %5648 = vmatpush.bf16.msra.mxu0 %v5570
      %5649 = vmatpush.bf16.msra.mxu0 %v5568
      %5650 = vmatpush.bf16.msra.mxu0 %v5566
      %5651 = vmatmul.bf16.gmra.mxu0 %v5120
      %v5652 = vpop.f32.mrf.mxu0
      %v5653 = vadd.f32 %v5411, %v5652
      %v5654 = vpop.f32.mrf.mxu0
      %v5655 = vadd.f32 %v5413, %v5654
      %5656 = vmatmul.bf16.gmra.mxu0 %v5091
      %v5657 = vpop.f32.mrf.mxu0
      %v5658 = vadd.f32 %v5416, %v5657
      %v5659 = vpop.f32.mrf.mxu0
      %v5660 = vadd.f32 %v5418, %v5659
      %5661 = vmatmul.bf16.gmra.mxu0 %v5107
      %v5662 = vpop.f32.mrf.mxu0
      %v5663 = vadd.f32 %v5421, %v5662
      %v5664 = vpop.f32.mrf.mxu0
      %v5665 = vadd.f32 %v5423, %v5664
      %5666 = vdwg.mxu0
      %5667 = vmatpush.bf16.msra.mxu0 %v5638
      %5668 = vmatpush.bf16.msra.mxu0 %v5594
      %5669 = vmatpush.bf16.msra.mxu0 %v5592
      %5670 = vmatpush.bf16.msra.mxu0 %v5590
      %5671 = vmatpush.bf16.msra.mxu0 %v5588
      %5672 = vmatpush.bf16.msra.mxu0 %v5586
      %5673 = vmatpush.bf16.msra.mxu0 %v5584
      %5674 = vmatpush.bf16.msra.mxu0 %v5582
      %5675 = vmatmul.bf16.gmra.mxu0 %v5629
      %v5676 = vpop.f32.mrf.mxu0
      %v5677 = vadd.f32 %v5653, %v5676
      %v5678 = vpop.f32.mrf.mxu0
      %v5679 = vadd.f32 %v5655, %v5678
      %5680 = vmatmul.bf16.gmra.mxu0 %v5632
      %v5681 = vpop.f32.mrf.mxu0
      %v5682 = vadd.f32 %v5658, %v5681
      %v5683 = vpop.f32.mrf.mxu0
      %v5684 = vadd.f32 %v5660, %v5683
      %5685 = vmatmul.bf16.gmra.mxu0 %v5635
      %v5686 = vpop.f32.mrf.mxu0
      %v5687 = vadd.f32 %v5663, %v5686
      %v5688 = vpop.f32.mrf.mxu0
      %v5689 = vadd.f32 %v5665, %v5688
      %5690 = vdwg.mxu0
      %5691 = vmatpush.bf16.msra.mxu0 %v5581
      %5692 = vmatpush.bf16.msra.mxu0 %v5579
      %5693 = vmatpush.bf16.msra.mxu0 %v5577
      %5694 = vmatpush.bf16.msra.mxu0 %v5575
      %5695 = vmatpush.bf16.msra.mxu0 %v5573
      %5696 = vmatpush.bf16.msra.mxu0 %v5571
      %5697 = vmatpush.bf16.msra.mxu0 %v5569
      %5698 = vmatpush.bf16.msra.mxu0 %v5567
      %5699 = vmatmul.bf16.gmra.mxu0 %v5120
      %v5700 = vpop.f32.mrf.mxu0
      %v5701 = vadd.f32 %v5459, %v5700
      %v5702 = vpop.f32.mrf.mxu0
      %v5703 = vadd.f32 %v5461, %v5702
      %5704 = vmatmul.bf16.gmra.mxu0 %v5091
      %v5705 = vpop.f32.mrf.mxu0
      %v5706 = vadd.f32 %v5464, %v5705
      %v5707 = vpop.f32.mrf.mxu0
      %v5708 = vadd.f32 %v5466, %v5707
      %5709 = vmatmul.bf16.gmra.mxu0 %v5107
      %v5710 = vpop.f32.mrf.mxu0
      %v5711 = vadd.f32 %v5469, %v5710
      %v5712 = vpop.f32.mrf.mxu0
      %v5713 = vadd.f32 %v5471, %v5712
      %5714 = vdwg.mxu0
      %5715 = vmatpush.bf16.msra.mxu0 %v5641
      %5716 = vmatpush.bf16.msra.mxu0 %v5595
      %5717 = vmatpush.bf16.msra.mxu0 %v5593
      %5718 = vmatpush.bf16.msra.mxu0 %v5591
      %5719 = vmatpush.bf16.msra.mxu0 %v5589
      %5720 = vmatpush.bf16.msra.mxu0 %v5587
      %5721 = vmatpush.bf16.msra.mxu0 %v5585
      %5722 = vmatpush.bf16.msra.mxu0 %v5583
      %5723 = vmatmul.bf16.gmra.mxu0 %v5629
      %v5724 = vpop.f32.mrf.mxu0
      %v5725 = vadd.f32 %v5701, %v5724
      %v5726 = vpop.f32.mrf.mxu0
      %v5727 = vadd.f32 %v5703, %v5726
      %5728 = vmatmul.bf16.gmra.mxu0 %v5632
      %v5729 = vpop.f32.mrf.mxu0
      %v5730 = vadd.f32 %v5706, %v5729
      %v5731 = vpop.f32.mrf.mxu0
      %v5732 = vadd.f32 %v5708, %v5731
      %5733 = vmatmul.bf16.gmra.mxu0 %v5635
      %v5734 = vpop.f32.mrf.mxu0
      %v5735 = vadd.f32 %v5711, %v5734
      %v5736 = vpop.f32.mrf.mxu0
      %v5737 = vadd.f32 %v5713, %v5736
      %5738 = vdwg.mxu0
      %s5739 = scalar_lea.vmem %s31, 496
      %v5740 = vld [vmem:[%s5739] sm:$0xff]
      %v5741 = vld [vmem:[%s5739 + $0x8] sm:$0xff]
      %v5742 = vld [vmem:[%s5739 + $0x10] sm:$0xff]
      %v5743 = vld [vmem:[%s5739 + $0x18] sm:$0xff]
      %v5744 = vld [vmem:[%s5739 + $0x20] sm:$0xff]
      %v5745 = vld [vmem:[%s5739 + $0x28] sm:$0xff]
      %v5746 = vld [vmem:[%s5739 + $0x30] sm:$0xff]
      %v5747 = vld [vmem:[%s5739 + $0x38] sm:$0xff]
      %v5748 = vld [vmem:[%s5739 + $0x40] sm:$0xff]
      %v5749 = vld [vmem:[%s5739 + $0x48] sm:$0xff]
      %v5750 = vld [vmem:[%s5739 + $0x50] sm:$0xff]
      %v5751 = vld [vmem:[%s5739 + $0x58] sm:$0xff]
      %v5752 = vld [vmem:[%s5739 + $0x60] sm:$0xff]
      %v5753 = vld [vmem:[%s5739 + $0x68] sm:$0xff]
      %v5754 = vld [vmem:[%s5739 + $0x70] sm:$0xff]
      %v5755 = vld [vmem:[%s5739 + $0x78] sm:$0xff]
      %v5756 = vld [vmem:[%s5739 + $0x80] sm:$0xff]
      %v5757 = vld [vmem:[%s5739 + $0x88] sm:$0xff]
      %v5758 = vld [vmem:[%s5739 + $0x90] sm:$0xff]
      %v5759 = vld [vmem:[%s5739 + $0x98] sm:$0xff]
      %v5760 = vld [vmem:[%s5739 + $0xa0] sm:$0xff]
      %v5761 = vld [vmem:[%s5739 + $0xa8] sm:$0xff]
      %v5762 = vld [vmem:[%s5739 + $0xb0] sm:$0xff]
      %v5763 = vld [vmem:[%s5739 + $0xb8] sm:$0xff]
      %v5764 = vld [vmem:[%s5739 + $0xc0] sm:$0xff]
      %v5765 = vld [vmem:[%s5739 + $0xc8] sm:$0xff]
      %v5766 = vld [vmem:[%s5739 + $0xd0] sm:$0xff]
      %v5767 = vld [vmem:[%s5739 + $0xd8] sm:$0xff]
      %v5768 = vld [vmem:[%s5739 + $0xe0] sm:$0xff]
      %v5769 = vld [vmem:[%s5739 + $0xe8] sm:$0xff]
      %v5770 = vld [vmem:[%s5739 + $0xf0] sm:$0x33]
      %v5802 = vunpack.c.l.b16 %v5740
      %v5803 = vunpack.c.h.b16 %v5740
      %v5804 = vunpack.c.l.b16 %v5741
      %v5805 = vunpack.c.h.b16 %v5741
      %v5806 = vunpack.c.l.b16 %v5742
      %v5807 = vunpack.c.h.b16 %v5742
      %v5808 = vunpack.c.l.b16 %v5743
      %v5809 = vunpack.c.h.b16 %v5743
      %v5810 = vunpack.c.l.b16 %v5744
      %v5811 = vunpack.c.h.b16 %v5744
      %v5812 = vunpack.c.l.b16 %v5745
      %v5813 = vunpack.c.h.b16 %v5745
      %v5814 = vunpack.c.l.b16 %v5746
      %v5815 = vunpack.c.h.b16 %v5746
      %v5816 = vunpack.c.l.b16 %v5747
      %v5817 = vunpack.c.h.b16 %v5747
      %v5818 = vunpack.c.l.b16 %v5748
      %v5819 = vunpack.c.h.b16 %v5748
      %v5820 = vunpack.c.l.b16 %v5749
      %v5821 = vunpack.c.h.b16 %v5749
      %v5822 = vunpack.c.l.b16 %v5750
      %v5823 = vunpack.c.h.b16 %v5750
      %v5824 = vunpack.c.l.b16 %v5751
      %v5825 = vunpack.c.h.b16 %v5751
      %v5826 = vunpack.c.l.b16 %v5752
      %v5827 = vunpack.c.h.b16 %v5752
      %v5828 = vunpack.c.l.b16 %v5753
      %v5829 = vunpack.c.h.b16 %v5753
      %v5830 = vunpack.c.l.b16 %v5754
      %v5831 = vunpack.c.h.b16 %v5754
      %v5832 = vunpack.c.l.b16 %v5755
      %v5833 = vunpack.c.h.b16 %v5755
      %v5834 = vunpack.c.l.b16 %v5756
      %v5835 = vunpack.c.h.b16 %v5756
      %v5836 = vunpack.c.l.b16 %v5757
      %v5837 = vunpack.c.h.b16 %v5757
      %v5838 = vunpack.c.l.b16 %v5758
      %v5839 = vunpack.c.h.b16 %v5758
      %v5840 = vunpack.c.l.b16 %v5759
      %v5841 = vunpack.c.h.b16 %v5759
      %v5842 = vunpack.c.l.b16 %v5760
      %v5843 = vunpack.c.h.b16 %v5760
      %v5844 = vunpack.c.l.b16 %v5761
      %v5845 = vunpack.c.h.b16 %v5761
      %v5846 = vunpack.c.l.b16 %v5762
      %v5847 = vunpack.c.h.b16 %v5762
      %v5848 = vunpack.c.l.b16 %v5763
      %v5849 = vunpack.c.h.b16 %v5763
      %v5850 = vunpack.c.l.b16 %v5764
      %v5851 = vunpack.c.h.b16 %v5764
      %v5852 = vunpack.c.l.b16 %v5765
      %v5853 = vunpack.c.h.b16 %v5765
      %v5854 = vunpack.c.l.b16 %v5766
      %v5855 = vunpack.c.h.b16 %v5766
      %v5856 = vunpack.c.l.b16 %v5767
      %v5857 = vunpack.c.h.b16 %v5767
      %v5858 = vunpack.c.l.b16 %v5768
      %v5859 = vunpack.c.h.b16 %v5768
      %v5860 = vunpack.c.l.b16 %v5769
      %v5861 = vunpack.c.h.b16 %v5769
      %v5862 = vunpack.c.l.b16 %v5770
      %v5863 = vunpack.c.h.b16 %v5770
      %v5864 = vpack.c.b16 %v5804, %v5802
      %v5865 = vpack.c.b16 %v5805, %v5803
      %v5866 = vpack.c.b16 %v5808, %v5806
      %v5867 = vpack.c.b16 %v5809, %v5807
      %v5868 = vpack.c.b16 %v5812, %v5810
      %v5869 = vpack.c.b16 %v5813, %v5811
      %v5870 = vpack.c.b16 %v5816, %v5814
      %v5871 = vpack.c.b16 %v5817, %v5815
      %v5872 = vpack.c.b16 %v5820, %v5818
      %v5873 = vpack.c.b16 %v5821, %v5819
      %v5874 = vpack.c.b16 %v5824, %v5822
      %v5875 = vpack.c.b16 %v5825, %v5823
      %v5876 = vpack.c.b16 %v5828, %v5826
      %v5877 = vpack.c.b16 %v5829, %v5827
      %v5878 = vpack.c.b16 %v5832, %v5830
      %v5879 = vpack.c.b16 %v5833, %v5831
      %v5880 = vpack.c.b16 %v5836, %v5834
      %v5881 = vpack.c.b16 %v5837, %v5835
      %v5882 = vpack.c.b16 %v5840, %v5838
      %v5883 = vpack.c.b16 %v5841, %v5839
      %v5884 = vpack.c.b16 %v5844, %v5842
      %v5885 = vpack.c.b16 %v5845, %v5843
      %v5886 = vpack.c.b16 %v5848, %v5846
      %v5887 = vpack.c.b16 %v5849, %v5847
      %v5888 = vpack.c.b16 %v5852, %v5850
      %v5889 = vpack.c.b16 %v5853, %v5851
      %v5890 = vpack.c.b16 %v5856, %v5854
      %v5891 = vpack.c.b16 %v5857, %v5855
      %v5892 = vpack.c.b16 %v5860, %v5858
      %v5893 = vpack.c.b16 %v5861, %v5859
      %v5894 = vpack.c.b16 %v5862, %v5862
      %v5895 = vpack.c.b16 %v5863, %v5863
      %v5927 = vsel %vm4313, %v5129, 0
      %v5930 = vsel %vm4313, %v5135, 0
      %v5933 = vsel %vm4313, %v5143, 0
      %v5936 = vsel %vm1257, %v5894, 0
      %v5939 = vsel %vm1257, %v5895, 0
      %5941 = vmatpush.bf16.msra.mxu0 %v5878
      %5942 = vmatpush.bf16.msra.mxu0 %v5876
      %5943 = vmatpush.bf16.msra.mxu0 %v5874
      %5944 = vmatpush.bf16.msra.mxu0 %v5872
      %5945 = vmatpush.bf16.msra.mxu0 %v5870
      %5946 = vmatpush.bf16.msra.mxu0 %v5868
      %5947 = vmatpush.bf16.msra.mxu0 %v5866
      %5948 = vmatpush.bf16.msra.mxu0 %v5864
      %5949 = vmatmul.bf16.gmra.mxu0 %v5125
      %v5950 = vpop.f32.mrf.mxu0
      %v5951 = vadd.f32 0.0, %v5950
      %v5952 = vpop.f32.mrf.mxu0
      %v5953 = vadd.f32 0.0, %v5952
      %5954 = vmatmul.bf16.gmra.mxu0 %v5132
      %v5955 = vpop.f32.mrf.mxu0
      %v5956 = vadd.f32 0.0, %v5955
      %v5957 = vpop.f32.mrf.mxu0
      %v5958 = vadd.f32 0.0, %v5957
      %5959 = vmatmul.bf16.gmra.mxu0 %v5142
      %v5960 = vpop.f32.mrf.mxu0
      %v5961 = vadd.f32 0.0, %v5960
      %v5962 = vpop.f32.mrf.mxu0
      %v5963 = vadd.f32 0.0, %v5962
      %5964 = vdwg.mxu0
      %5965 = vmatpush.bf16.msra.mxu0 %v5936
      %5966 = vmatpush.bf16.msra.mxu0 %v5892
      %5967 = vmatpush.bf16.msra.mxu0 %v5890
      %5968 = vmatpush.bf16.msra.mxu0 %v5888
      %5969 = vmatpush.bf16.msra.mxu0 %v5886
      %5970 = vmatpush.bf16.msra.mxu0 %v5884
      %5971 = vmatpush.bf16.msra.mxu0 %v5882
      %5972 = vmatpush.bf16.msra.mxu0 %v5880
      %5973 = vmatmul.bf16.gmra.mxu0 %v5927
      %v5974 = vpop.f32.mrf.mxu0
      %v5975 = vadd.f32 %v5951, %v5974
      %v5976 = vpop.f32.mrf.mxu0
      %v5977 = vadd.f32 %v5953, %v5976
      %5978 = vmatmul.bf16.gmra.mxu0 %v5930
      %v5979 = vpop.f32.mrf.mxu0
      %v5980 = vadd.f32 %v5956, %v5979
      %v5981 = vpop.f32.mrf.mxu0
      %v5982 = vadd.f32 %v5958, %v5981
      %5983 = vmatmul.bf16.gmra.mxu0 %v5933
      %v5984 = vpop.f32.mrf.mxu0
      %v5985 = vadd.f32 %v5961, %v5984
      %v5986 = vpop.f32.mrf.mxu0
      %v5987 = vadd.f32 %v5963, %v5986
      %5988 = vdwg.mxu0
      %5989 = vmatpush.bf16.msra.mxu0 %v5879
      %5990 = vmatpush.bf16.msra.mxu0 %v5877
      %5991 = vmatpush.bf16.msra.mxu0 %v5875
      %5992 = vmatpush.bf16.msra.mxu0 %v5873
      %5993 = vmatpush.bf16.msra.mxu0 %v5871
      %5994 = vmatpush.bf16.msra.mxu0 %v5869
      %5995 = vmatpush.bf16.msra.mxu0 %v5867
      %5996 = vmatpush.bf16.msra.mxu0 %v5865
      %5997 = vmatmul.bf16.gmra.mxu0 %v5125
      %v5998 = vpop.f32.mrf.mxu0
      %v5999 = vadd.f32 0.0, %v5998
      %v6000 = vpop.f32.mrf.mxu0
      %v6001 = vadd.f32 0.0, %v6000
      %6002 = vmatmul.bf16.gmra.mxu0 %v5132
      %v6003 = vpop.f32.mrf.mxu0
      %v6004 = vadd.f32 0.0, %v6003
      %v6005 = vpop.f32.mrf.mxu0
      %v6006 = vadd.f32 0.0, %v6005
      %6007 = vmatmul.bf16.gmra.mxu0 %v5142
      %v6008 = vpop.f32.mrf.mxu0
      %v6009 = vadd.f32 0.0, %v6008
      %v6010 = vpop.f32.mrf.mxu0
      %v6011 = vadd.f32 0.0, %v6010
      %6012 = vdwg.mxu0
      %6013 = vmatpush.bf16.msra.mxu0 %v5939
      %6014 = vmatpush.bf16.msra.mxu0 %v5893
      %6015 = vmatpush.bf16.msra.mxu0 %v5891
      %6016 = vmatpush.bf16.msra.mxu0 %v5889
      %6017 = vmatpush.bf16.msra.mxu0 %v5887
      %6018 = vmatpush.bf16.msra.mxu0 %v5885
      %6019 = vmatpush.bf16.msra.mxu0 %v5883
      %6020 = vmatpush.bf16.msra.mxu0 %v5881
      %6021 = vmatmul.bf16.gmra.mxu0 %v5927
      %v6022 = vpop.f32.mrf.mxu0
      %v6023 = vadd.f32 %v5999, %v6022
      %v6024 = vpop.f32.mrf.mxu0
      %v6025 = vadd.f32 %v6001, %v6024
      %6026 = vmatmul.bf16.gmra.mxu0 %v5930
      %v6027 = vpop.f32.mrf.mxu0
      %v6028 = vadd.f32 %v6004, %v6027
      %v6029 = vpop.f32.mrf.mxu0
      %v6030 = vadd.f32 %v6006, %v6029
      %6031 = vmatmul.bf16.gmra.mxu0 %v5933
      %v6032 = vpop.f32.mrf.mxu0
      %v6033 = vadd.f32 %v6009, %v6032
      %v6034 = vpop.f32.mrf.mxu0
      %v6035 = vadd.f32 %v6011, %v6034
      %6036 = vdwg.mxu0
      %v6037 = vadd.f32 %v5677, %v5975
      %v6038 = vadd.f32 %v5725, %v6023
      %v6039 = vadd.f32 %v5679, %v5977
      %v6040 = vadd.f32 %v5727, %v6025
      %v6041 = vadd.f32 %v5682, %v5980
      %v6042 = vadd.f32 %v5730, %v6028
      %v6043 = vadd.f32 %v5684, %v5982
      %v6044 = vadd.f32 %v5732, %v6030
      %v6045 = vadd.f32 %v5687, %v5985
      %v6046 = vadd.f32 %v5735, %v6033
      %v6047 = vadd.f32 %v5689, %v5987
      %v6048 = vadd.f32 %v5737, %v6035
      %v6049 = vld [vmem:[%s33] sm:$0x3]
      %v6051 = vperm.slane %v6049, 0
      %v6052 = vperm.slane %v6049, 1
      %v6055 = vadd.f32 %v6037, %v6051
      %v6056 = vadd.f32 %v6038, %v6052
      %v6057 = vadd.f32 %v6039, %v6051
      %v6058 = vadd.f32 %v6040, %v6052
      %v6059 = vadd.f32 %v6041, %v6051
      %v6060 = vadd.f32 %v6042, %v6052
      %v6061 = vadd.f32 %v6043, %v6051
      %v6062 = vadd.f32 %v6044, %v6052
      %v6063 = vadd.f32 %v6045, %v6051
      %v6064 = vadd.f32 %v6046, %v6052
      %v6065 = vadd.f32 %v6047, %v6051
      %v6066 = vadd.f32 %v6048, %v6052
      %v6067 = vmax.f32 %v6055, 0.0
      %v6068 = vmax.f32 %v6056, 0.0
      %v6069 = vmax.f32 %v6057, 0.0
      %v6070 = vmax.f32 %v6058, 0.0
      %v6071 = vmax.f32 %v6059, 0.0
      %v6072 = vmax.f32 %v6060, 0.0
      %v6073 = vmax.f32 %v6061, 0.0
      %v6074 = vmax.f32 %v6062, 0.0
      %v6075 = vmax.f32 %v6063, 0.0
      %v6076 = vmax.f32 %v6064, 0.0
      %v6077 = vmax.f32 %v6065, 0.0
      %v6078 = vmax.f32 %v6066, 0.0
      %v6079 = vsel %vm1387, %v6067, 0.0
      %v6080 = vsel %vm1387, %v6068, 0.0
      %v6081 = vsel %vm1388, %v6069, 0.0
      %v6082 = vsel %vm1388, %v6070, 0.0
      %v6083 = vsel %vm1389, %v6071, 0.0
      %v6084 = vsel %vm1389, %v6072, 0.0
      %v6085 = vsel %vm1390, %v6073, 0.0
      %v6086 = vsel %vm1390, %v6074, 0.0
      %v6087 = vsel %vm1391, %v6075, 0.0
      %v6088 = vsel %vm1391, %v6076, 0.0
      %v6089 = vsel %vm1392, %v6077, 0.0
      %v6090 = vsel %vm1392, %v6078, 0.0
      %v6091 = vpack.c.bf16 %v6080, %v6079
      %v6092 = vpack.c.bf16 %v6082, %v6081
      %v6093 = vpack.c.bf16 %v6084, %v6083
      %v6094 = vpack.c.bf16 %v6086, %v6085
      %v6095 = vpack.c.bf16 %v6088, %v6087
      %v6096 = vpack.c.bf16 %v6090, %v6089
      %v6103 = vunpack.c.l.b16 %v6091
      %v6104 = vunpack.c.h.b16 %v6091
      %v6105 = vunpack.c.l.b16 %v6092
      %v6106 = vunpack.c.h.b16 %v6092
      %v6107 = vunpack.c.l.b16 %v6093
      %v6108 = vunpack.c.h.b16 %v6093
      %v6109 = vunpack.c.l.b16 %v6094
      %v6110 = vunpack.c.h.b16 %v6094
      %v6111 = vunpack.c.l.b16 %v6095
      %v6112 = vunpack.c.h.b16 %v6095
      %v6113 = vunpack.c.l.b16 %v6096
      %v6114 = vunpack.c.h.b16 %v6096
      %v6115 = vpack.c.b16 %v6105, %v6103
      %v6116 = vpack.c.b16 %v6106, %v6104
      %v6117 = vpack.c.b16 %v6109, %v6107
      %v6118 = vpack.c.b16 %v6110, %v6108
      %v6119 = vpack.c.b16 %v6113, %v6111
      %v6120 = vpack.c.b16 %v6114, %v6112
      %v6122 = vshrl.u32 %v6115, 16
      %v6124 = vrot.slane %v6122, 7
      %v6125 = vshll.u32 %v6115, 16
      %v6127 = vor.u32 %v6124, %v6125
      %v6129 = vshrl.u32 %v6116, 16
      %v6131 = vrot.slane %v6129, 7
      %v6132 = vshll.u32 %v6116, 16
      %v6134 = vor.u32 %v6131, %v6132
      %v6136 = vshrl.u32 %v6117, 16
      %v6138 = vrot.slane %v6136, 7
      %v6139 = vshll.u32 %v6117, 16
      %v6141 = vor.u32 %v6138, %v6139
      %v6142 = vsel %vm1206, %v6124, %v6141
      %v6144 = vshrl.u32 %v6118, 16
      %v6146 = vrot.slane %v6144, 7
      %v6147 = vshll.u32 %v6118, 16
      %v6149 = vor.u32 %v6146, %v6147
      %v6150 = vsel %vm1206, %v6131, %v6149
      %v6152 = vshrl.u32 %v6119, 16
      %v6154 = vrot.slane %v6152, 7
      %v6155 = vshll.u32 %v6119, 16
      %v6157 = vor.u32 %v6154, %v6155
      %v6158 = vsel %vm1206, %v6138, %v6157
      %v6160 = vshrl.u32 %v6120, 16
      %v6162 = vrot.slane %v6160, 7
      %v6163 = vshll.u32 %v6120, 16
      %v6165 = vor.u32 %v6162, %v6163
      %v6166 = vsel %vm1206, %v6146, %v6165
      %v6171 = vsel %vm1232, 0, %v6127
      %v6172 = vsel %vm1232, 0, %v6134
      %v6173 = vrot.slane %v6125, 1
      %v6174 = vor.u32 %v6122, %v6173
      %v6175 = vrot.slane %v6139, 1
      %v6176 = vsel %vm1234, %v6174, %v6175
      %v6177 = vrot.slane %v6132, 1
      %v6178 = vor.u32 %v6129, %v6177
      %v6179 = vrot.slane %v6147, 1
      %v6180 = vsel %vm1234, %v6178, %v6179
      %v6181 = vor.u32 %v6136, %v6175
      %v6182 = vrot.slane %v6155, 1
      %v6183 = vsel %vm1234, %v6181, %v6182
      %v6184 = vor.u32 %v6144, %v6179
      %v6185 = vrot.slane %v6163, 1
      %v6186 = vsel %vm1234, %v6184, %v6185
      %v6187 = vor.u32 %v6152, %v6182
      %v6188 = vor.u32 %v6160, %v6185
      %v6193 = vsel %vm1245, %v6187, 0
      %v6194 = vsel %vm1245, %v6188, 0
      %v6195 = vld [vmem:[%s35] sm:$0xff]
      %v6196 = vld [vmem:[%s35 + $0x8] sm:$0xff]
      %v6197 = vld [vmem:[%s35 + $0x10] sm:$0xff]
      %v6198 = vld [vmem:[%s35 + $0x18] sm:$0xff]
      %v6199 = vld [vmem:[%s35 + $0x20] sm:$0xff]
      %v6200 = vld [vmem:[%s35 + $0x28] sm:$0xff]
      %v6201 = vld [vmem:[%s35 + $0x30] sm:$0xff]
      %v6202 = vld [vmem:[%s35 + $0x38] sm:$0xff]
      %v6203 = vld [vmem:[%s35 + $0x40] sm:$0xff]
      %v6204 = vld [vmem:[%s35 + $0x48] sm:$0xff]
      %v6205 = vld [vmem:[%s35 + $0x50] sm:$0xff]
      %v6206 = vld [vmem:[%s35 + $0x58] sm:$0xff]
      %v6207 = vld [vmem:[%s35 + $0x60] sm:$0xff]
      %v6208 = vld [vmem:[%s35 + $0x68] sm:$0xff]
      %v6209 = vld [vmem:[%s35 + $0x70] sm:$0xff]
      %v6210 = vld [vmem:[%s35 + $0x78] sm:$0xff]
      %v6211 = vld [vmem:[%s35 + $0x80] sm:$0xff]
      %v6212 = vld [vmem:[%s35 + $0x88] sm:$0xff]
      %v6213 = vld [vmem:[%s35 + $0x90] sm:$0xff]
      %v6214 = vld [vmem:[%s35 + $0x98] sm:$0xff]
      %v6215 = vld [vmem:[%s35 + $0xa0] sm:$0xff]
      %v6216 = vld [vmem:[%s35 + $0xa8] sm:$0xff]
      %v6217 = vld [vmem:[%s35 + $0xb0] sm:$0xff]
      %v6218 = vld [vmem:[%s35 + $0xb8] sm:$0xff]
      %v6219 = vld [vmem:[%s35 + $0xc0] sm:$0xff]
      %v6220 = vld [vmem:[%s35 + $0xc8] sm:$0xff]
      %v6221 = vld [vmem:[%s35 + $0xd0] sm:$0xff]
      %v6222 = vld [vmem:[%s35 + $0xd8] sm:$0xff]
      %v6223 = vld [vmem:[%s35 + $0xe0] sm:$0xff]
      %v6224 = vld [vmem:[%s35 + $0xe8] sm:$0xff]
      %v6225 = vld [vmem:[%s35 + $0xf0] sm:$0x33]
      %s6226 = scalar_lea.vmem %s35, 248
      %v6227 = vld [vmem:[%s6226] sm:$0xff]
      %v6228 = vld [vmem:[%s6226 + $0x8] sm:$0xff]
      %v6229 = vld [vmem:[%s6226 + $0x10] sm:$0xff]
      %v6230 = vld [vmem:[%s6226 + $0x18] sm:$0xff]
      %v6231 = vld [vmem:[%s6226 + $0x20] sm:$0xff]
      %v6232 = vld [vmem:[%s6226 + $0x28] sm:$0xff]
      %v6233 = vld [vmem:[%s6226 + $0x30] sm:$0xff]
      %v6234 = vld [vmem:[%s6226 + $0x38] sm:$0xff]
      %v6235 = vld [vmem:[%s6226 + $0x40] sm:$0xff]
      %v6236 = vld [vmem:[%s6226 + $0x48] sm:$0xff]
      %v6237 = vld [vmem:[%s6226 + $0x50] sm:$0xff]
      %v6238 = vld [vmem:[%s6226 + $0x58] sm:$0xff]
      %v6239 = vld [vmem:[%s6226 + $0x60] sm:$0xff]
      %v6240 = vld [vmem:[%s6226 + $0x68] sm:$0xff]
      %v6241 = vld [vmem:[%s6226 + $0x70] sm:$0xff]
      %v6242 = vld [vmem:[%s6226 + $0x78] sm:$0xff]
      %v6243 = vld [vmem:[%s6226 + $0x80] sm:$0xff]
      %v6244 = vld [vmem:[%s6226 + $0x88] sm:$0xff]
      %v6245 = vld [vmem:[%s6226 + $0x90] sm:$0xff]
      %v6246 = vld [vmem:[%s6226 + $0x98] sm:$0xff]
      %v6247 = vld [vmem:[%s6226 + $0xa0] sm:$0xff]
      %v6248 = vld [vmem:[%s6226 + $0xa8] sm:$0xff]
      %v6249 = vld [vmem:[%s6226 + $0xb0] sm:$0xff]
      %v6250 = vld [vmem:[%s6226 + $0xb8] sm:$0xff]
      %v6251 = vld [vmem:[%s6226 + $0xc0] sm:$0xff]
      %v6252 = vld [vmem:[%s6226 + $0xc8] sm:$0xff]
      %v6253 = vld [vmem:[%s6226 + $0xd0] sm:$0xff]
      %v6254 = vld [vmem:[%s6226 + $0xd8] sm:$0xff]
      %v6255 = vld [vmem:[%s6226 + $0xe0] sm:$0xff]
      %v6256 = vld [vmem:[%s6226 + $0xe8] sm:$0xff]
      %v6257 = vld [vmem:[%s6226 + $0xf0] sm:$0x33]
      %v6292 = vunpack.c.l.b16 %v6227
      %v6293 = vunpack.c.h.b16 %v6227
      %v6294 = vunpack.c.l.b16 %v6228
      %v6295 = vunpack.c.h.b16 %v6228
      %v6296 = vunpack.c.l.b16 %v6229
      %v6297 = vunpack.c.h.b16 %v6229
      %v6298 = vunpack.c.l.b16 %v6230
      %v6299 = vunpack.c.h.b16 %v6230
      %v6300 = vunpack.c.l.b16 %v6231
      %v6301 = vunpack.c.h.b16 %v6231
      %v6302 = vunpack.c.l.b16 %v6232
      %v6303 = vunpack.c.h.b16 %v6232
      %v6304 = vunpack.c.l.b16 %v6233
      %v6305 = vunpack.c.h.b16 %v6233
      %v6306 = vunpack.c.l.b16 %v6234
      %v6307 = vunpack.c.h.b16 %v6234
      %v6308 = vunpack.c.l.b16 %v6235
      %v6309 = vunpack.c.h.b16 %v6235
      %v6310 = vunpack.c.l.b16 %v6236
      %v6311 = vunpack.c.h.b16 %v6236
      %v6312 = vunpack.c.l.b16 %v6237
      %v6313 = vunpack.c.h.b16 %v6237
      %v6314 = vunpack.c.l.b16 %v6238
      %v6315 = vunpack.c.h.b16 %v6238
      %v6316 = vunpack.c.l.b16 %v6239
      %v6317 = vunpack.c.h.b16 %v6239
      %v6318 = vunpack.c.l.b16 %v6240
      %v6319 = vunpack.c.h.b16 %v6240
      %v6320 = vunpack.c.l.b16 %v6241
      %v6321 = vunpack.c.h.b16 %v6241
      %v6322 = vunpack.c.l.b16 %v6242
      %v6323 = vunpack.c.h.b16 %v6242
      %v6324 = vunpack.c.l.b16 %v6243
      %v6325 = vunpack.c.h.b16 %v6243
      %v6326 = vunpack.c.l.b16 %v6244
      %v6327 = vunpack.c.h.b16 %v6244
      %v6328 = vunpack.c.l.b16 %v6245
      %v6329 = vunpack.c.h.b16 %v6245
      %v6330 = vunpack.c.l.b16 %v6246
      %v6331 = vunpack.c.h.b16 %v6246
      %v6332 = vunpack.c.l.b16 %v6247
      %v6333 = vunpack.c.h.b16 %v6247
      %v6334 = vunpack.c.l.b16 %v6248
      %v6335 = vunpack.c.h.b16 %v6248
      %v6336 = vunpack.c.l.b16 %v6249
      %v6337 = vunpack.c.h.b16 %v6249
      %v6338 = vunpack.c.l.b16 %v6250
      %v6339 = vunpack.c.h.b16 %v6250
      %v6340 = vunpack.c.l.b16 %v6251
      %v6341 = vunpack.c.h.b16 %v6251
      %v6342 = vunpack.c.l.b16 %v6252
      %v6343 = vunpack.c.h.b16 %v6252
      %v6344 = vunpack.c.l.b16 %v6253
      %v6345 = vunpack.c.h.b16 %v6253
      %v6346 = vunpack.c.l.b16 %v6254
      %v6347 = vunpack.c.h.b16 %v6254
      %v6348 = vunpack.c.l.b16 %v6255
      %v6349 = vunpack.c.h.b16 %v6255
      %v6350 = vunpack.c.l.b16 %v6256
      %v6351 = vunpack.c.h.b16 %v6256
      %v6352 = vunpack.c.l.b16 %v6257
      %v6353 = vunpack.c.h.b16 %v6257
      %v6354 = vpack.c.b16 %v6294, %v6292
      %v6355 = vpack.c.b16 %v6295, %v6293
      %v6356 = vpack.c.b16 %v6298, %v6296
      %v6357 = vpack.c.b16 %v6299, %v6297
      %v6358 = vpack.c.b16 %v6302, %v6300
      %v6359 = vpack.c.b16 %v6303, %v6301
      %v6360 = vpack.c.b16 %v6306, %v6304
      %v6361 = vpack.c.b16 %v6307, %v6305
      %v6362 = vpack.c.b16 %v6310, %v6308
      %v6363 = vpack.c.b16 %v6311, %v6309
      %v6364 = vpack.c.b16 %v6314, %v6312
      %v6365 = vpack.c.b16 %v6315, %v6313
      %v6366 = vpack.c.b16 %v6318, %v6316
      %v6367 = vpack.c.b16 %v6319, %v6317
      %v6368 = vpack.c.b16 %v6322, %v6320
      %v6369 = vpack.c.b16 %v6323, %v6321
      %v6370 = vpack.c.b16 %v6326, %v6324
      %v6371 = vpack.c.b16 %v6327, %v6325
      %v6372 = vpack.c.b16 %v6330, %v6328
      %v6373 = vpack.c.b16 %v6331, %v6329
      %v6374 = vpack.c.b16 %v6334, %v6332
      %v6375 = vpack.c.b16 %v6335, %v6333
      %v6376 = vpack.c.b16 %v6338, %v6336
      %v6377 = vpack.c.b16 %v6339, %v6337
      %v6378 = vpack.c.b16 %v6342, %v6340
      %v6379 = vpack.c.b16 %v6343, %v6341
      %v6380 = vpack.c.b16 %v6346, %v6344
      %v6381 = vpack.c.b16 %v6347, %v6345
      %v6382 = vpack.c.b16 %v6350, %v6348
      %v6383 = vpack.c.b16 %v6351, %v6349
      %v6384 = vpack.c.b16 %v6352, %v6352
      %v6385 = vpack.c.b16 %v6353, %v6353
      %v6416 = vsel %vm4313, %v6116, 0
      %v6418 = vsel %vm4313, %v6118, 0
      %v6420 = vsel %vm4313, %v6120, 0
      %v6423 = vsel %vm1257, %v6384, 0
      %v6426 = vsel %vm1257, %v6385, 0
      %6428 = vmatpush.bf16.msra.mxu0 %v6368
      %6429 = vmatpush.bf16.msra.mxu0 %v6366
      %6430 = vmatpush.bf16.msra.mxu0 %v6364
      %6431 = vmatpush.bf16.msra.mxu0 %v6362
      %6432 = vmatpush.bf16.msra.mxu0 %v6360
      %6433 = vmatpush.bf16.msra.mxu0 %v6358
      %6434 = vmatpush.bf16.msra.mxu0 %v6356
      %6435 = vmatpush.bf16.msra.mxu0 %v6354
      %6436 = vmatmul.bf16.gmra.mxu0 %v6115
      %v6437 = vpop.f32.mrf.mxu0
      %v6438 = vadd.f32 0.0, %v6437
      %v6439 = vpop.f32.mrf.mxu0
      %v6440 = vadd.f32 0.0, %v6439
      %6441 = vmatmul.bf16.gmra.mxu0 %v6117
      %v6442 = vpop.f32.mrf.mxu0
      %v6443 = vadd.f32 0.0, %v6442
      %v6444 = vpop.f32.mrf.mxu0
      %v6445 = vadd.f32 0.0, %v6444
      %6446 = vmatmul.bf16.gmra.mxu0 %v6119
      %v6447 = vpop.f32.mrf.mxu0
      %v6448 = vadd.f32 0.0, %v6447
      %v6449 = vpop.f32.mrf.mxu0
      %v6450 = vadd.f32 0.0, %v6449
      %6451 = vdwg.mxu0
      %6452 = vmatpush.bf16.msra.mxu0 %v6423
      %6453 = vmatpush.bf16.msra.mxu0 %v6382
      %6454 = vmatpush.bf16.msra.mxu0 %v6380
      %6455 = vmatpush.bf16.msra.mxu0 %v6378
      %6456 = vmatpush.bf16.msra.mxu0 %v6376
      %6457 = vmatpush.bf16.msra.mxu0 %v6374
      %6458 = vmatpush.bf16.msra.mxu0 %v6372
      %6459 = vmatpush.bf16.msra.mxu0 %v6370
      %6460 = vmatmul.bf16.gmra.mxu0 %v6416
      %v6461 = vpop.f32.mrf.mxu0
      %v6462 = vadd.f32 %v6438, %v6461
      %v6463 = vpop.f32.mrf.mxu0
      %v6464 = vadd.f32 %v6440, %v6463
      %6465 = vmatmul.bf16.gmra.mxu0 %v6418
      %v6466 = vpop.f32.mrf.mxu0
      %v6467 = vadd.f32 %v6443, %v6466
      %v6468 = vpop.f32.mrf.mxu0
      %v6469 = vadd.f32 %v6445, %v6468
      %6470 = vmatmul.bf16.gmra.mxu0 %v6420
      %v6471 = vpop.f32.mrf.mxu0
      %v6472 = vadd.f32 %v6448, %v6471
      %v6473 = vpop.f32.mrf.mxu0
      %v6474 = vadd.f32 %v6450, %v6473
      %6475 = vdwg.mxu0
      %6476 = vmatpush.bf16.msra.mxu0 %v6369
      %6477 = vmatpush.bf16.msra.mxu0 %v6367
      %6478 = vmatpush.bf16.msra.mxu0 %v6365
      %6479 = vmatpush.bf16.msra.mxu0 %v6363
      %6480 = vmatpush.bf16.msra.mxu0 %v6361
      %6481 = vmatpush.bf16.msra.mxu0 %v6359
      %6482 = vmatpush.bf16.msra.mxu0 %v6357
      %6483 = vmatpush.bf16.msra.mxu0 %v6355
      %6484 = vmatmul.bf16.gmra.mxu0 %v6115
      %v6485 = vpop.f32.mrf.mxu0
      %v6486 = vadd.f32 0.0, %v6485
      %v6487 = vpop.f32.mrf.mxu0
      %v6488 = vadd.f32 0.0, %v6487
      %6489 = vmatmul.bf16.gmra.mxu0 %v6117
      %v6490 = vpop.f32.mrf.mxu0
      %v6491 = vadd.f32 0.0, %v6490
      %v6492 = vpop.f32.mrf.mxu0
      %v6493 = vadd.f32 0.0, %v6492
      %6494 = vmatmul.bf16.gmra.mxu0 %v6119
      %v6495 = vpop.f32.mrf.mxu0
      %v6496 = vadd.f32 0.0, %v6495
      %v6497 = vpop.f32.mrf.mxu0
      %v6498 = vadd.f32 0.0, %v6497
      %6499 = vdwg.mxu0
      %6500 = vmatpush.bf16.msra.mxu0 %v6426
      %6501 = vmatpush.bf16.msra.mxu0 %v6383
      %6502 = vmatpush.bf16.msra.mxu0 %v6381
      %6503 = vmatpush.bf16.msra.mxu0 %v6379
      %6504 = vmatpush.bf16.msra.mxu0 %v6377
      %6505 = vmatpush.bf16.msra.mxu0 %v6375
      %6506 = vmatpush.bf16.msra.mxu0 %v6373
      %6507 = vmatpush.bf16.msra.mxu0 %v6371
      %6508 = vmatmul.bf16.gmra.mxu0 %v6416
      %v6509 = vpop.f32.mrf.mxu0
      %v6510 = vadd.f32 %v6486, %v6509
      %v6511 = vpop.f32.mrf.mxu0
      %v6512 = vadd.f32 %v6488, %v6511
      %6513 = vmatmul.bf16.gmra.mxu0 %v6418
      %v6514 = vpop.f32.mrf.mxu0
      %v6515 = vadd.f32 %v6491, %v6514
      %v6516 = vpop.f32.mrf.mxu0
      %v6517 = vadd.f32 %v6493, %v6516
      %6518 = vmatmul.bf16.gmra.mxu0 %v6420
      %v6519 = vpop.f32.mrf.mxu0
      %v6520 = vadd.f32 %v6496, %v6519
      %v6521 = vpop.f32.mrf.mxu0
      %v6522 = vadd.f32 %v6498, %v6521
      %6523 = vdwg.mxu0
      %v6555 = vunpack.c.l.b16 %v6195
      %v6556 = vunpack.c.h.b16 %v6195
      %v6557 = vunpack.c.l.b16 %v6196
      %v6558 = vunpack.c.h.b16 %v6196
      %v6559 = vunpack.c.l.b16 %v6197
      %v6560 = vunpack.c.h.b16 %v6197
      %v6561 = vunpack.c.l.b16 %v6198
      %v6562 = vunpack.c.h.b16 %v6198
      %v6563 = vunpack.c.l.b16 %v6199
      %v6564 = vunpack.c.h.b16 %v6199
      %v6565 = vunpack.c.l.b16 %v6200
      %v6566 = vunpack.c.h.b16 %v6200
      %v6567 = vunpack.c.l.b16 %v6201
      %v6568 = vunpack.c.h.b16 %v6201
      %v6569 = vunpack.c.l.b16 %v6202
      %v6570 = vunpack.c.h.b16 %v6202
      %v6571 = vunpack.c.l.b16 %v6203
      %v6572 = vunpack.c.h.b16 %v6203
      %v6573 = vunpack.c.l.b16 %v6204
      %v6574 = vunpack.c.h.b16 %v6204
      %v6575 = vunpack.c.l.b16 %v6205
      %v6576 = vunpack.c.h.b16 %v6205
      %v6577 = vunpack.c.l.b16 %v6206
      %v6578 = vunpack.c.h.b16 %v6206
      %v6579 = vunpack.c.l.b16 %v6207
      %v6580 = vunpack.c.h.b16 %v6207
      %v6581 = vunpack.c.l.b16 %v6208
      %v6582 = vunpack.c.h.b16 %v6208
      %v6583 = vunpack.c.l.b16 %v6209
      %v6584 = vunpack.c.h.b16 %v6209
      %v6585 = vunpack.c.l.b16 %v6210
      %v6586 = vunpack.c.h.b16 %v6210
      %v6587 = vunpack.c.l.b16 %v6211
      %v6588 = vunpack.c.h.b16 %v6211
      %v6589 = vunpack.c.l.b16 %v6212
      %v6590 = vunpack.c.h.b16 %v6212
      %v6591 = vunpack.c.l.b16 %v6213
      %v6592 = vunpack.c.h.b16 %v6213
      %v6593 = vunpack.c.l.b16 %v6214
      %v6594 = vunpack.c.h.b16 %v6214
      %v6595 = vunpack.c.l.b16 %v6215
      %v6596 = vunpack.c.h.b16 %v6215
      %v6597 = vunpack.c.l.b16 %v6216
      %v6598 = vunpack.c.h.b16 %v6216
      %v6599 = vunpack.c.l.b16 %v6217
      %v6600 = vunpack.c.h.b16 %v6217
      %v6601 = vunpack.c.l.b16 %v6218
      %v6602 = vunpack.c.h.b16 %v6218
      %v6603 = vunpack.c.l.b16 %v6219
      %v6604 = vunpack.c.h.b16 %v6219
      %v6605 = vunpack.c.l.b16 %v6220
      %v6606 = vunpack.c.h.b16 %v6220
      %v6607 = vunpack.c.l.b16 %v6221
      %v6608 = vunpack.c.h.b16 %v6221
      %v6609 = vunpack.c.l.b16 %v6222
      %v6610 = vunpack.c.h.b16 %v6222
      %v6611 = vunpack.c.l.b16 %v6223
      %v6612 = vunpack.c.h.b16 %v6223
      %v6613 = vunpack.c.l.b16 %v6224
      %v6614 = vunpack.c.h.b16 %v6224
      %v6615 = vunpack.c.l.b16 %v6225
      %v6616 = vunpack.c.h.b16 %v6225
      %v6617 = vpack.c.b16 %v6557, %v6555
      %v6618 = vpack.c.b16 %v6558, %v6556
      %v6619 = vpack.c.b16 %v6561, %v6559
      %v6620 = vpack.c.b16 %v6562, %v6560
      %v6621 = vpack.c.b16 %v6565, %v6563
      %v6622 = vpack.c.b16 %v6566, %v6564
      %v6623 = vpack.c.b16 %v6569, %v6567
      %v6624 = vpack.c.b16 %v6570, %v6568
      %v6625 = vpack.c.b16 %v6573, %v6571
      %v6626 = vpack.c.b16 %v6574, %v6572
      %v6627 = vpack.c.b16 %v6577, %v6575
      %v6628 = vpack.c.b16 %v6578, %v6576
      %v6629 = vpack.c.b16 %v6581, %v6579
      %v6630 = vpack.c.b16 %v6582, %v6580
      %v6631 = vpack.c.b16 %v6585, %v6583
      %v6632 = vpack.c.b16 %v6586, %v6584
      %v6633 = vpack.c.b16 %v6589, %v6587
      %v6634 = vpack.c.b16 %v6590, %v6588
      %v6635 = vpack.c.b16 %v6593, %v6591
      %v6636 = vpack.c.b16 %v6594, %v6592
      %v6637 = vpack.c.b16 %v6597, %v6595
      %v6638 = vpack.c.b16 %v6598, %v6596
      %v6639 = vpack.c.b16 %v6601, %v6599
      %v6640 = vpack.c.b16 %v6602, %v6600
      %v6641 = vpack.c.b16 %v6605, %v6603
      %v6642 = vpack.c.b16 %v6606, %v6604
      %v6643 = vpack.c.b16 %v6609, %v6607
      %v6644 = vpack.c.b16 %v6610, %v6608
      %v6645 = vpack.c.b16 %v6613, %v6611
      %v6646 = vpack.c.b16 %v6614, %v6612
      %v6647 = vpack.c.b16 %v6615, %v6615
      %v6648 = vpack.c.b16 %v6616, %v6616
      %v6680 = vsel %vm4313, %v6172, 0
      %v6683 = vsel %vm4313, %v6150, 0
      %v6686 = vsel %vm4313, %v6166, 0
      %v6689 = vsel %vm1257, %v6647, 0
      %v6692 = vsel %vm1257, %v6648, 0
      %6694 = vmatpush.bf16.msra.mxu0 %v6631
      %6695 = vmatpush.bf16.msra.mxu0 %v6629
      %6696 = vmatpush.bf16.msra.mxu0 %v6627
      %6697 = vmatpush.bf16.msra.mxu0 %v6625
      %6698 = vmatpush.bf16.msra.mxu0 %v6623
      %6699 = vmatpush.bf16.msra.mxu0 %v6621
      %6700 = vmatpush.bf16.msra.mxu0 %v6619
      %6701 = vmatpush.bf16.msra.mxu0 %v6617
      %6702 = vmatmul.bf16.gmra.mxu0 %v6171
      %v6703 = vpop.f32.mrf.mxu0
      %v6704 = vadd.f32 %v6462, %v6703
      %v6705 = vpop.f32.mrf.mxu0
      %v6706 = vadd.f32 %v6464, %v6705
      %6707 = vmatmul.bf16.gmra.mxu0 %v6142
      %v6708 = vpop.f32.mrf.mxu0
      %v6709 = vadd.f32 %v6467, %v6708
      %v6710 = vpop.f32.mrf.mxu0
      %v6711 = vadd.f32 %v6469, %v6710
      %6712 = vmatmul.bf16.gmra.mxu0 %v6158
      %v6713 = vpop.f32.mrf.mxu0
      %v6714 = vadd.f32 %v6472, %v6713
      %v6715 = vpop.f32.mrf.mxu0
      %v6716 = vadd.f32 %v6474, %v6715
      %6717 = vdwg.mxu0
      %6718 = vmatpush.bf16.msra.mxu0 %v6689
      %6719 = vmatpush.bf16.msra.mxu0 %v6645
      %6720 = vmatpush.bf16.msra.mxu0 %v6643
      %6721 = vmatpush.bf16.msra.mxu0 %v6641
      %6722 = vmatpush.bf16.msra.mxu0 %v6639
      %6723 = vmatpush.bf16.msra.mxu0 %v6637
      %6724 = vmatpush.bf16.msra.mxu0 %v6635
      %6725 = vmatpush.bf16.msra.mxu0 %v6633
      %6726 = vmatmul.bf16.gmra.mxu0 %v6680
      %v6727 = vpop.f32.mrf.mxu0
      %v6728 = vadd.f32 %v6704, %v6727
      %v6729 = vpop.f32.mrf.mxu0
      %v6730 = vadd.f32 %v6706, %v6729
      %6731 = vmatmul.bf16.gmra.mxu0 %v6683
      %v6732 = vpop.f32.mrf.mxu0
      %v6733 = vadd.f32 %v6709, %v6732
      %v6734 = vpop.f32.mrf.mxu0
      %v6735 = vadd.f32 %v6711, %v6734
      %6736 = vmatmul.bf16.gmra.mxu0 %v6686
      %v6737 = vpop.f32.mrf.mxu0
      %v6738 = vadd.f32 %v6714, %v6737
      %v6739 = vpop.f32.mrf.mxu0
      %v6740 = vadd.f32 %v6716, %v6739
      %6741 = vdwg.mxu0
      %6742 = vmatpush.bf16.msra.mxu0 %v6632
      %6743 = vmatpush.bf16.msra.mxu0 %v6630
      %6744 = vmatpush.bf16.msra.mxu0 %v6628
      %6745 = vmatpush.bf16.msra.mxu0 %v6626
      %6746 = vmatpush.bf16.msra.mxu0 %v6624
      %6747 = vmatpush.bf16.msra.mxu0 %v6622
      %6748 = vmatpush.bf16.msra.mxu0 %v6620
      %6749 = vmatpush.bf16.msra.mxu0 %v6618
      %6750 = vmatmul.bf16.gmra.mxu0 %v6171
      %v6751 = vpop.f32.mrf.mxu0
      %v6752 = vadd.f32 %v6510, %v6751
      %v6753 = vpop.f32.mrf.mxu0
      %v6754 = vadd.f32 %v6512, %v6753
      %6755 = vmatmul.bf16.gmra.mxu0 %v6142
      %v6756 = vpop.f32.mrf.mxu0
      %v6757 = vadd.f32 %v6515, %v6756
      %v6758 = vpop.f32.mrf.mxu0
      %v6759 = vadd.f32 %v6517, %v6758
      %6760 = vmatmul.bf16.gmra.mxu0 %v6158
      %v6761 = vpop.f32.mrf.mxu0
      %v6762 = vadd.f32 %v6520, %v6761
      %v6763 = vpop.f32.mrf.mxu0
      %v6764 = vadd.f32 %v6522, %v6763
      %6765 = vdwg.mxu0
      %6766 = vmatpush.bf16.msra.mxu0 %v6692
      %6767 = vmatpush.bf16.msra.mxu0 %v6646
      %6768 = vmatpush.bf16.msra.mxu0 %v6644
      %6769 = vmatpush.bf16.msra.mxu0 %v6642
      %6770 = vmatpush.bf16.msra.mxu0 %v6640
      %6771 = vmatpush.bf16.msra.mxu0 %v6638
      %6772 = vmatpush.bf16.msra.mxu0 %v6636
      %6773 = vmatpush.bf16.msra.mxu0 %v6634
      %6774 = vmatmul.bf16.gmra.mxu0 %v6680
      %v6775 = vpop.f32.mrf.mxu0
      %v6776 = vadd.f32 %v6752, %v6775
      %v6777 = vpop.f32.mrf.mxu0
      %v6778 = vadd.f32 %v6754, %v6777
      %6779 = vmatmul.bf16.gmra.mxu0 %v6683
      %v6780 = vpop.f32.mrf.mxu0
      %v6781 = vadd.f32 %v6757, %v6780
      %v6782 = vpop.f32.mrf.mxu0
      %v6783 = vadd.f32 %v6759, %v6782
      %6784 = vmatmul.bf16.gmra.mxu0 %v6686
      %v6785 = vpop.f32.mrf.mxu0
      %v6786 = vadd.f32 %v6762, %v6785
      %v6787 = vpop.f32.mrf.mxu0
      %v6788 = vadd.f32 %v6764, %v6787
      %6789 = vdwg.mxu0
      %s6790 = scalar_lea.vmem %s35, 496
      %v6791 = vld [vmem:[%s6790] sm:$0xff]
      %v6792 = vld [vmem:[%s6790 + $0x8] sm:$0xff]
      %v6793 = vld [vmem:[%s6790 + $0x10] sm:$0xff]
      %v6794 = vld [vmem:[%s6790 + $0x18] sm:$0xff]
      %v6795 = vld [vmem:[%s6790 + $0x20] sm:$0xff]
      %v6796 = vld [vmem:[%s6790 + $0x28] sm:$0xff]
      %v6797 = vld [vmem:[%s6790 + $0x30] sm:$0xff]
      %v6798 = vld [vmem:[%s6790 + $0x38] sm:$0xff]
      %v6799 = vld [vmem:[%s6790 + $0x40] sm:$0xff]
      %v6800 = vld [vmem:[%s6790 + $0x48] sm:$0xff]
      %v6801 = vld [vmem:[%s6790 + $0x50] sm:$0xff]
      %v6802 = vld [vmem:[%s6790 + $0x58] sm:$0xff]
      %v6803 = vld [vmem:[%s6790 + $0x60] sm:$0xff]
      %v6804 = vld [vmem:[%s6790 + $0x68] sm:$0xff]
      %v6805 = vld [vmem:[%s6790 + $0x70] sm:$0xff]
      %v6806 = vld [vmem:[%s6790 + $0x78] sm:$0xff]
      %v6807 = vld [vmem:[%s6790 + $0x80] sm:$0xff]
      %v6808 = vld [vmem:[%s6790 + $0x88] sm:$0xff]
      %v6809 = vld [vmem:[%s6790 + $0x90] sm:$0xff]
      %v6810 = vld [vmem:[%s6790 + $0x98] sm:$0xff]
      %v6811 = vld [vmem:[%s6790 + $0xa0] sm:$0xff]
      %v6812 = vld [vmem:[%s6790 + $0xa8] sm:$0xff]
      %v6813 = vld [vmem:[%s6790 + $0xb0] sm:$0xff]
      %v6814 = vld [vmem:[%s6790 + $0xb8] sm:$0xff]
      %v6815 = vld [vmem:[%s6790 + $0xc0] sm:$0xff]
      %v6816 = vld [vmem:[%s6790 + $0xc8] sm:$0xff]
      %v6817 = vld [vmem:[%s6790 + $0xd0] sm:$0xff]
      %v6818 = vld [vmem:[%s6790 + $0xd8] sm:$0xff]
      %v6819 = vld [vmem:[%s6790 + $0xe0] sm:$0xff]
      %v6820 = vld [vmem:[%s6790 + $0xe8] sm:$0xff]
      %v6821 = vld [vmem:[%s6790 + $0xf0] sm:$0x33]
      %v6853 = vunpack.c.l.b16 %v6791
      %v6854 = vunpack.c.h.b16 %v6791
      %v6855 = vunpack.c.l.b16 %v6792
      %v6856 = vunpack.c.h.b16 %v6792
      %v6857 = vunpack.c.l.b16 %v6793
      %v6858 = vunpack.c.h.b16 %v6793
      %v6859 = vunpack.c.l.b16 %v6794
      %v6860 = vunpack.c.h.b16 %v6794
      %v6861 = vunpack.c.l.b16 %v6795
      %v6862 = vunpack.c.h.b16 %v6795
      %v6863 = vunpack.c.l.b16 %v6796
      %v6864 = vunpack.c.h.b16 %v6796
      %v6865 = vunpack.c.l.b16 %v6797
      %v6866 = vunpack.c.h.b16 %v6797
      %v6867 = vunpack.c.l.b16 %v6798
      %v6868 = vunpack.c.h.b16 %v6798
      %v6869 = vunpack.c.l.b16 %v6799
      %v6870 = vunpack.c.h.b16 %v6799
      %v6871 = vunpack.c.l.b16 %v6800
      %v6872 = vunpack.c.h.b16 %v6800
      %v6873 = vunpack.c.l.b16 %v6801
      %v6874 = vunpack.c.h.b16 %v6801
      %v6875 = vunpack.c.l.b16 %v6802
      %v6876 = vunpack.c.h.b16 %v6802
      %v6877 = vunpack.c.l.b16 %v6803
      %v6878 = vunpack.c.h.b16 %v6803
      %v6879 = vunpack.c.l.b16 %v6804
      %v6880 = vunpack.c.h.b16 %v6804
      %v6881 = vunpack.c.l.b16 %v6805
      %v6882 = vunpack.c.h.b16 %v6805
      %v6883 = vunpack.c.l.b16 %v6806
      %v6884 = vunpack.c.h.b16 %v6806
      %v6885 = vunpack.c.l.b16 %v6807
      %v6886 = vunpack.c.h.b16 %v6807
      %v6887 = vunpack.c.l.b16 %v6808
      %v6888 = vunpack.c.h.b16 %v6808
      %v6889 = vunpack.c.l.b16 %v6809
      %v6890 = vunpack.c.h.b16 %v6809
      %v6891 = vunpack.c.l.b16 %v6810
      %v6892 = vunpack.c.h.b16 %v6810
      %v6893 = vunpack.c.l.b16 %v6811
      %v6894 = vunpack.c.h.b16 %v6811
      %v6895 = vunpack.c.l.b16 %v6812
      %v6896 = vunpack.c.h.b16 %v6812
      %v6897 = vunpack.c.l.b16 %v6813
      %v6898 = vunpack.c.h.b16 %v6813
      %v6899 = vunpack.c.l.b16 %v6814
      %v6900 = vunpack.c.h.b16 %v6814
      %v6901 = vunpack.c.l.b16 %v6815
      %v6902 = vunpack.c.h.b16 %v6815
      %v6903 = vunpack.c.l.b16 %v6816
      %v6904 = vunpack.c.h.b16 %v6816
      %v6905 = vunpack.c.l.b16 %v6817
      %v6906 = vunpack.c.h.b16 %v6817
      %v6907 = vunpack.c.l.b16 %v6818
      %v6908 = vunpack.c.h.b16 %v6818
      %v6909 = vunpack.c.l.b16 %v6819
      %v6910 = vunpack.c.h.b16 %v6819
      %v6911 = vunpack.c.l.b16 %v6820
      %v6912 = vunpack.c.h.b16 %v6820
      %v6913 = vunpack.c.l.b16 %v6821
      %v6914 = vunpack.c.h.b16 %v6821
      %v6915 = vpack.c.b16 %v6855, %v6853
      %v6916 = vpack.c.b16 %v6856, %v6854
      %v6917 = vpack.c.b16 %v6859, %v6857
      %v6918 = vpack.c.b16 %v6860, %v6858
      %v6919 = vpack.c.b16 %v6863, %v6861
      %v6920 = vpack.c.b16 %v6864, %v6862
      %v6921 = vpack.c.b16 %v6867, %v6865
      %v6922 = vpack.c.b16 %v6868, %v6866
      %v6923 = vpack.c.b16 %v6871, %v6869
      %v6924 = vpack.c.b16 %v6872, %v6870
      %v6925 = vpack.c.b16 %v6875, %v6873
      %v6926 = vpack.c.b16 %v6876, %v6874
      %v6927 = vpack.c.b16 %v6879, %v6877
      %v6928 = vpack.c.b16 %v6880, %v6878
      %v6929 = vpack.c.b16 %v6883, %v6881
      %v6930 = vpack.c.b16 %v6884, %v6882
      %v6931 = vpack.c.b16 %v6887, %v6885
      %v6932 = vpack.c.b16 %v6888, %v6886
      %v6933 = vpack.c.b16 %v6891, %v6889
      %v6934 = vpack.c.b16 %v6892, %v6890
      %v6935 = vpack.c.b16 %v6895, %v6893
      %v6936 = vpack.c.b16 %v6896, %v6894
      %v6937 = vpack.c.b16 %v6899, %v6897
      %v6938 = vpack.c.b16 %v6900, %v6898
      %v6939 = vpack.c.b16 %v6903, %v6901
      %v6940 = vpack.c.b16 %v6904, %v6902
      %v6941 = vpack.c.b16 %v6907, %v6905
      %v6942 = vpack.c.b16 %v6908, %v6906
      %v6943 = vpack.c.b16 %v6911, %v6909
      %v6944 = vpack.c.b16 %v6912, %v6910
      %v6945 = vpack.c.b16 %v6913, %v6913
      %v6946 = vpack.c.b16 %v6914, %v6914
      %v6978 = vsel %vm4313, %v6180, 0
      %v6981 = vsel %vm4313, %v6186, 0
      %v6984 = vsel %vm4313, %v6194, 0
      %v6987 = vsel %vm1257, %v6945, 0
      %v6990 = vsel %vm1257, %v6946, 0
      %6992 = vmatpush.bf16.msra.mxu0 %v6929
      %6993 = vmatpush.bf16.msra.mxu0 %v6927
      %6994 = vmatpush.bf16.msra.mxu0 %v6925
      %6995 = vmatpush.bf16.msra.mxu0 %v6923
      %6996 = vmatpush.bf16.msra.mxu0 %v6921
      %6997 = vmatpush.bf16.msra.mxu0 %v6919
      %6998 = vmatpush.bf16.msra.mxu0 %v6917
      %6999 = vmatpush.bf16.msra.mxu0 %v6915
      %7000 = vmatmul.bf16.gmra.mxu0 %v6176
      %v7001 = vpop.f32.mrf.mxu0
      %v7002 = vadd.f32 0.0, %v7001
      %v7003 = vpop.f32.mrf.mxu0
      %v7004 = vadd.f32 0.0, %v7003
      %7005 = vmatmul.bf16.gmra.mxu0 %v6183
      %v7006 = vpop.f32.mrf.mxu0
      %v7007 = vadd.f32 0.0, %v7006
      %v7008 = vpop.f32.mrf.mxu0
      %v7009 = vadd.f32 0.0, %v7008
      %7010 = vmatmul.bf16.gmra.mxu0 %v6193
      %v7011 = vpop.f32.mrf.mxu0
      %v7012 = vadd.f32 0.0, %v7011
      %v7013 = vpop.f32.mrf.mxu0
      %v7014 = vadd.f32 0.0, %v7013
      %7015 = vdwg.mxu0
      %7016 = vmatpush.bf16.msra.mxu0 %v6987
      %7017 = vmatpush.bf16.msra.mxu0 %v6943
      %7018 = vmatpush.bf16.msra.mxu0 %v6941
      %7019 = vmatpush.bf16.msra.mxu0 %v6939
      %7020 = vmatpush.bf16.msra.mxu0 %v6937
      %7021 = vmatpush.bf16.msra.mxu0 %v6935
      %7022 = vmatpush.bf16.msra.mxu0 %v6933
      %7023 = vmatpush.bf16.msra.mxu0 %v6931
      %7024 = vmatmul.bf16.gmra.mxu0 %v6978
      %v7025 = vpop.f32.mrf.mxu0
      %v7026 = vadd.f32 %v7002, %v7025
      %v7027 = vpop.f32.mrf.mxu0
      %v7028 = vadd.f32 %v7004, %v7027
      %7029 = vmatmul.bf16.gmra.mxu0 %v6981
      %v7030 = vpop.f32.mrf.mxu0
      %v7031 = vadd.f32 %v7007, %v7030
      %v7032 = vpop.f32.mrf.mxu0
      %v7033 = vadd.f32 %v7009, %v7032
      %7034 = vmatmul.bf16.gmra.mxu0 %v6984
      %v7035 = vpop.f32.mrf.mxu0
      %v7036 = vadd.f32 %v7012, %v7035
      %v7037 = vpop.f32.mrf.mxu0
      %v7038 = vadd.f32 %v7014, %v7037
      %7039 = vdwg.mxu0
      %7040 = vmatpush.bf16.msra.mxu0 %v6930
      %7041 = vmatpush.bf16.msra.mxu0 %v6928
      %7042 = vmatpush.bf16.msra.mxu0 %v6926
      %7043 = vmatpush.bf16.msra.mxu0 %v6924
      %7044 = vmatpush.bf16.msra.mxu0 %v6922
      %7045 = vmatpush.bf16.msra.mxu0 %v6920
      %7046 = vmatpush.bf16.msra.mxu0 %v6918
      %7047 = vmatpush.bf16.msra.mxu0 %v6916
      %7048 = vmatmul.bf16.gmra.mxu0 %v6176
      %v7049 = vpop.f32.mrf.mxu0
      %v7050 = vadd.f32 0.0, %v7049
      %v7051 = vpop.f32.mrf.mxu0
      %v7052 = vadd.f32 0.0, %v7051
      %7053 = vmatmul.bf16.gmra.mxu0 %v6183
      %v7054 = vpop.f32.mrf.mxu0
      %v7055 = vadd.f32 0.0, %v7054
      %v7056 = vpop.f32.mrf.mxu0
      %v7057 = vadd.f32 0.0, %v7056
      %7058 = vmatmul.bf16.gmra.mxu0 %v6193
      %v7059 = vpop.f32.mrf.mxu0
      %v7060 = vadd.f32 0.0, %v7059
      %v7061 = vpop.f32.mrf.mxu0
      %v7062 = vadd.f32 0.0, %v7061
      %7063 = vdwg.mxu0
      %7064 = vmatpush.bf16.msra.mxu0 %v6990
      %7065 = vmatpush.bf16.msra.mxu0 %v6944
      %7066 = vmatpush.bf16.msra.mxu0 %v6942
      %7067 = vmatpush.bf16.msra.mxu0 %v6940
      %7068 = vmatpush.bf16.msra.mxu0 %v6938
      %7069 = vmatpush.bf16.msra.mxu0 %v6936
      %7070 = vmatpush.bf16.msra.mxu0 %v6934
      %7071 = vmatpush.bf16.msra.mxu0 %v6932
      %7072 = vmatmul.bf16.gmra.mxu0 %v6978
      %v7073 = vpop.f32.mrf.mxu0
      %v7074 = vadd.f32 %v7050, %v7073
      %v7075 = vpop.f32.mrf.mxu0
      %v7076 = vadd.f32 %v7052, %v7075
      %7077 = vmatmul.bf16.gmra.mxu0 %v6981
      %v7078 = vpop.f32.mrf.mxu0
      %v7079 = vadd.f32 %v7055, %v7078
      %v7080 = vpop.f32.mrf.mxu0
      %v7081 = vadd.f32 %v7057, %v7080
      %7082 = vmatmul.bf16.gmra.mxu0 %v6984
      %v7083 = vpop.f32.mrf.mxu0
      %v7084 = vadd.f32 %v7060, %v7083
      %v7085 = vpop.f32.mrf.mxu0
      %v7086 = vadd.f32 %v7062, %v7085
      %7087 = vdwg.mxu0
      %v7088 = vadd.f32 %v6728, %v7026
      %v7089 = vadd.f32 %v6776, %v7074
      %v7090 = vadd.f32 %v6730, %v7028
      %v7091 = vadd.f32 %v6778, %v7076
      %v7092 = vadd.f32 %v6733, %v7031
      %v7093 = vadd.f32 %v6781, %v7079
      %v7094 = vadd.f32 %v6735, %v7033
      %v7095 = vadd.f32 %v6783, %v7081
      %v7096 = vadd.f32 %v6738, %v7036
      %v7097 = vadd.f32 %v6786, %v7084
      %v7098 = vadd.f32 %v6740, %v7038
      %v7099 = vadd.f32 %v6788, %v7086
      %v7100 = vld [vmem:[%s37] sm:$0xff]
      %v7101 = vld [vmem:[%s37 + $0x8] sm:$0xff]
      %v7102 = vld [vmem:[%s37 + $0x10] sm:$0xff]
      %v7103 = vld [vmem:[%s37 + $0x18] sm:$0xff]
      %v7104 = vld [vmem:[%s37 + $0x20] sm:$0xff]
      %v7105 = vld [vmem:[%s37 + $0x28] sm:$0xff]
      %v7106 = vld [vmem:[%s37 + $0x30] sm:$0xff]
      %v7107 = vld [vmem:[%s37 + $0x38] sm:$0xff]
      %v7108 = vld [vmem:[%s37 + $0x40] sm:$0xff]
      %v7109 = vld [vmem:[%s37 + $0x48] sm:$0xff]
      %v7110 = vld [vmem:[%s37 + $0x50] sm:$0xff]
      %v7111 = vld [vmem:[%s37 + $0x58] sm:$0xff]
      %v7112 = vld [vmem:[%s37 + $0x60] sm:$0xff]
      %v7113 = vld [vmem:[%s37 + $0x68] sm:$0xff]
      %v7114 = vld [vmem:[%s37 + $0x70] sm:$0xff]
      %v7115 = vld [vmem:[%s37 + $0x78] sm:$0xff]
      %v7116 = vld [vmem:[%s37 + $0x80] sm:$0xff]
      %v7117 = vld [vmem:[%s37 + $0x88] sm:$0xff]
      %v7118 = vld [vmem:[%s37 + $0x90] sm:$0xff]
      %v7119 = vld [vmem:[%s37 + $0x98] sm:$0xff]
      %v7120 = vld [vmem:[%s37 + $0xa0] sm:$0xff]
      %v7121 = vld [vmem:[%s37 + $0xa8] sm:$0xff]
      %v7122 = vld [vmem:[%s37 + $0xb0] sm:$0xff]
      %v7123 = vld [vmem:[%s37 + $0xb8] sm:$0xff]
      %v7124 = vld [vmem:[%s37 + $0xc0] sm:$0x33]
      %v7150 = vunpack.c.l.b16 %v7100
      %v7151 = vunpack.c.h.b16 %v7100
      %v7152 = vunpack.c.l.b16 %v7101
      %v7153 = vunpack.c.h.b16 %v7101
      %v7154 = vunpack.c.l.b16 %v7102
      %v7155 = vunpack.c.h.b16 %v7102
      %v7156 = vunpack.c.l.b16 %v7103
      %v7157 = vunpack.c.h.b16 %v7103
      %v7158 = vunpack.c.l.b16 %v7104
      %v7159 = vunpack.c.h.b16 %v7104
      %v7160 = vunpack.c.l.b16 %v7105
      %v7161 = vunpack.c.h.b16 %v7105
      %v7162 = vunpack.c.l.b16 %v7106
      %v7163 = vunpack.c.h.b16 %v7106
      %v7164 = vunpack.c.l.b16 %v7107
      %v7165 = vunpack.c.h.b16 %v7107
      %v7166 = vunpack.c.l.b16 %v7108
      %v7167 = vunpack.c.h.b16 %v7108
      %v7168 = vunpack.c.l.b16 %v7109
      %v7169 = vunpack.c.h.b16 %v7109
      %v7170 = vunpack.c.l.b16 %v7110
      %v7171 = vunpack.c.h.b16 %v7110
      %v7172 = vunpack.c.l.b16 %v7111
      %v7173 = vunpack.c.h.b16 %v7111
      %v7174 = vunpack.c.l.b16 %v7112
      %v7175 = vunpack.c.h.b16 %v7112
      %v7176 = vunpack.c.l.b16 %v7113
      %v7177 = vunpack.c.h.b16 %v7113
      %v7178 = vunpack.c.l.b16 %v7114
      %v7179 = vunpack.c.h.b16 %v7114
      %v7180 = vunpack.c.l.b16 %v7115
      %v7181 = vunpack.c.h.b16 %v7115
      %v7182 = vunpack.c.l.b16 %v7116
      %v7183 = vunpack.c.h.b16 %v7116
      %v7184 = vunpack.c.l.b16 %v7117
      %v7185 = vunpack.c.h.b16 %v7117
      %v7186 = vunpack.c.l.b16 %v7118
      %v7187 = vunpack.c.h.b16 %v7118
      %v7188 = vunpack.c.l.b16 %v7119
      %v7189 = vunpack.c.h.b16 %v7119
      %v7190 = vunpack.c.l.b16 %v7120
      %v7191 = vunpack.c.h.b16 %v7120
      %v7192 = vunpack.c.l.b16 %v7121
      %v7193 = vunpack.c.h.b16 %v7121
      %v7194 = vunpack.c.l.b16 %v7122
      %v7195 = vunpack.c.h.b16 %v7122
      %v7196 = vunpack.c.l.b16 %v7123
      %v7197 = vunpack.c.h.b16 %v7123
      %v7198 = vunpack.c.l.b16 %v7124
      %v7199 = vunpack.c.h.b16 %v7124
      %v7200 = vpack.c.b16 %v7152, %v7150
      %v7201 = vpack.c.b16 %v7153, %v7151
      %v7202 = vpack.c.b16 %v7156, %v7154
      %v7203 = vpack.c.b16 %v7157, %v7155
      %v7204 = vpack.c.b16 %v7160, %v7158
      %v7205 = vpack.c.b16 %v7161, %v7159
      %v7206 = vpack.c.b16 %v7164, %v7162
      %v7207 = vpack.c.b16 %v7165, %v7163
      %v7208 = vpack.c.b16 %v7168, %v7166
      %v7209 = vpack.c.b16 %v7169, %v7167
      %v7210 = vpack.c.b16 %v7172, %v7170
      %v7211 = vpack.c.b16 %v7173, %v7171
      %v7212 = vpack.c.b16 %v7176, %v7174
      %v7213 = vpack.c.b16 %v7177, %v7175
      %v7214 = vpack.c.b16 %v7180, %v7178
      %v7215 = vpack.c.b16 %v7181, %v7179
      %v7216 = vpack.c.b16 %v7184, %v7182
      %v7217 = vpack.c.b16 %v7185, %v7183
      %v7218 = vpack.c.b16 %v7188, %v7186
      %v7219 = vpack.c.b16 %v7189, %v7187
      %v7220 = vpack.c.b16 %v7192, %v7190
      %v7221 = vpack.c.b16 %v7193, %v7191
      %v7222 = vpack.c.b16 %v7196, %v7194
      %v7223 = vpack.c.b16 %v7197, %v7195
      %v7224 = vpack.c.b16 %v7198, %v7198
      %v7225 = vpack.c.b16 %v7199, %v7199
      %v7251 = vsel %vm1257, %v7224, 0
      %v7254 = vsel %vm1257, %v7225, 0
      %7256 = vmatpush.bf16.msra.mxu0 %v7214
      %7257 = vmatpush.bf16.msra.mxu0 %v7212
      %7258 = vmatpush.bf16.msra.mxu0 %v7210
      %7259 = vmatpush.bf16.msra.mxu0 %v7208
      %7260 = vmatpush.bf16.msra.mxu0 %v7206
      %7261 = vmatpush.bf16.msra.mxu0 %v7204
      %7262 = vmatpush.bf16.msra.mxu0 %v7202
      %7263 = vmatpush.bf16.msra.mxu0 %v7200
      %7264 = vmatmul.bf16.gmra.mxu0 %v3124
      %v7265 = vpop.f32.mrf.mxu0
      %v7266 = vadd.f32 0.0, %v7265
      %v7267 = vpop.f32.mrf.mxu0
      %v7268 = vadd.f32 0.0, %v7267
      %7269 = vmatmul.bf16.gmra.mxu0 %v3095
      %v7270 = vpop.f32.mrf.mxu0
      %v7271 = vadd.f32 0.0, %v7270
      %v7272 = vpop.f32.mrf.mxu0
      %v7273 = vadd.f32 0.0, %v7272
      %7274 = vmatmul.bf16.gmra.mxu0 %v3111
      %v7275 = vpop.f32.mrf.mxu0
      %v7276 = vadd.f32 0.0, %v7275
      %v7277 = vpop.f32.mrf.mxu0
      %v7278 = vadd.f32 0.0, %v7277
      %7279 = vdwg.mxu0
      %7280 = vmatpush.bf16.msra.mxu0 0
      %7281 = vmatpush.bf16.msra.mxu0 0
      %7282 = vmatpush.bf16.msra.mxu0 0
      %7283 = vmatpush.bf16.msra.mxu0 %v7251
      %7284 = vmatpush.bf16.msra.mxu0 %v7222
      %7285 = vmatpush.bf16.msra.mxu0 %v7220
      %7286 = vmatpush.bf16.msra.mxu0 %v7218
      %7287 = vmatpush.bf16.msra.mxu0 %v7216
      %7288 = vmatmul.bf16.gmra.mxu0 %v3562
      %v7289 = vpop.f32.mrf.mxu0
      %v7290 = vadd.f32 %v7266, %v7289
      %v7291 = vpop.f32.mrf.mxu0
      %v7292 = vadd.f32 %v7268, %v7291
      %7293 = vmatmul.bf16.gmra.mxu0 %v3565
      %v7294 = vpop.f32.mrf.mxu0
      %v7295 = vadd.f32 %v7271, %v7294
      %v7296 = vpop.f32.mrf.mxu0
      %v7297 = vadd.f32 %v7273, %v7296
      %7298 = vmatmul.bf16.gmra.mxu0 %v3568
      %v7299 = vpop.f32.mrf.mxu0
      %v7300 = vadd.f32 %v7276, %v7299
      %v7301 = vpop.f32.mrf.mxu0
      %v7302 = vadd.f32 %v7278, %v7301
      %7303 = vdwg.mxu0
      %7304 = vmatpush.bf16.msra.mxu0 %v7215
      %7305 = vmatpush.bf16.msra.mxu0 %v7213
      %7306 = vmatpush.bf16.msra.mxu0 %v7211
      %7307 = vmatpush.bf16.msra.mxu0 %v7209
      %7308 = vmatpush.bf16.msra.mxu0 %v7207
      %7309 = vmatpush.bf16.msra.mxu0 %v7205
      %7310 = vmatpush.bf16.msra.mxu0 %v7203
      %7311 = vmatpush.bf16.msra.mxu0 %v7201
      %7312 = vmatmul.bf16.gmra.mxu0 %v3124
      %v7313 = vpop.f32.mrf.mxu0
      %v7314 = vadd.f32 0.0, %v7313
      %v7315 = vpop.f32.mrf.mxu0
      %v7316 = vadd.f32 0.0, %v7315
      %7317 = vmatmul.bf16.gmra.mxu0 %v3095
      %v7318 = vpop.f32.mrf.mxu0
      %v7319 = vadd.f32 0.0, %v7318
      %v7320 = vpop.f32.mrf.mxu0
      %v7321 = vadd.f32 0.0, %v7320
      %7322 = vmatmul.bf16.gmra.mxu0 %v3111
      %v7323 = vpop.f32.mrf.mxu0
      %v7324 = vadd.f32 0.0, %v7323
      %v7325 = vpop.f32.mrf.mxu0
      %v7326 = vadd.f32 0.0, %v7325
      %7327 = vdwg.mxu0
      %7328 = vmatpush.bf16.msra.mxu0 0
      %7329 = vmatpush.bf16.msra.mxu0 0
      %7330 = vmatpush.bf16.msra.mxu0 0
      %7331 = vmatpush.bf16.msra.mxu0 %v7254
      %7332 = vmatpush.bf16.msra.mxu0 %v7223
      %7333 = vmatpush.bf16.msra.mxu0 %v7221
      %7334 = vmatpush.bf16.msra.mxu0 %v7219
      %7335 = vmatpush.bf16.msra.mxu0 %v7217
      %7336 = vmatmul.bf16.gmra.mxu0 %v3562
      %v7337 = vpop.f32.mrf.mxu0
      %v7338 = vadd.f32 %v7314, %v7337
      %v7339 = vpop.f32.mrf.mxu0
      %v7340 = vadd.f32 %v7316, %v7339
      %7341 = vmatmul.bf16.gmra.mxu0 %v3565
      %v7342 = vpop.f32.mrf.mxu0
      %v7343 = vadd.f32 %v7319, %v7342
      %v7344 = vpop.f32.mrf.mxu0
      %v7345 = vadd.f32 %v7321, %v7344
      %7346 = vmatmul.bf16.gmra.mxu0 %v3568
      %v7347 = vpop.f32.mrf.mxu0
      %v7348 = vadd.f32 %v7324, %v7347
      %v7349 = vpop.f32.mrf.mxu0
      %v7350 = vadd.f32 %v7326, %v7349
      %7351 = vdwg.mxu0
      %v7352 = vadd.f32 %v7088, %v7290
      %v7353 = vadd.f32 %v7089, %v7338
      %v7354 = vadd.f32 %v7090, %v7292
      %v7355 = vadd.f32 %v7091, %v7340
      %v7356 = vadd.f32 %v7092, %v7295
      %v7357 = vadd.f32 %v7093, %v7343
      %v7358 = vadd.f32 %v7094, %v7297
      %v7359 = vadd.f32 %v7095, %v7345
      %v7360 = vadd.f32 %v7096, %v7300
      %v7361 = vadd.f32 %v7097, %v7348
      %v7362 = vadd.f32 %v7098, %v7302
      %v7363 = vadd.f32 %v7099, %v7350
      %s7364 = scalar_lea.vmem %s37, 200
      %v7365 = vld [vmem:[%s7364] sm:$0xff]
      %v7366 = vld [vmem:[%s7364 + $0x8] sm:$0xff]
      %v7367 = vld [vmem:[%s7364 + $0x10] sm:$0xff]
      %v7368 = vld [vmem:[%s7364 + $0x18] sm:$0xff]
      %v7369 = vld [vmem:[%s7364 + $0x20] sm:$0xff]
      %v7370 = vld [vmem:[%s7364 + $0x28] sm:$0xff]
      %v7371 = vld [vmem:[%s7364 + $0x30] sm:$0xff]
      %v7372 = vld [vmem:[%s7364 + $0x38] sm:$0xff]
      %v7373 = vld [vmem:[%s7364 + $0x40] sm:$0xff]
      %v7374 = vld [vmem:[%s7364 + $0x48] sm:$0xff]
      %v7375 = vld [vmem:[%s7364 + $0x50] sm:$0xff]
      %v7376 = vld [vmem:[%s7364 + $0x58] sm:$0xff]
      %v7377 = vld [vmem:[%s7364 + $0x60] sm:$0xff]
      %v7378 = vld [vmem:[%s7364 + $0x68] sm:$0xff]
      %v7379 = vld [vmem:[%s7364 + $0x70] sm:$0xff]
      %v7380 = vld [vmem:[%s7364 + $0x78] sm:$0xff]
      %v7381 = vld [vmem:[%s7364 + $0x80] sm:$0xff]
      %v7382 = vld [vmem:[%s7364 + $0x88] sm:$0xff]
      %v7383 = vld [vmem:[%s7364 + $0x90] sm:$0xff]
      %v7384 = vld [vmem:[%s7364 + $0x98] sm:$0xff]
      %v7385 = vld [vmem:[%s7364 + $0xa0] sm:$0xff]
      %v7386 = vld [vmem:[%s7364 + $0xa8] sm:$0xff]
      %v7387 = vld [vmem:[%s7364 + $0xb0] sm:$0xff]
      %v7388 = vld [vmem:[%s7364 + $0xb8] sm:$0xff]
      %v7389 = vld [vmem:[%s7364 + $0xc0] sm:$0x33]
      %v7415 = vunpack.c.l.b16 %v7365
      %v7416 = vunpack.c.h.b16 %v7365
      %v7417 = vunpack.c.l.b16 %v7366
      %v7418 = vunpack.c.h.b16 %v7366
      %v7419 = vunpack.c.l.b16 %v7367
      %v7420 = vunpack.c.h.b16 %v7367
      %v7421 = vunpack.c.l.b16 %v7368
      %v7422 = vunpack.c.h.b16 %v7368
      %v7423 = vunpack.c.l.b16 %v7369
      %v7424 = vunpack.c.h.b16 %v7369
      %v7425 = vunpack.c.l.b16 %v7370
      %v7426 = vunpack.c.h.b16 %v7370
      %v7427 = vunpack.c.l.b16 %v7371
      %v7428 = vunpack.c.h.b16 %v7371
      %v7429 = vunpack.c.l.b16 %v7372
      %v7430 = vunpack.c.h.b16 %v7372
      %v7431 = vunpack.c.l.b16 %v7373
      %v7432 = vunpack.c.h.b16 %v7373
      %v7433 = vunpack.c.l.b16 %v7374
      %v7434 = vunpack.c.h.b16 %v7374
      %v7435 = vunpack.c.l.b16 %v7375
      %v7436 = vunpack.c.h.b16 %v7375
      %v7437 = vunpack.c.l.b16 %v7376
      %v7438 = vunpack.c.h.b16 %v7376
      %v7439 = vunpack.c.l.b16 %v7377
      %v7440 = vunpack.c.h.b16 %v7377
      %v7441 = vunpack.c.l.b16 %v7378
      %v7442 = vunpack.c.h.b16 %v7378
      %v7443 = vunpack.c.l.b16 %v7379
      %v7444 = vunpack.c.h.b16 %v7379
      %v7445 = vunpack.c.l.b16 %v7380
      %v7446 = vunpack.c.h.b16 %v7380
      %v7447 = vunpack.c.l.b16 %v7381
      %v7448 = vunpack.c.h.b16 %v7381
      %v7449 = vunpack.c.l.b16 %v7382
      %v7450 = vunpack.c.h.b16 %v7382
      %v7451 = vunpack.c.l.b16 %v7383
      %v7452 = vunpack.c.h.b16 %v7383
      %v7453 = vunpack.c.l.b16 %v7384
      %v7454 = vunpack.c.h.b16 %v7384
      %v7455 = vunpack.c.l.b16 %v7385
      %v7456 = vunpack.c.h.b16 %v7385
      %v7457 = vunpack.c.l.b16 %v7386
      %v7458 = vunpack.c.h.b16 %v7386
      %v7459 = vunpack.c.l.b16 %v7387
      %v7460 = vunpack.c.h.b16 %v7387
      %v7461 = vunpack.c.l.b16 %v7388
      %v7462 = vunpack.c.h.b16 %v7388
      %v7463 = vunpack.c.l.b16 %v7389
      %v7464 = vunpack.c.h.b16 %v7389
      %v7465 = vpack.c.b16 %v7417, %v7415
      %v7466 = vpack.c.b16 %v7418, %v7416
      %v7467 = vpack.c.b16 %v7421, %v7419
      %v7468 = vpack.c.b16 %v7422, %v7420
      %v7469 = vpack.c.b16 %v7425, %v7423
      %v7470 = vpack.c.b16 %v7426, %v7424
      %v7471 = vpack.c.b16 %v7429, %v7427
      %v7472 = vpack.c.b16 %v7430, %v7428
      %v7473 = vpack.c.b16 %v7433, %v7431
      %v7474 = vpack.c.b16 %v7434, %v7432
      %v7475 = vpack.c.b16 %v7437, %v7435
      %v7476 = vpack.c.b16 %v7438, %v7436
      %v7477 = vpack.c.b16 %v7441, %v7439
      %v7478 = vpack.c.b16 %v7442, %v7440
      %v7479 = vpack.c.b16 %v7445, %v7443
      %v7480 = vpack.c.b16 %v7446, %v7444
      %v7481 = vpack.c.b16 %v7449, %v7447
      %v7482 = vpack.c.b16 %v7450, %v7448
      %v7483 = vpack.c.b16 %v7453, %v7451
      %v7484 = vpack.c.b16 %v7454, %v7452
      %v7485 = vpack.c.b16 %v7457, %v7455
      %v7486 = vpack.c.b16 %v7458, %v7456
      %v7487 = vpack.c.b16 %v7461, %v7459
      %v7488 = vpack.c.b16 %v7462, %v7460
      %v7489 = vpack.c.b16 %v7463, %v7463
      %v7490 = vpack.c.b16 %v7464, %v7464
      %v7516 = vsel %vm1257, %v7489, 0
      %v7519 = vsel %vm1257, %v7490, 0
      %7521 = vmatpush.bf16.msra.mxu0 %v7479
      %7522 = vmatpush.bf16.msra.mxu0 %v7477
      %7523 = vmatpush.bf16.msra.mxu0 %v7475
      %7524 = vmatpush.bf16.msra.mxu0 %v7473
      %7525 = vmatpush.bf16.msra.mxu0 %v7471
      %7526 = vmatpush.bf16.msra.mxu0 %v7469
      %7527 = vmatpush.bf16.msra.mxu0 %v7467
      %7528 = vmatpush.bf16.msra.mxu0 %v7465
      %7529 = vmatmul.bf16.gmra.mxu0 %v3068
      %v7530 = vpop.f32.mrf.mxu0
      %v7531 = vadd.f32 0.0, %v7530
      %v7532 = vpop.f32.mrf.mxu0
      %v7533 = vadd.f32 0.0, %v7532
      %7534 = vmatmul.bf16.gmra.mxu0 %v3070
      %v7535 = vpop.f32.mrf.mxu0
      %v7536 = vadd.f32 0.0, %v7535
      %v7537 = vpop.f32.mrf.mxu0
      %v7538 = vadd.f32 0.0, %v7537
      %7539 = vmatmul.bf16.gmra.mxu0 %v3072
      %v7540 = vpop.f32.mrf.mxu0
      %v7541 = vadd.f32 0.0, %v7540
      %v7542 = vpop.f32.mrf.mxu0
      %v7543 = vadd.f32 0.0, %v7542
      %7544 = vdwg.mxu0
      %7545 = vmatpush.bf16.msra.mxu0 0
      %7546 = vmatpush.bf16.msra.mxu0 0
      %7547 = vmatpush.bf16.msra.mxu0 0
      %7548 = vmatpush.bf16.msra.mxu0 %v7516
      %7549 = vmatpush.bf16.msra.mxu0 %v7487
      %7550 = vmatpush.bf16.msra.mxu0 %v7485
      %7551 = vmatpush.bf16.msra.mxu0 %v7483
      %7552 = vmatpush.bf16.msra.mxu0 %v7481
      %7553 = vmatmul.bf16.gmra.mxu0 %v3328
      %v7554 = vpop.f32.mrf.mxu0
      %v7555 = vadd.f32 %v7531, %v7554
      %v7556 = vpop.f32.mrf.mxu0
      %v7557 = vadd.f32 %v7533, %v7556
      %7558 = vmatmul.bf16.gmra.mxu0 %v3330
      %v7559 = vpop.f32.mrf.mxu0
      %v7560 = vadd.f32 %v7536, %v7559
      %v7561 = vpop.f32.mrf.mxu0
      %v7562 = vadd.f32 %v7538, %v7561
      %7563 = vmatmul.bf16.gmra.mxu0 %v3332
      %v7564 = vpop.f32.mrf.mxu0
      %v7565 = vadd.f32 %v7541, %v7564
      %v7566 = vpop.f32.mrf.mxu0
      %v7567 = vadd.f32 %v7543, %v7566
      %7568 = vdwg.mxu0
      %7569 = vmatpush.bf16.msra.mxu0 %v7480
      %7570 = vmatpush.bf16.msra.mxu0 %v7478
      %7571 = vmatpush.bf16.msra.mxu0 %v7476
      %7572 = vmatpush.bf16.msra.mxu0 %v7474
      %7573 = vmatpush.bf16.msra.mxu0 %v7472
      %7574 = vmatpush.bf16.msra.mxu0 %v7470
      %7575 = vmatpush.bf16.msra.mxu0 %v7468
      %7576 = vmatpush.bf16.msra.mxu0 %v7466
      %7577 = vmatmul.bf16.gmra.mxu0 %v3068
      %v7578 = vpop.f32.mrf.mxu0
      %v7579 = vadd.f32 0.0, %v7578
      %v7580 = vpop.f32.mrf.mxu0
      %v7581 = vadd.f32 0.0, %v7580
      %7582 = vmatmul.bf16.gmra.mxu0 %v3070
      %v7583 = vpop.f32.mrf.mxu0
      %v7584 = vadd.f32 0.0, %v7583
      %v7585 = vpop.f32.mrf.mxu0
      %v7586 = vadd.f32 0.0, %v7585
      %7587 = vmatmul.bf16.gmra.mxu0 %v3072
      %v7588 = vpop.f32.mrf.mxu0
      %v7589 = vadd.f32 0.0, %v7588
      %v7590 = vpop.f32.mrf.mxu0
      %v7591 = vadd.f32 0.0, %v7590
      %7592 = vdwg.mxu0
      %7593 = vmatpush.bf16.msra.mxu0 0
      %7594 = vmatpush.bf16.msra.mxu0 0
      %7595 = vmatpush.bf16.msra.mxu0 0
      %7596 = vmatpush.bf16.msra.mxu0 %v7519
      %7597 = vmatpush.bf16.msra.mxu0 %v7488
      %7598 = vmatpush.bf16.msra.mxu0 %v7486
      %7599 = vmatpush.bf16.msra.mxu0 %v7484
      %7600 = vmatpush.bf16.msra.mxu0 %v7482
      %7601 = vmatmul.bf16.gmra.mxu0 %v3328
      %v7602 = vpop.f32.mrf.mxu0
      %v7603 = vadd.f32 %v7579, %v7602
      %v7604 = vpop.f32.mrf.mxu0
      %v7605 = vadd.f32 %v7581, %v7604
      %7606 = vmatmul.bf16.gmra.mxu0 %v3330
      %v7607 = vpop.f32.mrf.mxu0
      %v7608 = vadd.f32 %v7584, %v7607
      %v7609 = vpop.f32.mrf.mxu0
      %v7610 = vadd.f32 %v7586, %v7609
      %7611 = vmatmul.bf16.gmra.mxu0 %v3332
      %v7612 = vpop.f32.mrf.mxu0
      %v7613 = vadd.f32 %v7589, %v7612
      %v7614 = vpop.f32.mrf.mxu0
      %v7615 = vadd.f32 %v7591, %v7614
      %7616 = vdwg.mxu0
      %v7617 = vadd.f32 %v7352, %v7555
      %v7618 = vadd.f32 %v7353, %v7603
      %v7619 = vadd.f32 %v7354, %v7557
      %v7620 = vadd.f32 %v7355, %v7605
      %v7621 = vadd.f32 %v7356, %v7560
      %v7622 = vadd.f32 %v7357, %v7608
      %v7623 = vadd.f32 %v7358, %v7562
      %v7624 = vadd.f32 %v7359, %v7610
      %v7625 = vadd.f32 %v7360, %v7565
      %v7626 = vadd.f32 %v7361, %v7613
      %v7627 = vadd.f32 %v7362, %v7567
      %v7628 = vadd.f32 %v7363, %v7615
      %s7629 = scalar_lea.vmem %s37, 400
      %v7630 = vld [vmem:[%s7629] sm:$0xff]
      %v7631 = vld [vmem:[%s7629 + $0x8] sm:$0xff]
      %v7632 = vld [vmem:[%s7629 + $0x10] sm:$0xff]
      %v7633 = vld [vmem:[%s7629 + $0x18] sm:$0xff]
      %v7634 = vld [vmem:[%s7629 + $0x20] sm:$0xff]
      %v7635 = vld [vmem:[%s7629 + $0x28] sm:$0xff]
      %v7636 = vld [vmem:[%s7629 + $0x30] sm:$0xff]
      %v7637 = vld [vmem:[%s7629 + $0x38] sm:$0xff]
      %v7638 = vld [vmem:[%s7629 + $0x40] sm:$0xff]
      %v7639 = vld [vmem:[%s7629 + $0x48] sm:$0xff]
      %v7640 = vld [vmem:[%s7629 + $0x50] sm:$0xff]
      %v7641 = vld [vmem:[%s7629 + $0x58] sm:$0xff]
      %v7642 = vld [vmem:[%s7629 + $0x60] sm:$0xff]
      %v7643 = vld [vmem:[%s7629 + $0x68] sm:$0xff]
      %v7644 = vld [vmem:[%s7629 + $0x70] sm:$0xff]
      %v7645 = vld [vmem:[%s7629 + $0x78] sm:$0xff]
      %v7646 = vld [vmem:[%s7629 + $0x80] sm:$0xff]
      %v7647 = vld [vmem:[%s7629 + $0x88] sm:$0xff]
      %v7648 = vld [vmem:[%s7629 + $0x90] sm:$0xff]
      %v7649 = vld [vmem:[%s7629 + $0x98] sm:$0xff]
      %v7650 = vld [vmem:[%s7629 + $0xa0] sm:$0xff]
      %v7651 = vld [vmem:[%s7629 + $0xa8] sm:$0xff]
      %v7652 = vld [vmem:[%s7629 + $0xb0] sm:$0xff]
      %v7653 = vld [vmem:[%s7629 + $0xb8] sm:$0xff]
      %v7654 = vld [vmem:[%s7629 + $0xc0] sm:$0x33]
      %v7680 = vunpack.c.l.b16 %v7630
      %v7681 = vunpack.c.h.b16 %v7630
      %v7682 = vunpack.c.l.b16 %v7631
      %v7683 = vunpack.c.h.b16 %v7631
      %v7684 = vunpack.c.l.b16 %v7632
      %v7685 = vunpack.c.h.b16 %v7632
      %v7686 = vunpack.c.l.b16 %v7633
      %v7687 = vunpack.c.h.b16 %v7633
      %v7688 = vunpack.c.l.b16 %v7634
      %v7689 = vunpack.c.h.b16 %v7634
      %v7690 = vunpack.c.l.b16 %v7635
      %v7691 = vunpack.c.h.b16 %v7635
      %v7692 = vunpack.c.l.b16 %v7636
      %v7693 = vunpack.c.h.b16 %v7636
      %v7694 = vunpack.c.l.b16 %v7637
      %v7695 = vunpack.c.h.b16 %v7637
      %v7696 = vunpack.c.l.b16 %v7638
      %v7697 = vunpack.c.h.b16 %v7638
      %v7698 = vunpack.c.l.b16 %v7639
      %v7699 = vunpack.c.h.b16 %v7639
      %v7700 = vunpack.c.l.b16 %v7640
      %v7701 = vunpack.c.h.b16 %v7640
      %v7702 = vunpack.c.l.b16 %v7641
      %v7703 = vunpack.c.h.b16 %v7641
      %v7704 = vunpack.c.l.b16 %v7642
      %v7705 = vunpack.c.h.b16 %v7642
      %v7706 = vunpack.c.l.b16 %v7643
      %v7707 = vunpack.c.h.b16 %v7643
      %v7708 = vunpack.c.l.b16 %v7644
      %v7709 = vunpack.c.h.b16 %v7644
      %v7710 = vunpack.c.l.b16 %v7645
      %v7711 = vunpack.c.h.b16 %v7645
      %v7712 = vunpack.c.l.b16 %v7646
      %v7713 = vunpack.c.h.b16 %v7646
      %v7714 = vunpack.c.l.b16 %v7647
      %v7715 = vunpack.c.h.b16 %v7647
      %v7716 = vunpack.c.l.b16 %v7648
      %v7717 = vunpack.c.h.b16 %v7648
      %v7718 = vunpack.c.l.b16 %v7649
      %v7719 = vunpack.c.h.b16 %v7649
      %v7720 = vunpack.c.l.b16 %v7650
      %v7721 = vunpack.c.h.b16 %v7650
      %v7722 = vunpack.c.l.b16 %v7651
      %v7723 = vunpack.c.h.b16 %v7651
      %v7724 = vunpack.c.l.b16 %v7652
      %v7725 = vunpack.c.h.b16 %v7652
      %v7726 = vunpack.c.l.b16 %v7653
      %v7727 = vunpack.c.h.b16 %v7653
      %v7728 = vunpack.c.l.b16 %v7654
      %v7729 = vunpack.c.h.b16 %v7654
      %v7730 = vpack.c.b16 %v7682, %v7680
      %v7731 = vpack.c.b16 %v7683, %v7681
      %v7732 = vpack.c.b16 %v7686, %v7684
      %v7733 = vpack.c.b16 %v7687, %v7685
      %v7734 = vpack.c.b16 %v7690, %v7688
      %v7735 = vpack.c.b16 %v7691, %v7689
      %v7736 = vpack.c.b16 %v7694, %v7692
      %v7737 = vpack.c.b16 %v7695, %v7693
      %v7738 = vpack.c.b16 %v7698, %v7696
      %v7739 = vpack.c.b16 %v7699, %v7697
      %v7740 = vpack.c.b16 %v7702, %v7700
      %v7741 = vpack.c.b16 %v7703, %v7701
      %v7742 = vpack.c.b16 %v7706, %v7704
      %v7743 = vpack.c.b16 %v7707, %v7705
      %v7744 = vpack.c.b16 %v7710, %v7708
      %v7745 = vpack.c.b16 %v7711, %v7709
      %v7746 = vpack.c.b16 %v7714, %v7712
      %v7747 = vpack.c.b16 %v7715, %v7713
      %v7748 = vpack.c.b16 %v7718, %v7716
      %v7749 = vpack.c.b16 %v7719, %v7717
      %v7750 = vpack.c.b16 %v7722, %v7720
      %v7751 = vpack.c.b16 %v7723, %v7721
      %v7752 = vpack.c.b16 %v7726, %v7724
      %v7753 = vpack.c.b16 %v7727, %v7725
      %v7754 = vpack.c.b16 %v7728, %v7728
      %v7755 = vpack.c.b16 %v7729, %v7729
      %v7781 = vsel %vm1257, %v7754, 0
      %v7784 = vsel %vm1257, %v7755, 0
      %7786 = vmatpush.bf16.msra.mxu0 %v7744
      %7787 = vmatpush.bf16.msra.mxu0 %v7742
      %7788 = vmatpush.bf16.msra.mxu0 %v7740
      %7789 = vmatpush.bf16.msra.mxu0 %v7738
      %7790 = vmatpush.bf16.msra.mxu0 %v7736
      %7791 = vmatpush.bf16.msra.mxu0 %v7734
      %7792 = vmatpush.bf16.msra.mxu0 %v7732
      %7793 = vmatpush.bf16.msra.mxu0 %v7730
      %7794 = vmatmul.bf16.gmra.mxu0 %v3129
      %v7795 = vpop.f32.mrf.mxu0
      %v7796 = vadd.f32 0.0, %v7795
      %v7797 = vpop.f32.mrf.mxu0
      %v7798 = vadd.f32 0.0, %v7797
      %7799 = vmatmul.bf16.gmra.mxu0 %v3136
      %v7800 = vpop.f32.mrf.mxu0
      %v7801 = vadd.f32 0.0, %v7800
      %v7802 = vpop.f32.mrf.mxu0
      %v7803 = vadd.f32 0.0, %v7802
      %7804 = vmatmul.bf16.gmra.mxu0 %v3146
      %v7805 = vpop.f32.mrf.mxu0
      %v7806 = vadd.f32 0.0, %v7805
      %v7807 = vpop.f32.mrf.mxu0
      %v7808 = vadd.f32 0.0, %v7807
      %7809 = vdwg.mxu0
      %7810 = vmatpush.bf16.msra.mxu0 0
      %7811 = vmatpush.bf16.msra.mxu0 0
      %7812 = vmatpush.bf16.msra.mxu0 0
      %7813 = vmatpush.bf16.msra.mxu0 %v7781
      %7814 = vmatpush.bf16.msra.mxu0 %v7752
      %7815 = vmatpush.bf16.msra.mxu0 %v7750
      %7816 = vmatpush.bf16.msra.mxu0 %v7748
      %7817 = vmatpush.bf16.msra.mxu0 %v7746
      %7818 = vmatmul.bf16.gmra.mxu0 %v3824
      %v7819 = vpop.f32.mrf.mxu0
      %v7820 = vadd.f32 %v7796, %v7819
      %v7821 = vpop.f32.mrf.mxu0
      %v7822 = vadd.f32 %v7798, %v7821
      %7823 = vmatmul.bf16.gmra.mxu0 %v3827
      %v7824 = vpop.f32.mrf.mxu0
      %v7825 = vadd.f32 %v7801, %v7824
      %v7826 = vpop.f32.mrf.mxu0
      %v7827 = vadd.f32 %v7803, %v7826
      %7828 = vmatmul.bf16.gmra.mxu0 %v3830
      %v7829 = vpop.f32.mrf.mxu0
      %v7830 = vadd.f32 %v7806, %v7829
      %v7831 = vpop.f32.mrf.mxu0
      %v7832 = vadd.f32 %v7808, %v7831
      %7833 = vdwg.mxu0
      %7834 = vmatpush.bf16.msra.mxu0 %v7745
      %7835 = vmatpush.bf16.msra.mxu0 %v7743
      %7836 = vmatpush.bf16.msra.mxu0 %v7741
      %7837 = vmatpush.bf16.msra.mxu0 %v7739
      %7838 = vmatpush.bf16.msra.mxu0 %v7737
      %7839 = vmatpush.bf16.msra.mxu0 %v7735
      %7840 = vmatpush.bf16.msra.mxu0 %v7733
      %7841 = vmatpush.bf16.msra.mxu0 %v7731
      %7842 = vmatmul.bf16.gmra.mxu0 %v3129
      %v7843 = vpop.f32.mrf.mxu0
      %v7844 = vadd.f32 0.0, %v7843
      %v7845 = vpop.f32.mrf.mxu0
      %v7846 = vadd.f32 0.0, %v7845
      %7847 = vmatmul.bf16.gmra.mxu0 %v3136
      %v7848 = vpop.f32.mrf.mxu0
      %v7849 = vadd.f32 0.0, %v7848
      %v7850 = vpop.f32.mrf.mxu0
      %v7851 = vadd.f32 0.0, %v7850
      %7852 = vmatmul.bf16.gmra.mxu0 %v3146
      %v7853 = vpop.f32.mrf.mxu0
      %v7854 = vadd.f32 0.0, %v7853
      %v7855 = vpop.f32.mrf.mxu0
      %v7856 = vadd.f32 0.0, %v7855
      %7857 = vdwg.mxu0
      %7858 = vmatpush.bf16.msra.mxu0 0
      %7859 = vmatpush.bf16.msra.mxu0 0
      %7860 = vmatpush.bf16.msra.mxu0 0
      %7861 = vmatpush.bf16.msra.mxu0 %v7784
      %7862 = vmatpush.bf16.msra.mxu0 %v7753
      %7863 = vmatpush.bf16.msra.mxu0 %v7751
      %7864 = vmatpush.bf16.msra.mxu0 %v7749
      %7865 = vmatpush.bf16.msra.mxu0 %v7747
      %7866 = vmatmul.bf16.gmra.mxu0 %v3824
      %v7867 = vpop.f32.mrf.mxu0
      %v7868 = vadd.f32 %v7844, %v7867
      %v7869 = vpop.f32.mrf.mxu0
      %v7870 = vadd.f32 %v7846, %v7869
      %7871 = vmatmul.bf16.gmra.mxu0 %v3827
      %v7872 = vpop.f32.mrf.mxu0
      %v7873 = vadd.f32 %v7849, %v7872
      %v7874 = vpop.f32.mrf.mxu0
      %v7875 = vadd.f32 %v7851, %v7874
      %7876 = vmatmul.bf16.gmra.mxu0 %v3830
      %v7877 = vpop.f32.mrf.mxu0
      %v7878 = vadd.f32 %v7854, %v7877
      %v7879 = vpop.f32.mrf.mxu0
      %v7880 = vadd.f32 %v7856, %v7879
      %7881 = vdwg.mxu0
      %v7882 = vadd.f32 %v7617, %v7820
      %v7883 = vadd.f32 %v7618, %v7868
      %v7884 = vadd.f32 %v7619, %v7822
      %v7885 = vadd.f32 %v7620, %v7870
      %v7886 = vadd.f32 %v7621, %v7825
      %v7887 = vadd.f32 %v7622, %v7873
      %v7888 = vadd.f32 %v7623, %v7827
      %v7889 = vadd.f32 %v7624, %v7875
      %v7890 = vadd.f32 %v7625, %v7830
      %v7891 = vadd.f32 %v7626, %v7878
      %v7892 = vadd.f32 %v7627, %v7832
      %v7893 = vadd.f32 %v7628, %v7880
      %v7894 = vld [vmem:[%s39] sm:$0x3]
      %v7896 = vperm.slane %v7894, 0
      %v7897 = vperm.slane %v7894, 1
      %v7900 = vadd.f32 %v7882, %v7896
      %v7901 = vadd.f32 %v7883, %v7897
      %v7902 = vadd.f32 %v7884, %v7896
      %v7903 = vadd.f32 %v7885, %v7897
      %v7904 = vadd.f32 %v7886, %v7896
      %v7905 = vadd.f32 %v7887, %v7897
      %v7906 = vadd.f32 %v7888, %v7896
      %v7907 = vadd.f32 %v7889, %v7897
      %v7908 = vadd.f32 %v7890, %v7896
      %v7909 = vadd.f32 %v7891, %v7897
      %v7910 = vadd.f32 %v7892, %v7896
      %v7911 = vadd.f32 %v7893, %v7897
      %v7912 = vmax.f32 %v7900, 0.0
      %v7913 = vmax.f32 %v7901, 0.0
      %v7914 = vmax.f32 %v7902, 0.0
      %v7915 = vmax.f32 %v7903, 0.0
      %v7916 = vmax.f32 %v7904, 0.0
      %v7917 = vmax.f32 %v7905, 0.0
      %v7918 = vmax.f32 %v7906, 0.0
      %v7919 = vmax.f32 %v7907, 0.0
      %v7920 = vmax.f32 %v7908, 0.0
      %v7921 = vmax.f32 %v7909, 0.0
      %v7922 = vmax.f32 %v7910, 0.0
      %v7923 = vmax.f32 %v7911, 0.0
      %v7924 = vsel %vm1387, %v7912, 0.0
      %v7925 = vsel %vm1387, %v7913, 0.0
      %v7926 = vsel %vm1388, %v7914, 0.0
      %v7927 = vsel %vm1388, %v7915, 0.0
      %v7928 = vsel %vm1389, %v7916, 0.0
      %v7929 = vsel %vm1389, %v7917, 0.0
      %v7930 = vsel %vm1390, %v7918, 0.0
      %v7931 = vsel %vm1390, %v7919, 0.0
      %v7932 = vsel %vm1391, %v7920, 0.0
      %v7933 = vsel %vm1391, %v7921, 0.0
      %v7934 = vsel %vm1392, %v7922, 0.0
      %v7935 = vsel %vm1392, %v7923, 0.0
      %v7936 = vpack.c.bf16 %v7925, %v7924
      %v7937 = vpack.c.bf16 %v7927, %v7926
      %v7938 = vpack.c.bf16 %v7929, %v7928
      %v7939 = vpack.c.bf16 %v7931, %v7930
      %v7940 = vpack.c.bf16 %v7933, %v7932
      %v7941 = vpack.c.bf16 %v7935, %v7934
      %v7948 = vunpack.c.l.b16 %v7936
      %v7949 = vunpack.c.h.b16 %v7936
      %v7950 = vunpack.c.l.b16 %v7937
      %v7951 = vunpack.c.h.b16 %v7937
      %v7952 = vunpack.c.l.b16 %v7938
      %v7953 = vunpack.c.h.b16 %v7938
      %v7954 = vunpack.c.l.b16 %v7939
      %v7955 = vunpack.c.h.b16 %v7939
      %v7956 = vunpack.c.l.b16 %v7940
      %v7957 = vunpack.c.h.b16 %v7940
      %v7958 = vunpack.c.l.b16 %v7941
      %v7959 = vunpack.c.h.b16 %v7941
      %v7960 = vpack.c.b16 %v7950, %v7948
      %v7961 = vpack.c.b16 %v7951, %v7949
      %v7962 = vpack.c.b16 %v7954, %v7952
      %v7963 = vpack.c.b16 %v7955, %v7953
      %v7964 = vpack.c.b16 %v7958, %v7956
      %v7965 = vpack.c.b16 %v7959, %v7957
      %v7967 = vshrl.u32 %v7960, 16
      %v7969 = vrot.slane %v7967, 7
      %v7970 = vshll.u32 %v7960, 16
      %v7972 = vor.u32 %v7969, %v7970
      %v7974 = vshrl.u32 %v7961, 16
      %v7976 = vrot.slane %v7974, 7
      %v7977 = vshll.u32 %v7961, 16
      %v7979 = vor.u32 %v7976, %v7977
      %v7981 = vshrl.u32 %v7962, 16
      %v7983 = vrot.slane %v7981, 7
      %v7984 = vshll.u32 %v7962, 16
      %v7986 = vor.u32 %v7983, %v7984
      %v7987 = vsel %vm1206, %v7969, %v7986
      %v7989 = vshrl.u32 %v7963, 16
      %v7991 = vrot.slane %v7989, 7
      %v7992 = vshll.u32 %v7963, 16
      %v7994 = vor.u32 %v7991, %v7992
      %v7995 = vsel %vm1206, %v7976, %v7994
      %v7997 = vshrl.u32 %v7964, 16
      %v7999 = vrot.slane %v7997, 7
      %v8000 = vshll.u32 %v7964, 16
      %v8002 = vor.u32 %v7999, %v8000
      %v8003 = vsel %vm1206, %v7983, %v8002
      %v8005 = vshrl.u32 %v7965, 16
      %v8007 = vrot.slane %v8005, 7
      %v8008 = vshll.u32 %v7965, 16
      %v8010 = vor.u32 %v8007, %v8008
      %v8011 = vsel %vm1206, %v7991, %v8010
      %v8016 = vsel %vm1232, 0, %v7972
      %v8017 = vsel %vm1232, 0, %v7979
      %v8018 = vrot.slane %v7970, 1
      %v8019 = vor.u32 %v7967, %v8018
      %v8020 = vrot.slane %v7984, 1
      %v8021 = vsel %vm1234, %v8019, %v8020
      %v8022 = vrot.slane %v7977, 1
      %v8023 = vor.u32 %v7974, %v8022
      %v8024 = vrot.slane %v7992, 1
      %v8025 = vsel %vm1234, %v8023, %v8024
      %v8026 = vor.u32 %v7981, %v8020
      %v8027 = vrot.slane %v8000, 1
      %v8028 = vsel %vm1234, %v8026, %v8027
      %v8029 = vor.u32 %v7989, %v8024
      %v8030 = vrot.slane %v8008, 1
      %v8031 = vsel %vm1234, %v8029, %v8030
      %v8032 = vor.u32 %v7997, %v8027
      %v8033 = vor.u32 %v8005, %v8030
      %v8038 = vsel %vm1245, %v8032, 0
      %v8039 = vsel %vm1245, %v8033, 0
      %v8040 = vld [vmem:[%s41] sm:$0xff]
      %v8041 = vld [vmem:[%s41 + $0x8] sm:$0xff]
      %v8042 = vld [vmem:[%s41 + $0x10] sm:$0xff]
      %v8043 = vld [vmem:[%s41 + $0x18] sm:$0xff]
      %v8044 = vld [vmem:[%s41 + $0x20] sm:$0xff]
      %v8045 = vld [vmem:[%s41 + $0x28] sm:$0xff]
      %v8046 = vld [vmem:[%s41 + $0x30] sm:$0xff]
      %v8047 = vld [vmem:[%s41 + $0x38] sm:$0xff]
      %v8048 = vld [vmem:[%s41 + $0x40] sm:$0xff]
      %v8049 = vld [vmem:[%s41 + $0x48] sm:$0xff]
      %v8050 = vld [vmem:[%s41 + $0x50] sm:$0xff]
      %v8051 = vld [vmem:[%s41 + $0x58] sm:$0xff]
      %v8052 = vld [vmem:[%s41 + $0x60] sm:$0xff]
      %v8053 = vld [vmem:[%s41 + $0x68] sm:$0xff]
      %v8054 = vld [vmem:[%s41 + $0x70] sm:$0xff]
      %v8055 = vld [vmem:[%s41 + $0x78] sm:$0xff]
      %v8056 = vld [vmem:[%s41 + $0x80] sm:$0xff]
      %v8057 = vld [vmem:[%s41 + $0x88] sm:$0xff]
      %v8058 = vld [vmem:[%s41 + $0x90] sm:$0xff]
      %v8059 = vld [vmem:[%s41 + $0x98] sm:$0xff]
      %v8060 = vld [vmem:[%s41 + $0xa0] sm:$0xff]
      %v8061 = vld [vmem:[%s41 + $0xa8] sm:$0xff]
      %v8062 = vld [vmem:[%s41 + $0xb0] sm:$0xff]
      %v8063 = vld [vmem:[%s41 + $0xb8] sm:$0xff]
      %v8064 = vld [vmem:[%s41 + $0xc0] sm:$0x33]
      %s8065 = scalar_lea.vmem %s41, 200
      %v8066 = vld [vmem:[%s8065] sm:$0xff]
      %v8067 = vld [vmem:[%s8065 + $0x8] sm:$0xff]
      %v8068 = vld [vmem:[%s8065 + $0x10] sm:$0xff]
      %v8069 = vld [vmem:[%s8065 + $0x18] sm:$0xff]
      %v8070 = vld [vmem:[%s8065 + $0x20] sm:$0xff]
      %v8071 = vld [vmem:[%s8065 + $0x28] sm:$0xff]
      %v8072 = vld [vmem:[%s8065 + $0x30] sm:$0xff]
      %v8073 = vld [vmem:[%s8065 + $0x38] sm:$0xff]
      %v8074 = vld [vmem:[%s8065 + $0x40] sm:$0xff]
      %v8075 = vld [vmem:[%s8065 + $0x48] sm:$0xff]
      %v8076 = vld [vmem:[%s8065 + $0x50] sm:$0xff]
      %v8077 = vld [vmem:[%s8065 + $0x58] sm:$0xff]
      %v8078 = vld [vmem:[%s8065 + $0x60] sm:$0xff]
      %v8079 = vld [vmem:[%s8065 + $0x68] sm:$0xff]
      %v8080 = vld [vmem:[%s8065 + $0x70] sm:$0xff]
      %v8081 = vld [vmem:[%s8065 + $0x78] sm:$0xff]
      %v8082 = vld [vmem:[%s8065 + $0x80] sm:$0xff]
      %v8083 = vld [vmem:[%s8065 + $0x88] sm:$0xff]
      %v8084 = vld [vmem:[%s8065 + $0x90] sm:$0xff]
      %v8085 = vld [vmem:[%s8065 + $0x98] sm:$0xff]
      %v8086 = vld [vmem:[%s8065 + $0xa0] sm:$0xff]
      %v8087 = vld [vmem:[%s8065 + $0xa8] sm:$0xff]
      %v8088 = vld [vmem:[%s8065 + $0xb0] sm:$0xff]
      %v8089 = vld [vmem:[%s8065 + $0xb8] sm:$0xff]
      %v8090 = vld [vmem:[%s8065 + $0xc0] sm:$0x33]
      %v8119 = vunpack.c.l.b16 %v8066
      %v8120 = vunpack.c.h.b16 %v8066
      %v8121 = vunpack.c.l.b16 %v8067
      %v8122 = vunpack.c.h.b16 %v8067
      %v8123 = vunpack.c.l.b16 %v8068
      %v8124 = vunpack.c.h.b16 %v8068
      %v8125 = vunpack.c.l.b16 %v8069
      %v8126 = vunpack.c.h.b16 %v8069
      %v8127 = vunpack.c.l.b16 %v8070
      %v8128 = vunpack.c.h.b16 %v8070
      %v8129 = vunpack.c.l.b16 %v8071
      %v8130 = vunpack.c.h.b16 %v8071
      %v8131 = vunpack.c.l.b16 %v8072
      %v8132 = vunpack.c.h.b16 %v8072
      %v8133 = vunpack.c.l.b16 %v8073
      %v8134 = vunpack.c.h.b16 %v8073
      %v8135 = vunpack.c.l.b16 %v8074
      %v8136 = vunpack.c.h.b16 %v8074
      %v8137 = vunpack.c.l.b16 %v8075
      %v8138 = vunpack.c.h.b16 %v8075
      %v8139 = vunpack.c.l.b16 %v8076
      %v8140 = vunpack.c.h.b16 %v8076
      %v8141 = vunpack.c.l.b16 %v8077
      %v8142 = vunpack.c.h.b16 %v8077
      %v8143 = vunpack.c.l.b16 %v8078
      %v8144 = vunpack.c.h.b16 %v8078
      %v8145 = vunpack.c.l.b16 %v8079
      %v8146 = vunpack.c.h.b16 %v8079
      %v8147 = vunpack.c.l.b16 %v8080
      %v8148 = vunpack.c.h.b16 %v8080
      %v8149 = vunpack.c.l.b16 %v8081
      %v8150 = vunpack.c.h.b16 %v8081
      %v8151 = vunpack.c.l.b16 %v8082
      %v8152 = vunpack.c.h.b16 %v8082
      %v8153 = vunpack.c.l.b16 %v8083
      %v8154 = vunpack.c.h.b16 %v8083
      %v8155 = vunpack.c.l.b16 %v8084
      %v8156 = vunpack.c.h.b16 %v8084
      %v8157 = vunpack.c.l.b16 %v8085
      %v8158 = vunpack.c.h.b16 %v8085
      %v8159 = vunpack.c.l.b16 %v8086
      %v8160 = vunpack.c.h.b16 %v8086
      %v8161 = vunpack.c.l.b16 %v8087
      %v8162 = vunpack.c.h.b16 %v8087
      %v8163 = vunpack.c.l.b16 %v8088
      %v8164 = vunpack.c.h.b16 %v8088
      %v8165 = vunpack.c.l.b16 %v8089
      %v8166 = vunpack.c.h.b16 %v8089
      %v8167 = vunpack.c.l.b16 %v8090
      %v8168 = vunpack.c.h.b16 %v8090
      %v8169 = vpack.c.b16 %v8121, %v8119
      %v8170 = vpack.c.b16 %v8122, %v8120
      %v8171 = vpack.c.b16 %v8125, %v8123
      %v8172 = vpack.c.b16 %v8126, %v8124
      %v8173 = vpack.c.b16 %v8129, %v8127
      %v8174 = vpack.c.b16 %v8130, %v8128
      %v8175 = vpack.c.b16 %v8133, %v8131
      %v8176 = vpack.c.b16 %v8134, %v8132
      %v8177 = vpack.c.b16 %v8137, %v8135
      %v8178 = vpack.c.b16 %v8138, %v8136
      %v8179 = vpack.c.b16 %v8141, %v8139
      %v8180 = vpack.c.b16 %v8142, %v8140
      %v8181 = vpack.c.b16 %v8145, %v8143
      %v8182 = vpack.c.b16 %v8146, %v8144
      %v8183 = vpack.c.b16 %v8149, %v8147
      %v8184 = vpack.c.b16 %v8150, %v8148
      %v8185 = vpack.c.b16 %v8153, %v8151
      %v8186 = vpack.c.b16 %v8154, %v8152
      %v8187 = vpack.c.b16 %v8157, %v8155
      %v8188 = vpack.c.b16 %v8158, %v8156
      %v8189 = vpack.c.b16 %v8161, %v8159
      %v8190 = vpack.c.b16 %v8162, %v8160
      %v8191 = vpack.c.b16 %v8165, %v8163
      %v8192 = vpack.c.b16 %v8166, %v8164
      %v8193 = vpack.c.b16 %v8167, %v8167
      %v8194 = vpack.c.b16 %v8168, %v8168
      %v8219 = vsel %vm3327, %v7961, 0
      %v8221 = vsel %vm3327, %v7963, 0
      %v8223 = vsel %vm3327, %v7965, 0
      %v8226 = vsel %vm1257, %v8193, 0
      %v8229 = vsel %vm1257, %v8194, 0
      %8231 = vmatpush.bf16.msra.mxu0 %v8183
      %8232 = vmatpush.bf16.msra.mxu0 %v8181
      %8233 = vmatpush.bf16.msra.mxu0 %v8179
      %8234 = vmatpush.bf16.msra.mxu0 %v8177
      %8235 = vmatpush.bf16.msra.mxu0 %v8175
      %8236 = vmatpush.bf16.msra.mxu0 %v8173
      %8237 = vmatpush.bf16.msra.mxu0 %v8171
      %8238 = vmatpush.bf16.msra.mxu0 %v8169
      %8239 = vmatmul.bf16.gmra.mxu0 %v7960
      %v8240 = vpop.f32.mrf.mxu0
      %v8241 = vadd.f32 0.0, %v8240
      %v8242 = vpop.f32.mrf.mxu0
      %v8243 = vadd.f32 0.0, %v8242
      %8244 = vmatmul.bf16.gmra.mxu0 %v7962
      %v8245 = vpop.f32.mrf.mxu0
      %v8246 = vadd.f32 0.0, %v8245
      %v8247 = vpop.f32.mrf.mxu0
      %v8248 = vadd.f32 0.0, %v8247
      %8249 = vmatmul.bf16.gmra.mxu0 %v7964
      %v8250 = vpop.f32.mrf.mxu0
      %v8251 = vadd.f32 0.0, %v8250
      %v8252 = vpop.f32.mrf.mxu0
      %v8253 = vadd.f32 0.0, %v8252
      %8254 = vdwg.mxu0
      %8255 = vmatpush.bf16.msra.mxu0 0
      %8256 = vmatpush.bf16.msra.mxu0 0
      %8257 = vmatpush.bf16.msra.mxu0 0
      %8258 = vmatpush.bf16.msra.mxu0 %v8226
      %8259 = vmatpush.bf16.msra.mxu0 %v8191
      %8260 = vmatpush.bf16.msra.mxu0 %v8189
      %8261 = vmatpush.bf16.msra.mxu0 %v8187
      %8262 = vmatpush.bf16.msra.mxu0 %v8185
      %8263 = vmatmul.bf16.gmra.mxu0 %v8219
      %v8264 = vpop.f32.mrf.mxu0
      %v8265 = vadd.f32 %v8241, %v8264
      %v8266 = vpop.f32.mrf.mxu0
      %v8267 = vadd.f32 %v8243, %v8266
      %8268 = vmatmul.bf16.gmra.mxu0 %v8221
      %v8269 = vpop.f32.mrf.mxu0
      %v8270 = vadd.f32 %v8246, %v8269
      %v8271 = vpop.f32.mrf.mxu0
      %v8272 = vadd.f32 %v8248, %v8271
      %8273 = vmatmul.bf16.gmra.mxu0 %v8223
      %v8274 = vpop.f32.mrf.mxu0
      %v8275 = vadd.f32 %v8251, %v8274
      %v8276 = vpop.f32.mrf.mxu0
      %v8277 = vadd.f32 %v8253, %v8276
      %8278 = vdwg.mxu0
      %8279 = vmatpush.bf16.msra.mxu0 %v8184
      %8280 = vmatpush.bf16.msra.mxu0 %v8182
      %8281 = vmatpush.bf16.msra.mxu0 %v8180
      %8282 = vmatpush.bf16.msra.mxu0 %v8178
      %8283 = vmatpush.bf16.msra.mxu0 %v8176
      %8284 = vmatpush.bf16.msra.mxu0 %v8174
      %8285 = vmatpush.bf16.msra.mxu0 %v8172
      %8286 = vmatpush.bf16.msra.mxu0 %v8170
      %8287 = vmatmul.bf16.gmra.mxu0 %v7960
      %v8288 = vpop.f32.mrf.mxu0
      %v8289 = vadd.f32 0.0, %v8288
      %v8290 = vpop.f32.mrf.mxu0
      %v8291 = vadd.f32 0.0, %v8290
      %8292 = vmatmul.bf16.gmra.mxu0 %v7962
      %v8293 = vpop.f32.mrf.mxu0
      %v8294 = vadd.f32 0.0, %v8293
      %v8295 = vpop.f32.mrf.mxu0
      %v8296 = vadd.f32 0.0, %v8295
      %8297 = vmatmul.bf16.gmra.mxu0 %v7964
      %v8298 = vpop.f32.mrf.mxu0
      %v8299 = vadd.f32 0.0, %v8298
      %v8300 = vpop.f32.mrf.mxu0
      %v8301 = vadd.f32 0.0, %v8300
      %8302 = vdwg.mxu0
      %8303 = vmatpush.bf16.msra.mxu0 0
      %8304 = vmatpush.bf16.msra.mxu0 0
      %8305 = vmatpush.bf16.msra.mxu0 0
      %8306 = vmatpush.bf16.msra.mxu0 %v8229
      %8307 = vmatpush.bf16.msra.mxu0 %v8192
      %8308 = vmatpush.bf16.msra.mxu0 %v8190
      %8309 = vmatpush.bf16.msra.mxu0 %v8188
      %8310 = vmatpush.bf16.msra.mxu0 %v8186
      %8311 = vmatmul.bf16.gmra.mxu0 %v8219
      %v8312 = vpop.f32.mrf.mxu0
      %v8313 = vadd.f32 %v8289, %v8312
      %v8314 = vpop.f32.mrf.mxu0
      %v8315 = vadd.f32 %v8291, %v8314
      %8316 = vmatmul.bf16.gmra.mxu0 %v8221
      %v8317 = vpop.f32.mrf.mxu0
      %v8318 = vadd.f32 %v8294, %v8317
      %v8319 = vpop.f32.mrf.mxu0
      %v8320 = vadd.f32 %v8296, %v8319
      %8321 = vmatmul.bf16.gmra.mxu0 %v8223
      %v8322 = vpop.f32.mrf.mxu0
      %v8323 = vadd.f32 %v8299, %v8322
      %v8324 = vpop.f32.mrf.mxu0
      %v8325 = vadd.f32 %v8301, %v8324
      %8326 = vdwg.mxu0
      %v8352 = vunpack.c.l.b16 %v8040
      %v8353 = vunpack.c.h.b16 %v8040
      %v8354 = vunpack.c.l.b16 %v8041
      %v8355 = vunpack.c.h.b16 %v8041
      %v8356 = vunpack.c.l.b16 %v8042
      %v8357 = vunpack.c.h.b16 %v8042
      %v8358 = vunpack.c.l.b16 %v8043
      %v8359 = vunpack.c.h.b16 %v8043
      %v8360 = vunpack.c.l.b16 %v8044
      %v8361 = vunpack.c.h.b16 %v8044
      %v8362 = vunpack.c.l.b16 %v8045
      %v8363 = vunpack.c.h.b16 %v8045
      %v8364 = vunpack.c.l.b16 %v8046
      %v8365 = vunpack.c.h.b16 %v8046
      %v8366 = vunpack.c.l.b16 %v8047
      %v8367 = vunpack.c.h.b16 %v8047
      %v8368 = vunpack.c.l.b16 %v8048
      %v8369 = vunpack.c.h.b16 %v8048
      %v8370 = vunpack.c.l.b16 %v8049
      %v8371 = vunpack.c.h.b16 %v8049
      %v8372 = vunpack.c.l.b16 %v8050
      %v8373 = vunpack.c.h.b16 %v8050
      %v8374 = vunpack.c.l.b16 %v8051
      %v8375 = vunpack.c.h.b16 %v8051
      %v8376 = vunpack.c.l.b16 %v8052
      %v8377 = vunpack.c.h.b16 %v8052
      %v8378 = vunpack.c.l.b16 %v8053
      %v8379 = vunpack.c.h.b16 %v8053
      %v8380 = vunpack.c.l.b16 %v8054
      %v8381 = vunpack.c.h.b16 %v8054
      %v8382 = vunpack.c.l.b16 %v8055
      %v8383 = vunpack.c.h.b16 %v8055
      %v8384 = vunpack.c.l.b16 %v8056
      %v8385 = vunpack.c.h.b16 %v8056
      %v8386 = vunpack.c.l.b16 %v8057
      %v8387 = vunpack.c.h.b16 %v8057
      %v8388 = vunpack.c.l.b16 %v8058
      %v8389 = vunpack.c.h.b16 %v8058
      %v8390 = vunpack.c.l.b16 %v8059
      %v8391 = vunpack.c.h.b16 %v8059
      %v8392 = vunpack.c.l.b16 %v8060
      %v8393 = vunpack.c.h.b16 %v8060
      %v8394 = vunpack.c.l.b16 %v8061
      %v8395 = vunpack.c.h.b16 %v8061
      %v8396 = vunpack.c.l.b16 %v8062
      %v8397 = vunpack.c.h.b16 %v8062
      %v8398 = vunpack.c.l.b16 %v8063
      %v8399 = vunpack.c.h.b16 %v8063
      %v8400 = vunpack.c.l.b16 %v8064
      %v8401 = vunpack.c.h.b16 %v8064
      %v8402 = vpack.c.b16 %v8354, %v8352
      %v8403 = vpack.c.b16 %v8355, %v8353
      %v8404 = vpack.c.b16 %v8358, %v8356
      %v8405 = vpack.c.b16 %v8359, %v8357
      %v8406 = vpack.c.b16 %v8362, %v8360
      %v8407 = vpack.c.b16 %v8363, %v8361
      %v8408 = vpack.c.b16 %v8366, %v8364
      %v8409 = vpack.c.b16 %v8367, %v8365
      %v8410 = vpack.c.b16 %v8370, %v8368
      %v8411 = vpack.c.b16 %v8371, %v8369
      %v8412 = vpack.c.b16 %v8374, %v8372
      %v8413 = vpack.c.b16 %v8375, %v8373
      %v8414 = vpack.c.b16 %v8378, %v8376
      %v8415 = vpack.c.b16 %v8379, %v8377
      %v8416 = vpack.c.b16 %v8382, %v8380
      %v8417 = vpack.c.b16 %v8383, %v8381
      %v8418 = vpack.c.b16 %v8386, %v8384
      %v8419 = vpack.c.b16 %v8387, %v8385
      %v8420 = vpack.c.b16 %v8390, %v8388
      %v8421 = vpack.c.b16 %v8391, %v8389
      %v8422 = vpack.c.b16 %v8394, %v8392
      %v8423 = vpack.c.b16 %v8395, %v8393
      %v8424 = vpack.c.b16 %v8398, %v8396
      %v8425 = vpack.c.b16 %v8399, %v8397
      %v8426 = vpack.c.b16 %v8400, %v8400
      %v8427 = vpack.c.b16 %v8401, %v8401
      %v8453 = vsel %vm3327, %v8017, 0
      %v8456 = vsel %vm3327, %v7995, 0
      %v8459 = vsel %vm3327, %v8011, 0
      %v8462 = vsel %vm1257, %v8426, 0
      %v8465 = vsel %vm1257, %v8427, 0
      %8467 = vmatpush.bf16.msra.mxu0 %v8416
      %8468 = vmatpush.bf16.msra.mxu0 %v8414
      %8469 = vmatpush.bf16.msra.mxu0 %v8412
      %8470 = vmatpush.bf16.msra.mxu0 %v8410
      %8471 = vmatpush.bf16.msra.mxu0 %v8408
      %8472 = vmatpush.bf16.msra.mxu0 %v8406
      %8473 = vmatpush.bf16.msra.mxu0 %v8404
      %8474 = vmatpush.bf16.msra.mxu0 %v8402
      %8475 = vmatmul.bf16.gmra.mxu0 %v8016
      %v8476 = vpop.f32.mrf.mxu0
      %v8477 = vadd.f32 %v8265, %v8476
      %v8478 = vpop.f32.mrf.mxu0
      %v8479 = vadd.f32 %v8267, %v8478
      %8480 = vmatmul.bf16.gmra.mxu0 %v7987
      %v8481 = vpop.f32.mrf.mxu0
      %v8482 = vadd.f32 %v8270, %v8481
      %v8483 = vpop.f32.mrf.mxu0
      %v8484 = vadd.f32 %v8272, %v8483
      %8485 = vmatmul.bf16.gmra.mxu0 %v8003
      %v8486 = vpop.f32.mrf.mxu0
      %v8487 = vadd.f32 %v8275, %v8486
      %v8488 = vpop.f32.mrf.mxu0
      %v8489 = vadd.f32 %v8277, %v8488
      %8490 = vdwg.mxu0
      %8491 = vmatpush.bf16.msra.mxu0 0
      %8492 = vmatpush.bf16.msra.mxu0 0
      %8493 = vmatpush.bf16.msra.mxu0 0
      %8494 = vmatpush.bf16.msra.mxu0 %v8462
      %8495 = vmatpush.bf16.msra.mxu0 %v8424
      %8496 = vmatpush.bf16.msra.mxu0 %v8422
      %8497 = vmatpush.bf16.msra.mxu0 %v8420
      %8498 = vmatpush.bf16.msra.mxu0 %v8418
      %8499 = vmatmul.bf16.gmra.mxu0 %v8453
      %v8500 = vpop.f32.mrf.mxu0
      %v8501 = vadd.f32 %v8477, %v8500
      %v8502 = vpop.f32.mrf.mxu0
      %v8503 = vadd.f32 %v8479, %v8502
      %8504 = vmatmul.bf16.gmra.mxu0 %v8456
      %v8505 = vpop.f32.mrf.mxu0
      %v8506 = vadd.f32 %v8482, %v8505
      %v8507 = vpop.f32.mrf.mxu0
      %v8508 = vadd.f32 %v8484, %v8507
      %8509 = vmatmul.bf16.gmra.mxu0 %v8459
      %v8510 = vpop.f32.mrf.mxu0
      %v8511 = vadd.f32 %v8487, %v8510
      %v8512 = vpop.f32.mrf.mxu0
      %v8513 = vadd.f32 %v8489, %v8512
      %8514 = vdwg.mxu0
      %8515 = vmatpush.bf16.msra.mxu0 %v8417
      %8516 = vmatpush.bf16.msra.mxu0 %v8415
      %8517 = vmatpush.bf16.msra.mxu0 %v8413
      %8518 = vmatpush.bf16.msra.mxu0 %v8411
      %8519 = vmatpush.bf16.msra.mxu0 %v8409
      %8520 = vmatpush.bf16.msra.mxu0 %v8407
      %8521 = vmatpush.bf16.msra.mxu0 %v8405
      %8522 = vmatpush.bf16.msra.mxu0 %v8403
      %8523 = vmatmul.bf16.gmra.mxu0 %v8016
      %v8524 = vpop.f32.mrf.mxu0
      %v8525 = vadd.f32 %v8313, %v8524
      %v8526 = vpop.f32.mrf.mxu0
      %v8527 = vadd.f32 %v8315, %v8526
      %8528 = vmatmul.bf16.gmra.mxu0 %v7987
      %v8529 = vpop.f32.mrf.mxu0
      %v8530 = vadd.f32 %v8318, %v8529
      %v8531 = vpop.f32.mrf.mxu0
      %v8532 = vadd.f32 %v8320, %v8531
      %8533 = vmatmul.bf16.gmra.mxu0 %v8003
      %v8534 = vpop.f32.mrf.mxu0
      %v8535 = vadd.f32 %v8323, %v8534
      %v8536 = vpop.f32.mrf.mxu0
      %v8537 = vadd.f32 %v8325, %v8536
      %8538 = vdwg.mxu0
      %8539 = vmatpush.bf16.msra.mxu0 0
      %8540 = vmatpush.bf16.msra.mxu0 0
      %8541 = vmatpush.bf16.msra.mxu0 0
      %8542 = vmatpush.bf16.msra.mxu0 %v8465
      %8543 = vmatpush.bf16.msra.mxu0 %v8425
      %8544 = vmatpush.bf16.msra.mxu0 %v8423
      %8545 = vmatpush.bf16.msra.mxu0 %v8421
      %8546 = vmatpush.bf16.msra.mxu0 %v8419
      %8547 = vmatmul.bf16.gmra.mxu0 %v8453
      %v8548 = vpop.f32.mrf.mxu0
      %v8549 = vadd.f32 %v8525, %v8548
      %v8550 = vpop.f32.mrf.mxu0
      %v8551 = vadd.f32 %v8527, %v8550
      %8552 = vmatmul.bf16.gmra.mxu0 %v8456
      %v8553 = vpop.f32.mrf.mxu0
      %v8554 = vadd.f32 %v8530, %v8553
      %v8555 = vpop.f32.mrf.mxu0
      %v8556 = vadd.f32 %v8532, %v8555
      %8557 = vmatmul.bf16.gmra.mxu0 %v8459
      %v8558 = vpop.f32.mrf.mxu0
      %v8559 = vadd.f32 %v8535, %v8558
      %v8560 = vpop.f32.mrf.mxu0
      %v8561 = vadd.f32 %v8537, %v8560
      %8562 = vdwg.mxu0
      %s8563 = scalar_lea.vmem %s41, 400
      %v8564 = vld [vmem:[%s8563] sm:$0xff]
      %v8565 = vld [vmem:[%s8563 + $0x8] sm:$0xff]
      %v8566 = vld [vmem:[%s8563 + $0x10] sm:$0xff]
      %v8567 = vld [vmem:[%s8563 + $0x18] sm:$0xff]
      %v8568 = vld [vmem:[%s8563 + $0x20] sm:$0xff]
      %v8569 = vld [vmem:[%s8563 + $0x28] sm:$0xff]
      %v8570 = vld [vmem:[%s8563 + $0x30] sm:$0xff]
      %v8571 = vld [vmem:[%s8563 + $0x38] sm:$0xff]
      %v8572 = vld [vmem:[%s8563 + $0x40] sm:$0xff]
      %v8573 = vld [vmem:[%s8563 + $0x48] sm:$0xff]
      %v8574 = vld [vmem:[%s8563 + $0x50] sm:$0xff]
      %v8575 = vld [vmem:[%s8563 + $0x58] sm:$0xff]
      %v8576 = vld [vmem:[%s8563 + $0x60] sm:$0xff]
      %v8577 = vld [vmem:[%s8563 + $0x68] sm:$0xff]
      %v8578 = vld [vmem:[%s8563 + $0x70] sm:$0xff]
      %v8579 = vld [vmem:[%s8563 + $0x78] sm:$0xff]
      %v8580 = vld [vmem:[%s8563 + $0x80] sm:$0xff]
      %v8581 = vld [vmem:[%s8563 + $0x88] sm:$0xff]
      %v8582 = vld [vmem:[%s8563 + $0x90] sm:$0xff]
      %v8583 = vld [vmem:[%s8563 + $0x98] sm:$0xff]
      %v8584 = vld [vmem:[%s8563 + $0xa0] sm:$0xff]
      %v8585 = vld [vmem:[%s8563 + $0xa8] sm:$0xff]
      %v8586 = vld [vmem:[%s8563 + $0xb0] sm:$0xff]
      %v8587 = vld [vmem:[%s8563 + $0xb8] sm:$0xff]
      %v8588 = vld [vmem:[%s8563 + $0xc0] sm:$0x33]
      %v8614 = vunpack.c.l.b16 %v8564
      %v8615 = vunpack.c.h.b16 %v8564
      %v8616 = vunpack.c.l.b16 %v8565
      %v8617 = vunpack.c.h.b16 %v8565
      %v8618 = vunpack.c.l.b16 %v8566
      %v8619 = vunpack.c.h.b16 %v8566
      %v8620 = vunpack.c.l.b16 %v8567
      %v8621 = vunpack.c.h.b16 %v8567
      %v8622 = vunpack.c.l.b16 %v8568
      %v8623 = vunpack.c.h.b16 %v8568
      %v8624 = vunpack.c.l.b16 %v8569
      %v8625 = vunpack.c.h.b16 %v8569
      %v8626 = vunpack.c.l.b16 %v8570
      %v8627 = vunpack.c.h.b16 %v8570
      %v8628 = vunpack.c.l.b16 %v8571
      %v8629 = vunpack.c.h.b16 %v8571
      %v8630 = vunpack.c.l.b16 %v8572
      %v8631 = vunpack.c.h.b16 %v8572
      %v8632 = vunpack.c.l.b16 %v8573
      %v8633 = vunpack.c.h.b16 %v8573
      %v8634 = vunpack.c.l.b16 %v8574
      %v8635 = vunpack.c.h.b16 %v8574
      %v8636 = vunpack.c.l.b16 %v8575
      %v8637 = vunpack.c.h.b16 %v8575
      %v8638 = vunpack.c.l.b16 %v8576
      %v8639 = vunpack.c.h.b16 %v8576
      %v8640 = vunpack.c.l.b16 %v8577
      %v8641 = vunpack.c.h.b16 %v8577
      %v8642 = vunpack.c.l.b16 %v8578
      %v8643 = vunpack.c.h.b16 %v8578
      %v8644 = vunpack.c.l.b16 %v8579
      %v8645 = vunpack.c.h.b16 %v8579
      %v8646 = vunpack.c.l.b16 %v8580
      %v8647 = vunpack.c.h.b16 %v8580
      %v8648 = vunpack.c.l.b16 %v8581
      %v8649 = vunpack.c.h.b16 %v8581
      %v8650 = vunpack.c.l.b16 %v8582
      %v8651 = vunpack.c.h.b16 %v8582
      %v8652 = vunpack.c.l.b16 %v8583
      %v8653 = vunpack.c.h.b16 %v8583
      %v8654 = vunpack.c.l.b16 %v8584
      %v8655 = vunpack.c.h.b16 %v8584
      %v8656 = vunpack.c.l.b16 %v8585
      %v8657 = vunpack.c.h.b16 %v8585
      %v8658 = vunpack.c.l.b16 %v8586
      %v8659 = vunpack.c.h.b16 %v8586
      %v8660 = vunpack.c.l.b16 %v8587
      %v8661 = vunpack.c.h.b16 %v8587
      %v8662 = vunpack.c.l.b16 %v8588
      %v8663 = vunpack.c.h.b16 %v8588
      %v8664 = vpack.c.b16 %v8616, %v8614
      %v8665 = vpack.c.b16 %v8617, %v8615
      %v8666 = vpack.c.b16 %v8620, %v8618
      %v8667 = vpack.c.b16 %v8621, %v8619
      %v8668 = vpack.c.b16 %v8624, %v8622
      %v8669 = vpack.c.b16 %v8625, %v8623
      %v8670 = vpack.c.b16 %v8628, %v8626
      %v8671 = vpack.c.b16 %v8629, %v8627
      %v8672 = vpack.c.b16 %v8632, %v8630
      %v8673 = vpack.c.b16 %v8633, %v8631
      %v8674 = vpack.c.b16 %v8636, %v8634
      %v8675 = vpack.c.b16 %v8637, %v8635
      %v8676 = vpack.c.b16 %v8640, %v8638
      %v8677 = vpack.c.b16 %v8641, %v8639
      %v8678 = vpack.c.b16 %v8644, %v8642
      %v8679 = vpack.c.b16 %v8645, %v8643
      %v8680 = vpack.c.b16 %v8648, %v8646
      %v8681 = vpack.c.b16 %v8649, %v8647
      %v8682 = vpack.c.b16 %v8652, %v8650
      %v8683 = vpack.c.b16 %v8653, %v8651
      %v8684 = vpack.c.b16 %v8656, %v8654
      %v8685 = vpack.c.b16 %v8657, %v8655
      %v8686 = vpack.c.b16 %v8660, %v8658
      %v8687 = vpack.c.b16 %v8661, %v8659
      %v8688 = vpack.c.b16 %v8662, %v8662
      %v8689 = vpack.c.b16 %v8663, %v8663
      %v8715 = vsel %vm3327, %v8025, 0
      %v8718 = vsel %vm3327, %v8031, 0
      %v8721 = vsel %vm3327, %v8039, 0
      %v8724 = vsel %vm1257, %v8688, 0
      %v8727 = vsel %vm1257, %v8689, 0
      %8729 = vmatpush.bf16.msra.mxu0 %v8678
      %8730 = vmatpush.bf16.msra.mxu0 %v8676
      %8731 = vmatpush.bf16.msra.mxu0 %v8674
      %8732 = vmatpush.bf16.msra.mxu0 %v8672
      %8733 = vmatpush.bf16.msra.mxu0 %v8670
      %8734 = vmatpush.bf16.msra.mxu0 %v8668
      %8735 = vmatpush.bf16.msra.mxu0 %v8666
      %8736 = vmatpush.bf16.msra.mxu0 %v8664
      %8737 = vmatmul.bf16.gmra.mxu0 %v8021
      %v8738 = vpop.f32.mrf.mxu0
      %v8739 = vadd.f32 0.0, %v8738
      %v8740 = vpop.f32.mrf.mxu0
      %v8741 = vadd.f32 0.0, %v8740
      %8742 = vmatmul.bf16.gmra.mxu0 %v8028
      %v8743 = vpop.f32.mrf.mxu0
      %v8744 = vadd.f32 0.0, %v8743
      %v8745 = vpop.f32.mrf.mxu0
      %v8746 = vadd.f32 0.0, %v8745
      %8747 = vmatmul.bf16.gmra.mxu0 %v8038
      %v8748 = vpop.f32.mrf.mxu0
      %v8749 = vadd.f32 0.0, %v8748
      %v8750 = vpop.f32.mrf.mxu0
      %v8751 = vadd.f32 0.0, %v8750
      %8752 = vdwg.mxu0
      %8753 = vmatpush.bf16.msra.mxu0 0
      %8754 = vmatpush.bf16.msra.mxu0 0
      %8755 = vmatpush.bf16.msra.mxu0 0
      %8756 = vmatpush.bf16.msra.mxu0 %v8724
      %8757 = vmatpush.bf16.msra.mxu0 %v8686
      %8758 = vmatpush.bf16.msra.mxu0 %v8684
      %8759 = vmatpush.bf16.msra.mxu0 %v8682
      %8760 = vmatpush.bf16.msra.mxu0 %v8680
      %8761 = vmatmul.bf16.gmra.mxu0 %v8715
      %v8762 = vpop.f32.mrf.mxu0
      %v8763 = vadd.f32 %v8739, %v8762
      %v8764 = vpop.f32.mrf.mxu0
      %v8765 = vadd.f32 %v8741, %v8764
      %8766 = vmatmul.bf16.gmra.mxu0 %v8718
      %v8767 = vpop.f32.mrf.mxu0
      %v8768 = vadd.f32 %v8744, %v8767
      %v8769 = vpop.f32.mrf.mxu0
      %v8770 = vadd.f32 %v8746, %v8769
      %8771 = vmatmul.bf16.gmra.mxu0 %v8721
      %v8772 = vpop.f32.mrf.mxu0
      %v8773 = vadd.f32 %v8749, %v8772
      %v8774 = vpop.f32.mrf.mxu0
      %v8775 = vadd.f32 %v8751, %v8774
      %8776 = vdwg.mxu0
      %8777 = vmatpush.bf16.msra.mxu0 %v8679
      %8778 = vmatpush.bf16.msra.mxu0 %v8677
      %8779 = vmatpush.bf16.msra.mxu0 %v8675
      %8780 = vmatpush.bf16.msra.mxu0 %v8673
      %8781 = vmatpush.bf16.msra.mxu0 %v8671
      %8782 = vmatpush.bf16.msra.mxu0 %v8669
      %8783 = vmatpush.bf16.msra.mxu0 %v8667
      %8784 = vmatpush.bf16.msra.mxu0 %v8665
      %8785 = vmatmul.bf16.gmra.mxu0 %v8021
      %v8786 = vpop.f32.mrf.mxu0
      %v8787 = vadd.f32 0.0, %v8786
      %v8788 = vpop.f32.mrf.mxu0
      %v8789 = vadd.f32 0.0, %v8788
      %8790 = vmatmul.bf16.gmra.mxu0 %v8028
      %v8791 = vpop.f32.mrf.mxu0
      %v8792 = vadd.f32 0.0, %v8791
      %v8793 = vpop.f32.mrf.mxu0
      %v8794 = vadd.f32 0.0, %v8793
      %8795 = vmatmul.bf16.gmra.mxu0 %v8038
      %v8796 = vpop.f32.mrf.mxu0
      %v8797 = vadd.f32 0.0, %v8796
      %v8798 = vpop.f32.mrf.mxu0
      %v8799 = vadd.f32 0.0, %v8798
      %8800 = vdwg.mxu0
      %8801 = vmatpush.bf16.msra.mxu0 0
      %8802 = vmatpush.bf16.msra.mxu0 0
      %8803 = vmatpush.bf16.msra.mxu0 0
      %8804 = vmatpush.bf16.msra.mxu0 %v8727
      %8805 = vmatpush.bf16.msra.mxu0 %v8687
      %8806 = vmatpush.bf16.msra.mxu0 %v8685
      %8807 = vmatpush.bf16.msra.mxu0 %v8683
      %8808 = vmatpush.bf16.msra.mxu0 %v8681
      %8809 = vmatmul.bf16.gmra.mxu0 %v8715
      %v8810 = vpop.f32.mrf.mxu0
      %v8811 = vadd.f32 %v8787, %v8810
      %v8812 = vpop.f32.mrf.mxu0
      %v8813 = vadd.f32 %v8789, %v8812
      %8814 = vmatmul.bf16.gmra.mxu0 %v8718
      %v8815 = vpop.f32.mrf.mxu0
      %v8816 = vadd.f32 %v8792, %v8815
      %v8817 = vpop.f32.mrf.mxu0
      %v8818 = vadd.f32 %v8794, %v8817
      %8819 = vmatmul.bf16.gmra.mxu0 %v8721
      %v8820 = vpop.f32.mrf.mxu0
      %v8821 = vadd.f32 %v8797, %v8820
      %v8822 = vpop.f32.mrf.mxu0
      %v8823 = vadd.f32 %v8799, %v8822
      %8824 = vdwg.mxu0
      %v8825 = vadd.f32 %v8501, %v8763
      %v8826 = vadd.f32 %v8549, %v8811
      %v8827 = vadd.f32 %v8503, %v8765
      %v8828 = vadd.f32 %v8551, %v8813
      %v8829 = vadd.f32 %v8506, %v8768
      %v8830 = vadd.f32 %v8554, %v8816
      %v8831 = vadd.f32 %v8508, %v8770
      %v8832 = vadd.f32 %v8556, %v8818
      %v8833 = vadd.f32 %v8511, %v8773
      %v8834 = vadd.f32 %v8559, %v8821
      %v8835 = vadd.f32 %v8513, %v8775
      %v8836 = vadd.f32 %v8561, %v8823
      %v8837 = vld [vmem:[%s43] sm:$0xff]
      %v8838 = vld [vmem:[%s43 + $0x8] sm:$0xff]
      %v8839 = vld [vmem:[%s43 + $0x10] sm:$0xff]
      %v8840 = vld [vmem:[%s43 + $0x18] sm:$0xff]
      %v8841 = vld [vmem:[%s43 + $0x20] sm:$0xff]
      %v8842 = vld [vmem:[%s43 + $0x28] sm:$0xff]
      %v8843 = vld [vmem:[%s43 + $0x30] sm:$0xff]
      %v8844 = vld [vmem:[%s43 + $0x38] sm:$0xff]
      %v8845 = vld [vmem:[%s43 + $0x40] sm:$0xff]
      %v8846 = vld [vmem:[%s43 + $0x48] sm:$0xff]
      %v8847 = vld [vmem:[%s43 + $0x50] sm:$0xff]
      %v8848 = vld [vmem:[%s43 + $0x58] sm:$0xff]
      %v8849 = vld [vmem:[%s43 + $0x60] sm:$0xff]
      %v8850 = vld [vmem:[%s43 + $0x68] sm:$0xff]
      %v8851 = vld [vmem:[%s43 + $0x70] sm:$0xff]
      %v8852 = vld [vmem:[%s43 + $0x78] sm:$0xff]
      %v8853 = vld [vmem:[%s43 + $0x80] sm:$0xff]
      %v8854 = vld [vmem:[%s43 + $0x88] sm:$0xff]
      %v8855 = vld [vmem:[%s43 + $0x90] sm:$0x33]
      %v8875 = vunpack.c.l.b16 %v8837
      %v8876 = vunpack.c.h.b16 %v8837
      %v8877 = vunpack.c.l.b16 %v8838
      %v8878 = vunpack.c.h.b16 %v8838
      %v8879 = vunpack.c.l.b16 %v8839
      %v8880 = vunpack.c.h.b16 %v8839
      %v8881 = vunpack.c.l.b16 %v8840
      %v8882 = vunpack.c.h.b16 %v8840
      %v8883 = vunpack.c.l.b16 %v8841
      %v8884 = vunpack.c.h.b16 %v8841
      %v8885 = vunpack.c.l.b16 %v8842
      %v8886 = vunpack.c.h.b16 %v8842
      %v8887 = vunpack.c.l.b16 %v8843
      %v8888 = vunpack.c.h.b16 %v8843
      %v8889 = vunpack.c.l.b16 %v8844
      %v8890 = vunpack.c.h.b16 %v8844
      %v8891 = vunpack.c.l.b16 %v8845
      %v8892 = vunpack.c.h.b16 %v8845
      %v8893 = vunpack.c.l.b16 %v8846
      %v8894 = vunpack.c.h.b16 %v8846
      %v8895 = vunpack.c.l.b16 %v8847
      %v8896 = vunpack.c.h.b16 %v8847
      %v8897 = vunpack.c.l.b16 %v8848
      %v8898 = vunpack.c.h.b16 %v8848
      %v8899 = vunpack.c.l.b16 %v8849
      %v8900 = vunpack.c.h.b16 %v8849
      %v8901 = vunpack.c.l.b16 %v8850
      %v8902 = vunpack.c.h.b16 %v8850
      %v8903 = vunpack.c.l.b16 %v8851
      %v8904 = vunpack.c.h.b16 %v8851
      %v8905 = vunpack.c.l.b16 %v8852
      %v8906 = vunpack.c.h.b16 %v8852
      %v8907 = vunpack.c.l.b16 %v8853
      %v8908 = vunpack.c.h.b16 %v8853
      %v8909 = vunpack.c.l.b16 %v8854
      %v8910 = vunpack.c.h.b16 %v8854
      %v8911 = vunpack.c.l.b16 %v8855
      %v8912 = vunpack.c.h.b16 %v8855
      %v8913 = vpack.c.b16 %v8877, %v8875
      %v8914 = vpack.c.b16 %v8878, %v8876
      %v8915 = vpack.c.b16 %v8881, %v8879
      %v8916 = vpack.c.b16 %v8882, %v8880
      %v8917 = vpack.c.b16 %v8885, %v8883
      %v8918 = vpack.c.b16 %v8886, %v8884
      %v8919 = vpack.c.b16 %v8889, %v8887
      %v8920 = vpack.c.b16 %v8890, %v8888
      %v8921 = vpack.c.b16 %v8893, %v8891
      %v8922 = vpack.c.b16 %v8894, %v8892
      %v8923 = vpack.c.b16 %v8897, %v8895
      %v8924 = vpack.c.b16 %v8898, %v8896
      %v8925 = vpack.c.b16 %v8901, %v8899
      %v8926 = vpack.c.b16 %v8902, %v8900
      %v8927 = vpack.c.b16 %v8905, %v8903
      %v8928 = vpack.c.b16 %v8906, %v8904
      %v8929 = vpack.c.b16 %v8909, %v8907
      %v8930 = vpack.c.b16 %v8910, %v8908
      %v8931 = vpack.c.b16 %v8911, %v8911
      %v8932 = vpack.c.b16 %v8912, %v8912
      %v8952 = vsel %vm1257, %v8931, 0
      %v8955 = vsel %vm1257, %v8932, 0
      %8957 = vmatpush.bf16.msra.mxu0 %v8927
      %8958 = vmatpush.bf16.msra.mxu0 %v8925
      %8959 = vmatpush.bf16.msra.mxu0 %v8923
      %8960 = vmatpush.bf16.msra.mxu0 %v8921
      %8961 = vmatpush.bf16.msra.mxu0 %v8919
      %8962 = vmatpush.bf16.msra.mxu0 %v8917
      %8963 = vmatpush.bf16.msra.mxu0 %v8915
      %8964 = vmatpush.bf16.msra.mxu0 %v8913
      %8965 = vmatmul.bf16.gmra.mxu0 %v2288
      %v8966 = vpop.f32.mrf.mxu0
      %v8967 = vadd.f32 0.0, %v8966
      %v8968 = vpop.f32.mrf.mxu0
      %v8969 = vadd.f32 0.0, %v8968
      %8970 = vmatmul.bf16.gmra.mxu0 %v2259
      %v8971 = vpop.f32.mrf.mxu0
      %v8972 = vadd.f32 0.0, %v8971
      %v8973 = vpop.f32.mrf.mxu0
      %v8974 = vadd.f32 0.0, %v8973
      %8975 = vmatmul.bf16.gmra.mxu0 %v2275
      %v8976 = vpop.f32.mrf.mxu0
      %v8977 = vadd.f32 0.0, %v8976
      %v8978 = vpop.f32.mrf.mxu0
      %v8979 = vadd.f32 0.0, %v8978
      %8980 = vdwg.mxu0
      %8981 = vmatpush.bf16.msra.mxu0 0
      %8982 = vmatpush.bf16.msra.mxu0 0
      %8983 = vmatpush.bf16.msra.mxu0 0
      %8984 = vmatpush.bf16.msra.mxu0 0
      %8985 = vmatpush.bf16.msra.mxu0 0
      %8986 = vmatpush.bf16.msra.mxu0 0
      %8987 = vmatpush.bf16.msra.mxu0 %v8952
      %8988 = vmatpush.bf16.msra.mxu0 %v8929
      %8989 = vmatmul.bf16.gmra.mxu0 %v2654
      %v8990 = vpop.f32.mrf.mxu0
      %v8991 = vadd.f32 %v8967, %v8990
      %v8992 = vpop.f32.mrf.mxu0
      %v8993 = vadd.f32 %v8969, %v8992
      %8994 = vmatmul.bf16.gmra.mxu0 %v2657
      %v8995 = vpop.f32.mrf.mxu0
      %v8996 = vadd.f32 %v8972, %v8995
      %v8997 = vpop.f32.mrf.mxu0
      %v8998 = vadd.f32 %v8974, %v8997
      %8999 = vmatmul.bf16.gmra.mxu0 %v2660
      %v9000 = vpop.f32.mrf.mxu0
      %v9001 = vadd.f32 %v8977, %v9000
      %v9002 = vpop.f32.mrf.mxu0
      %v9003 = vadd.f32 %v8979, %v9002
      %9004 = vdwg.mxu0
      %9005 = vmatpush.bf16.msra.mxu0 %v8928
      %9006 = vmatpush.bf16.msra.mxu0 %v8926
      %9007 = vmatpush.bf16.msra.mxu0 %v8924
      %9008 = vmatpush.bf16.msra.mxu0 %v8922
      %9009 = vmatpush.bf16.msra.mxu0 %v8920
      %9010 = vmatpush.bf16.msra.mxu0 %v8918
      %9011 = vmatpush.bf16.msra.mxu0 %v8916
      %9012 = vmatpush.bf16.msra.mxu0 %v8914
      %9013 = vmatmul.bf16.gmra.mxu0 %v2288
      %v9014 = vpop.f32.mrf.mxu0
      %v9015 = vadd.f32 0.0, %v9014
      %v9016 = vpop.f32.mrf.mxu0
      %v9017 = vadd.f32 0.0, %v9016
      %9018 = vmatmul.bf16.gmra.mxu0 %v2259
      %v9019 = vpop.f32.mrf.mxu0
      %v9020 = vadd.f32 0.0, %v9019
      %v9021 = vpop.f32.mrf.mxu0
      %v9022 = vadd.f32 0.0, %v9021
      %9023 = vmatmul.bf16.gmra.mxu0 %v2275
      %v9024 = vpop.f32.mrf.mxu0
      %v9025 = vadd.f32 0.0, %v9024
      %v9026 = vpop.f32.mrf.mxu0
      %v9027 = vadd.f32 0.0, %v9026
      %9028 = vdwg.mxu0
      %9029 = vmatpush.bf16.msra.mxu0 0
      %9030 = vmatpush.bf16.msra.mxu0 0
      %9031 = vmatpush.bf16.msra.mxu0 0
      %9032 = vmatpush.bf16.msra.mxu0 0
      %9033 = vmatpush.bf16.msra.mxu0 0
      %9034 = vmatpush.bf16.msra.mxu0 0
      %9035 = vmatpush.bf16.msra.mxu0 %v8955
      %9036 = vmatpush.bf16.msra.mxu0 %v8930
      %9037 = vmatmul.bf16.gmra.mxu0 %v2654
      %v9038 = vpop.f32.mrf.mxu0
      %v9039 = vadd.f32 %v9015, %v9038
      %v9040 = vpop.f32.mrf.mxu0
      %v9041 = vadd.f32 %v9017, %v9040
      %9042 = vmatmul.bf16.gmra.mxu0 %v2657
      %v9043 = vpop.f32.mrf.mxu0
      %v9044 = vadd.f32 %v9020, %v9043
      %v9045 = vpop.f32.mrf.mxu0
      %v9046 = vadd.f32 %v9022, %v9045
      %9047 = vmatmul.bf16.gmra.mxu0 %v2660
      %v9048 = vpop.f32.mrf.mxu0
      %v9049 = vadd.f32 %v9025, %v9048
      %v9050 = vpop.f32.mrf.mxu0
      %v9051 = vadd.f32 %v9027, %v9050
      %9052 = vdwg.mxu0
      %v9053 = vadd.f32 %v8825, %v8991
      %v9054 = vadd.f32 %v8826, %v9039
      %v9055 = vadd.f32 %v8827, %v8993
      %v9056 = vadd.f32 %v8828, %v9041
      %v9057 = vadd.f32 %v8829, %v8996
      %v9058 = vadd.f32 %v8830, %v9044
      %v9059 = vadd.f32 %v8831, %v8998
      %v9060 = vadd.f32 %v8832, %v9046
      %v9061 = vadd.f32 %v8833, %v9001
      %v9062 = vadd.f32 %v8834, %v9049
      %v9063 = vadd.f32 %v8835, %v9003
      %v9064 = vadd.f32 %v8836, %v9051
      %s9065 = scalar_lea.vmem %s43, 152
      %v9066 = vld [vmem:[%s9065] sm:$0xff]
      %v9067 = vld [vmem:[%s9065 + $0x8] sm:$0xff]
      %v9068 = vld [vmem:[%s9065 + $0x10] sm:$0xff]
      %v9069 = vld [vmem:[%s9065 + $0x18] sm:$0xff]
      %v9070 = vld [vmem:[%s9065 + $0x20] sm:$0xff]
      %v9071 = vld [vmem:[%s9065 + $0x28] sm:$0xff]
      %v9072 = vld [vmem:[%s9065 + $0x30] sm:$0xff]
      %v9073 = vld [vmem:[%s9065 + $0x38] sm:$0xff]
      %v9074 = vld [vmem:[%s9065 + $0x40] sm:$0xff]
      %v9075 = vld [vmem:[%s9065 + $0x48] sm:$0xff]
      %v9076 = vld [vmem:[%s9065 + $0x50] sm:$0xff]
      %v9077 = vld [vmem:[%s9065 + $0x58] sm:$0xff]
      %v9078 = vld [vmem:[%s9065 + $0x60] sm:$0xff]
      %v9079 = vld [vmem:[%s9065 + $0x68] sm:$0xff]
      %v9080 = vld [vmem:[%s9065 + $0x70] sm:$0xff]
      %v9081 = vld [vmem:[%s9065 + $0x78] sm:$0xff]
      %v9082 = vld [vmem:[%s9065 + $0x80] sm:$0xff]
      %v9083 = vld [vmem:[%s9065 + $0x88] sm:$0xff]
      %v9084 = vld [vmem:[%s9065 + $0x90] sm:$0x33]
      %v9104 = vunpack.c.l.b16 %v9066
      %v9105 = vunpack.c.h.b16 %v9066
      %v9106 = vunpack.c.l.b16 %v9067
      %v9107 = vunpack.c.h.b16 %v9067
      %v9108 = vunpack.c.l.b16 %v9068
      %v9109 = vunpack.c.h.b16 %v9068
      %v9110 = vunpack.c.l.b16 %v9069
      %v9111 = vunpack.c.h.b16 %v9069
      %v9112 = vunpack.c.l.b16 %v9070
      %v9113 = vunpack.c.h.b16 %v9070
      %v9114 = vunpack.c.l.b16 %v9071
      %v9115 = vunpack.c.h.b16 %v9071
      %v9116 = vunpack.c.l.b16 %v9072
      %v9117 = vunpack.c.h.b16 %v9072
      %v9118 = vunpack.c.l.b16 %v9073
      %v9119 = vunpack.c.h.b16 %v9073
      %v9120 = vunpack.c.l.b16 %v9074
      %v9121 = vunpack.c.h.b16 %v9074
      %v9122 = vunpack.c.l.b16 %v9075
      %v9123 = vunpack.c.h.b16 %v9075
      %v9124 = vunpack.c.l.b16 %v9076
      %v9125 = vunpack.c.h.b16 %v9076
      %v9126 = vunpack.c.l.b16 %v9077
      %v9127 = vunpack.c.h.b16 %v9077
      %v9128 = vunpack.c.l.b16 %v9078
      %v9129 = vunpack.c.h.b16 %v9078
      %v9130 = vunpack.c.l.b16 %v9079
      %v9131 = vunpack.c.h.b16 %v9079
      %v9132 = vunpack.c.l.b16 %v9080
      %v9133 = vunpack.c.h.b16 %v9080
      %v9134 = vunpack.c.l.b16 %v9081
      %v9135 = vunpack.c.h.b16 %v9081
      %v9136 = vunpack.c.l.b16 %v9082
      %v9137 = vunpack.c.h.b16 %v9082
      %v9138 = vunpack.c.l.b16 %v9083
      %v9139 = vunpack.c.h.b16 %v9083
      %v9140 = vunpack.c.l.b16 %v9084
      %v9141 = vunpack.c.h.b16 %v9084
      %v9142 = vpack.c.b16 %v9106, %v9104
      %v9143 = vpack.c.b16 %v9107, %v9105
      %v9144 = vpack.c.b16 %v9110, %v9108
      %v9145 = vpack.c.b16 %v9111, %v9109
      %v9146 = vpack.c.b16 %v9114, %v9112
      %v9147 = vpack.c.b16 %v9115, %v9113
      %v9148 = vpack.c.b16 %v9118, %v9116
      %v9149 = vpack.c.b16 %v9119, %v9117
      %v9150 = vpack.c.b16 %v9122, %v9120
      %v9151 = vpack.c.b16 %v9123, %v9121
      %v9152 = vpack.c.b16 %v9126, %v9124
      %v9153 = vpack.c.b16 %v9127, %v9125
      %v9154 = vpack.c.b16 %v9130, %v9128
      %v9155 = vpack.c.b16 %v9131, %v9129
      %v9156 = vpack.c.b16 %v9134, %v9132
      %v9157 = vpack.c.b16 %v9135, %v9133
      %v9158 = vpack.c.b16 %v9138, %v9136
      %v9159 = vpack.c.b16 %v9139, %v9137
      %v9160 = vpack.c.b16 %v9140, %v9140
      %v9161 = vpack.c.b16 %v9141, %v9141
      %v9181 = vsel %vm1257, %v9160, 0
      %v9184 = vsel %vm1257, %v9161, 0
      %9186 = vmatpush.bf16.msra.mxu0 %v9156
      %9187 = vmatpush.bf16.msra.mxu0 %v9154
      %9188 = vmatpush.bf16.msra.mxu0 %v9152
      %9189 = vmatpush.bf16.msra.mxu0 %v9150
      %9190 = vmatpush.bf16.msra.mxu0 %v9148
      %9191 = vmatpush.bf16.msra.mxu0 %v9146
      %9192 = vmatpush.bf16.msra.mxu0 %v9144
      %9193 = vmatpush.bf16.msra.mxu0 %v9142
      %9194 = vmatmul.bf16.gmra.mxu0 %v2232
      %v9195 = vpop.f32.mrf.mxu0
      %v9196 = vadd.f32 0.0, %v9195
      %v9197 = vpop.f32.mrf.mxu0
      %v9198 = vadd.f32 0.0, %v9197
      %9199 = vmatmul.bf16.gmra.mxu0 %v2234
      %v9200 = vpop.f32.mrf.mxu0
      %v9201 = vadd.f32 0.0, %v9200
      %v9202 = vpop.f32.mrf.mxu0
      %v9203 = vadd.f32 0.0, %v9202
      %9204 = vmatmul.bf16.gmra.mxu0 %v2236
      %v9205 = vpop.f32.mrf.mxu0
      %v9206 = vadd.f32 0.0, %v9205
      %v9207 = vpop.f32.mrf.mxu0
      %v9208 = vadd.f32 0.0, %v9207
      %9209 = vdwg.mxu0
      %9210 = vmatpush.bf16.msra.mxu0 0
      %9211 = vmatpush.bf16.msra.mxu0 0
      %9212 = vmatpush.bf16.msra.mxu0 0
      %9213 = vmatpush.bf16.msra.mxu0 0
      %9214 = vmatpush.bf16.msra.mxu0 0
      %9215 = vmatpush.bf16.msra.mxu0 0
      %9216 = vmatpush.bf16.msra.mxu0 %v9181
      %9217 = vmatpush.bf16.msra.mxu0 %v9158
      %9218 = vmatmul.bf16.gmra.mxu0 %v2450
      %v9219 = vpop.f32.mrf.mxu0
      %v9220 = vadd.f32 %v9196, %v9219
      %v9221 = vpop.f32.mrf.mxu0
      %v9222 = vadd.f32 %v9198, %v9221
      %9223 = vmatmul.bf16.gmra.mxu0 %v2452
      %v9224 = vpop.f32.mrf.mxu0
      %v9225 = vadd.f32 %v9201, %v9224
      %v9226 = vpop.f32.mrf.mxu0
      %v9227 = vadd.f32 %v9203, %v9226
      %9228 = vmatmul.bf16.gmra.mxu0 %v2454
      %v9229 = vpop.f32.mrf.mxu0
      %v9230 = vadd.f32 %v9206, %v9229
      %v9231 = vpop.f32.mrf.mxu0
      %v9232 = vadd.f32 %v9208, %v9231
      %9233 = vdwg.mxu0
      %9234 = vmatpush.bf16.msra.mxu0 %v9157
      %9235 = vmatpush.bf16.msra.mxu0 %v9155
      %9236 = vmatpush.bf16.msra.mxu0 %v9153
      %9237 = vmatpush.bf16.msra.mxu0 %v9151
      %9238 = vmatpush.bf16.msra.mxu0 %v9149
      %9239 = vmatpush.bf16.msra.mxu0 %v9147
      %9240 = vmatpush.bf16.msra.mxu0 %v9145
      %9241 = vmatpush.bf16.msra.mxu0 %v9143
      %9242 = vmatmul.bf16.gmra.mxu0 %v2232
      %v9243 = vpop.f32.mrf.mxu0
      %v9244 = vadd.f32 0.0, %v9243
      %v9245 = vpop.f32.mrf.mxu0
      %v9246 = vadd.f32 0.0, %v9245
      %9247 = vmatmul.bf16.gmra.mxu0 %v2234
      %v9248 = vpop.f32.mrf.mxu0
      %v9249 = vadd.f32 0.0, %v9248
      %v9250 = vpop.f32.mrf.mxu0
      %v9251 = vadd.f32 0.0, %v9250
      %9252 = vmatmul.bf16.gmra.mxu0 %v2236
      %v9253 = vpop.f32.mrf.mxu0
      %v9254 = vadd.f32 0.0, %v9253
      %v9255 = vpop.f32.mrf.mxu0
      %v9256 = vadd.f32 0.0, %v9255
      %9257 = vdwg.mxu0
      %9258 = vmatpush.bf16.msra.mxu0 0
      %9259 = vmatpush.bf16.msra.mxu0 0
      %9260 = vmatpush.bf16.msra.mxu0 0
      %9261 = vmatpush.bf16.msra.mxu0 0
      %9262 = vmatpush.bf16.msra.mxu0 0
      %9263 = vmatpush.bf16.msra.mxu0 0
      %9264 = vmatpush.bf16.msra.mxu0 %v9184
      %9265 = vmatpush.bf16.msra.mxu0 %v9159
      %9266 = vmatmul.bf16.gmra.mxu0 %v2450
      %v9267 = vpop.f32.mrf.mxu0
      %v9268 = vadd.f32 %v9244, %v9267
      %v9269 = vpop.f32.mrf.mxu0
      %v9270 = vadd.f32 %v9246, %v9269
      %9271 = vmatmul.bf16.gmra.mxu0 %v2452
      %v9272 = vpop.f32.mrf.mxu0
      %v9273 = vadd.f32 %v9249, %v9272
      %v9274 = vpop.f32.mrf.mxu0
      %v9275 = vadd.f32 %v9251, %v9274
      %9276 = vmatmul.bf16.gmra.mxu0 %v2454
      %v9277 = vpop.f32.mrf.mxu0
      %v9278 = vadd.f32 %v9254, %v9277
      %v9279 = vpop.f32.mrf.mxu0
      %v9280 = vadd.f32 %v9256, %v9279
      %9281 = vdwg.mxu0
      %v9282 = vadd.f32 %v9053, %v9220
      %v9283 = vadd.f32 %v9054, %v9268
      %v9284 = vadd.f32 %v9055, %v9222
      %v9285 = vadd.f32 %v9056, %v9270
      %v9286 = vadd.f32 %v9057, %v9225
      %v9287 = vadd.f32 %v9058, %v9273
      %v9288 = vadd.f32 %v9059, %v9227
      %v9289 = vadd.f32 %v9060, %v9275
      %v9290 = vadd.f32 %v9061, %v9230
      %v9291 = vadd.f32 %v9062, %v9278
      %v9292 = vadd.f32 %v9063, %v9232
      %v9293 = vadd.f32 %v9064, %v9280
      %s9294 = scalar_lea.vmem %s43, 304
      %v9295 = vld [vmem:[%s9294] sm:$0xff]
      %v9296 = vld [vmem:[%s9294 + $0x8] sm:$0xff]
      %v9297 = vld [vmem:[%s9294 + $0x10] sm:$0xff]
      %v9298 = vld [vmem:[%s9294 + $0x18] sm:$0xff]
      %v9299 = vld [vmem:[%s9294 + $0x20] sm:$0xff]
      %v9300 = vld [vmem:[%s9294 + $0x28] sm:$0xff]
      %v9301 = vld [vmem:[%s9294 + $0x30] sm:$0xff]
      %v9302 = vld [vmem:[%s9294 + $0x38] sm:$0xff]
      %v9303 = vld [vmem:[%s9294 + $0x40] sm:$0xff]
      %v9304 = vld [vmem:[%s9294 + $0x48] sm:$0xff]
      %v9305 = vld [vmem:[%s9294 + $0x50] sm:$0xff]
      %v9306 = vld [vmem:[%s9294 + $0x58] sm:$0xff]
      %v9307 = vld [vmem:[%s9294 + $0x60] sm:$0xff]
      %v9308 = vld [vmem:[%s9294 + $0x68] sm:$0xff]
      %v9309 = vld [vmem:[%s9294 + $0x70] sm:$0xff]
      %v9310 = vld [vmem:[%s9294 + $0x78] sm:$0xff]
      %v9311 = vld [vmem:[%s9294 + $0x80] sm:$0xff]
      %v9312 = vld [vmem:[%s9294 + $0x88] sm:$0xff]
      %v9313 = vld [vmem:[%s9294 + $0x90] sm:$0x33]
      %v9333 = vunpack.c.l.b16 %v9295
      %v9334 = vunpack.c.h.b16 %v9295
      %v9335 = vunpack.c.l.b16 %v9296
      %v9336 = vunpack.c.h.b16 %v9296
      %v9337 = vunpack.c.l.b16 %v9297
      %v9338 = vunpack.c.h.b16 %v9297
      %v9339 = vunpack.c.l.b16 %v9298
      %v9340 = vunpack.c.h.b16 %v9298
      %v9341 = vunpack.c.l.b16 %v9299
      %v9342 = vunpack.c.h.b16 %v9299
      %v9343 = vunpack.c.l.b16 %v9300
      %v9344 = vunpack.c.h.b16 %v9300
      %v9345 = vunpack.c.l.b16 %v9301
      %v9346 = vunpack.c.h.b16 %v9301
      %v9347 = vunpack.c.l.b16 %v9302
      %v9348 = vunpack.c.h.b16 %v9302
      %v9349 = vunpack.c.l.b16 %v9303
      %v9350 = vunpack.c.h.b16 %v9303
      %v9351 = vunpack.c.l.b16 %v9304
      %v9352 = vunpack.c.h.b16 %v9304
      %v9353 = vunpack.c.l.b16 %v9305
      %v9354 = vunpack.c.h.b16 %v9305
      %v9355 = vunpack.c.l.b16 %v9306
      %v9356 = vunpack.c.h.b16 %v9306
      %v9357 = vunpack.c.l.b16 %v9307
      %v9358 = vunpack.c.h.b16 %v9307
      %v9359 = vunpack.c.l.b16 %v9308
      %v9360 = vunpack.c.h.b16 %v9308
      %v9361 = vunpack.c.l.b16 %v9309
      %v9362 = vunpack.c.h.b16 %v9309
      %v9363 = vunpack.c.l.b16 %v9310
      %v9364 = vunpack.c.h.b16 %v9310
      %v9365 = vunpack.c.l.b16 %v9311
      %v9366 = vunpack.c.h.b16 %v9311
      %v9367 = vunpack.c.l.b16 %v9312
      %v9368 = vunpack.c.h.b16 %v9312
      %v9369 = vunpack.c.l.b16 %v9313
      %v9370 = vunpack.c.h.b16 %v9313
      %v9371 = vpack.c.b16 %v9335, %v9333
      %v9372 = vpack.c.b16 %v9336, %v9334
      %v9373 = vpack.c.b16 %v9339, %v9337
      %v9374 = vpack.c.b16 %v9340, %v9338
      %v9375 = vpack.c.b16 %v9343, %v9341
      %v9376 = vpack.c.b16 %v9344, %v9342
      %v9377 = vpack.c.b16 %v9347, %v9345
      %v9378 = vpack.c.b16 %v9348, %v9346
      %v9379 = vpack.c.b16 %v9351, %v9349
      %v9380 = vpack.c.b16 %v9352, %v9350
      %v9381 = vpack.c.b16 %v9355, %v9353
      %v9382 = vpack.c.b16 %v9356, %v9354
      %v9383 = vpack.c.b16 %v9359, %v9357
      %v9384 = vpack.c.b16 %v9360, %v9358
      %v9385 = vpack.c.b16 %v9363, %v9361
      %v9386 = vpack.c.b16 %v9364, %v9362
      %v9387 = vpack.c.b16 %v9367, %v9365
      %v9388 = vpack.c.b16 %v9368, %v9366
      %v9389 = vpack.c.b16 %v9369, %v9369
      %v9390 = vpack.c.b16 %v9370, %v9370
      %v9410 = vsel %vm1257, %v9389, 0
      %v9413 = vsel %vm1257, %v9390, 0
      %9415 = vmatpush.bf16.msra.mxu0 %v9385
      %9416 = vmatpush.bf16.msra.mxu0 %v9383
      %9417 = vmatpush.bf16.msra.mxu0 %v9381
      %9418 = vmatpush.bf16.msra.mxu0 %v9379
      %9419 = vmatpush.bf16.msra.mxu0 %v9377
      %9420 = vmatpush.bf16.msra.mxu0 %v9375
      %9421 = vmatpush.bf16.msra.mxu0 %v9373
      %9422 = vmatpush.bf16.msra.mxu0 %v9371
      %9423 = vmatmul.bf16.gmra.mxu0 %v2293
      %v9424 = vpop.f32.mrf.mxu0
      %v9425 = vadd.f32 0.0, %v9424
      %v9426 = vpop.f32.mrf.mxu0
      %v9427 = vadd.f32 0.0, %v9426
      %9428 = vmatmul.bf16.gmra.mxu0 %v2300
      %v9429 = vpop.f32.mrf.mxu0
      %v9430 = vadd.f32 0.0, %v9429
      %v9431 = vpop.f32.mrf.mxu0
      %v9432 = vadd.f32 0.0, %v9431
      %9433 = vmatmul.bf16.gmra.mxu0 %v2310
      %v9434 = vpop.f32.mrf.mxu0
      %v9435 = vadd.f32 0.0, %v9434
      %v9436 = vpop.f32.mrf.mxu0
      %v9437 = vadd.f32 0.0, %v9436
      %9438 = vdwg.mxu0
      %9439 = vmatpush.bf16.msra.mxu0 0
      %9440 = vmatpush.bf16.msra.mxu0 0
      %9441 = vmatpush.bf16.msra.mxu0 0
      %9442 = vmatpush.bf16.msra.mxu0 0
      %9443 = vmatpush.bf16.msra.mxu0 0
      %9444 = vmatpush.bf16.msra.mxu0 0
      %9445 = vmatpush.bf16.msra.mxu0 %v9410
      %9446 = vmatpush.bf16.msra.mxu0 %v9387
      %9447 = vmatmul.bf16.gmra.mxu0 %v2880
      %v9448 = vpop.f32.mrf.mxu0
      %v9449 = vadd.f32 %v9425, %v9448
      %v9450 = vpop.f32.mrf.mxu0
      %v9451 = vadd.f32 %v9427, %v9450
      %9452 = vmatmul.bf16.gmra.mxu0 %v2883
      %v9453 = vpop.f32.mrf.mxu0
      %v9454 = vadd.f32 %v9430, %v9453
      %v9455 = vpop.f32.mrf.mxu0
      %v9456 = vadd.f32 %v9432, %v9455
      %9457 = vmatmul.bf16.gmra.mxu0 %v2886
      %v9458 = vpop.f32.mrf.mxu0
      %v9459 = vadd.f32 %v9435, %v9458
      %v9460 = vpop.f32.mrf.mxu0
      %v9461 = vadd.f32 %v9437, %v9460
      %9462 = vdwg.mxu0
      %9463 = vmatpush.bf16.msra.mxu0 %v9386
      %9464 = vmatpush.bf16.msra.mxu0 %v9384
      %9465 = vmatpush.bf16.msra.mxu0 %v9382
      %9466 = vmatpush.bf16.msra.mxu0 %v9380
      %9467 = vmatpush.bf16.msra.mxu0 %v9378
      %9468 = vmatpush.bf16.msra.mxu0 %v9376
      %9469 = vmatpush.bf16.msra.mxu0 %v9374
      %9470 = vmatpush.bf16.msra.mxu0 %v9372
      %9471 = vmatmul.bf16.gmra.mxu0 %v2293
      %v9472 = vpop.f32.mrf.mxu0
      %v9473 = vadd.f32 0.0, %v9472
      %v9474 = vpop.f32.mrf.mxu0
      %v9475 = vadd.f32 0.0, %v9474
      %9476 = vmatmul.bf16.gmra.mxu0 %v2300
      %v9477 = vpop.f32.mrf.mxu0
      %v9478 = vadd.f32 0.0, %v9477
      %v9479 = vpop.f32.mrf.mxu0
      %v9480 = vadd.f32 0.0, %v9479
      %9481 = vmatmul.bf16.gmra.mxu0 %v2310
      %v9482 = vpop.f32.mrf.mxu0
      %v9483 = vadd.f32 0.0, %v9482
      %v9484 = vpop.f32.mrf.mxu0
      %v9485 = vadd.f32 0.0, %v9484
      %9486 = vdwg.mxu0
      %9487 = vmatpush.bf16.msra.mxu0 0
      %9488 = vmatpush.bf16.msra.mxu0 0
      %9489 = vmatpush.bf16.msra.mxu0 0
      %9490 = vmatpush.bf16.msra.mxu0 0
      %9491 = vmatpush.bf16.msra.mxu0 0
      %9492 = vmatpush.bf16.msra.mxu0 0
      %9493 = vmatpush.bf16.msra.mxu0 %v9413
      %9494 = vmatpush.bf16.msra.mxu0 %v9388
      %9495 = vmatmul.bf16.gmra.mxu0 %v2880
      %v9496 = vpop.f32.mrf.mxu0
      %v9497 = vadd.f32 %v9473, %v9496
      %v9498 = vpop.f32.mrf.mxu0
      %v9499 = vadd.f32 %v9475, %v9498
      %9500 = vmatmul.bf16.gmra.mxu0 %v2883
      %v9501 = vpop.f32.mrf.mxu0
      %v9502 = vadd.f32 %v9478, %v9501
      %v9503 = vpop.f32.mrf.mxu0
      %v9504 = vadd.f32 %v9480, %v9503
      %9505 = vmatmul.bf16.gmra.mxu0 %v2886
      %v9506 = vpop.f32.mrf.mxu0
      %v9507 = vadd.f32 %v9483, %v9506
      %v9508 = vpop.f32.mrf.mxu0
      %v9509 = vadd.f32 %v9485, %v9508
      %9510 = vdwg.mxu0
      %v9511 = vadd.f32 %v9282, %v9449
      %v9512 = vadd.f32 %v9283, %v9497
      %v9513 = vadd.f32 %v9284, %v9451
      %v9514 = vadd.f32 %v9285, %v9499
      %v9515 = vadd.f32 %v9286, %v9454
      %v9516 = vadd.f32 %v9287, %v9502
      %v9517 = vadd.f32 %v9288, %v9456
      %v9518 = vadd.f32 %v9289, %v9504
      %v9519 = vadd.f32 %v9290, %v9459
      %v9520 = vadd.f32 %v9291, %v9507
      %v9521 = vadd.f32 %v9292, %v9461
      %v9522 = vadd.f32 %v9293, %v9509
      %v9523 = vld [vmem:[%s45] sm:$0x3]
      %v9525 = vperm.slane %v9523, 0
      %v9526 = vperm.slane %v9523, 1
      %v9529 = vadd.f32 %v9511, %v9525
      %v9530 = vadd.f32 %v9512, %v9526
      %v9531 = vadd.f32 %v9513, %v9525
      %v9532 = vadd.f32 %v9514, %v9526
      %v9533 = vadd.f32 %v9515, %v9525
      %v9534 = vadd.f32 %v9516, %v9526
      %v9535 = vadd.f32 %v9517, %v9525
      %v9536 = vadd.f32 %v9518, %v9526
      %v9537 = vadd.f32 %v9519, %v9525
      %v9538 = vadd.f32 %v9520, %v9526
      %v9539 = vadd.f32 %v9521, %v9525
      %v9540 = vadd.f32 %v9522, %v9526
      %v9541 = vmax.f32 %v9529, 0.0
      %v9542 = vmax.f32 %v9530, 0.0
      %v9543 = vmax.f32 %v9531, 0.0
      %v9544 = vmax.f32 %v9532, 0.0
      %v9545 = vmax.f32 %v9533, 0.0
      %v9546 = vmax.f32 %v9534, 0.0
      %v9547 = vmax.f32 %v9535, 0.0
      %v9548 = vmax.f32 %v9536, 0.0
      %v9549 = vmax.f32 %v9537, 0.0
      %v9550 = vmax.f32 %v9538, 0.0
      %v9551 = vmax.f32 %v9539, 0.0
      %v9552 = vmax.f32 %v9540, 0.0
      %v9553 = vsel %vm1387, %v9541, 0.0
      %v9554 = vsel %vm1387, %v9542, 0.0
      %v9555 = vsel %vm1388, %v9543, 0.0
      %v9556 = vsel %vm1388, %v9544, 0.0
      %v9557 = vsel %vm1389, %v9545, 0.0
      %v9558 = vsel %vm1389, %v9546, 0.0
      %v9559 = vsel %vm1390, %v9547, 0.0
      %v9560 = vsel %vm1390, %v9548, 0.0
      %v9561 = vsel %vm1391, %v9549, 0.0
      %v9562 = vsel %vm1391, %v9550, 0.0
      %v9563 = vsel %vm1392, %v9551, 0.0
      %v9564 = vsel %vm1392, %v9552, 0.0
      %v9565 = vpack.c.bf16 %v9554, %v9553
      %v9566 = vpack.c.bf16 %v9556, %v9555
      %v9567 = vpack.c.bf16 %v9558, %v9557
      %v9568 = vpack.c.bf16 %v9560, %v9559
      %v9569 = vpack.c.bf16 %v9562, %v9561
      %v9570 = vpack.c.bf16 %v9564, %v9563
      %v9577 = vunpack.c.l.b16 %v9565
      %v9578 = vunpack.c.h.b16 %v9565
      %v9579 = vunpack.c.l.b16 %v9566
      %v9580 = vunpack.c.h.b16 %v9566
      %v9581 = vunpack.c.l.b16 %v9567
      %v9582 = vunpack.c.h.b16 %v9567
      %v9583 = vunpack.c.l.b16 %v9568
      %v9584 = vunpack.c.h.b16 %v9568
      %v9585 = vunpack.c.l.b16 %v9569
      %v9586 = vunpack.c.h.b16 %v9569
      %v9587 = vunpack.c.l.b16 %v9570
      %v9588 = vunpack.c.h.b16 %v9570
      %v9589 = vpack.c.b16 %v9579, %v9577
      %v9590 = vpack.c.b16 %v9580, %v9578
      %v9591 = vpack.c.b16 %v9583, %v9581
      %v9592 = vpack.c.b16 %v9584, %v9582
      %v9593 = vpack.c.b16 %v9587, %v9585
      %v9594 = vpack.c.b16 %v9588, %v9586
      %v9596 = vshrl.u32 %v9589, 16
      %v9598 = vrot.slane %v9596, 7
      %v9599 = vshll.u32 %v9589, 16
      %v9601 = vor.u32 %v9598, %v9599
      %v9603 = vshrl.u32 %v9590, 16
      %v9605 = vrot.slane %v9603, 7
      %v9606 = vshll.u32 %v9590, 16
      %v9608 = vor.u32 %v9605, %v9606
      %v9610 = vshrl.u32 %v9591, 16
      %v9612 = vrot.slane %v9610, 7
      %v9613 = vshll.u32 %v9591, 16
      %v9615 = vor.u32 %v9612, %v9613
      %v9616 = vsel %vm1206, %v9598, %v9615
      %v9618 = vshrl.u32 %v9592, 16
      %v9620 = vrot.slane %v9618, 7
      %v9621 = vshll.u32 %v9592, 16
      %v9623 = vor.u32 %v9620, %v9621
      %v9624 = vsel %vm1206, %v9605, %v9623
      %v9626 = vshrl.u32 %v9593, 16
      %v9628 = vrot.slane %v9626, 7
      %v9629 = vshll.u32 %v9593, 16
      %v9631 = vor.u32 %v9628, %v9629
      %v9632 = vsel %vm1206, %v9612, %v9631
      %v9634 = vshrl.u32 %v9594, 16
      %v9636 = vrot.slane %v9634, 7
      %v9637 = vshll.u32 %v9594, 16
      %v9639 = vor.u32 %v9636, %v9637
      %v9640 = vsel %vm1206, %v9620, %v9639
      %v9645 = vsel %vm1232, 0, %v9601
      %v9646 = vsel %vm1232, 0, %v9608
      %v9647 = vrot.slane %v9599, 1
      %v9648 = vor.u32 %v9596, %v9647
      %v9649 = vrot.slane %v9613, 1
      %v9650 = vsel %vm1234, %v9648, %v9649
      %v9651 = vrot.slane %v9606, 1
      %v9652 = vor.u32 %v9603, %v9651
      %v9653 = vrot.slane %v9621, 1
      %v9654 = vsel %vm1234, %v9652, %v9653
      %v9655 = vor.u32 %v9610, %v9649
      %v9656 = vrot.slane %v9629, 1
      %v9657 = vsel %vm1234, %v9655, %v9656
      %v9658 = vor.u32 %v9618, %v9653
      %v9659 = vrot.slane %v9637, 1
      %v9660 = vsel %vm1234, %v9658, %v9659
      %v9661 = vor.u32 %v9626, %v9656
      %v9662 = vor.u32 %v9634, %v9659
      %v9667 = vsel %vm1245, %v9661, 0
      %v9668 = vsel %vm1245, %v9662, 0
      %v9669 = vld [vmem:[%s47] sm:$0xf]
      %v9670 = vld [vmem:[%s47 + $0x4] sm:$0xf]
      %v9671 = vld [vmem:[%s47 + $0x8] sm:$0xf]
      %v9672 = vld [vmem:[%s47 + $0xc] sm:$0xf]
      %v9673 = vld [vmem:[%s47 + $0x10] sm:$0xf]
      %v9674 = vld [vmem:[%s47 + $0x14] sm:$0xf]
      %v9675 = vld [vmem:[%s47 + $0x18] sm:$0xf]
      %v9676 = vld [vmem:[%s47 + $0x1c] sm:$0xf]
      %v9677 = vld [vmem:[%s47 + $0x20] sm:$0xf]
      %v9678 = vld [vmem:[%s47 + $0x24] sm:$0xf]
      %v9679 = vld [vmem:[%s47 + $0x28] sm:$0xf]
      %v9680 = vld [vmem:[%s47 + $0x2c] sm:$0xf]
      %v9681 = vld [vmem:[%s47 + $0x30] sm:$0xf]
      %v9682 = vld [vmem:[%s47 + $0x34] sm:$0xf]
      %v9683 = vld [vmem:[%s47 + $0x38] sm:$0xf]
      %v9684 = vld [vmem:[%s47 + $0x3c] sm:$0xf]
      %v9685 = vld [vmem:[%s47 + $0x40] sm:$0xf]
      %v9686 = vld [vmem:[%s47 + $0x44] sm:$0xf]
      %v9687 = vld [vmem:[%s47 + $0x48] sm:$0x3]
      %s9688 = scalar_lea.vmem %s47, 76
      %v9689 = vld [vmem:[%s9688] sm:$0xf]
      %v9690 = vld [vmem:[%s9688 + $0x4] sm:$0xf]
      %v9691 = vld [vmem:[%s9688 + $0x8] sm:$0xf]
      %v9692 = vld [vmem:[%s9688 + $0xc] sm:$0xf]
      %v9693 = vld [vmem:[%s9688 + $0x10] sm:$0xf]
      %v9694 = vld [vmem:[%s9688 + $0x14] sm:$0xf]
      %v9695 = vld [vmem:[%s9688 + $0x18] sm:$0xf]
      %v9696 = vld [vmem:[%s9688 + $0x1c] sm:$0xf]
      %v9697 = vld [vmem:[%s9688 + $0x20] sm:$0xf]
      %v9698 = vld [vmem:[%s9688 + $0x24] sm:$0xf]
      %v9699 = vld [vmem:[%s9688 + $0x28] sm:$0xf]
      %v9700 = vld [vmem:[%s9688 + $0x2c] sm:$0xf]
      %v9701 = vld [vmem:[%s9688 + $0x30] sm:$0xf]
      %v9702 = vld [vmem:[%s9688 + $0x34] sm:$0xf]
      %v9703 = vld [vmem:[%s9688 + $0x38] sm:$0xf]
      %v9704 = vld [vmem:[%s9688 + $0x3c] sm:$0xf]
      %v9705 = vld [vmem:[%s9688 + $0x40] sm:$0xf]
      %v9706 = vld [vmem:[%s9688 + $0x44] sm:$0xf]
      %v9707 = vld [vmem:[%s9688 + $0x48] sm:$0x3]
      %v9730 = vunpack.c.l.b16 %v9689
      %v9731 = vunpack.c.l.b16 %v9690
      %v9732 = vunpack.c.l.b16 %v9691
      %v9733 = vunpack.c.l.b16 %v9692
      %v9734 = vunpack.c.l.b16 %v9693
      %v9735 = vunpack.c.l.b16 %v9694
      %v9736 = vunpack.c.l.b16 %v9695
      %v9737 = vunpack.c.l.b16 %v9696
      %v9738 = vunpack.c.l.b16 %v9697
      %v9739 = vunpack.c.l.b16 %v9698
      %v9740 = vunpack.c.l.b16 %v9699
      %v9741 = vunpack.c.l.b16 %v9700
      %v9742 = vunpack.c.l.b16 %v9701
      %v9743 = vunpack.c.l.b16 %v9702
      %v9744 = vunpack.c.l.b16 %v9703
      %v9745 = vunpack.c.l.b16 %v9704
      %v9746 = vunpack.c.l.b16 %v9705
      %v9747 = vunpack.c.l.b16 %v9706
      %v9748 = vunpack.c.l.b16 %v9707
      %v9749 = vpack.c.b16 %v9731, %v9730
      %v9750 = vpack.c.b16 %v9733, %v9732
      %v9751 = vpack.c.b16 %v9735, %v9734
      %v9752 = vpack.c.b16 %v9737, %v9736
      %v9753 = vpack.c.b16 %v9739, %v9738
      %v9754 = vpack.c.b16 %v9741, %v9740
      %v9755 = vpack.c.b16 %v9743, %v9742
      %v9756 = vpack.c.b16 %v9745, %v9744
      %v9757 = vpack.c.b16 %v9747, %v9746
      %v9758 = vpack.c.b16 %v9748, %v9748
      %v9768 = vsel %vm2449, %v9590, 0
      %v9770 = vsel %vm2449, %v9592, 0
      %v9772 = vsel %vm2449, %v9594, 0
      %v9775 = vsel %vm1257, %v9758, 0
      %9777 = vmatpush.bf16.msra.mxu0 %v9756
      %9778 = vmatpush.bf16.msra.mxu0 %v9755
      %9779 = vmatpush.bf16.msra.mxu0 %v9754
      %9780 = vmatpush.bf16.msra.mxu0 %v9753
      %9781 = vmatpush.bf16.msra.mxu0 %v9752
      %9782 = vmatpush.bf16.msra.mxu0 %v9751
      %9783 = vmatpush.bf16.msra.mxu0 %v9750
      %9784 = vmatpush.bf16.msra.mxu0 %v9749
      %9785 = vmatmul.bf16.gmra.mxu0 %v9589
      %v9786 = vpop.f32.mrf.mxu0
      %v9787 = vadd.f32 0.0, %v9786
      %v9788 = vpop.f32.mrf.mxu0
      %v9789 = vadd.f32 0.0, %v9788
      %9790 = vmatmul.bf16.gmra.mxu0 %v9591
      %v9791 = vpop.f32.mrf.mxu0
      %v9792 = vadd.f32 0.0, %v9791
      %v9793 = vpop.f32.mrf.mxu0
      %v9794 = vadd.f32 0.0, %v9793
      %9795 = vmatmul.bf16.gmra.mxu0 %v9593
      %v9796 = vpop.f32.mrf.mxu0
      %v9797 = vadd.f32 0.0, %v9796
      %v9798 = vpop.f32.mrf.mxu0
      %v9799 = vadd.f32 0.0, %v9798
      %9800 = vdwg.mxu0
      %9801 = vmatpush.bf16.msra.mxu0 0
      %9802 = vmatpush.bf16.msra.mxu0 0
      %9803 = vmatpush.bf16.msra.mxu0 0
      %9804 = vmatpush.bf16.msra.mxu0 0
      %9805 = vmatpush.bf16.msra.mxu0 0
      %9806 = vmatpush.bf16.msra.mxu0 0
      %9807 = vmatpush.bf16.msra.mxu0 %v9775
      %9808 = vmatpush.bf16.msra.mxu0 %v9757
      %9809 = vmatmul.bf16.gmra.mxu0 %v9768
      %v9810 = vpop.f32.mrf.mxu0
      %v9811 = vadd.f32 %v9787, %v9810
      %v9812 = vpop.f32.mrf.mxu0
      %v9813 = vadd.f32 %v9789, %v9812
      %9814 = vmatmul.bf16.gmra.mxu0 %v9770
      %v9815 = vpop.f32.mrf.mxu0
      %v9816 = vadd.f32 %v9792, %v9815
      %v9817 = vpop.f32.mrf.mxu0
      %v9818 = vadd.f32 %v9794, %v9817
      %9819 = vmatmul.bf16.gmra.mxu0 %v9772
      %v9820 = vpop.f32.mrf.mxu0
      %v9821 = vadd.f32 %v9797, %v9820
      %v9822 = vpop.f32.mrf.mxu0
      %v9823 = vadd.f32 %v9799, %v9822
      %9824 = vdwg.mxu0
      %v9844 = vunpack.c.l.b16 %v9669
      %v9845 = vunpack.c.l.b16 %v9670
      %v9846 = vunpack.c.l.b16 %v9671
      %v9847 = vunpack.c.l.b16 %v9672
      %v9848 = vunpack.c.l.b16 %v9673
      %v9849 = vunpack.c.l.b16 %v9674
      %v9850 = vunpack.c.l.b16 %v9675
      %v9851 = vunpack.c.l.b16 %v9676
      %v9852 = vunpack.c.l.b16 %v9677
      %v9853 = vunpack.c.l.b16 %v9678
      %v9854 = vunpack.c.l.b16 %v9679
      %v9855 = vunpack.c.l.b16 %v9680
      %v9856 = vunpack.c.l.b16 %v9681
      %v9857 = vunpack.c.l.b16 %v9682
      %v9858 = vunpack.c.l.b16 %v9683
      %v9859 = vunpack.c.l.b16 %v9684
      %v9860 = vunpack.c.l.b16 %v9685
      %v9861 = vunpack.c.l.b16 %v9686
      %v9862 = vunpack.c.l.b16 %v9687
      %v9863 = vpack.c.b16 %v9845, %v9844
      %v9864 = vpack.c.b16 %v9847, %v9846
      %v9865 = vpack.c.b16 %v9849, %v9848
      %v9866 = vpack.c.b16 %v9851, %v9850
      %v9867 = vpack.c.b16 %v9853, %v9852
      %v9868 = vpack.c.b16 %v9855, %v9854
      %v9869 = vpack.c.b16 %v9857, %v9856
      %v9870 = vpack.c.b16 %v9859, %v9858
      %v9871 = vpack.c.b16 %v9861, %v9860
      %v9872 = vpack.c.b16 %v9862, %v9862
      %v9883 = vsel %vm2449, %v9646, 0
      %v9886 = vsel %vm2449, %v9624, 0
      %v9889 = vsel %vm2449, %v9640, 0
      %v9892 = vsel %vm1257, %v9872, 0
      %9894 = vmatpush.bf16.msra.mxu0 %v9870
      %9895 = vmatpush.bf16.msra.mxu0 %v9869
      %9896 = vmatpush.bf16.msra.mxu0 %v9868
      %9897 = vmatpush.bf16.msra.mxu0 %v9867
      %9898 = vmatpush.bf16.msra.mxu0 %v9866
      %9899 = vmatpush.bf16.msra.mxu0 %v9865
      %9900 = vmatpush.bf16.msra.mxu0 %v9864
      %9901 = vmatpush.bf16.msra.mxu0 %v9863
      %9902 = vmatmul.bf16.gmra.mxu0 %v9645
      %v9903 = vpop.f32.mrf.mxu0
      %v9904 = vadd.f32 %v9811, %v9903
      %v9905 = vpop.f32.mrf.mxu0
      %v9906 = vadd.f32 %v9813, %v9905
      %9907 = vmatmul.bf16.gmra.mxu0 %v9616
      %v9908 = vpop.f32.mrf.mxu0
      %v9909 = vadd.f32 %v9816, %v9908
      %v9910 = vpop.f32.mrf.mxu0
      %v9911 = vadd.f32 %v9818, %v9910
      %9912 = vmatmul.bf16.gmra.mxu0 %v9632
      %v9913 = vpop.f32.mrf.mxu0
      %v9914 = vadd.f32 %v9821, %v9913
      %v9915 = vpop.f32.mrf.mxu0
      %v9916 = vadd.f32 %v9823, %v9915
      %9917 = vdwg.mxu0
      %9918 = vmatpush.bf16.msra.mxu0 0
      %9919 = vmatpush.bf16.msra.mxu0 0
      %9920 = vmatpush.bf16.msra.mxu0 0
      %9921 = vmatpush.bf16.msra.mxu0 0
      %9922 = vmatpush.bf16.msra.mxu0 0
      %9923 = vmatpush.bf16.msra.mxu0 0
      %9924 = vmatpush.bf16.msra.mxu0 %v9892
      %9925 = vmatpush.bf16.msra.mxu0 %v9871
      %9926 = vmatmul.bf16.gmra.mxu0 %v9883
      %v9927 = vpop.f32.mrf.mxu0
      %v9928 = vadd.f32 %v9904, %v9927
      %v9929 = vpop.f32.mrf.mxu0
      %v9930 = vadd.f32 %v9906, %v9929
      %9931 = vmatmul.bf16.gmra.mxu0 %v9886
      %v9932 = vpop.f32.mrf.mxu0
      %v9933 = vadd.f32 %v9909, %v9932
      %v9934 = vpop.f32.mrf.mxu0
      %v9935 = vadd.f32 %v9911, %v9934
      %9936 = vmatmul.bf16.gmra.mxu0 %v9889
      %v9937 = vpop.f32.mrf.mxu0
      %v9938 = vadd.f32 %v9914, %v9937
      %v9939 = vpop.f32.mrf.mxu0
      %v9940 = vadd.f32 %v9916, %v9939
      %9941 = vdwg.mxu0
      %s9942 = scalar_lea.vmem %s47, 152
      %v9943 = vld [vmem:[%s9942] sm:$0xf]
      %v9944 = vld [vmem:[%s9942 + $0x4] sm:$0xf]
      %v9945 = vld [vmem:[%s9942 + $0x8] sm:$0xf]
      %v9946 = vld [vmem:[%s9942 + $0xc] sm:$0xf]
      %v9947 = vld [vmem:[%s9942 + $0x10] sm:$0xf]
      %v9948 = vld [vmem:[%s9942 + $0x14] sm:$0xf]
      %v9949 = vld [vmem:[%s9942 + $0x18] sm:$0xf]
      %v9950 = vld [vmem:[%s9942 + $0x1c] sm:$0xf]
      %v9951 = vld [vmem:[%s9942 + $0x20] sm:$0xf]
      %v9952 = vld [vmem:[%s9942 + $0x24] sm:$0xf]
      %v9953 = vld [vmem:[%s9942 + $0x28] sm:$0xf]
      %v9954 = vld [vmem:[%s9942 + $0x2c] sm:$0xf]
      %v9955 = vld [vmem:[%s9942 + $0x30] sm:$0xf]
      %v9956 = vld [vmem:[%s9942 + $0x34] sm:$0xf]
      %v9957 = vld [vmem:[%s9942 + $0x38] sm:$0xf]
      %v9958 = vld [vmem:[%s9942 + $0x3c] sm:$0xf]
      %v9959 = vld [vmem:[%s9942 + $0x40] sm:$0xf]
      %v9960 = vld [vmem:[%s9942 + $0x44] sm:$0xf]
      %v9961 = vld [vmem:[%s9942 + $0x48] sm:$0x3]
      %v9981 = vunpack.c.l.b16 %v9943
      %v9982 = vunpack.c.l.b16 %v9944
      %v9983 = vunpack.c.l.b16 %v9945
      %v9984 = vunpack.c.l.b16 %v9946
      %v9985 = vunpack.c.l.b16 %v9947
      %v9986 = vunpack.c.l.b16 %v9948
      %v9987 = vunpack.c.l.b16 %v9949
      %v9988 = vunpack.c.l.b16 %v9950
      %v9989 = vunpack.c.l.b16 %v9951
      %v9990 = vunpack.c.l.b16 %v9952
      %v9991 = vunpack.c.l.b16 %v9953
      %v9992 = vunpack.c.l.b16 %v9954
      %v9993 = vunpack.c.l.b16 %v9955
      %v9994 = vunpack.c.l.b16 %v9956
      %v9995 = vunpack.c.l.b16 %v9957
      %v9996 = vunpack.c.l.b16 %v9958
      %v9997 = vunpack.c.l.b16 %v9959
      %v9998 = vunpack.c.l.b16 %v9960
      %v9999 = vunpack.c.l.b16 %v9961
      %v10000 = vpack.c.b16 %v9982, %v9981
      %v10001 = vpack.c.b16 %v9984, %v9983
      %v10002 = vpack.c.b16 %v9986, %v9985
      %v10003 = vpack.c.b16 %v9988, %v9987
      %v10004 = vpack.c.b16 %v9990, %v9989
      %v10005 = vpack.c.b16 %v9992, %v9991
      %v10006 = vpack.c.b16 %v9994, %v9993
      %v10007 = vpack.c.b16 %v9996, %v9995
      %v10008 = vpack.c.b16 %v9998, %v9997
      %v10009 = vpack.c.b16 %v9999, %v9999
      %v10020 = vsel %vm2449, %v9654, 0
      %v10023 = vsel %vm2449, %v9660, 0
      %v10026 = vsel %vm2449, %v9668, 0
      %v10029 = vsel %vm1257, %v10009, 0
      %10031 = vmatpush.bf16.msra.mxu0 %v10007
      %10032 = vmatpush.bf16.msra.mxu0 %v10006
      %10033 = vmatpush.bf16.msra.mxu0 %v10005
      %10034 = vmatpush.bf16.msra.mxu0 %v10004
      %10035 = vmatpush.bf16.msra.mxu0 %v10003
      %10036 = vmatpush.bf16.msra.mxu0 %v10002
      %10037 = vmatpush.bf16.msra.mxu0 %v10001
      %10038 = vmatpush.bf16.msra.mxu0 %v10000
      %10039 = vmatmul.bf16.gmra.mxu0 %v9650
      %v10040 = vpop.f32.mrf.mxu0
      %v10041 = vadd.f32 0.0, %v10040
      %v10042 = vpop.f32.mrf.mxu0
      %v10043 = vadd.f32 0.0, %v10042
      %10044 = vmatmul.bf16.gmra.mxu0 %v9657
      %v10045 = vpop.f32.mrf.mxu0
      %v10046 = vadd.f32 0.0, %v10045
      %v10047 = vpop.f32.mrf.mxu0
      %v10048 = vadd.f32 0.0, %v10047
      %10049 = vmatmul.bf16.gmra.mxu0 %v9667
      %v10050 = vpop.f32.mrf.mxu0
      %v10051 = vadd.f32 0.0, %v10050
      %v10052 = vpop.f32.mrf.mxu0
      %v10053 = vadd.f32 0.0, %v10052
      %10054 = vdwg.mxu0
      %10055 = vmatpush.bf16.msra.mxu0 0
      %10056 = vmatpush.bf16.msra.mxu0 0
      %10057 = vmatpush.bf16.msra.mxu0 0
      %10058 = vmatpush.bf16.msra.mxu0 0
      %10059 = vmatpush.bf16.msra.mxu0 0
      %10060 = vmatpush.bf16.msra.mxu0 0
      %10061 = vmatpush.bf16.msra.mxu0 %v10029
      %10062 = vmatpush.bf16.msra.mxu0 %v10008
      %10063 = vmatmul.bf16.gmra.mxu0 %v10020
      %v10064 = vpop.f32.mrf.mxu0
      %v10065 = vadd.f32 %v10041, %v10064
      %v10066 = vpop.f32.mrf.mxu0
      %v10067 = vadd.f32 %v10043, %v10066
      %10068 = vmatmul.bf16.gmra.mxu0 %v10023
      %v10069 = vpop.f32.mrf.mxu0
      %v10070 = vadd.f32 %v10046, %v10069
      %v10071 = vpop.f32.mrf.mxu0
      %v10072 = vadd.f32 %v10048, %v10071
      %10073 = vmatmul.bf16.gmra.mxu0 %v10026
      %v10074 = vpop.f32.mrf.mxu0
      %v10075 = vadd.f32 %v10051, %v10074
      %v10076 = vpop.f32.mrf.mxu0
      %v10077 = vadd.f32 %v10053, %v10076
      %10078 = vdwg.mxu0
      %v10079 = vadd.f32 %v9928, %v10065
      %v10080 = vadd.f32 %v9930, %v10067
      %v10081 = vadd.f32 %v9933, %v10070
      %v10082 = vadd.f32 %v9935, %v10072
      %v10083 = vadd.f32 %v9938, %v10075
      %v10084 = vadd.f32 %v9940, %v10077
      %v10085 = vld [vmem:[%s49] sm:$0xf]
      %v10086 = vld [vmem:[%s49 + $0x4] sm:$0xf]
      %v10087 = vld [vmem:[%s49 + $0x8] sm:$0xf]
      %v10088 = vld [vmem:[%s49 + $0xc] sm:$0xf]
      %v10089 = vld [vmem:[%s49 + $0x10] sm:$0xf]
      %v10090 = vld [vmem:[%s49 + $0x14] sm:$0xf]
      %v10091 = vld [vmem:[%s49 + $0x18] sm:$0xf]
      %v10092 = vld [vmem:[%s49 + $0x1c] sm:$0xf]
      %v10093 = vld [vmem:[%s49 + $0x20] sm:$0xf]
      %v10094 = vld [vmem:[%s49 + $0x24] sm:$0xf]
      %v10095 = vld [vmem:[%s49 + $0x28] sm:$0xf]
      %v10096 = vld [vmem:[%s49 + $0x2c] sm:$0xf]
      %v10097 = vld [vmem:[%s49 + $0x30] sm:$0x3]
      %v10111 = vunpack.c.l.b16 %v10085
      %v10112 = vunpack.c.l.b16 %v10086
      %v10113 = vunpack.c.l.b16 %v10087
      %v10114 = vunpack.c.l.b16 %v10088
      %v10115 = vunpack.c.l.b16 %v10089
      %v10116 = vunpack.c.l.b16 %v10090
      %v10117 = vunpack.c.l.b16 %v10091
      %v10118 = vunpack.c.l.b16 %v10092
      %v10119 = vunpack.c.l.b16 %v10093
      %v10120 = vunpack.c.l.b16 %v10094
      %v10121 = vunpack.c.l.b16 %v10095
      %v10122 = vunpack.c.l.b16 %v10096
      %v10123 = vunpack.c.l.b16 %v10097
      %v10124 = vpack.c.b16 %v10112, %v10111
      %v10125 = vpack.c.b16 %v10114, %v10113
      %v10126 = vpack.c.b16 %v10116, %v10115
      %v10127 = vpack.c.b16 %v10118, %v10117
      %v10128 = vpack.c.b16 %v10120, %v10119
      %v10129 = vpack.c.b16 %v10122, %v10121
      %v10130 = vpack.c.b16 %v10123, %v10123
      %v10138 = vsel %vm1257, %v10130, 0
      %10140 = vmatpush.bf16.msra.mxu0 0
      %10141 = vmatpush.bf16.msra.mxu0 %v10138
      %10142 = vmatpush.bf16.msra.mxu0 %v10129
      %10143 = vmatpush.bf16.msra.mxu0 %v10128
      %10144 = vmatpush.bf16.msra.mxu0 %v10127
      %10145 = vmatpush.bf16.msra.mxu0 %v10126
      %10146 = vmatpush.bf16.msra.mxu0 %v10125
      %10147 = vmatpush.bf16.msra.mxu0 %v10124
      %10148 = vmatmul.bf16.gmra.mxu0 %v1950
      %v10149 = vpop.f32.mrf.mxu0
      %v10150 = vadd.f32 0.0, %v10149
      %v10151 = vpop.f32.mrf.mxu0
      %v10152 = vadd.f32 0.0, %v10151
      %10153 = vmatmul.bf16.gmra.mxu0 %v1953
      %v10154 = vpop.f32.mrf.mxu0
      %v10155 = vadd.f32 0.0, %v10154
      %v10156 = vpop.f32.mrf.mxu0
      %v10157 = vadd.f32 0.0, %v10156
      %10158 = vmatmul.bf16.gmra.mxu0 %v1956
      %v10159 = vpop.f32.mrf.mxu0
      %v10160 = vadd.f32 0.0, %v10159
      %v10161 = vpop.f32.mrf.mxu0
      %v10162 = vadd.f32 0.0, %v10161
      %10163 = vdwg.mxu0
      %v10164 = vadd.f32 %v10079, %v10150
      %v10165 = vadd.f32 %v10080, %v10152
      %v10166 = vadd.f32 %v10081, %v10155
      %v10167 = vadd.f32 %v10082, %v10157
      %v10168 = vadd.f32 %v10083, %v10160
      %v10169 = vadd.f32 %v10084, %v10162
      %s10170 = scalar_lea.vmem %s49, 52
      %v10171 = vld [vmem:[%s10170] sm:$0xf]
      %v10172 = vld [vmem:[%s10170 + $0x4] sm:$0xf]
      %v10173 = vld [vmem:[%s10170 + $0x8] sm:$0xf]
      %v10174 = vld [vmem:[%s10170 + $0xc] sm:$0xf]
      %v10175 = vld [vmem:[%s10170 + $0x10] sm:$0xf]
      %v10176 = vld [vmem:[%s10170 + $0x14] sm:$0xf]
      %v10177 = vld [vmem:[%s10170 + $0x18] sm:$0xf]
      %v10178 = vld [vmem:[%s10170 + $0x1c] sm:$0xf]
      %v10179 = vld [vmem:[%s10170 + $0x20] sm:$0xf]
      %v10180 = vld [vmem:[%s10170 + $0x24] sm:$0xf]
      %v10181 = vld [vmem:[%s10170 + $0x28] sm:$0xf]
      %v10182 = vld [vmem:[%s10170 + $0x2c] sm:$0xf]
      %v10183 = vld [vmem:[%s10170 + $0x30] sm:$0x3]
      %v10197 = vunpack.c.l.b16 %v10171
      %v10198 = vunpack.c.l.b16 %v10172
      %v10199 = vunpack.c.l.b16 %v10173
      %v10200 = vunpack.c.l.b16 %v10174
      %v10201 = vunpack.c.l.b16 %v10175
      %v10202 = vunpack.c.l.b16 %v10176
      %v10203 = vunpack.c.l.b16 %v10177
      %v10204 = vunpack.c.l.b16 %v10178
      %v10205 = vunpack.c.l.b16 %v10179
      %v10206 = vunpack.c.l.b16 %v10180
      %v10207 = vunpack.c.l.b16 %v10181
      %v10208 = vunpack.c.l.b16 %v10182
      %v10209 = vunpack.c.l.b16 %v10183
      %v10210 = vpack.c.b16 %v10198, %v10197
      %v10211 = vpack.c.b16 %v10200, %v10199
      %v10212 = vpack.c.b16 %v10202, %v10201
      %v10213 = vpack.c.b16 %v10204, %v10203
      %v10214 = vpack.c.b16 %v10206, %v10205
      %v10215 = vpack.c.b16 %v10208, %v10207
      %v10216 = vpack.c.b16 %v10209, %v10209
      %v10224 = vsel %vm1257, %v10216, 0
      %10226 = vmatpush.bf16.msra.mxu0 0
      %10227 = vmatpush.bf16.msra.mxu0 %v10224
      %10228 = vmatpush.bf16.msra.mxu0 %v10215
      %10229 = vmatpush.bf16.msra.mxu0 %v10214
      %10230 = vmatpush.bf16.msra.mxu0 %v10213
      %10231 = vmatpush.bf16.msra.mxu0 %v10212
      %10232 = vmatpush.bf16.msra.mxu0 %v10211
      %10233 = vmatpush.bf16.msra.mxu0 %v10210
      %10234 = vmatmul.bf16.gmra.mxu0 %v1824
      %v10235 = vpop.f32.mrf.mxu0
      %v10236 = vadd.f32 0.0, %v10235
      %v10237 = vpop.f32.mrf.mxu0
      %v10238 = vadd.f32 0.0, %v10237
      %10239 = vmatmul.bf16.gmra.mxu0 %v1826
      %v10240 = vpop.f32.mrf.mxu0
      %v10241 = vadd.f32 0.0, %v10240
      %v10242 = vpop.f32.mrf.mxu0
      %v10243 = vadd.f32 0.0, %v10242
      %10244 = vmatmul.bf16.gmra.mxu0 %v1828
      %v10245 = vpop.f32.mrf.mxu0
      %v10246 = vadd.f32 0.0, %v10245
      %v10247 = vpop.f32.mrf.mxu0
      %v10248 = vadd.f32 0.0, %v10247
      %10249 = vdwg.mxu0
      %v10250 = vadd.f32 %v10164, %v10236
      %v10251 = vadd.f32 %v10165, %v10238
      %v10252 = vadd.f32 %v10166, %v10241
      %v10253 = vadd.f32 %v10167, %v10243
      %v10254 = vadd.f32 %v10168, %v10246
      %v10255 = vadd.f32 %v10169, %v10248
      %s10256 = scalar_lea.vmem %s49, 104
      %v10257 = vld [vmem:[%s10256] sm:$0xf]
      %v10258 = vld [vmem:[%s10256 + $0x4] sm:$0xf]
      %v10259 = vld [vmem:[%s10256 + $0x8] sm:$0xf]
      %v10260 = vld [vmem:[%s10256 + $0xc] sm:$0xf]
      %v10261 = vld [vmem:[%s10256 + $0x10] sm:$0xf]
      %v10262 = vld [vmem:[%s10256 + $0x14] sm:$0xf]
      %v10263 = vld [vmem:[%s10256 + $0x18] sm:$0xf]
      %v10264 = vld [vmem:[%s10256 + $0x1c] sm:$0xf]
      %v10265 = vld [vmem:[%s10256 + $0x20] sm:$0xf]
      %v10266 = vld [vmem:[%s10256 + $0x24] sm:$0xf]
      %v10267 = vld [vmem:[%s10256 + $0x28] sm:$0xf]
      %v10268 = vld [vmem:[%s10256 + $0x2c] sm:$0xf]
      %v10269 = vld [vmem:[%s10256 + $0x30] sm:$0x3]
      %v10283 = vunpack.c.l.b16 %v10257
      %v10284 = vunpack.c.l.b16 %v10258
      %v10285 = vunpack.c.l.b16 %v10259
      %v10286 = vunpack.c.l.b16 %v10260
      %v10287 = vunpack.c.l.b16 %v10261
      %v10288 = vunpack.c.l.b16 %v10262
      %v10289 = vunpack.c.l.b16 %v10263
      %v10290 = vunpack.c.l.b16 %v10264
      %v10291 = vunpack.c.l.b16 %v10265
      %v10292 = vunpack.c.l.b16 %v10266
      %v10293 = vunpack.c.l.b16 %v10267
      %v10294 = vunpack.c.l.b16 %v10268
      %v10295 = vunpack.c.l.b16 %v10269
      %v10296 = vpack.c.b16 %v10284, %v10283
      %v10297 = vpack.c.b16 %v10286, %v10285
      %v10298 = vpack.c.b16 %v10288, %v10287
      %v10299 = vpack.c.b16 %v10290, %v10289
      %v10300 = vpack.c.b16 %v10292, %v10291
      %v10301 = vpack.c.b16 %v10294, %v10293
      %v10302 = vpack.c.b16 %v10295, %v10295
      %v10310 = vsel %vm1257, %v10302, 0
      %10312 = vmatpush.bf16.msra.mxu0 0
      %10313 = vmatpush.bf16.msra.mxu0 %v10310
      %10314 = vmatpush.bf16.msra.mxu0 %v10301
      %10315 = vmatpush.bf16.msra.mxu0 %v10300
      %10316 = vmatpush.bf16.msra.mxu0 %v10299
      %10317 = vmatpush.bf16.msra.mxu0 %v10298
      %10318 = vmatpush.bf16.msra.mxu0 %v10297
      %10319 = vmatpush.bf16.msra.mxu0 %v10296
      %10320 = vmatmul.bf16.gmra.mxu0 %v2092
      %v10321 = vpop.f32.mrf.mxu0
      %v10322 = vadd.f32 0.0, %v10321
      %v10323 = vpop.f32.mrf.mxu0
      %v10324 = vadd.f32 0.0, %v10323
      %10325 = vmatmul.bf16.gmra.mxu0 %v2095
      %v10326 = vpop.f32.mrf.mxu0
      %v10327 = vadd.f32 0.0, %v10326
      %v10328 = vpop.f32.mrf.mxu0
      %v10329 = vadd.f32 0.0, %v10328
      %10330 = vmatmul.bf16.gmra.mxu0 %v2098
      %v10331 = vpop.f32.mrf.mxu0
      %v10332 = vadd.f32 0.0, %v10331
      %v10333 = vpop.f32.mrf.mxu0
      %v10334 = vadd.f32 0.0, %v10333
      %10335 = vdwg.mxu0
      %v10336 = vadd.f32 %v10250, %v10322
      %v10337 = vadd.f32 %v10251, %v10324
      %v10338 = vadd.f32 %v10252, %v10327
      %v10339 = vadd.f32 %v10253, %v10329
      %v10340 = vadd.f32 %v10254, %v10332
      %v10341 = vadd.f32 %v10255, %v10334
      %v10342 = vld [vmem:[%s51] sm:$0x1]
      %v10344 = vperm.slane %v10342, 0
      %v10346 = vadd.f32 %v10336, %v10344
      %v10347 = vadd.f32 %v10337, %v10344
      %v10348 = vadd.f32 %v10338, %v10344
      %v10349 = vadd.f32 %v10339, %v10344
      %v10350 = vadd.f32 %v10340, %v10344
      %v10351 = vadd.f32 %v10341, %v10344
      %v10352 = vmax.f32 %v10346, 0.0
      %v10353 = vmax.f32 %v10347, 0.0
      %v10354 = vmax.f32 %v10348, 0.0
      %v10355 = vmax.f32 %v10349, 0.0
      %v10356 = vmax.f32 %v10350, 0.0
      %v10357 = vmax.f32 %v10351, 0.0
      %v10358 = vsel %vm1387, %v10352, 0.0
      %v10359 = vsel %vm1388, %v10353, 0.0
      %v10360 = vsel %vm1389, %v10354, 0.0
      %v10361 = vsel %vm1390, %v10355, 0.0
      %v10362 = vsel %vm1391, %v10356, 0.0
      %v10363 = vsel %vm1392, %v10357, 0.0
      %v10364 = vpack.c.bf16 %v10358, %v10358
      %v10365 = vpack.c.bf16 %v10359, %v10359
      %v10366 = vpack.c.bf16 %v10360, %v10360
      %v10367 = vpack.c.bf16 %v10361, %v10361
      %v10368 = vpack.c.bf16 %v10362, %v10362
      %v10369 = vpack.c.bf16 %v10363, %v10363
      %v10376 = vunpack.c.l.b16 %v10364
      %v10377 = vunpack.c.l.b16 %v10365
      %v10378 = vunpack.c.l.b16 %v10366
      %v10379 = vunpack.c.l.b16 %v10367
      %v10380 = vunpack.c.l.b16 %v10368
      %v10381 = vunpack.c.l.b16 %v10369
      %v10382 = vpack.c.b16 %v10377, %v10376
      %v10383 = vpack.c.b16 %v10379, %v10378
      %v10384 = vpack.c.b16 %v10381, %v10380
      %v10386 = vshrl.u32 %v10382, 16
      %v10388 = vrot.slane %v10386, 7
      %v10389 = vshll.u32 %v10382, 16
      %v10391 = vor.u32 %v10388, %v10389
      %v10393 = vshrl.u32 %v10383, 16
      %v10395 = vrot.slane %v10393, 7
      %v10396 = vshll.u32 %v10383, 16
      %v10398 = vor.u32 %v10395, %v10396
      %v10399 = vsel %vm1206, %v10388, %v10398
      %v10401 = vshrl.u32 %v10384, 16
      %v10403 = vrot.slane %v10401, 7
      %v10404 = vshll.u32 %v10384, 16
      %v10406 = vor.u32 %v10403, %v10404
      %v10407 = vsel %vm1206, %v10395, %v10406
      %v10409 = vsel %vm1232, 0, %v10391
      %v10410 = vrot.slane %v10389, 1
      %v10411 = vor.u32 %v10386, %v10410
      %v10412 = vrot.slane %v10396, 1
      %v10413 = vsel %vm1234, %v10411, %v10412
      %v10414 = vor.u32 %v10393, %v10412
      %v10415 = vrot.slane %v10404, 1
      %v10416 = vsel %vm1234, %v10414, %v10415
      %v10417 = vor.u32 %v10401, %v10415
      %v10419 = vsel %vm1245, %v10417, 0
      %v10420 = vld [vmem:[%s53] sm:$0xf]
      %v10421 = vld [vmem:[%s53 + $0x4] sm:$0xf]
      %v10422 = vld [vmem:[%s53 + $0x8] sm:$0xf]
      %v10423 = vld [vmem:[%s53 + $0xc] sm:$0xf]
      %v10424 = vld [vmem:[%s53 + $0x10] sm:$0xf]
      %v10425 = vld [vmem:[%s53 + $0x14] sm:$0xf]
      %v10426 = vld [vmem:[%s53 + $0x18] sm:$0xf]
      %v10427 = vld [vmem:[%s53 + $0x1c] sm:$0xf]
      %v10428 = vld [vmem:[%s53 + $0x20] sm:$0xf]
      %v10429 = vld [vmem:[%s53 + $0x24] sm:$0xf]
      %v10430 = vld [vmem:[%s53 + $0x28] sm:$0xf]
      %v10431 = vld [vmem:[%s53 + $0x2c] sm:$0xf]
      %v10432 = vld [vmem:[%s53 + $0x30] sm:$0x3]
      %s10433 = scalar_lea.vmem %s53, 52
      %v10434 = vld [vmem:[%s10433] sm:$0xf]
      %v10435 = vld [vmem:[%s10433 + $0x4] sm:$0xf]
      %v10436 = vld [vmem:[%s10433 + $0x8] sm:$0xf]
      %v10437 = vld [vmem:[%s10433 + $0xc] sm:$0xf]
      %v10438 = vld [vmem:[%s10433 + $0x10] sm:$0xf]
      %v10439 = vld [vmem:[%s10433 + $0x14] sm:$0xf]
      %v10440 = vld [vmem:[%s10433 + $0x18] sm:$0xf]
      %v10441 = vld [vmem:[%s10433 + $0x1c] sm:$0xf]
      %v10442 = vld [vmem:[%s10433 + $0x20] sm:$0xf]
      %v10443 = vld [vmem:[%s10433 + $0x24] sm:$0xf]
      %v10444 = vld [vmem:[%s10433 + $0x28] sm:$0xf]
      %v10445 = vld [vmem:[%s10433 + $0x2c] sm:$0xf]
      %v10446 = vld [vmem:[%s10433 + $0x30] sm:$0x3]
      %v10460 = vunpack.c.l.b16 %v10434
      %v10461 = vunpack.c.l.b16 %v10435
      %v10462 = vunpack.c.l.b16 %v10436
      %v10463 = vunpack.c.l.b16 %v10437
      %v10464 = vunpack.c.l.b16 %v10438
      %v10465 = vunpack.c.l.b16 %v10439
      %v10466 = vunpack.c.l.b16 %v10440
      %v10467 = vunpack.c.l.b16 %v10441
      %v10468 = vunpack.c.l.b16 %v10442
      %v10469 = vunpack.c.l.b16 %v10443
      %v10470 = vunpack.c.l.b16 %v10444
      %v10471 = vunpack.c.l.b16 %v10445
      %v10472 = vunpack.c.l.b16 %v10446
      %v10473 = vpack.c.b16 %v10461, %v10460
      %v10474 = vpack.c.b16 %v10463, %v10462
      %v10475 = vpack.c.b16 %v10465, %v10464
      %v10476 = vpack.c.b16 %v10467, %v10466
      %v10477 = vpack.c.b16 %v10469, %v10468
      %v10478 = vpack.c.b16 %v10471, %v10470
      %v10479 = vpack.c.b16 %v10472, %v10472
      %v10486 = vsel %vm1823, %v10382, 0
      %v10488 = vsel %vm1823, %v10383, 0
      %v10490 = vsel %vm1823, %v10384, 0
      %v10493 = vsel %vm1257, %v10479, 0
      %10495 = vmatpush.bf16.msra.mxu0 0
      %10496 = vmatpush.bf16.msra.mxu0 %v10493
      %10497 = vmatpush.bf16.msra.mxu0 %v10478
      %10498 = vmatpush.bf16.msra.mxu0 %v10477
      %10499 = vmatpush.bf16.msra.mxu0 %v10476
      %10500 = vmatpush.bf16.msra.mxu0 %v10475
      %10501 = vmatpush.bf16.msra.mxu0 %v10474
      %10502 = vmatpush.bf16.msra.mxu0 %v10473
      %10503 = vmatmul.bf16.gmra.mxu0 %v10486
      %v10504 = vpop.f32.mrf.mxu0
      %v10505 = vadd.f32 0.0, %v10504
      %v10506 = vpop.f32.mrf.mxu0
      %v10507 = vadd.f32 0.0, %v10506
      %10508 = vmatmul.bf16.gmra.mxu0 %v10488
      %v10509 = vpop.f32.mrf.mxu0
      %v10510 = vadd.f32 0.0, %v10509
      %v10511 = vpop.f32.mrf.mxu0
      %v10512 = vadd.f32 0.0, %v10511
      %10513 = vmatmul.bf16.gmra.mxu0 %v10490
      %v10514 = vpop.f32.mrf.mxu0
      %v10515 = vadd.f32 0.0, %v10514
      %v10516 = vpop.f32.mrf.mxu0
      %v10517 = vadd.f32 0.0, %v10516
      %10518 = vdwg.mxu0
      %v10532 = vunpack.c.l.b16 %v10420
      %v10533 = vunpack.c.l.b16 %v10421
      %v10534 = vunpack.c.l.b16 %v10422
      %v10535 = vunpack.c.l.b16 %v10423
      %v10536 = vunpack.c.l.b16 %v10424
      %v10537 = vunpack.c.l.b16 %v10425
      %v10538 = vunpack.c.l.b16 %v10426
      %v10539 = vunpack.c.l.b16 %v10427
      %v10540 = vunpack.c.l.b16 %v10428
      %v10541 = vunpack.c.l.b16 %v10429
      %v10542 = vunpack.c.l.b16 %v10430
      %v10543 = vunpack.c.l.b16 %v10431
      %v10544 = vunpack.c.l.b16 %v10432
      %v10545 = vpack.c.b16 %v10533, %v10532
      %v10546 = vpack.c.b16 %v10535, %v10534
      %v10547 = vpack.c.b16 %v10537, %v10536
      %v10548 = vpack.c.b16 %v10539, %v10538
      %v10549 = vpack.c.b16 %v10541, %v10540
      %v10550 = vpack.c.b16 %v10543, %v10542
      %v10551 = vpack.c.b16 %v10544, %v10544
      %v10559 = vsel %vm1823, %v10409, 0
      %v10562 = vsel %vm1823, %v10399, 0
      %v10565 = vsel %vm1823, %v10407, 0
      %v10568 = vsel %vm1257, %v10551, 0
      %10570 = vmatpush.bf16.msra.mxu0 0
      %10571 = vmatpush.bf16.msra.mxu0 %v10568
      %10572 = vmatpush.bf16.msra.mxu0 %v10550
      %10573 = vmatpush.bf16.msra.mxu0 %v10549
      %10574 = vmatpush.bf16.msra.mxu0 %v10548
      %10575 = vmatpush.bf16.msra.mxu0 %v10547
      %10576 = vmatpush.bf16.msra.mxu0 %v10546
      %10577 = vmatpush.bf16.msra.mxu0 %v10545
      %10578 = vmatmul.bf16.gmra.mxu0 %v10559
      %v10579 = vpop.f32.mrf.mxu0
      %v10580 = vadd.f32 %v10505, %v10579
      %v10581 = vpop.f32.mrf.mxu0
      %v10582 = vadd.f32 %v10507, %v10581
      %10583 = vmatmul.bf16.gmra.mxu0 %v10562
      %v10584 = vpop.f32.mrf.mxu0
      %v10585 = vadd.f32 %v10510, %v10584
      %v10586 = vpop.f32.mrf.mxu0
      %v10587 = vadd.f32 %v10512, %v10586
      %10588 = vmatmul.bf16.gmra.mxu0 %v10565
      %v10589 = vpop.f32.mrf.mxu0
      %v10590 = vadd.f32 %v10515, %v10589
      %v10591 = vpop.f32.mrf.mxu0
      %v10592 = vadd.f32 %v10517, %v10591
      %10593 = vdwg.mxu0
      %s10594 = scalar_lea.vmem %s53, 104
      %v10595 = vld [vmem:[%s10594] sm:$0xf]
      %v10596 = vld [vmem:[%s10594 + $0x4] sm:$0xf]
      %v10597 = vld [vmem:[%s10594 + $0x8] sm:$0xf]
      %v10598 = vld [vmem:[%s10594 + $0xc] sm:$0xf]
      %v10599 = vld [vmem:[%s10594 + $0x10] sm:$0xf]
      %v10600 = vld [vmem:[%s10594 + $0x14] sm:$0xf]
      %v10601 = vld [vmem:[%s10594 + $0x18] sm:$0xf]
      %v10602 = vld [vmem:[%s10594 + $0x1c] sm:$0xf]
      %v10603 = vld [vmem:[%s10594 + $0x20] sm:$0xf]
      %v10604 = vld [vmem:[%s10594 + $0x24] sm:$0xf]
      %v10605 = vld [vmem:[%s10594 + $0x28] sm:$0xf]
      %v10606 = vld [vmem:[%s10594 + $0x2c] sm:$0xf]
      %v10607 = vld [vmem:[%s10594 + $0x30] sm:$0x3]
      %v10621 = vunpack.c.l.b16 %v10595
      %v10622 = vunpack.c.l.b16 %v10596
      %v10623 = vunpack.c.l.b16 %v10597
      %v10624 = vunpack.c.l.b16 %v10598
      %v10625 = vunpack.c.l.b16 %v10599
      %v10626 = vunpack.c.l.b16 %v10600
      %v10627 = vunpack.c.l.b16 %v10601
      %v10628 = vunpack.c.l.b16 %v10602
      %v10629 = vunpack.c.l.b16 %v10603
      %v10630 = vunpack.c.l.b16 %v10604
      %v10631 = vunpack.c.l.b16 %v10605
      %v10632 = vunpack.c.l.b16 %v10606
      %v10633 = vunpack.c.l.b16 %v10607
      %v10634 = vpack.c.b16 %v10622, %v10621
      %v10635 = vpack.c.b16 %v10624, %v10623
      %v10636 = vpack.c.b16 %v10626, %v10625
      %v10637 = vpack.c.b16 %v10628, %v10627
      %v10638 = vpack.c.b16 %v10630, %v10629
      %v10639 = vpack.c.b16 %v10632, %v10631
      %v10640 = vpack.c.b16 %v10633, %v10633
      %v10648 = vsel %vm1823, %v10413, 0
      %v10651 = vsel %vm1823, %v10416, 0
      %v10654 = vsel %vm1823, %v10419, 0
      %v10657 = vsel %vm1257, %v10640, 0
      %10659 = vmatpush.bf16.msra.mxu0 0
      %10660 = vmatpush.bf16.msra.mxu0 %v10657
      %10661 = vmatpush.bf16.msra.mxu0 %v10639
      %10662 = vmatpush.bf16.msra.mxu0 %v10638
      %10663 = vmatpush.bf16.msra.mxu0 %v10637
      %10664 = vmatpush.bf16.msra.mxu0 %v10636
      %10665 = vmatpush.bf16.msra.mxu0 %v10635
      %10666 = vmatpush.bf16.msra.mxu0 %v10634
      %10667 = vmatmul.bf16.gmra.mxu0 %v10648
      %v10668 = vpop.f32.mrf.mxu0
      %v10669 = vadd.f32 0.0, %v10668
      %v10670 = vpop.f32.mrf.mxu0
      %v10671 = vadd.f32 0.0, %v10670
      %10672 = vmatmul.bf16.gmra.mxu0 %v10651
      %v10673 = vpop.f32.mrf.mxu0
      %v10674 = vadd.f32 0.0, %v10673
      %v10675 = vpop.f32.mrf.mxu0
      %v10676 = vadd.f32 0.0, %v10675
      %10677 = vmatmul.bf16.gmra.mxu0 %v10654
      %v10678 = vpop.f32.mrf.mxu0
      %v10679 = vadd.f32 0.0, %v10678
      %v10680 = vpop.f32.mrf.mxu0
      %v10681 = vadd.f32 0.0, %v10680
      %10682 = vdwg.mxu0
      %v10683 = vadd.f32 %v10580, %v10669
      %v10684 = vadd.f32 %v10582, %v10671
      %v10685 = vadd.f32 %v10585, %v10674
      %v10686 = vadd.f32 %v10587, %v10676
      %v10687 = vadd.f32 %v10590, %v10679
      %v10688 = vadd.f32 %v10592, %v10681
      %v10689 = vld [vmem:[%s55] sm:$0xf]
      %v10690 = vld [vmem:[%s55 + $0x4] sm:$0xf]
      %v10691 = vld [vmem:[%s55 + $0x8] sm:$0xf]
      %v10692 = vld [vmem:[%s55 + $0xc] sm:$0xf]
      %v10693 = vld [vmem:[%s55 + $0x10] sm:$0xf]
      %v10694 = vld [vmem:[%s55 + $0x14] sm:$0xf]
      %v10695 = vld [vmem:[%s55 + $0x18] sm:$0x3]
      %v10703 = vunpack.c.l.b16 %v10689
      %v10704 = vunpack.c.l.b16 %v10690
      %v10705 = vunpack.c.l.b16 %v10691
      %v10706 = vunpack.c.l.b16 %v10692
      %v10707 = vunpack.c.l.b16 %v10693
      %v10708 = vunpack.c.l.b16 %v10694
      %v10709 = vunpack.c.l.b16 %v10695
      %v10710 = vpack.c.b16 %v10704, %v10703
      %v10711 = vpack.c.b16 %v10706, %v10705
      %v10712 = vpack.c.b16 %v10708, %v10707
      %v10713 = vpack.c.b16 %v10709, %v10709
      %v10718 = vsel %vm1257, %v10713, 0
      %10720 = vmatpush.bf16.msra.mxu0 0
      %10721 = vmatpush.bf16.msra.mxu0 0
      %10722 = vmatpush.bf16.msra.mxu0 0
      %10723 = vmatpush.bf16.msra.mxu0 0
      %10724 = vmatpush.bf16.msra.mxu0 %v10718
      %10725 = vmatpush.bf16.msra.mxu0 %v10712
      %10726 = vmatpush.bf16.msra.mxu0 %v10711
      %10727 = vmatpush.bf16.msra.mxu0 %v10710
      %10728 = vmatmul.bf16.gmra.mxu0 %v1547
      %v10729 = vpop.f32.mrf.mxu0
      %v10730 = vadd.f32 0.0, %v10729
      %v10731 = vpop.f32.mrf.mxu0
      %v10732 = vadd.f32 0.0, %v10731
      %10733 = vmatmul.bf16.gmra.mxu0 %v1550
      %v10734 = vpop.f32.mrf.mxu0
      %v10735 = vadd.f32 0.0, %v10734
      %v10736 = vpop.f32.mrf.mxu0
      %v10737 = vadd.f32 0.0, %v10736
      %10738 = vmatmul.bf16.gmra.mxu0 %v1553
      %v10739 = vpop.f32.mrf.mxu0
      %v10740 = vadd.f32 0.0, %v10739
      %v10741 = vpop.f32.mrf.mxu0
      %v10742 = vadd.f32 0.0, %v10741
      %10743 = vdwg.mxu0
      %v10744 = vadd.f32 %v10683, %v10730
      %v10745 = vadd.f32 %v10684, %v10732
      %v10746 = vadd.f32 %v10685, %v10735
      %v10747 = vadd.f32 %v10686, %v10737
      %v10748 = vadd.f32 %v10687, %v10740
      %v10749 = vadd.f32 %v10688, %v10742
      %s10750 = scalar_lea.vmem %s55, 28
      %v10751 = vld [vmem:[%s10750] sm:$0xf]
      %v10752 = vld [vmem:[%s10750 + $0x4] sm:$0xf]
      %v10753 = vld [vmem:[%s10750 + $0x8] sm:$0xf]
      %v10754 = vld [vmem:[%s10750 + $0xc] sm:$0xf]
      %v10755 = vld [vmem:[%s10750 + $0x10] sm:$0xf]
      %v10756 = vld [vmem:[%s10750 + $0x14] sm:$0xf]
      %v10757 = vld [vmem:[%s10750 + $0x18] sm:$0x3]
      %v10765 = vunpack.c.l.b16 %v10751
      %v10766 = vunpack.c.l.b16 %v10752
      %v10767 = vunpack.c.l.b16 %v10753
      %v10768 = vunpack.c.l.b16 %v10754
      %v10769 = vunpack.c.l.b16 %v10755
      %v10770 = vunpack.c.l.b16 %v10756
      %v10771 = vunpack.c.l.b16 %v10757
      %v10772 = vpack.c.b16 %v10766, %v10765
      %v10773 = vpack.c.b16 %v10768, %v10767
      %v10774 = vpack.c.b16 %v10770, %v10769
      %v10775 = vpack.c.b16 %v10771, %v10771
      %v10780 = vsel %vm1257, %v10775, 0
      %10782 = vmatpush.bf16.msra.mxu0 0
      %10783 = vmatpush.bf16.msra.mxu0 0
      %10784 = vmatpush.bf16.msra.mxu0 0
      %10785 = vmatpush.bf16.msra.mxu0 0
      %10786 = vmatpush.bf16.msra.mxu0 %v10780
      %10787 = vmatpush.bf16.msra.mxu0 %v10774
      %10788 = vmatpush.bf16.msra.mxu0 %v10773
      %10789 = vmatpush.bf16.msra.mxu0 %v10772
      %10790 = vmatmul.bf16.gmra.mxu0 %v1492
      %v10791 = vpop.f32.mrf.mxu0
      %v10792 = vadd.f32 0.0, %v10791
      %v10793 = vpop.f32.mrf.mxu0
      %v10794 = vadd.f32 0.0, %v10793
      %10795 = vmatmul.bf16.gmra.mxu0 %v1494
      %v10796 = vpop.f32.mrf.mxu0
      %v10797 = vadd.f32 0.0, %v10796
      %v10798 = vpop.f32.mrf.mxu0
      %v10799 = vadd.f32 0.0, %v10798
      %10800 = vmatmul.bf16.gmra.mxu0 %v1496
      %v10801 = vpop.f32.mrf.mxu0
      %v10802 = vadd.f32 0.0, %v10801
      %v10803 = vpop.f32.mrf.mxu0
      %v10804 = vadd.f32 0.0, %v10803
      %10805 = vdwg.mxu0
      %v10806 = vadd.f32 %v10744, %v10792
      %v10807 = vadd.f32 %v10745, %v10794
      %v10808 = vadd.f32 %v10746, %v10797
      %v10809 = vadd.f32 %v10747, %v10799
      %v10810 = vadd.f32 %v10748, %v10802
      %v10811 = vadd.f32 %v10749, %v10804
      %s10812 = scalar_lea.vmem %s55, 56
      %v10813 = vld [vmem:[%s10812] sm:$0xf]
      %v10814 = vld [vmem:[%s10812 + $0x4] sm:$0xf]
      %v10815 = vld [vmem:[%s10812 + $0x8] sm:$0xf]
      %v10816 = vld [vmem:[%s10812 + $0xc] sm:$0xf]
      %v10817 = vld [vmem:[%s10812 + $0x10] sm:$0xf]
      %v10818 = vld [vmem:[%s10812 + $0x14] sm:$0xf]
      %v10819 = vld [vmem:[%s10812 + $0x18] sm:$0x3]
      %v10827 = vunpack.c.l.b16 %v10813
      %v10828 = vunpack.c.l.b16 %v10814
      %v10829 = vunpack.c.l.b16 %v10815
      %v10830 = vunpack.c.l.b16 %v10816
      %v10831 = vunpack.c.l.b16 %v10817
      %v10832 = vunpack.c.l.b16 %v10818
      %v10833 = vunpack.c.l.b16 %v10819
      %v10834 = vpack.c.b16 %v10828, %v10827
      %v10835 = vpack.c.b16 %v10830, %v10829
      %v10836 = vpack.c.b16 %v10832, %v10831
      %v10837 = vpack.c.b16 %v10833, %v10833
      %v10842 = vsel %vm1257, %v10837, 0
      %10844 = vmatpush.bf16.msra.mxu0 0
      %10845 = vmatpush.bf16.msra.mxu0 0
      %10846 = vmatpush.bf16.msra.mxu0 0
      %10847 = vmatpush.bf16.msra.mxu0 0
      %10848 = vmatpush.bf16.msra.mxu0 %v10842
      %10849 = vmatpush.bf16.msra.mxu0 %v10836
      %10850 = vmatpush.bf16.msra.mxu0 %v10835
      %10851 = vmatpush.bf16.msra.mxu0 %v10834
      %10852 = vmatmul.bf16.gmra.mxu0 %v1612
      %v10853 = vpop.f32.mrf.mxu0
      %v10854 = vadd.f32 0.0, %v10853
      %v10855 = vpop.f32.mrf.mxu0
      %v10856 = vadd.f32 0.0, %v10855
      %10857 = vmatmul.bf16.gmra.mxu0 %v1615
      %v10858 = vpop.f32.mrf.mxu0
      %v10859 = vadd.f32 0.0, %v10858
      %v10860 = vpop.f32.mrf.mxu0
      %v10861 = vadd.f32 0.0, %v10860
      %10862 = vmatmul.bf16.gmra.mxu0 %v1618
      %v10863 = vpop.f32.mrf.mxu0
      %v10864 = vadd.f32 0.0, %v10863
      %v10865 = vpop.f32.mrf.mxu0
      %v10866 = vadd.f32 0.0, %v10865
      %10867 = vdwg.mxu0
      %v10868 = vadd.f32 %v10806, %v10854
      %v10869 = vadd.f32 %v10807, %v10856
      %v10870 = vadd.f32 %v10808, %v10859
      %v10871 = vadd.f32 %v10809, %v10861
      %v10872 = vadd.f32 %v10810, %v10864
      %v10873 = vadd.f32 %v10811, %v10866
      %v10874 = vld [vmem:[%s57] sm:$0x1]
      %v10876 = vperm.slane %v10874, 0
      %v10878 = vadd.f32 %v10868, %v10876
      %v10879 = vadd.f32 %v10869, %v10876
      %v10880 = vadd.f32 %v10870, %v10876
      %v10881 = vadd.f32 %v10871, %v10876
      %v10882 = vadd.f32 %v10872, %v10876
      %v10883 = vadd.f32 %v10873, %v10876
      %v10884 = vmax.f32 %v10878, 0.0
      %v10885 = vmax.f32 %v10879, 0.0
      %v10886 = vmax.f32 %v10880, 0.0
      %v10887 = vmax.f32 %v10881, 0.0
      %v10888 = vmax.f32 %v10882, 0.0
      %v10889 = vmax.f32 %v10883, 0.0
      %v10890 = vsel %vm1387, %v10884, 0.0
      %v10891 = vsel %vm1388, %v10885, 0.0
      %v10892 = vsel %vm1389, %v10886, 0.0
      %v10893 = vsel %vm1390, %v10887, 0.0
      %v10894 = vsel %vm1391, %v10888, 0.0
      %v10895 = vsel %vm1392, %v10889, 0.0
      %v10896 = vpack.c.bf16 %v10890, %v10890
      %v10897 = vpack.c.bf16 %v10891, %v10891
      %v10898 = vpack.c.bf16 %v10892, %v10892
      %v10899 = vpack.c.bf16 %v10893, %v10893
      %v10900 = vpack.c.bf16 %v10894, %v10894
      %v10901 = vpack.c.bf16 %v10895, %v10895
      %v10908 = vunpack.c.l.b16 %v10896
      %v10909 = vunpack.c.l.b16 %v10897
      %v10910 = vunpack.c.l.b16 %v10898
      %v10911 = vunpack.c.l.b16 %v10899
      %v10912 = vunpack.c.l.b16 %v10900
      %v10913 = vunpack.c.l.b16 %v10901
      %v10914 = vpack.c.b16 %v10909, %v10908
      %v10915 = vpack.c.b16 %v10911, %v10910
      %v10916 = vpack.c.b16 %v10913, %v10912
      %v10918 = vshrl.u32 %v10914, 16
      %v10920 = vrot.slane %v10918, 7
      %v10921 = vshll.u32 %v10914, 16
      %v10923 = vor.u32 %v10920, %v10921
      %v10925 = vshrl.u32 %v10915, 16
      %v10927 = vrot.slane %v10925, 7
      %v10928 = vshll.u32 %v10915, 16
      %v10930 = vor.u32 %v10927, %v10928
      %v10931 = vsel %vm1206, %v10920, %v10930
      %v10933 = vshrl.u32 %v10916, 16
      %v10935 = vrot.slane %v10933, 7
      %v10936 = vshll.u32 %v10916, 16
      %v10938 = vor.u32 %v10935, %v10936
      %v10939 = vsel %vm1206, %v10927, %v10938
      %v10941 = vsel %vm1232, 0, %v10923
      %v10942 = vrot.slane %v10921, 1
      %v10943 = vor.u32 %v10918, %v10942
      %v10944 = vrot.slane %v10928, 1
      %v10945 = vsel %vm1234, %v10943, %v10944
      %v10946 = vor.u32 %v10925, %v10944
      %v10947 = vrot.slane %v10936, 1
      %v10948 = vsel %vm1234, %v10946, %v10947
      %v10949 = vor.u32 %v10933, %v10947
      %v10951 = vsel %vm1245, %v10949, 0
      %v10952 = vld [vmem:[%s59] sm:$0xf]
      %v10953 = vld [vmem:[%s59 + $0x4] sm:$0xf]
      %v10954 = vld [vmem:[%s59 + $0x8] sm:$0xf]
      %v10955 = vld [vmem:[%s59 + $0xc] sm:$0xf]
      %v10956 = vld [vmem:[%s59 + $0x10] sm:$0xf]
      %v10957 = vld [vmem:[%s59 + $0x14] sm:$0xf]
      %v10958 = vld [vmem:[%s59 + $0x18] sm:$0x3]
      %s10959 = scalar_lea.vmem %s59, 28
      %v10960 = vld [vmem:[%s10959] sm:$0xf]
      %v10961 = vld [vmem:[%s10959 + $0x4] sm:$0xf]
      %v10962 = vld [vmem:[%s10959 + $0x8] sm:$0xf]
      %v10963 = vld [vmem:[%s10959 + $0xc] sm:$0xf]
      %v10964 = vld [vmem:[%s10959 + $0x10] sm:$0xf]
      %v10965 = vld [vmem:[%s10959 + $0x14] sm:$0xf]
      %v10966 = vld [vmem:[%s10959 + $0x18] sm:$0x3]
      %v10974 = vunpack.c.l.b16 %v10960
      %v10975 = vunpack.c.l.b16 %v10961
      %v10976 = vunpack.c.l.b16 %v10962
      %v10977 = vunpack.c.l.b16 %v10963
      %v10978 = vunpack.c.l.b16 %v10964
      %v10979 = vunpack.c.l.b16 %v10965
      %v10980 = vunpack.c.l.b16 %v10966
      %v10981 = vpack.c.b16 %v10975, %v10974
      %v10982 = vpack.c.b16 %v10977, %v10976
      %v10983 = vpack.c.b16 %v10979, %v10978
      %v10984 = vpack.c.b16 %v10980, %v10980
      %v10988 = vsel %vm1491, %v10914, 0
      %v10990 = vsel %vm1491, %v10915, 0
      %v10992 = vsel %vm1491, %v10916, 0
      %v10995 = vsel %vm1257, %v10984, 0
      %10997 = vmatpush.bf16.msra.mxu0 0
      %10998 = vmatpush.bf16.msra.mxu0 0
      %10999 = vmatpush.bf16.msra.mxu0 0
      %11000 = vmatpush.bf16.msra.mxu0 0
      %11001 = vmatpush.bf16.msra.mxu0 %v10995
      %11002 = vmatpush.bf16.msra.mxu0 %v10983
      %11003 = vmatpush.bf16.msra.mxu0 %v10982
      %11004 = vmatpush.bf16.msra.mxu0 %v10981
      %11005 = vmatmul.bf16.gmra.mxu0 %v10988
      %v11006 = vpop.f32.mrf.mxu0
      %v11007 = vadd.f32 0.0, %v11006
      %v11008 = vpop.f32.mrf.mxu0
      %v11009 = vadd.f32 0.0, %v11008
      %11010 = vmatmul.bf16.gmra.mxu0 %v10990
      %v11011 = vpop.f32.mrf.mxu0
      %v11012 = vadd.f32 0.0, %v11011
      %v11013 = vpop.f32.mrf.mxu0
      %v11014 = vadd.f32 0.0, %v11013
      %11015 = vmatmul.bf16.gmra.mxu0 %v10992
      %v11016 = vpop.f32.mrf.mxu0
      %v11017 = vadd.f32 0.0, %v11016
      %v11018 = vpop.f32.mrf.mxu0
      %v11019 = vadd.f32 0.0, %v11018
      %11020 = vdwg.mxu0
      %v11028 = vunpack.c.l.b16 %v10952
      %v11029 = vunpack.c.l.b16 %v10953
      %v11030 = vunpack.c.l.b16 %v10954
      %v11031 = vunpack.c.l.b16 %v10955
      %v11032 = vunpack.c.l.b16 %v10956
      %v11033 = vunpack.c.l.b16 %v10957
      %v11034 = vunpack.c.l.b16 %v10958
      %v11035 = vpack.c.b16 %v11029, %v11028
      %v11036 = vpack.c.b16 %v11031, %v11030
      %v11037 = vpack.c.b16 %v11033, %v11032
      %v11038 = vpack.c.b16 %v11034, %v11034
      %v11043 = vsel %vm1491, %v10941, 0
      %v11046 = vsel %vm1491, %v10931, 0
      %v11049 = vsel %vm1491, %v10939, 0
      %v11052 = vsel %vm1257, %v11038, 0
      %11054 = vmatpush.bf16.msra.mxu0 0
      %11055 = vmatpush.bf16.msra.mxu0 0
      %11056 = vmatpush.bf16.msra.mxu0 0
      %11057 = vmatpush.bf16.msra.mxu0 0
      %11058 = vmatpush.bf16.msra.mxu0 %v11052
      %11059 = vmatpush.bf16.msra.mxu0 %v11037
      %11060 = vmatpush.bf16.msra.mxu0 %v11036
      %11061 = vmatpush.bf16.msra.mxu0 %v11035
      %11062 = vmatmul.bf16.gmra.mxu0 %v11043
      %v11063 = vpop.f32.mrf.mxu0
      %v11064 = vadd.f32 %v11007, %v11063
      %v11065 = vpop.f32.mrf.mxu0
      %v11066 = vadd.f32 %v11009, %v11065
      %11067 = vmatmul.bf16.gmra.mxu0 %v11046
      %v11068 = vpop.f32.mrf.mxu0
      %v11069 = vadd.f32 %v11012, %v11068
      %v11070 = vpop.f32.mrf.mxu0
      %v11071 = vadd.f32 %v11014, %v11070
      %11072 = vmatmul.bf16.gmra.mxu0 %v11049
      %v11073 = vpop.f32.mrf.mxu0
      %v11074 = vadd.f32 %v11017, %v11073
      %v11075 = vpop.f32.mrf.mxu0
      %v11076 = vadd.f32 %v11019, %v11075
      %11077 = vdwg.mxu0
      %s11078 = scalar_lea.vmem %s59, 56
      %v11079 = vld [vmem:[%s11078] sm:$0xf]
      %v11080 = vld [vmem:[%s11078 + $0x4] sm:$0xf]
      %v11081 = vld [vmem:[%s11078 + $0x8] sm:$0xf]
      %v11082 = vld [vmem:[%s11078 + $0xc] sm:$0xf]
      %v11083 = vld [vmem:[%s11078 + $0x10] sm:$0xf]
      %v11084 = vld [vmem:[%s11078 + $0x14] sm:$0xf]
      %v11085 = vld [vmem:[%s11078 + $0x18] sm:$0x3]
      %v11093 = vunpack.c.l.b16 %v11079
      %v11094 = vunpack.c.l.b16 %v11080
      %v11095 = vunpack.c.l.b16 %v11081
      %v11096 = vunpack.c.l.b16 %v11082
      %v11097 = vunpack.c.l.b16 %v11083
      %v11098 = vunpack.c.l.b16 %v11084
      %v11099 = vunpack.c.l.b16 %v11085
      %v11100 = vpack.c.b16 %v11094, %v11093
      %v11101 = vpack.c.b16 %v11096, %v11095
      %v11102 = vpack.c.b16 %v11098, %v11097
      %v11103 = vpack.c.b16 %v11099, %v11099
      %v11108 = vsel %vm1491, %v10945, 0
      %v11111 = vsel %vm1491, %v10948, 0
      %v11114 = vsel %vm1491, %v10951, 0
      %v11117 = vsel %vm1257, %v11103, 0
      %11119 = vmatpush.bf16.msra.mxu0 0
      %11120 = vmatpush.bf16.msra.mxu0 0
      %11121 = vmatpush.bf16.msra.mxu0 0
      %11122 = vmatpush.bf16.msra.mxu0 0
      %11123 = vmatpush.bf16.msra.mxu0 %v11117
      %11124 = vmatpush.bf16.msra.mxu0 %v11102
      %11125 = vmatpush.bf16.msra.mxu0 %v11101
      %11126 = vmatpush.bf16.msra.mxu0 %v11100
      %11127 = vmatmul.bf16.gmra.mxu0 %v11108
      %v11128 = vpop.f32.mrf.mxu0
      %v11129 = vadd.f32 0.0, %v11128
      %v11130 = vpop.f32.mrf.mxu0
      %v11131 = vadd.f32 0.0, %v11130
      %11132 = vmatmul.bf16.gmra.mxu0 %v11111
      %v11133 = vpop.f32.mrf.mxu0
      %v11134 = vadd.f32 0.0, %v11133
      %v11135 = vpop.f32.mrf.mxu0
      %v11136 = vadd.f32 0.0, %v11135
      %11137 = vmatmul.bf16.gmra.mxu0 %v11114
      %v11138 = vpop.f32.mrf.mxu0
      %v11139 = vadd.f32 0.0, %v11138
      %v11140 = vpop.f32.mrf.mxu0
      %v11141 = vadd.f32 0.0, %v11140
      %11142 = vdwg.mxu0
      %v11143 = vadd.f32 %v11064, %v11129
      %v11144 = vadd.f32 %v11066, %v11131
      %v11145 = vadd.f32 %v11069, %v11134
      %v11146 = vadd.f32 %v11071, %v11136
      %v11147 = vadd.f32 %v11074, %v11139
      %v11148 = vadd.f32 %v11076, %v11141
      %v11149 = vld [vmem:[%s61] sm:$0x3]
      %v11151 = vsel %vm1257, %v11149, 0
      %11153 = vmatpush.bf16.msra.mxu0 0
      %11154 = vmatpush.bf16.msra.mxu0 0
      %11155 = vmatpush.bf16.msra.mxu0 0
      %11156 = vmatpush.bf16.msra.mxu0 0
      %11157 = vmatpush.bf16.msra.mxu0 0
      %11158 = vmatpush.bf16.msra.mxu0 0
      %11159 = vmatpush.bf16.msra.mxu0 0
      %11160 = vmatpush.bf16.msra.mxu0 %v11151
      %11161 = vmatmul.bf16.gmra.mxu0 %v1286
      %v11162 = vpop.f32.mrf.mxu0
      %v11163 = vadd.f32 0.0, %v11162
      %v11164 = vpop.f32.mrf.mxu0
      %v11165 = vadd.f32 0.0, %v11164
      %11166 = vmatmul.bf16.gmra.mxu0 %v1289
      %v11167 = vpop.f32.mrf.mxu0
      %v11168 = vadd.f32 0.0, %v11167
      %v11169 = vpop.f32.mrf.mxu0
      %v11170 = vadd.f32 0.0, %v11169
      %11171 = vmatmul.bf16.gmra.mxu0 %v1292
      %v11172 = vpop.f32.mrf.mxu0
      %v11173 = vadd.f32 0.0, %v11172
      %v11174 = vpop.f32.mrf.mxu0
      %v11175 = vadd.f32 0.0, %v11174
      %11176 = vdwg.mxu0
      %v11177 = vadd.f32 %v11143, %v11163
      %v11178 = vadd.f32 %v11144, %v11165
      %v11179 = vadd.f32 %v11145, %v11168
      %v11180 = vadd.f32 %v11146, %v11170
      %v11181 = vadd.f32 %v11147, %v11173
      %v11182 = vadd.f32 %v11148, %v11175
      %s11183 = scalar_lea.vmem %s61, 2
      %v11184 = vld [vmem:[%s11183] sm:$0x3]
      %v11186 = vsel %vm1257, %v11184, 0
      %11188 = vmatpush.bf16.msra.mxu0 0
      %11189 = vmatpush.bf16.msra.mxu0 0
      %11190 = vmatpush.bf16.msra.mxu0 0
      %11191 = vmatpush.bf16.msra.mxu0 0
      %11192 = vmatpush.bf16.msra.mxu0 0
      %11193 = vmatpush.bf16.msra.mxu0 0
      %11194 = vmatpush.bf16.msra.mxu0 0
      %11195 = vmatpush.bf16.msra.mxu0 %v11186
      %11196 = vmatmul.bf16.gmra.mxu0 %v1251
      %v11197 = vpop.f32.mrf.mxu0
      %v11198 = vadd.f32 0.0, %v11197
      %v11199 = vpop.f32.mrf.mxu0
      %v11200 = vadd.f32 0.0, %v11199
      %11201 = vmatmul.bf16.gmra.mxu0 %v1253
      %v11202 = vpop.f32.mrf.mxu0
      %v11203 = vadd.f32 0.0, %v11202
      %v11204 = vpop.f32.mrf.mxu0
      %v11205 = vadd.f32 0.0, %v11204
      %11206 = vmatmul.bf16.gmra.mxu0 %v1255
      %v11207 = vpop.f32.mrf.mxu0
      %v11208 = vadd.f32 0.0, %v11207
      %v11209 = vpop.f32.mrf.mxu0
      %v11210 = vadd.f32 0.0, %v11209
      %11211 = vdwg.mxu0
      %v11212 = vadd.f32 %v11177, %v11198
      %v11213 = vadd.f32 %v11178, %v11200
      %v11214 = vadd.f32 %v11179, %v11203
      %v11215 = vadd.f32 %v11180, %v11205
      %v11216 = vadd.f32 %v11181, %v11208
      %v11217 = vadd.f32 %v11182, %v11210
      %s11218 = scalar_lea.vmem %s61, 4
      %v11219 = vld [vmem:[%s11218] sm:$0x3]
      %v11221 = vsel %vm1257, %v11219, 0
      %11223 = vmatpush.bf16.msra.mxu0 0
      %11224 = vmatpush.bf16.msra.mxu0 0
      %11225 = vmatpush.bf16.msra.mxu0 0
      %11226 = vmatpush.bf16.msra.mxu0 0
      %11227 = vmatpush.bf16.msra.mxu0 0
      %11228 = vmatpush.bf16.msra.mxu0 0
      %11229 = vmatpush.bf16.msra.mxu0 0
      %11230 = vmatpush.bf16.msra.mxu0 %v11221
      %11231 = vmatmul.bf16.gmra.mxu0 %v1324
      %v11232 = vpop.f32.mrf.mxu0
      %v11233 = vadd.f32 0.0, %v11232
      %v11234 = vpop.f32.mrf.mxu0
      %v11235 = vadd.f32 0.0, %v11234
      %11236 = vmatmul.bf16.gmra.mxu0 %v1327
      %v11237 = vpop.f32.mrf.mxu0
      %v11238 = vadd.f32 0.0, %v11237
      %v11239 = vpop.f32.mrf.mxu0
      %v11240 = vadd.f32 0.0, %v11239
      %11241 = vmatmul.bf16.gmra.mxu0 %v1330
      %v11242 = vpop.f32.mrf.mxu0
      %v11243 = vadd.f32 0.0, %v11242
      %v11244 = vpop.f32.mrf.mxu0
      %v11245 = vadd.f32 0.0, %v11244
      %11246 = vdwg.mxu0
      %v11247 = vadd.f32 %v11212, %v11233
      %v11248 = vadd.f32 %v11213, %v11235
      %v11249 = vadd.f32 %v11214, %v11238
      %v11250 = vadd.f32 %v11215, %v11240
      %v11251 = vadd.f32 %v11216, %v11243
      %v11252 = vadd.f32 %v11217, %v11245
      %v11253 = vld [vmem:[%s63] sm:$0x1]
      %v11255 = vperm.slane %v11253, 0
      %v11257 = vadd.f32 %v11247, %v11255
      %v11258 = vadd.f32 %v11248, %v11255
      %v11259 = vadd.f32 %v11249, %v11255
      %v11260 = vadd.f32 %v11250, %v11255
      %v11261 = vadd.f32 %v11251, %v11255
      %v11262 = vadd.f32 %v11252, %v11255
      %v11263 = vmax.f32 %v11257, 0.0
      %v11264 = vmax.f32 %v11258, 0.0
      %v11265 = vmax.f32 %v11259, 0.0
      %v11266 = vmax.f32 %v11260, 0.0
      %v11267 = vmax.f32 %v11261, 0.0
      %v11268 = vmax.f32 %v11262, 0.0
      %v11269 = vsel %vm1387, %v11263, 0.0
      %v11270 = vsel %vm1388, %v11264, 0.0
      %v11271 = vsel %vm1389, %v11265, 0.0
      %v11272 = vsel %vm1390, %v11266, 0.0
      %v11273 = vsel %vm1391, %v11267, 0.0
      %v11274 = vsel %vm1392, %v11268, 0.0
      %v11275 = vpack.c.bf16 %v11269, %v11269
      %v11276 = vpack.c.bf16 %v11270, %v11270
      %v11277 = vpack.c.bf16 %v11271, %v11271
      %v11278 = vpack.c.bf16 %v11272, %v11272
      %v11279 = vpack.c.bf16 %v11273, %v11273
      %v11280 = vpack.c.bf16 %v11274, %v11274
      %v11287 = vunpack.c.l.b16 %v11275
      %v11288 = vunpack.c.l.b16 %v11276
      %v11289 = vunpack.c.l.b16 %v11277
      %v11290 = vunpack.c.l.b16 %v11278
      %v11291 = vunpack.c.l.b16 %v11279
      %v11292 = vunpack.c.l.b16 %v11280
      %v11293 = vpack.c.b16 %v11288, %v11287
      %v11294 = vpack.c.b16 %v11290, %v11289
      %v11295 = vpack.c.b16 %v11292, %v11291
      %v11297 = vshrl.u32 %v11293, 16
      %v11299 = vrot.slane %v11297, 7
      %v11300 = vshll.u32 %v11293, 16
      %v11302 = vor.u32 %v11299, %v11300
      %v11304 = vshrl.u32 %v11294, 16
      %v11306 = vrot.slane %v11304, 7
      %v11307 = vshll.u32 %v11294, 16
      %v11309 = vor.u32 %v11306, %v11307
      %v11310 = vsel %vm1206, %v11299, %v11309
      %v11312 = vshrl.u32 %v11295, 16
      %v11314 = vrot.slane %v11312, 7
      %v11315 = vshll.u32 %v11295, 16
      %v11317 = vor.u32 %v11314, %v11315
      %v11318 = vsel %vm1206, %v11306, %v11317
      %v11320 = vsel %vm1232, 0, %v11302
      %v11321 = vrot.slane %v11300, 1
      %v11322 = vor.u32 %v11297, %v11321
      %v11323 = vrot.slane %v11307, 1
      %v11324 = vsel %vm1234, %v11322, %v11323
      %v11325 = vor.u32 %v11304, %v11323
      %v11326 = vrot.slane %v11315, 1
      %v11327 = vsel %vm1234, %v11325, %v11326
      %v11328 = vor.u32 %v11312, %v11326
      %v11330 = vsel %vm1245, %v11328, 0
      %v11331 = vld [vmem:[%s65] sm:$0x3]
      %s11332 = scalar_lea.vmem %s65, 2
      %v11333 = vld [vmem:[%s11332] sm:$0x3]
      %v11334 = vsel %vm1250, %v11293, 0
      %v11336 = vsel %vm1250, %v11294, 0
      %v11338 = vsel %vm1250, %v11295, 0
      %v11341 = vsel %vm1257, %v11333, 0
      %11343 = vmatpush.bf16.msra.mxu0 0
      %11344 = vmatpush.bf16.msra.mxu0 0
      %11345 = vmatpush.bf16.msra.mxu0 0
      %11346 = vmatpush.bf16.msra.mxu0 0
      %11347 = vmatpush.bf16.msra.mxu0 0
      %11348 = vmatpush.bf16.msra.mxu0 0
      %11349 = vmatpush.bf16.msra.mxu0 0
      %11350 = vmatpush.bf16.msra.mxu0 %v11341
      %11351 = vmatmul.bf16.gmra.mxu0 %v11334
      %v11352 = vpop.f32.mrf.mxu0
      %v11353 = vpop.f32.mrf.mxu0
      %11354 = vmatmul.bf16.gmra.mxu0 %v11336
      %v11355 = vpop.f32.mrf.mxu0
      %v11356 = vadd.f32 0.0, %v11355
      %v11357 = vpop.f32.mrf.mxu0
      %v11358 = vadd.f32 0.0, %v11357
      %11359 = vmatmul.bf16.gmra.mxu0 %v11338
      %v11360 = vpop.f32.mrf.mxu0
      %v11361 = vpop.f32.mrf.mxu0
      %11362 = vdwg.mxu0
      %v11364 = vsel %vm1250, %v11320, 0
      %v11367 = vsel %vm1250, %v11310, 0
      %v11370 = vsel %vm1250, %v11318, 0
      %v11373 = vsel %vm1257, %v11331, 0
      %11375 = vmatpush.bf16.msra.mxu0 0
      %11376 = vmatpush.bf16.msra.mxu0 0
      %11377 = vmatpush.bf16.msra.mxu0 0
      %11378 = vmatpush.bf16.msra.mxu0 0
      %11379 = vmatpush.bf16.msra.mxu0 0
      %11380 = vmatpush.bf16.msra.mxu0 0
      %11381 = vmatpush.bf16.msra.mxu0 0
      %11382 = vmatpush.bf16.msra.mxu0 %v11373
      %11383 = vmatmul.bf16.gmra.mxu0 %v11364
      %v11384 = vpop.f32.mrf.mxu0
      %v11385 = vpop.f32.mrf.mxu0
      %11386 = vmatmul.bf16.gmra.mxu0 %v11367
      %v11387 = vpop.f32.mrf.mxu0
      %v11388 = vadd.f32 %v11356, %v11387
      %v11389 = vpop.f32.mrf.mxu0
      %v11390 = vadd.f32 %v11358, %v11389
      %11391 = vmatmul.bf16.gmra.mxu0 %v11370
      %v11392 = vpop.f32.mrf.mxu0
      %v11393 = vpop.f32.mrf.mxu0
      %11394 = vdwg.mxu0
      %s11395 = scalar_lea.vmem %s65, 4
      %v11396 = vld [vmem:[%s11395] sm:$0x3]
      %v11398 = vsel %vm1250, %v11324, 0
      %v11401 = vsel %vm1250, %v11327, 0
      %v11404 = vsel %vm1250, %v11330, 0
      %v11407 = vsel %vm1257, %v11396, 0
      %11409 = vmatpush.bf16.msra.mxu0 0
      %11410 = vmatpush.bf16.msra.mxu0 0
      %11411 = vmatpush.bf16.msra.mxu0 0
      %11412 = vmatpush.bf16.msra.mxu0 0
      %11413 = vmatpush.bf16.msra.mxu0 0
      %11414 = vmatpush.bf16.msra.mxu0 0
      %11415 = vmatpush.bf16.msra.mxu0 0
      %11416 = vmatpush.bf16.msra.mxu0 %v11407
      %11417 = vmatmul.bf16.gmra.mxu0 %v11398
      %v11418 = vpop.f32.mrf.mxu0
      %v11419 = vpop.f32.mrf.mxu0
      %11420 = vmatmul.bf16.gmra.mxu0 %v11401
      %v11421 = vpop.f32.mrf.mxu0
      %v11422 = vadd.f32 0.0, %v11421
      %v11423 = vpop.f32.mrf.mxu0
      %v11424 = vadd.f32 0.0, %v11423
      %11425 = vmatmul.bf16.gmra.mxu0 %v11404
      %v11426 = vpop.f32.mrf.mxu0
      %v11427 = vpop.f32.mrf.mxu0
      %11428 = vdwg.mxu0
      %v11429 = vadd.f32 %v11388, %v11422
      %v11430 = vadd.f32 %v11390, %v11424
      %v11431 = vld [vmem:[%s67] sm:$0x1]
      %v11433 = vperm.slane %v11431, 0
      %v11435 = vadd.f32 %v11429, %v11433
      %v11436 = vadd.f32 %v11430, %v11433
      %11437 = vst.msk [vmem:[%s1148] sm:$0xff] %vm1250, %v11435
      %11438 = vst.msk [vmem:[%s1148 + $0x8] sm:$0xff] %vm1250, %v11436
      %s11439 = smul.u32 2, %s85
      %p11440 = scmp.lt.s32.totalorder %s84, 1
      %s11441 = scalar_select %p11440, %s84, 1
      %p11442 = scmp.lt.s32.totalorder %s11439, 1
      %s11443 = scalar_select %p11442, %s11439, 1
      %s11444 = smul.addr %s11441, 2
      %s11445 = sadd.s32 %s11443, %s11444
      %s11446 = smul.addr %s11445, 8
      %s11447 = scalar_lea.vmem %s69, %s11446
      // Predicated region
      $region157: #{_lambda_.1} parent=155 // pred_check
        %p11448 = pneg %p847
      $region158: #{_lambda_.1} parent=155 // pred_check_branch
        %11450 = sbr.rel (%p11448) target = $region160
      $region159: #{_lambda_.1} parent=155 // pred_region
        %s11451 = smul.u32 2, %s85
      $region160: #{_lambda_.1} parent=155 // pred_fallthru
        _
    $region156: #{_lambda_.1} parent=5 // pred_fallthru
      _
    %p11452 = scmp.le.s32.totalorder 2, %s75
    // Predicated region
    $region161: #{_lambda_.1} parent=5 // pred_check
      %p11453 = pneg %p11452
    $region162: #{_lambda_.1} parent=5 // pred_check_branch
      %11455 = sbr.rel (%p11453) target = $region164
    $region163: #{_lambda_.1} parent=5 // pred_region
      %s11456 = ssub.s32 %s75, 2
      // Predicated region
      $region165: #{_lambda_.1} parent=163 // pred_check
        %p11457 = pneg %p853
      $region166: #{_lambda_.1} parent=163 // pred_check_branch
        %11459 = sbr.rel (%p11457) target = $region168
      $region167: #{_lambda_.1} parent=163 // pred_region
        %s11460 = smul.u32 2, %s87
        %p11461 = scmp.lt.s32.totalorder %s86, 1
        %s11462 = scalar_select %p11461, %s86, 1
        %p11463 = scmp.lt.s32.totalorder %s11460, 1
        %s11464 = scalar_select %p11463, %s11460, 1
        %s11465 = smul.addr %s11462, 2
        %s11466 = sadd.s32 %s11464, %s11465
        %s11467 = smul.addr %s11466, 8
        %s11468 = scalar_lea.vmem %s69, %s11467
      $region168: #{_lambda_.1} parent=163 // pred_fallthru
        _
    $region164: #{_lambda_.1} parent=5 // pred_fallthru
      _
  $region6: #{_lambda_.1} parent=0 // loop_footer
    %s79 = sadd.s32 1, %s75
  $region7: #{_lambda_.1} parent=0 // loop_footer_branch
    %74 = sbr.rel target = $region3
  $region8: #{_lambda_.1} parent=0 // loop_exit
    _

</llo_original>
